<compile_context>
chip_gen: v6e
topology: v6e:2x2x1
jax: 0.10.0
libtpu: 0.0.40
codegen_flags: <defaults>
</compile_context>

<pallas_src>
import functools
import math

import jax
import jax.numpy as jnp
from jax import lax
from jax.experimental import pallas as pl
from jax.experimental.pallas import tpu as pltpu


_MXU_DTYPE = jnp.bfloat16          # MXU input dtype for projections/FFN (f32 accum kept)

_VMEM_LIMIT_CACHE = None


def _vmem_limit():
    """32 MiB on v7x (64 MiB physical), ~64 MiB on v5e/v6e (128 MiB physical)."""
    global _VMEM_LIMIT_CACHE
    if _VMEM_LIMIT_CACHE is None:
        cap = 64 * 1024 * 1024
        try:
            info = pltpu.get_tpu_info()
            cap = int(getattr(info, "vmem_capacity_bytes", cap))
        except Exception:
            pass
        _VMEM_LIMIT_CACHE = max(32 * 1024 * 1024, min(100 * 1024 * 1024, cap // 2))
    return _VMEM_LIMIT_CACHE


def _round_up(x, m):
    return ((x + m - 1) // m) * m


def _pick_tile(total, pref, unit):
    """Largest multiple of `unit` that divides `total` and is <= pref."""
    best = unit
    t = unit
    cap = min(pref, total)
    while t <= cap:
        if total % t == 0:
            best = t
        t += unit
    return best


def _pick_seq_tile(L, pref=64):
    Lp = _round_up(L, 8)
    tl = _pick_tile(Lp, pref, 8)
    if tl < min(pref, 32) and L > 2 * pref:
        Lp = _round_up(L, pref)
        tl = pref
    return Lp, tl


# ----------------------- in-kernel math helpers -----------------------

def _sigmoid(x):
    # exp + approximate reciprocal both on the EUP -> frees VALU slots.
    return pl.reciprocal(1.0 + jnp.exp(-x), approx=True)


def _gelu_tanh(x):
    # TODO(synk): nn.GELU() default is the exact erf form; tanh approximation used
    # for robust Mosaic lowering.
    c = math.sqrt(2.0 / math.pi)
    return 0.5 * x * (1.0 + jnp.tanh(c * (x + 0.044715 * x * x * x)))


def _softplus(x):
    return jnp.maximum(x, 0.0) + jnp.log(1.0 + jnp.exp(-jnp.abs(x)))


def _apply_act(y, act):
    if act == "gelu":
        return _gelu_tanh(y)
    if act == "silu":
        return y * _sigmoid(y)
    if act == "softplus":
        return _softplus(y)
    return y


# ----------------------- tiled linear (bf16 MXU, f32 accum, fused bias/act) -----------------------

def _linear_kernel(*refs, act, has_bias):
    if has_bias:
        x_ref, w_ref, b_ref, o_ref, acc_ref = refs
    else:
        x_ref, w_ref, o_ref, acc_ref = refs
        b_ref = None

    k = pl.program_id(2)

    @pl.when(k == 0)
    def _():
        acc_ref[...] = jnp.zeros_like(acc_ref)

    acc_ref[...] += jnp.dot(x_ref[...].astype(w_ref.dtype), w_ref[...],
                            preferred_element_type=jnp.float32)

    @pl.when(k == pl.num_programs(2) - 1)
    def _():
        y = acc_ref[...]
        if b_ref is not None:
            y = y + b_ref[...]
        o_ref[...] = _apply_act(y, act)


def pallas_linear(x, w, b=None, act=None, *, tm_pref=256, tn_pref=256, tk_pref=512):
    """y = act(x @ w (+ b)); x:(M,K) f32, w:(K,N) pre-padded bf16, b:(1,N) f32 or None."""
    M, K = x.shape
    Kw, N = w.shape
    assert K == Kw and K % 128 == 0 and N % 128 == 0, (x.shape, w.shape)

    Mp = _round_up(M, 8)
    tm = _pick_tile(Mp, tm_pref, 8)
    if tm < 64 and Mp > 512:                  # avoid a sea of tiny row tiles
        Mp = _round_up(M, tm_pref)
        tm = tm_pref
    if Mp != M:
        x = jnp.pad(x, ((0, Mp - M), (0, 0)))

    tn = _pick_tile(N, tn_pref, 128)
    tk = _pick_tile(K, tk_pref, 128)

    in_specs = [pl.BlockSpec((tm, tk), lambda i, j, k: (i, k)),
                pl.BlockSpec((tk, tn), lambda i, j, k: (k, j))]
    args = [x, w]
    has_bias = b is not None
    if has_bias:
        in_specs.append(pl.BlockSpec((1, tn), lambda i, j, k: (0, j)))
        args.append(b)

    out = pl.pallas_call(
        functools.partial(_linear_kernel, act=act, has_bias=has_bias),
        grid=(Mp // tm, N // tn, K // tk),
        in_specs=in_specs,
        out_specs=pl.BlockSpec((tm, tn), lambda i, j, k: (i, j)),
        out_shape=jax.ShapeDtypeStruct((Mp, N), jnp.float32),
        scratch_shapes=[pltpu.VMEM((tm, tn), jnp.float32)],
        compiler_params=pltpu.CompilerParams(
            dimension_semantics=("parallel", "parallel", "arbitrary"),
            vmem_limit_bytes=_vmem_limit()),
    )(*args)
    return out[:M] if Mp != M else out


# ----------------------- fused linear + LayerNorm + residual (BiMambaBlock tail) -----------------------

def _linear_ln_residual_kernel(x_ref, w_ref, b_ref, g_ref, bt_ref, r_ref,
                               o_ref, acc_ref, *, eps, n_valid):
    k = pl.program_id(1)

    @pl.when(k == 0)
    def _():
        acc_ref[...] = jnp.zeros_like(acc_ref)

    acc_ref[...] += jnp.dot(x_ref[...].astype(w_ref.dtype), w_ref[...],
                            preferred_element_type=jnp.float32)

    @pl.when(k == pl.num_programs(1) - 1)
    def _():
        y = acc_ref[...] + b_ref[...]
        # LayerNorm over the valid (unpadded) feature columns only.
        col = lax.broadcasted_iota(jnp.int32, y.shape, 1)
        mask = col < n_valid
        inv_n = 1.0 / float(n_valid)
        yv = jnp.where(mask, y, 0.0)
        mu = jnp.sum(yv, axis=-1, keepdims=True) * inv_n
        xc = jnp.where(mask, y - mu, 0.0)
        var = jnp.sum(xc * xc, axis=-1, keepdims=True) * inv_n
        ln = xc * lax.rsqrt(var + eps) * g_ref[...] + bt_ref[...]
        o_ref[...] = r_ref[...] + ln


def pallas_linear_ln_residual(x, w, b, gamma, beta, resid, *, n_valid, eps=1e-5,
                              tm_pref=256, tk_pref=512):
    """out = resid + LayerNorm(x @ w + b) -- fused FF2 + norm2 + residual."""
    M, K = x.shape
    N = w.shape[1]
    Mp = _round_up(M, 8)
    tm = _pick_tile(Mp, tm_pref, 8)
    if tm < 64 and Mp > 512:
        Mp = _round_up(M, tm_pref)
        tm = tm_pref
    if Mp != M:
        x = jnp.pad(x, ((0, Mp - M), (0, 0)))
        resid = jnp.pad(resid, ((0, Mp - M), (0, 0)))
    tk = _pick_tile(K, tk_pref, 128)

    out = pl.pallas_call(
        functools.partial(_linear_ln_residual_kernel, eps=eps, n_valid=n_valid),
        grid=(Mp // tm, K // tk),
        in_specs=[
            pl.BlockSpec((tm, tk), lambda i, k: (i, k)),
            pl.BlockSpec((tk, N), lambda i, k: (k, 0)),
            pl.BlockSpec((1, N), lambda i, k: (0, 0)),
            pl.BlockSpec((1, N), lambda i, k: (0, 0)),
            pl.BlockSpec((1, N), lambda i, k: (0, 0)),
            pl.BlockSpec((tm, N), lambda i, k: (i, 0)),
        ],
        out_specs=pl.BlockSpec((tm, N), lambda i, k: (i, 0)),
        out_shape=jax.ShapeDtypeStruct((Mp, N), jnp.float32),
        scratch_shapes=[pltpu.VMEM((tm, N), jnp.float32)],
        compiler_params=pltpu.CompilerParams(
            dimension_semantics=("parallel", "arbitrary"),
            vmem_limit_bytes=_vmem_limit()),
    )(x, w, b, gamma, beta, resid)
    return out[:M] if Mp != M else out


# ----------------------- depthwise conv1d + SiLU (causal fwd, anti-causal bwd) -----------------------

def _conv_kernel(xcur_ref, xhalo_ref, w_ref, b_ref, o_ref, *, k_taps, tl, reverse):
    K = k_taps
    cur = xcur_ref[0]                         # (tl, C)  channels of the current L-tile
    halo = xhalo_ref[0]                       # (tl, C)  previous (fwd) / next (bwd) tile
    if reverse:
        # anti-causal: y[t] = sum_m w[K-1-m] * x[t+m]
        edge = pl.program_id(1) == pl.num_programs(1) - 1
        head = jnp.where(edge, 0.0, halo[:K - 1, :])
        win = jnp.concatenate([cur, head], axis=0)          # (tl+K-1, C)
        acc = win[0:tl, :] * w_ref[K - 1:K, :]
        for m in range(1, K):
            acc = acc + win[m:m + tl, :] * w_ref[K - 1 - m:K - m, :]
    else:
        # causal: y[t] = sum_j w[j] * x[t + j - (K-1)]
        edge = pl.program_id(1) == 0
        tail = jnp.where(edge, 0.0, halo[tl - (K - 1):, :])
        win = jnp.concatenate([tail, cur], axis=0)          # (tl+K-1, C)
        acc = win[K - 1:K - 1 + tl, :] * w_ref[K - 1:K, :]
        for j in range(K - 1):
            acc = acc + win[j:j + tl, :] * w_ref[j:j + 1, :]
    y = acc + b_ref[...]
    o_ref[0] = y * _sigmoid(y)


def pallas_conv_silu(xz3, w, b, d_inner_p, tl, reverse):
    """Depthwise conv over the first d_inner_p columns of xz3 (B, Lp, 2*d_inner_p)."""
    B, Lp, _ = xz3.shape
    nl = Lp // tl
    K = w.shape[0]

    def cur_map(bi, l):
        return (bi, l, 0)

    if reverse:
        def halo_map(bi, l):
            return (bi, jnp.minimum(l + 1, nl - 1), 0)
    else:
        def halo_map(bi, l):
            return (bi, jnp.maximum(l - 1, 0), 0)

    return pl.pallas_call(
        functools.partial(_conv_kernel, k_taps=K, tl=tl, reverse=reverse),
        grid=(B, nl),
        in_specs=[
            pl.BlockSpec((1, tl, d_inner_p), cur_map),
            pl.BlockSpec((1, tl, d_inner_p), halo_map),
            pl.BlockSpec((K, d_inner_p), lambda bi, l: (0, 0)),
            pl.BlockSpec((1, d_inner_p), lambda bi, l: (0, 0)),
        ],
        out_specs=pl.BlockSpec((1, tl, d_inner_p), cur_map),
        out_shape=jax.ShapeDtypeStruct((B, Lp, d_inner_p), jnp.float32),
        compiler_params=pltpu.CompilerParams(
            dimension_semantics=("parallel", "parallel"),
            vmem_limit_bytes=_vmem_limit()),
    )(xz3, xz3, w, b)


# ----------------------- streamed selective scan (Mamba SSM) -----------------------

def _scan_kernel(xc_ref, dtp_ref, z_ref, b_ref, c_ref, at_ref, dvec_ref, *rest,
                 tl, reverse, has_accum):
    if has_accum:
        acc_ref, y_ref, h_ref = rest
    else:
        acc_ref = None
        y_ref, h_ref = rest

    @pl.when(pl.program_id(2) == 0)
    def _():
        h_ref[...] = jnp.zeros_like(h_ref)          # new (batch, d-tile) -> reset state

    at = at_ref[...]                                # (n, d)  = A^T tile
    x = xc_ref[0]                                   # (tl, d)
    z = z_ref[0]                                    # (tl, d)
    dt = _softplus(dtp_ref[0])                      # fused dt_proj softplus
    bm = b_ref[0]                                   # (tl, n)
    cm = c_ref[0]                                   # (tl, n)
    bmT = jnp.transpose(bm)                         # (n, tl): one relayout per chunk
    dtx = dt * x                                    # (tl, d)

    # Sequential recurrence (general A); only (n, d) temporaries per step, no
    # (tl, n, d) materialization.  Backward direction iterates steps in reverse
    # and the chunk index_map reverses chunk order -> no data flips anywhere.
    h = h_ref[...]
    rows = [None] * tl
    order = range(tl - 1, -1, -1) if reverse else range(tl)
    for i in order:
        dA = jnp.exp(dt[i:i + 1, :] * at)           # (n, d)
        dBu = bmT[:, i:i + 1] * dtx[i:i + 1, :]     # (n, d)
        h = dA * h + dBu
        rows[i] = jnp.dot(cm[i:i + 1, :], h,        # (1, d) output contraction (MXU)
                          preferred_element_type=jnp.float32)
    h_ref[...] = h

    y = jnp.concatenate(rows, axis=0)               # (tl, d) in original time order
    y = (y + dvec_ref[...] * x) * (z * _sigmoid(z))  # D-skip + SiLU(z) gate, fused
    if acc_ref is not None:
        y = y + acc_ref[0]                          # fuse fwd+bwd sum (no extra pass)
    y_ref[0] = y                                     # single lane-dense store


def pallas_selective_scan(xc, dt_pre, bc, xz3, a_t, d_vec, *, tl, reverse, accum=None):
    """y = gate(SSM_scan(xc)); xc/dt_pre:(B,Lp,Di_p), bc:(B,Lp,2*Ns_p), z from xz3."""
    B, Lp, Di_p = xc.shape
    Ns_p = a_t.shape[0]
    nl = Lp // tl
    d_tile = _pick_tile(Di_p, 256, 128)
    nd = Di_p // d_tile
    z_off = Di_p // d_tile                           # z column-block offset inside xz3

    def lidx(l):
        return (nl - 1 - l) if reverse else l

    def dmap(b, d, l):
        return (b, lidx(l), d)

    def zmap(b, d, l):
        return (b, lidx(l), z_off + d)

    def bmap(b, d, l):
        return (b, lidx(l), 0)

    def cmap(b, d, l):
        return (b, lidx(l), 1)

    in_specs = [
        pl.BlockSpec((1, tl, d_tile), dmap),         # xc (post-conv, post-SiLU)
        pl.BlockSpec((1, tl, d_tile), dmap),         # dt (pre-softplus)
        pl.BlockSpec((1, tl, d_tile), zmap),         # z  (from in_proj output)
        pl.BlockSpec((1, tl, Ns_p), bmap),           # B
        pl.BlockSpec((1, tl, Ns_p), cmap),           # C
        pl.BlockSpec((Ns_p, d_tile), lambda b, d, l: (0, d)),   # A^T
        pl.BlockSpec((1, d_tile), lambda b, d, l: (0, d)),      # D
    ]
    args = [xc, dt_pre, xz3, bc, bc, a_t, d_vec]
    if accum is not None:
        in_specs.append(pl.BlockSpec((1, tl, d_tile), dmap))
        args.append(accum)

    return pl.pallas_call(
        functools.partial(_scan_kernel, tl=tl, reverse=reverse,
                          has_accum=accum is not None),
        grid=(B, nd, nl),
        in_specs=in_specs,
        out_specs=pl.BlockSpec((1, tl, d_tile), dmap),
        out_shape=jax.ShapeDtypeStruct((B, Lp, Di_p), jnp.float32),
        scratch_shapes=[pltpu.VMEM((Ns_p, d_tile), jnp.float32)],   # hidden-state carry
        compiler_params=pltpu.CompilerParams(
            dimension_semantics=("parallel", "parallel", "arbitrary"),
            vmem_limit_bytes=_vmem_limit()),
    )(*args)


# ----------------------- model glue (plain JAX between kernels) -----------------------

def mamba_bidir(x, mp, tl):
    """Both directions of the shared Mamba, flip-free; returns out_proj(y_fwd + y_bwd)."""
    B, Lp, Dm_p = x.shape
    Di_p = mp["dtc_w"].shape[1]
    M = B * Lp

    xz = pallas_linear(x.reshape(M, Dm_p), mp["in_proj_w"])          # (M, 2*Di_p), no bias
    xz3 = xz.reshape(B, Lp, 2 * Di_p)

    y_sum = None
    for reverse in (False, True):
        xc = pallas_conv_silu(xz3, mp["conv_w"], mp["conv_b"], Di_p, tl, reverse)
        xc2d = xc.reshape(M, Di_p)
        # x_proj(dt-part) and dt_proj folded into one matmul; softplus in the scan.
        dt_pre = pallas_linear(xc2d, mp["dtc_w"], mp["dtc_b"])
        bc = pallas_linear(xc2d, mp["bc_w"])                          # [B | C], no bias
        y_sum = pallas_selective_scan(
            xc, dt_pre.reshape(B, Lp, Di_p), bc.reshape(B, Lp, -1), xz3,
            mp["A_T"], mp["D"], tl=tl, reverse=reverse, accum=y_sum)

    out = pallas_linear(y_sum.reshape(M, Di_p), mp["out_proj_w"])     # no bias
    return out.reshape(B, Lp, Dm_p)


def bimamba_block(x, p, meta):
    B, L, Dm_p = x.shape
    Lp, tl = _pick_seq_tile(L)
    if Lp != L:
        x = jnp.pad(x, ((0, 0), (0, Lp - L), (0, 0)))
    y_cap = mamba_bidir(x, p["mamba"], tl)            # == mamba(x) + flip(mamba(flip(x)))

    y2d = y_cap.reshape(B * Lp, Dm_p)
    hff = pallas_linear(y2d, p["ff1_w"], p["ff1_b"], act="gelu")
    out2d = pallas_linear_ln_residual(hff, p["ff2_w"], p["ff2_b"],
                                      p["norm2_g"], p["norm2_b"], y2d,
                                      n_valid=meta["d_model"])
    out = out2d.reshape(B, Lp, Dm_p)
    return out[:, :L, :] if Lp != L else out


def full_model_forward(x, params, meta):
    """FullModelMambaOffset forward (mamba_type='bi mamba').  x: (B, L, input_dim)."""
    B, L, in_dim = x.shape
    In_p, Dm_p = params["embed_w"].shape
    if In_p != in_dim:
        x = jnp.pad(x, ((0, 0), (0, 0), (0, In_p - in_dim)))
    h = pallas_linear(x.reshape(B * L, In_p), params["embed_w"], params["embed_b"])
    h = h.reshape(B, L, Dm_p)
    for bp in params["blocks"]:
        h = bimamba_block(h, bp, meta)
    last = h[:, L - 1, :]
    out = pallas_linear(last, params["head_w"], params["head_b"])
    return out[:, :meta["prediction_dim"]]


# ----------------------- deterministic parameter init (pre-padded, pre-cast) -----------------------

def init_params(key, input_dim, embedding_dim, num_blocks, prediction_dim):
    d_model = embedding_dim
    d_state = embedding_dim            # Mamba(d_model, n_state) -> d_state = embedding_dim
    d_inner = 2 * d_model              # expand = 2
    dt_rank = max(1, math.ceil(d_model / 16))
    d_conv = 4
    d_ff = 4 * d_model

    Dm = _round_up(d_model, 128)
    Ns = _round_up(d_state, 128)
    Di = _round_up(d_inner, 128)
    Dff = _round_up(d_ff, 128)
    In = _round_up(input_dim, 128)
    Pr = _round_up(prediction_dim, 128)

    keys = iter(jax.random.split(key, 16 + 32 * num_blocks))

    def dense(shape, scale=0.02):
        return scale * jax.random.normal(next(keys), shape, jnp.float32)

    def padw(w, kp, np_):
        k, n = w.shape
        return jnp.pad(w, ((0, kp - k), (0, np_ - n))).astype(_MXU_DTYPE)

    def padb(v, np_):
        return jnp.pad(v.reshape(1, -1).astype(jnp.float32), ((0, 0), (0, np_ - v.shape[0])))

    def mamba_params():
        w_in_x = dense((d_model, d_inner))
        w_in_z = dense((d_model, d_inner))
        in_proj_w = jnp.concatenate([padw(w_in_x, Dm, Di), padw(w_in_z, Dm, Di)], axis=1)

        conv_w = dense((d_conv, d_inner))                   # PyTorch (C,1,K) -> (K,C)
        conv_b = dense((d_inner,))

        wx_dt = dense((d_inner, dt_rank))
        wx_b = dense((d_inner, d_state))
        wx_c = dense((d_inner, d_state))
        dt_proj_w = dense((dt_rank, d_inner), scale=0.1)
        dt_proj_b = dense((d_inner,))
        dtc_w = wx_dt @ dt_proj_w                           # linear compose (exact)
        bc_w = jnp.concatenate([padw(wx_b, Di, Ns), padw(wx_c, Di, Ns)], axis=1)

        a = jnp.arange(1, d_state + 1, dtype=jnp.float32)   # A = -exp(A_log) init
        a_t = -jnp.broadcast_to(a[:, None], (d_state, d_inner))
        a_t = jnp.pad(a_t, ((0, Ns - d_state), (0, Di - d_inner)))

        d_vec = jnp.pad(jnp.ones((1, d_inner), jnp.float32), ((0, 0), (0, Di - d_inner)))

        return {
            "in_proj_w": in_proj_w,
            "conv_w": jnp.pad(conv_w, ((0, 0), (0, Di - d_inner))),
            "conv_b": padb(conv_b, Di),
            "dtc_w": padw(dtc_w, Di, Di),
            "dtc_b": padb(dt_proj_b, Di),
            "bc_w": bc_w,
            "A_T": a_t,
            "D": d_vec,
            "out_proj_w": padw(dense((d_inner, d_model)), Di, Dm),
        }

    blocks = []
    for _ in range(num_blocks):
        blocks.append({
            "mamba": mamba_params(),          # shared by both directions (as in PyTorch)
            "ff1_w": padw(dense((d_model, d_ff)), Dm, Dff),
            "ff1_b": padb(dense((d_ff,)), Dff),
            "ff2_w": padw(dense((d_ff, d_model)), Dff, Dm),
            "ff2_b": padb(dense((d_model,)), Dm),
            "norm2_g": padb(jnp.ones((d_model,), jnp.float32), Dm),
            "norm2_b": padb(jnp.zeros((d_model,), jnp.float32), Dm),
            # norm1 of BiMambaBlock is never used in forward -> omitted
        })

    params = {
        "embed_w": padw(dense((input_dim, d_model)), In, Dm),
        "embed_b": padb(dense((d_model,)), Dm),
        "blocks": blocks,
        "head_w": padw(dense((d_model, prediction_dim)), Dm, Pr),
        "head_b": padb(dense((prediction_dim,)), Pr),
        # vanilla_mamba_encoding_layer is unused for mamba_type='bi mamba' -> omitted
    }
    meta = {"d_model": d_model, "prediction_dim": prediction_dim}
    return params, meta


if __name__ == "__main__":
    input_dim, embedding_dim, num_blocks, prediction_dim = 4, 32, 2, 4
    batch, seq = 2, 8

    key = jax.random.PRNGKey(0)
    pkey, xkey = jax.random.split(key)
    params, meta = init_params(pkey, input_dim, embedding_dim, num_blocks, prediction_dim)
    x = jax.random.normal(xkey, (batch, seq, input_dim), jnp.float32)

    fwd = jax.jit(lambda xx: full_model_forward(xx, params, meta))
    out = jax.block_until_ready(fwd(x))
    assert out.shape == (batch, prediction_dim)
    assert bool(jnp.all(jnp.isfinite(out)))
    print("KERNEL_OK")
</pallas_src>

<mosaic_0001>
module attributes {stable_mosaic.version = 11 : i64} {
  func.func @_linear_kernel(%arg0: i32, %arg1: i32, %arg2: i32, %arg3: memref<16x128xf32, #tpu.memory_space<vmem>>, %arg4: memref<128x256xbf16, #tpu.memory_space<vmem>>, %arg5: memref<16x256xf32, #tpu.memory_space<vmem>>, %arg6: memref<16x256xf32, #tpu.memory_space<vmem>>) attributes {dimension_semantics = [#tpu.dimension_semantics<parallel>, #tpu.dimension_semantics<parallel>, #tpu.dimension_semantics<arbitrary>], iteration_bounds = array<i64: 1, 1, 1>, scalar_prefetch = 0 : i64, scratch_operands = 1 : i64, tpu.core_type = #tpu.core_type<tc>, window_params = [{transform_indices = @transform_0, window_bounds = array<i64: 16, 128>}, {transform_indices = @transform_1, window_bounds = array<i64: 128, 256>}, {transform_indices = @transform_2, window_bounds = array<i64: 16, 256>}]} {
    %c0_i32 = arith.constant 0 : i32
    %0 = arith.cmpi eq, %arg2, %c0_i32 : i32
    %1 = arith.extui %0 : i1 to i32
    %c0_i32_0 = arith.constant 0 : i32
    %2 = arith.cmpi ne, %1, %c0_i32_0 : i32
    scf.if %2 {
      %cst_10 = arith.constant 0.000000e+00 : f32
      %13 = vector.broadcast %cst_10 : f32 to vector<16x256xf32>
      %c0_11 = arith.constant 0 : index
      %c0_12 = arith.constant 0 : index
      %14 = vector.load %arg6[%c0_11, %c0_12] : memref<16x256xf32, #tpu.memory_space<vmem>>, vector<16x256xf32>
      tpu.vector_store %arg6[%c0_11, %c0_12], %13 {strides = array<i32>} : memref<16x256xf32, #tpu.memory_space<vmem>>, vector<16x256xf32>,
    } else {
    }
    %c0 = arith.constant 0 : index
    %c0_1 = arith.constant 0 : index
    %3 = vector.load %arg6[%c0, %c0_1] : memref<16x256xf32, #tpu.memory_space<vmem>>, vector<16x256xf32>
    %c0_2 = arith.constant 0 : index
    %c0_3 = arith.constant 0 : index
    %4 = vector.load %arg3[%c0_2, %c0_3] : memref<16x128xf32, #tpu.memory_space<vmem>>, vector<16x128xf32>
    %5 = arith.truncf %4 : vector<16x128xf32> to vector<16x128xbf16>
    %c0_4 = arith.constant 0 : index
    %c0_5 = arith.constant 0 : index
    %6 = vector.load %arg4[%c0_4, %c0_5] : memref<128x256xbf16, #tpu.memory_space<vmem>>, vector<128x256xbf16>
    %cst = arith.constant dense<0.000000e+00> : vector<16x256xf32>
    %7 = tpu.matmul %5, %6, %cst {dimension_numbers = #tpu.dot_dimension_numbers<[1], [0], [0], [1], [0, 0, 1, 1], [], []>} : vector<16x128xbf16>, vector<128x256xbf16>, vector<16x256xf32> -> vector<16x256xf32>
    %8 = arith.addf %3, %7 : vector<16x256xf32>
    %c0_6 = arith.constant 0 : index
    %c0_7 = arith.constant 0 : index
    %9 = vector.load %arg6[%c0_6, %c0_7] : memref<16x256xf32, #tpu.memory_space<vmem>>, vector<16x256xf32>
    tpu.vector_store %arg6[%c0_6, %c0_7], %8 {strides = array<i32>} : memref<16x256xf32, #tpu.memory_space<vmem>>, vector<16x256xf32>,
    %c0_i32_8 = arith.constant 0 : i32
    %10 = arith.cmpi eq, %arg2, %c0_i32_8 : i32
    %11 = arith.extui %10 : i1 to i32
    %c0_i32_9 = arith.constant 0 : i32
    %12 = arith.cmpi ne, %11, %c0_i32_9 : i32
    scf.if %12 {
      %c0_10 = arith.constant 0 : index
      %c0_11 = arith.constant 0 : index
      %13 = vector.load %arg6[%c0_10, %c0_11] : memref<16x256xf32, #tpu.memory_space<vmem>>, vector<16x256xf32>
      %c0_12 = arith.constant 0 : index
      %c0_13 = arith.constant 0 : index
      %14 = vector.load %arg5[%c0_12, %c0_13] : memref<16x256xf32, #tpu.memory_space<vmem>>, vector<16x256xf32>
      tpu.vector_store %arg5[%c0_12, %c0_13], %13 {strides = array<i32>} : memref<16x256xf32, #tpu.memory_space<vmem>>, vector<16x256xf32>,
    } else {
    }
    return
  }
  func.func @transform_0(%arg0: i32, %arg1: i32, %arg2: i32) -> (i32, i32) {
    %c0_i32 = arith.constant 0 : i32
    return %arg0, %arg2 : i32, i32
  }
  func.func @transform_1(%arg0: i32, %arg1: i32, %arg2: i32) -> (i32, i32) {
    %c0_i32 = arith.constant 0 : i32
    return %arg2, %arg1 : i32, i32
  }
  func.func @transform_2(%arg0: i32, %arg1: i32, %arg2: i32) -> (i32, i32) {
    %c0_i32 = arith.constant 0 : i32
    return %arg0, %arg1 : i32, i32
  }
}

module attributes {stable_mosaic.version = 11 : i64} {
  func.func @_linear_kernel(%arg0: i32, %arg1: i32, %arg2: i32, %arg3: memref<16x128xf32, #tpu.memory_space<vmem>>, %arg4: memref<128x128xbf16, #tpu.memory_space<vmem>>, %arg5: memref<1x128xf32, #tpu.memory_space<vmem>>, %arg6: memref<16x128xf32, #tpu.memory_space<vmem>>, %arg7: memref<16x128xf32, #tpu.memory_space<vmem>>) attributes {dimension_semantics = [#tpu.dimension_semantics<parallel>, #tpu.dimension_semantics<parallel>, #tpu.dimension_semantics<arbitrary>], iteration_bounds = array<i64: 1, 1, 1>, scalar_prefetch = 0 : i64, scratch_operands = 1 : i64, tpu.core_type = #tpu.core_type<tc>, window_params = [{transform_indices = @transform_0, window_bounds = array<i64: 16, 128>}, {transform_indices = @transform_1, window_bounds = array<i64: 128, 128>}, {transform_indices = @transform_2, window_bounds = array<i64: 1, 128>}, {transform_indices = @transform_3, window_bounds = array<i64: 16, 128>}]} {
    %c0_i32 = arith.constant 0 : i32
    %0 = arith.cmpi eq, %arg2, %c0_i32 : i32
    %1 = arith.extui %0 : i1 to i32
    %c0_i32_0 = arith.constant 0 : i32
    %2 = arith.cmpi ne, %1, %c0_i32_0 : i32
    scf.if %2 {
      %cst_10 = arith.constant 0.000000e+00 : f32
      %13 = vector.broadcast %cst_10 : f32 to vector<16x128xf32>
      %c0_11 = arith.constant 0 : index
      %c0_12 = arith.constant 0 : index
      %14 = vector.load %arg7[%c0_11, %c0_12] : memref<16x128xf32, #tpu.memory_space<vmem>>, vector<16x128xf32>
      tpu.vector_store %arg7[%c0_11, %c0_12], %13 {strides = array<i32>} : memref<16x128xf32, #tpu.memory_space<vmem>>, vector<16x128xf32>,
    } else {
    }
    %c0 = arith.constant 0 : index
    %c0_1 = arith.constant 0 : index
    %3 = vector.load %arg7[%c0, %c0_1] : memref<16x128xf32, #tpu.memory_space<vmem>>, vector<16x128xf32>
    %c0_2 = arith.constant 0 : index
    %c0_3 = arith.constant 0 : index
    %4 = vector.load %arg3[%c0_2, %c0_3] : memref<16x128xf32, #tpu.memory_space<vmem>>, vector<16x128xf32>
    %5 = arith.truncf %4 : vector<16x128xf32> to vector<16x128xbf16>
    %c0_4 = arith.constant 0 : index
    %c0_5 = arith.constant 0 : index
    %6 = vector.load %arg4[%c0_4, %c0_5] : memref<128x128xbf16, #tpu.memory_space<vmem>>, vector<128x128xbf16>
    %cst = arith.constant dense<0.000000e+00> : vector<16x128xf32>
    %7 = tpu.matmul %5, %6, %cst {dimension_numbers = #tpu.dot_dimension_numbers<[1], [0], [0], [1], [0, 0, 1, 1], [], []>} : vector<16x128xbf16>, vector<128x128xbf16>, vector<16x128xf32> -> vector<16x128xf32>
    %8 = arith.addf %3, %7 : vector<16x128xf32>
    %c0_6 = arith.constant 0 : index
    %c0_7 = arith.constant 0 : index
    %9 = vector.load %arg7[%c0_6, %c0_7] : memref<16x128xf32, #tpu.memory_space<vmem>>, vector<16x128xf32>
    tpu.vector_store %arg7[%c0_6, %c0_7], %8 {strides = array<i32>} : memref<16x128xf32, #tpu.memory_space<vmem>>, vector<16x128xf32>,
    %c0_i32_8 = arith.constant 0 : i32
    %10 = arith.cmpi eq, %arg2, %c0_i32_8 : i32
    %11 = arith.extui %10 : i1 to i32
    %c0_i32_9 = arith.constant 0 : i32
    %12 = arith.cmpi ne, %11, %c0_i32_9 : i32
    scf.if %12 {
      %c0_10 = arith.constant 0 : index
      %c0_11 = arith.constant 0 : index
      %13 = vector.load %arg7[%c0_10, %c0_11] : memref<16x128xf32, #tpu.memory_space<vmem>>, vector<16x128xf32>
      %c0_12 = arith.constant 0 : index
      %c0_13 = arith.constant 0 : index
      %14 = vector.load %arg5[%c0_12, %c0_13] : memref<1x128xf32, #tpu.memory_space<vmem>>, vector<1x128xf32>
      %15 = vector.broadcast %14 : vector<1x128xf32> to vector<16x128xf32>
      %16 = arith.addf %13, %15 : vector<16x128xf32>
      %c0_14 = arith.constant 0 : index
      %c0_15 = arith.constant 0 : index
      %17 = vector.load %arg6[%c0_14, %c0_15] : memref<16x128xf32, #tpu.memory_space<vmem>>, vector<16x128xf32>
      tpu.vector_store %arg6[%c0_14, %c0_15], %16 {strides = array<i32>} : memref<16x128xf32, #tpu.memory_space<vmem>>, vector<16x128xf32>,
    } else {
    }
    return
  }
  func.func @transform_0(%arg0: i32, %arg1: i32, %arg2: i32) -> (i32, i32) {
    %c0_i32 = arith.constant 0 : i32
    return %arg0, %arg2 : i32, i32
  }
  func.func @transform_1(%arg0: i32, %arg1: i32, %arg2: i32) -> (i32, i32) {
    %c0_i32 = arith.constant 0 : i32
    return %arg2, %arg1 : i32, i32
  }
  func.func @transform_2(%arg0: i32, %arg1: i32, %arg2: i32) -> (i32, i32) {
    %c0_i32 = arith.constant 0 : i32
    %c0_i32_0 = arith.constant 0 : i32
    return %c0_i32, %arg1 : i32, i32
  }
  func.func @transform_3(%arg0: i32, %arg1: i32, %arg2: i32) -> (i32, i32) {
    %c0_i32 = arith.constant 0 : i32
    return %arg0, %arg1 : i32, i32
  }
}

module attributes {stable_mosaic.version = 11 : i64} {
  func.func @_conv_kernel(%arg0: i32, %arg1: i32, %arg2: memref<1x8x128xf32, #tpu.memory_space<vmem>>, %arg3: memref<1x8x128xf32, #tpu.memory_space<vmem>>, %arg4: memref<4x128xf32, #tpu.memory_space<vmem>>, %arg5: memref<1x128xf32, #tpu.memory_space<vmem>>, %arg6: memref<1x8x128xf32, #tpu.memory_space<vmem>>) attributes {dimension_semantics = [#tpu.dimension_semantics<parallel>, #tpu.dimension_semantics<parallel>], iteration_bounds = array<i64: 2, 1>, scalar_prefetch = 0 : i64, scratch_operands = 0 : i64, tpu.core_type = #tpu.core_type<tc>, window_params = [{transform_indices = @transform_0, window_bounds = array<i64: 1, 8, 128>}, {transform_indices = @transform_1, window_bounds = array<i64: 1, 8, 128>}, {pipeline_mode = #tpu.pipeline_mode<synchronous>, transform_indices = @transform_2, window_bounds = array<i64: 4, 128>}, {pipeline_mode = #tpu.pipeline_mode<synchronous>, transform_indices = @transform_3, window_bounds = array<i64: 1, 128>}, {transform_indices = @transform_4, window_bounds = array<i64: 1, 8, 128>}]} {
    %c0 = arith.constant 0 : index
    %c0_0 = arith.constant 0 : index
    %c0_1 = arith.constant 0 : index
    %0 = vector.load %arg2[%c0, %c0_0, %c0_1] : memref<1x8x128xf32, #tpu.memory_space<vmem>>, vector<1x8x128xf32>
    %1 = vector.shape_cast %0 : vector<1x8x128xf32> to vector<8x128xf32>
    %c0_2 = arith.constant 0 : index
    %c0_3 = arith.constant 0 : index
    %c0_4 = arith.constant 0 : index
    %2 = vector.load %arg3[%c0_2, %c0_3, %c0_4] : memref<1x8x128xf32, #tpu.memory_space<vmem>>, vector<1x8x128xf32>
    %3 = vector.shape_cast %2 : vector<1x8x128xf32> to vector<8x128xf32>
    %c0_i32 = arith.constant 0 : i32
    %4 = arith.cmpi eq, %arg1, %c0_i32 : i32
    %5 = vector.extract_strided_slice %3 {offsets = [5, 0], sizes = [3, 128], strides = [1, 1]} : vector<8x128xf32> to vector<3x128xf32>
    %cst = arith.constant 0.000000e+00 : f32
    %6 = vector.broadcast %cst : f32 to vector<3x128xf32>
    %7 = arith.select %4, %6, %5 : vector<3x128xf32>
    %8 = tpu.concatenate %7, %1 in 0 : vector<3x128xf32>, vector<8x128xf32> -> vector<11x128xf32>
    %9 = vector.extract_strided_slice %8 {offsets = [3, 0], sizes = [8, 128], strides = [1, 1]} : vector<11x128xf32> to vector<8x128xf32>
    %c3 = arith.constant 3 : index
    %c0_5 = arith.constant 0 : index
    %10 = vector.load %arg4[%c3, %c0_5] : memref<4x128xf32, #tpu.memory_space<vmem>>, vector<1x128xf32>
    %11 = vector.broadcast %10 : vector<1x128xf32> to vector<8x128xf32>
    %12 = arith.mulf %9, %11 : vector<8x128xf32>
    %13 = vector.extract_strided_slice %8 {offsets = [0, 0], sizes = [8, 128], strides = [1, 1]} : vector<11x128xf32> to vector<8x128xf32>
    %c0_6 = arith.constant 0 : index
    %c0_7 = arith.constant 0 : index
    %14 = vector.load %arg4[%c0_6, %c0_7] : memref<4x128xf32, #tpu.memory_space<vmem>>, vector<1x128xf32>
    %15 = vector.broadcast %14 : vector<1x128xf32> to vector<8x128xf32>
    %16 = arith.mulf %13, %15 : vector<8x128xf32>
    %17 = arith.addf %12, %16 : vector<8x128xf32>
    %18 = vector.extract_strided_slice %8 {offsets = [1, 0], sizes = [8, 128], strides = [1, 1]} : vector<11x128xf32> to vector<8x128xf32>
    %c1 = arith.constant 1 : index
    %c0_8 = arith.constant 0 : index
    %19 = vector.load %arg4[%c1, %c0_8] : memref<4x128xf32, #tpu.memory_space<vmem>>, vector<1x128xf32>
    %20 = vector.broadcast %19 : vector<1x128xf32> to vector<8x128xf32>
    %21 = arith.mulf %18, %20 : vector<8x128xf32>
    %22 = arith.addf %17, %21 : vector<8x128xf32>
    %23 = vector.extract_strided_slice %8 {offsets = [2, 0], sizes = [8, 128], strides = [1, 1]} : vector<11x128xf32> to vector<8x128xf32>
    %c2 = arith.constant 2 : index
    %c0_9 = arith.constant 0 : index
    %24 = vector.load %arg4[%c2, %c0_9] : memref<4x128xf32, #tpu.memory_space<vmem>>, vector<1x128xf32>
    %25 = vector.broadcast %24 : vector<1x128xf32> to vector<8x128xf32>
    %26 = arith.mulf %23, %25 : vector<8x128xf32>
    %27 = arith.addf %22, %26 : vector<8x128xf32>
    %c0_10 = arith.constant 0 : index
    %c0_11 = arith.constant 0 : index
    %28 = vector.load %arg5[%c0_10, %c0_11] : memref<1x128xf32, #tpu.memory_space<vmem>>, vector<1x128xf32>
    %29 = vector.broadcast %28 : vector<1x128xf32> to vector<8x128xf32>
    %30 = arith.addf %27, %29 : vector<8x128xf32>
    %cst_12 = arith.constant 0.000000e+00 : f32
    %31 = vector.broadcast %cst_12 : f32 to vector<8x128xf32>
    %32 = arith.subf %31, %30 : vector<8x128xf32>
    %33 = math.exp %32 : vector<8x128xf32>
    %cst_13 = arith.constant 1.000000e+00 : f32
    %34 = vector.broadcast %cst_13 : f32 to vector<8x128xf32>
    %35 = arith.addf %34, %33 : vector<8x128xf32>
    %36 = tpu.reciprocal %35 {approx = true} : vector<8x128xf32> -> vector<8x128xf32>
    %37 = arith.mulf %30, %36 : vector<8x128xf32>
    %c0_14 = arith.constant 0 : index
    %c0_15 = arith.constant 0 : index
    %c0_16 = arith.constant 0 : index
    %38 = vector.load %arg6[%c0_14, %c0_15, %c0_16] : memref<1x8x128xf32, #tpu.memory_space<vmem>>, vector<1x8x128xf32>
    %39 = vector.shape_cast %38 : vector<1x8x128xf32> to vector<8x128xf32>
    %40 = vector.shape_cast %37 : vector<8x128xf32> to vector<1x8x128xf32>
    tpu.vector_store %arg6[%c0_14, %c0_15, %c0_16], %40 {strides = array<i32>} : memref<1x8x128xf32, #tpu.memory_space<vmem>>, vector<1x8x128xf32>,
    return
  }
  func.func @transform_0(%arg0: i32, %arg1: i32) -> (i32, i32, i32) {
    %c0_i32 = arith.constant 0 : i32
    %c0_i32_0 = arith.constant 0 : i32
    return %arg0, %arg1, %c0_i32 : i32, i32, i32
  }
  func.func @transform_1(%arg0: i32, %arg1: i32) -> (i32, i32, i32) {
    %c1_i32 = arith.constant 1 : i32
    %0 = arith.subi %arg1, %c1_i32 : i32
    %c0_i32 = arith.constant 0 : i32
    %1 = arith.maxsi %0, %c0_i32 : i32
    %c0_i32_0 = arith.constant 0 : i32
    %c0_i32_1 = arith.constant 0 : i32
    return %arg0, %1, %c0_i32_0 : i32, i32, i32
  }
  func.func @transform_2(%arg0: i32, %arg1: i32) -> (i32, i32) {
    %c0_i32 = arith.constant 0 : i32
    %c0_i32_0 = arith.constant 0 : i32
    %c0_i32_1 = arith.constant 0 : i32
    return %c0_i32, %c0_i32_0 : i32, i32
  }
  func.func @transform_3(%arg0: i32, %arg1: i32) -> (i32, i32) {
    %c0_i32 = arith.constant 0 : i32
    %c0_i32_0 = arith.constant 0 : i32
    %c0_i32_1 = arith.constant 0 : i32
    return %c0_i32, %c0_i32_0 : i32, i32
  }
  func.func @transform_4(%arg0: i32, %arg1: i32) -> (i32, i32, i32) {
    %c0_i32 = arith.constant 0 : i32
    %c0_i32_0 = arith.constant 0 : i32
    return %arg0, %arg1, %c0_i32 : i32, i32, i32
  }
}

module attributes {stable_mosaic.version = 11 : i64} {
  func.func @_scan_kernel(%arg0: i32, %arg1: i32, %arg2: i32, %arg3: memref<1x8x128xf32, #tpu.memory_space<vmem>>, %arg4: memref<1x8x128xf32, #tpu.memory_space<vmem>>, %arg5: memref<1x8x128xf32, #tpu.memory_space<vmem>>, %arg6: memref<1x8x128xf32, #tpu.memory_space<vmem>>, %arg7: memref<1x8x128xf32, #tpu.memory_space<vmem>>, %arg8: memref<128x128xf32, #tpu.memory_space<vmem>>, %arg9: memref<1x128xf32, #tpu.memory_space<vmem>>, %arg10: memref<1x8x128xf32, #tpu.memory_space<vmem>>, %arg11: memref<128x128xf32, #tpu.memory_space<vmem>>) attributes {dimension_semantics = [#tpu.dimension_semantics<parallel>, #tpu.dimension_semantics<parallel>, #tpu.dimension_semantics<arbitrary>], iteration_bounds = array<i64: 2, 1, 1>, scalar_prefetch = 0 : i64, scratch_operands = 1 : i64, tpu.core_type = #tpu.core_type<tc>, window_params = [{transform_indices = @transform_0, window_bounds = array<i64: 1, 8, 128>}, {transform_indices = @transform_1, window_bounds = array<i64: 1, 8, 128>}, {transform_indices = @transform_2, window_bounds = array<i64: 1, 8, 128>}, {transform_indices = @transform_3, window_bounds = array<i64: 1, 8, 128>}, {transform_indices = @transform_4, window_bounds = array<i64: 1, 8, 128>}, {transform_indices = @transform_5, window_bounds = array<i64: 128, 128>}, {transform_indices = @transform_6, window_bounds = array<i64: 1, 128>}, {transform_indices = @transform_7, window_bounds = array<i64: 1, 8, 128>}]} {
    %c0_i32 = arith.constant 0 : i32
    %0 = arith.cmpi eq, %arg2, %c0_i32 : i32
    %1 = arith.extui %0 : i1 to i32
    %c0_i32_0 = arith.constant 0 : i32
    %2 = arith.cmpi ne, %1, %c0_i32_0 : i32
    scf.if %2 {
      %cst_38 = arith.constant 0.000000e+00 : f32
      %148 = vector.broadcast %cst_38 : f32 to vector<128x128xf32>
      %c0_39 = arith.constant 0 : index
      %c0_40 = arith.constant 0 : index
      %149 = vector.load %arg11[%c0_39, %c0_40] : memref<128x128xf32, #tpu.memory_space<vmem>>, vector<128x128xf32>
      tpu.vector_store %arg11[%c0_39, %c0_40], %148 {strides = array<i32>} : memref<128x128xf32, #tpu.memory_space<vmem>>, vector<128x128xf32>,
    } else {
    }
    %c0 = arith.constant 0 : index
    %c0_1 = arith.constant 0 : index
    %3 = vector.load %arg8[%c0, %c0_1] : memref<128x128xf32, #tpu.memory_space<vmem>>, vector<128x128xf32>
    %c0_2 = arith.constant 0 : index
    %c0_3 = arith.constant 0 : index
    %c0_4 = arith.constant 0 : index
    %4 = vector.load %arg3[%c0_2, %c0_3, %c0_4] : memref<1x8x128xf32, #tpu.memory_space<vmem>>, vector<1x8x128xf32>
    %5 = vector.shape_cast %4 : vector<1x8x128xf32> to vector<8x128xf32>
    %c0_5 = arith.constant 0 : index
    %c0_6 = arith.constant 0 : index
    %c0_7 = arith.constant 0 : index
    %6 = vector.load %arg5[%c0_5, %c0_6, %c0_7] : memref<1x8x128xf32, #tpu.memory_space<vmem>>, vector<1x8x128xf32>
    %7 = vector.shape_cast %6 : vector<1x8x128xf32> to vector<8x128xf32>
    %c0_8 = arith.constant 0 : index
    %c0_9 = arith.constant 0 : index
    %c0_10 = arith.constant 0 : index
    %8 = vector.load %arg4[%c0_8, %c0_9, %c0_10] : memref<1x8x128xf32, #tpu.memory_space<vmem>>, vector<1x8x128xf32>
    %9 = vector.shape_cast %8 : vector<1x8x128xf32> to vector<8x128xf32>
    %cst = arith.constant 0.000000e+00 : f32
    %10 = vector.broadcast %cst : f32 to vector<8x128xf32>
    %11 = arith.maximumf %9, %10 : vector<8x128xf32>
    %12 = math.absf %9 : vector<8x128xf32>
    %cst_11 = arith.constant 0.000000e+00 : f32
    %13 = vector.broadcast %cst_11 : f32 to vector<8x128xf32>
    %14 = arith.subf %13, %12 : vector<8x128xf32>
    %15 = math.exp %14 : vector<8x128xf32>
    %cst_12 = arith.constant 1.000000e+00 : f32
    %16 = vector.broadcast %cst_12 : f32 to vector<8x128xf32>
    %17 = arith.addf %16, %15 : vector<8x128xf32>
    %18 = math.log %17 : vector<8x128xf32>
    %19 = arith.addf %11, %18 : vector<8x128xf32>
    %c0_13 = arith.constant 0 : index
    %c0_14 = arith.constant 0 : index
    %c0_15 = arith.constant 0 : index
    %20 = vector.load %arg6[%c0_13, %c0_14, %c0_15] : memref<1x8x128xf32, #tpu.memory_space<vmem>>, vector<1x8x128xf32>
    %21 = vector.shape_cast %20 : vector<1x8x128xf32> to vector<8x128xf32>
    %c0_16 = arith.constant 0 : index
    %c0_17 = arith.constant 0 : index
    %c0_18 = arith.constant 0 : index
    %22 = vector.load %arg7[%c0_16, %c0_17, %c0_18] : memref<1x8x128xf32, #tpu.memory_space<vmem>>, vector<1x8x128xf32>
    %23 = vector.shape_cast %22 : vector<1x8x128xf32> to vector<8x128xf32>
    %24 = tpu.transpose %21, [1, 0] : vector<8x128xf32> -> vector<128x8xf32>
    %25 = arith.mulf %19, %5 : vector<8x128xf32>
    %c0_19 = arith.constant 0 : index
    %c0_20 = arith.constant 0 : index
    %26 = vector.load %arg11[%c0_19, %c0_20] : memref<128x128xf32, #tpu.memory_space<vmem>>, vector<128x128xf32>
    %27 = vector.extract_strided_slice %19 {offsets = [0, 0], sizes = [1, 128], strides = [1, 1]} : vector<8x128xf32> to vector<1x128xf32>
    %28 = vector.broadcast %27 : vector<1x128xf32> to vector<128x128xf32>
    %29 = arith.mulf %28, %3 : vector<128x128xf32>
    %30 = math.exp %29 : vector<128x128xf32>
    %31 = vector.extract_strided_slice %24 {offsets = [0, 0], sizes = [128, 1], strides = [1, 1]} : vector<128x8xf32> to vector<128x1xf32>
    %32 = vector.extract_strided_slice %25 {offsets = [0, 0], sizes = [1, 128], strides = [1, 1]} : vector<8x128xf32> to vector<1x128xf32>
    %33 = vector.broadcast %31 : vector<128x1xf32> to vector<128x128xf32>
    %34 = vector.broadcast %32 : vector<1x128xf32> to vector<128x128xf32>
    %35 = arith.mulf %33, %34 : vector<128x128xf32>
    %36 = arith.mulf %30, %26 : vector<128x128xf32>
    %37 = arith.addf %36, %35 : vector<128x128xf32>
    %38 = vector.extract_strided_slice %23 {offsets = [0, 0], sizes = [1, 128], strides = [1, 1]} : vector<8x128xf32> to vector<1x128xf32>
    %cst_21 = arith.constant dense<0.000000e+00> : vector<1x128xf32>
    %39 = tpu.matmul %38, %37, %cst_21 {dimension_numbers = #tpu.dot_dimension_numbers<[1], [0], [0], [1], [0, 0, 1, 1], [], []>} : vector<1x128xf32>, vector<128x128xf32>, vector<1x128xf32> -> vector<1x128xf32>
    %40 = vector.extract_strided_slice %19 {offsets = [1, 0], sizes = [1, 128], strides = [1, 1]} : vector<8x128xf32> to vector<1x128xf32>
    %41 = vector.broadcast %40 : vector<1x128xf32> to vector<128x128xf32>
    %42 = arith.mulf %41, %3 : vector<128x128xf32>
    %43 = math.exp %42 : vector<128x128xf32>
    %44 = vector.extract_strided_slice %24 {offsets = [0, 1], sizes = [128, 1], strides = [1, 1]} : vector<128x8xf32> to vector<128x1xf32>
    %45 = vector.extract_strided_slice %25 {offsets = [1, 0], sizes = [1, 128], strides = [1, 1]} : vector<8x128xf32> to vector<1x128xf32>
    %46 = vector.broadcast %44 : vector<128x1xf32> to vector<128x128xf32>
    %47 = vector.broadcast %45 : vector<1x128xf32> to vector<128x128xf32>
    %48 = arith.mulf %46, %47 : vector<128x128xf32>
    %49 = arith.mulf %43, %37 : vector<128x128xf32>
    %50 = arith.addf %49, %48 : vector<128x128xf32>
    %51 = vector.extract_strided_slice %23 {offsets = [1, 0], sizes = [1, 128], strides = [1, 1]} : vector<8x128xf32> to vector<1x128xf32>
    %cst_22 = arith.constant dense<0.000000e+00> : vector<1x128xf32>
    %52 = tpu.matmul %51, %50, %cst_22 {dimension_numbers = #tpu.dot_dimension_numbers<[1], [0], [0], [1], [0, 0, 1, 1], [], []>} : vector<1x128xf32>, vector<128x128xf32>, vector<1x128xf32> -> vector<1x128xf32>
    %53 = vector.extract_strided_slice %19 {offsets = [2, 0], sizes = [1, 128], strides = [1, 1]} : vector<8x128xf32> to vector<1x128xf32>
    %54 = vector.broadcast %53 : vector<1x128xf32> to vector<128x128xf32>
    %55 = arith.mulf %54, %3 : vector<128x128xf32>
    %56 = math.exp %55 : vector<128x128xf32>
    %57 = vector.extract_strided_slice %24 {offsets = [0, 2], sizes = [128, 1], strides = [1, 1]} : vector<128x8xf32> to vector<128x1xf32>
    %58 = vector.extract_strided_slice %25 {offsets = [2, 0], sizes = [1, 128], strides = [1, 1]} : vector<8x128xf32> to vector<1x128xf32>
    %59 = vector.broadcast %57 : vector<128x1xf32> to vector<128x128xf32>
    %60 = vector.broadcast %58 : vector<1x128xf32> to vector<128x128xf32>
    %61 = arith.mulf %59, %60 : vector<128x128xf32>
    %62 = arith.mulf %56, %50 : vector<128x128xf32>
    %63 = arith.addf %62, %61 : vector<128x128xf32>
    %64 = vector.extract_strided_slice %23 {offsets = [2, 0], sizes = [1, 128], strides = [1, 1]} : vector<8x128xf32> to vector<1x128xf32>
    %cst_23 = arith.constant dense<0.000000e+00> : vector<1x128xf32>
    %65 = tpu.matmul %64, %63, %cst_23 {dimension_numbers = #tpu.dot_dimension_numbers<[1], [0], [0], [1], [0, 0, 1, 1], [], []>} : vector<1x128xf32>, vector<128x128xf32>, vector<1x128xf32> -> vector<1x128xf32>
    %66 = vector.extract_strided_slice %19 {offsets = [3, 0], sizes = [1, 128], strides = [1, 1]} : vector<8x128xf32> to vector<1x128xf32>
    %67 = vector.broadcast %66 : vector<1x128xf32> to vector<128x128xf32>
    %68 = arith.mulf %67, %3 : vector<128x128xf32>
    %69 = math.exp %68 : vector<128x128xf32>
    %70 = vector.extract_strided_slice %24 {offsets = [0, 3], sizes = [128, 1], strides = [1, 1]} : vector<128x8xf32> to vector<128x1xf32>
    %71 = vector.extract_strided_slice %25 {offsets = [3, 0], sizes = [1, 128], strides = [1, 1]} : vector<8x128xf32> to vector<1x128xf32>
    %72 = vector.broadcast %70 : vector<128x1xf32> to vector<128x128xf32>
    %73 = vector.broadcast %71 : vector<1x128xf32> to vector<128x128xf32>
    %74 = arith.mulf %72, %73 : vector<128x128xf32>
    %75 = arith.mulf %69, %63 : vector<128x128xf32>
    %76 = arith.addf %75, %74 : vector<128x128xf32>
    %77 = vector.extract_strided_slice %23 {offsets = [3, 0], sizes = [1, 128], strides = [1, 1]} : vector<8x128xf32> to vector<1x128xf32>
    %cst_24 = arith.constant dense<0.000000e+00> : vector<1x128xf32>
    %78 = tpu.matmul %77, %76, %cst_24 {dimension_numbers = #tpu.dot_dimension_numbers<[1], [0], [0], [1], [0, 0, 1, 1], [], []>} : vector<1x128xf32>, vector<128x128xf32>, vector<1x128xf32> -> vector<1x128xf32>
    %79 = vector.extract_strided_slice %19 {offsets = [4, 0], sizes = [1, 128], strides = [1, 1]} : vector<8x128xf32> to vector<1x128xf32>
    %80 = vector.broadcast %79 : vector<1x128xf32> to vector<128x128xf32>
    %81 = arith.mulf %80, %3 : vector<128x128xf32>
    %82 = math.exp %81 : vector<128x128xf32>
    %83 = vector.extract_strided_slice %24 {offsets = [0, 4], sizes = [128, 1], strides = [1, 1]} : vector<128x8xf32> to vector<128x1xf32>
    %84 = vector.extract_strided_slice %25 {offsets = [4, 0], sizes = [1, 128], strides = [1, 1]} : vector<8x128xf32> to vector<1x128xf32>
    %85 = vector.broadcast %83 : vector<128x1xf32> to vector<128x128xf32>
    %86 = vector.broadcast %84 : vector<1x128xf32> to vector<128x128xf32>
    %87 = arith.mulf %85, %86 : vector<128x128xf32>
    %88 = arith.mulf %82, %76 : vector<128x128xf32>
    %89 = arith.addf %88, %87 : vector<128x128xf32>
    %90 = vector.extract_strided_slice %23 {offsets = [4, 0], sizes = [1, 128], strides = [1, 1]} : vector<8x128xf32> to vector<1x128xf32>
    %cst_25 = arith.constant dense<0.000000e+00> : vector<1x128xf32>
    %91 = tpu.matmul %90, %89, %cst_25 {dimension_numbers = #tpu.dot_dimension_numbers<[1], [0], [0], [1], [0, 0, 1, 1], [], []>} : vector<1x128xf32>, vector<128x128xf32>, vector<1x128xf32> -> vector<1x128xf32>
    %92 = vector.extract_strided_slice %19 {offsets = [5, 0], sizes = [1, 128], strides = [1, 1]} : vector<8x128xf32> to vector<1x128xf32>
    %93 = vector.broadcast %92 : vector<1x128xf32> to vector<128x128xf32>
    %94 = arith.mulf %93, %3 : vector<128x128xf32>
    %95 = math.exp %94 : vector<128x128xf32>
    %96 = vector.extract_strided_slice %24 {offsets = [0, 5], sizes = [128, 1], strides = [1, 1]} : vector<128x8xf32> to vector<128x1xf32>
    %97 = vector.extract_strided_slice %25 {offsets = [5, 0], sizes = [1, 128], strides = [1, 1]} : vector<8x128xf32> to vector<1x128xf32>
    %98 = vector.broadcast %96 : vector<128x1xf32> to vector<128x128xf32>
    %99 = vector.broadcast %97 : vector<1x128xf32> to vector<128x128xf32>
    %100 = arith.mulf %98, %99 : vector<128x128xf32>
    %101 = arith.mulf %95, %89 : vector<128x128xf32>
    %102 = arith.addf %101, %100 : vector<128x128xf32>
    %103 = vector.extract_strided_slice %23 {offsets = [5, 0], sizes = [1, 128], strides = [1, 1]} : vector<8x128xf32> to vector<1x128xf32>
    %cst_26 = arith.constant dense<0.000000e+00> : vector<1x128xf32>
    %104 = tpu.matmul %103, %102, %cst_26 {dimension_numbers = #tpu.dot_dimension_numbers<[1], [0], [0], [1], [0, 0, 1, 1], [], []>} : vector<1x128xf32>, vector<128x128xf32>, vector<1x128xf32> -> vector<1x128xf32>
    %105 = vector.extract_strided_slice %19 {offsets = [6, 0], sizes = [1, 128], strides = [1, 1]} : vector<8x128xf32> to vector<1x128xf32>
    %106 = vector.broadcast %105 : vector<1x128xf32> to vector<128x128xf32>
    %107 = arith.mulf %106, %3 : vector<128x128xf32>
    %108 = math.exp %107 : vector<128x128xf32>
    %109 = vector.extract_strided_slice %24 {offsets = [0, 6], sizes = [128, 1], strides = [1, 1]} : vector<128x8xf32> to vector<128x1xf32>
    %110 = vector.extract_strided_slice %25 {offsets = [6, 0], sizes = [1, 128], strides = [1, 1]} : vector<8x128xf32> to vector<1x128xf32>
    %111 = vector.broadcast %109 : vector<128x1xf32> to vector<128x128xf32>
    %112 = vector.broadcast %110 : vector<1x128xf32> to vector<128x128xf32>
    %113 = arith.mulf %111, %112 : vector<128x128xf32>
    %114 = arith.mulf %108, %102 : vector<128x128xf32>
    %115 = arith.addf %114, %113 : vector<128x128xf32>
    %116 = vector.extract_strided_slice %23 {offsets = [6, 0], sizes = [1, 128], strides = [1, 1]} : vector<8x128xf32> to vector<1x128xf32>
    %cst_27 = arith.constant dense<0.000000e+00> : vector<1x128xf32>
    %117 = tpu.matmul %116, %115, %cst_27 {dimension_numbers = #tpu.dot_dimension_numbers<[1], [0], [0], [1], [0, 0, 1, 1], [], []>} : vector<1x128xf32>, vector<128x128xf32>, vector<1x128xf32> -> vector<1x128xf32>
    %118 = vector.extract_strided_slice %19 {offsets = [7, 0], sizes = [1, 128], strides = [1, 1]} : vector<8x128xf32> to vector<1x128xf32>
    %119 = vector.broadcast %118 : vector<1x128xf32> to vector<128x128xf32>
    %120 = arith.mulf %119, %3 : vector<128x128xf32>
    %121 = math.exp %120 : vector<128x128xf32>
    %122 = vector.extract_strided_slice %24 {offsets = [0, 7], sizes = [128, 1], strides = [1, 1]} : vector<128x8xf32> to vector<128x1xf32>
    %123 = vector.extract_strided_slice %25 {offsets = [7, 0], sizes = [1, 128], strides = [1, 1]} : vector<8x128xf32> to vector<1x128xf32>
    %124 = vector.broadcast %122 : vector<128x1xf32> to vector<128x128xf32>
    %125 = vector.broadcast %123 : vector<1x128xf32> to vector<128x128xf32>
    %126 = arith.mulf %124, %125 : vector<128x128xf32>
    %127 = arith.mulf %121, %115 : vector<128x128xf32>
    %128 = arith.addf %127, %126 : vector<128x128xf32>
    %129 = vector.extract_strided_slice %23 {offsets = [7, 0], sizes = [1, 128], strides = [1, 1]} : vector<8x128xf32> to vector<1x128xf32>
    %cst_28 = arith.constant dense<0.000000e+00> : vector<1x128xf32>
    %130 = tpu.matmul %129, %128, %cst_28 {dimension_numbers = #tpu.dot_dimension_numbers<[1], [0], [0], [1], [0, 0, 1, 1], [], []>} : vector<1x128xf32>, vector<128x128xf32>, vector<1x128xf32> -> vector<1x128xf32>
    %c0_29 = arith.constant 0 : index
    %c0_30 = arith.constant 0 : index
    %131 = vector.load %arg11[%c0_29, %c0_30] : memref<128x128xf32, #tpu.memory_space<vmem>>, vector<128x128xf32>
    tpu.vector_store %arg11[%c0_29, %c0_30], %128 {strides = array<i32>} : memref<128x128xf32, #tpu.memory_space<vmem>>, vector<128x128xf32>,
    %132 = tpu.concatenate %39, %52, %65, %78, %91, %104, %117, %130 in 0 : vector<1x128xf32>, vector<1x128xf32>, vector<1x128xf32>, vector<1x128xf32>, vector<1x128xf32>, vector<1x128xf32>, vector<1x128xf32>, vector<1x128xf32> -> vector<8x128xf32>
    %c0_31 = arith.constant 0 : index
    %c0_32 = arith.constant 0 : index
    %133 = vector.load %arg9[%c0_31, %c0_32] : memref<1x128xf32, #tpu.memory_space<vmem>>, vector<1x128xf32>
    %134 = vector.broadcast %133 : vector<1x128xf32> to vector<8x128xf32>
    %135 = arith.mulf %134, %5 : vector<8x128xf32>
    %136 = arith.addf %132, %135 : vector<8x128xf32>
    %cst_33 = arith.constant 0.000000e+00 : f32
    %137 = vector.broadcast %cst_33 : f32 to vector<8x128xf32>
    %138 = arith.subf %137, %7 : vector<8x128xf32>
    %139 = math.exp %138 : vector<8x128xf32>
    %cst_34 = arith.constant 1.000000e+00 : f32
    %140 = vector.broadcast %cst_34 : f32 to vector<8x128xf32>
    %141 = arith.addf %140, %139 : vector<8x128xf32>
    %142 = tpu.reciprocal %141 {approx = true} : vector<8x128xf32> -> vector<8x128xf32>
    %143 = arith.mulf %7, %142 : vector<8x128xf32>
    %144 = arith.mulf %136, %143 : vector<8x128xf32>
    %c0_35 = arith.constant 0 : index
    %c0_36 = arith.constant 0 : index
    %c0_37 = arith.constant 0 : index
    %145 = vector.load %arg10[%c0_35, %c0_36, %c0_37] : memref<1x8x128xf32, #tpu.memory_space<vmem>>, vector<1x8x128xf32>
    %146 = vector.shape_cast %145 : vector<1x8x128xf32> to vector<8x128xf32>
    %147 = vector.shape_cast %144 : vector<8x128xf32> to vector<1x8x128xf32>
    tpu.vector_store %arg10[%c0_35, %c0_36, %c0_37], %147 {strides = array<i32>} : memref<1x8x128xf32, #tpu.memory_space<vmem>>, vector<1x8x128xf32>,
    return
  }
  func.func @transform_0(%arg0: i32, %arg1: i32, %arg2: i32) -> (i32, i32, i32) {
    %c0_i32 = arith.constant 0 : i32
    return %arg0, %arg2, %arg1 : i32, i32, i32
  }
  func.func @transform_1(%arg0: i32, %arg1: i32, %arg2: i32) -> (i32, i32, i32) {
    %c0_i32 = arith.constant 0 : i32
    return %arg0, %arg2, %arg1 : i32, i32, i32
  }
  func.func @transform_2(%arg0: i32, %arg1: i32, %arg2: i32) -> (i32, i32, i32) {
    %c1_i32 = arith.constant 1 : i32
    %0 = arith.addi %c1_i32, %arg1 : i32
    %c0_i32 = arith.constant 0 : i32
    return %arg0, %arg2, %0 : i32, i32, i32
  }
  func.func @transform_3(%arg0: i32, %arg1: i32, %arg2: i32) -> (i32, i32, i32) {
    %c0_i32 = arith.constant 0 : i32
    %c0_i32_0 = arith.constant 0 : i32
    return %arg0, %arg2, %c0_i32 : i32, i32, i32
  }
  func.func @transform_4(%arg0: i32, %arg1: i32, %arg2: i32) -> (i32, i32, i32) {
    %c1_i32 = arith.constant 1 : i32
    %c0_i32 = arith.constant 0 : i32
    return %arg0, %arg2, %c1_i32 : i32, i32, i32
  }
  func.func @transform_5(%arg0: i32, %arg1: i32, %arg2: i32) -> (i32, i32) {
    %c0_i32 = arith.constant 0 : i32
    %c0_i32_0 = arith.constant 0 : i32
    return %c0_i32, %arg1 : i32, i32
  }
  func.func @transform_6(%arg0: i32, %arg1: i32, %arg2: i32) -> (i32, i32) {
    %c0_i32 = arith.constant 0 : i32
    %c0_i32_0 = arith.constant 0 : i32
    return %c0_i32, %arg1 : i32, i32
  }
  func.func @transform_7(%arg0: i32, %arg1: i32, %arg2: i32) -> (i32, i32, i32) {
    %c0_i32 = arith.constant 0 : i32
    return %arg0, %arg2, %arg1 : i32, i32, i32
  }
}

module attributes {stable_mosaic.version = 11 : i64} {
  func.func @_scan_kernel(%arg0: i32, %arg1: i32, %arg2: i32, %arg3: memref<1x8x128xf32, #tpu.memory_space<vmem>>, %arg4: memref<1x8x128xf32, #tpu.memory_space<vmem>>, %arg5: memref<1x8x128xf32, #tpu.memory_space<vmem>>, %arg6: memref<1x8x128xf32, #tpu.memory_space<vmem>>, %arg7: memref<1x8x128xf32, #tpu.memory_space<vmem>>, %arg8: memref<128x128xf32, #tpu.memory_space<vmem>>, %arg9: memref<1x128xf32, #tpu.memory_space<vmem>>, %arg10: memref<1x8x128xf32, #tpu.memory_space<vmem>>, %arg11: memref<1x8x128xf32, #tpu.memory_space<vmem>>, %arg12: memref<128x128xf32, #tpu.memory_space<vmem>>) attributes {dimension_semantics = [#tpu.dimension_semantics<parallel>, #tpu.dimension_semantics<parallel>, #tpu.dimension_semantics<arbitrary>], iteration_bounds = array<i64: 2, 1, 1>, scalar_prefetch = 0 : i64, scratch_operands = 1 : i64, tpu.core_type = #tpu.core_type<tc>, window_params = [{transform_indices = @transform_0, window_bounds = array<i64: 1, 8, 128>}, {transform_indices = @transform_1, window_bounds = array<i64: 1, 8, 128>}, {transform_indices = @transform_2, window_bounds = array<i64: 1, 8, 128>}, {transform_indices = @transform_3, window_bounds = array<i64: 1, 8, 128>}, {transform_indices = @transform_4, window_bounds = array<i64: 1, 8, 128>}, {transform_indices = @transform_5, window_bounds = array<i64: 128, 128>}, {transform_indices = @transform_6, window_bounds = array<i64: 1, 128>}, {transform_indices = @transform_7, window_bounds = array<i64: 1, 8, 128>}, {transform_indices = @transform_8, window_bounds = array<i64: 1, 8, 128>}]} {
    %c0_i32 = arith.constant 0 : i32
    %0 = arith.cmpi eq, %arg2, %c0_i32 : i32
    %1 = arith.extui %0 : i1 to i32
    %c0_i32_0 = arith.constant 0 : i32
    %2 = arith.cmpi ne, %1, %c0_i32_0 : i32
    scf.if %2 {
      %cst_41 = arith.constant 0.000000e+00 : f32
      %151 = vector.broadcast %cst_41 : f32 to vector<128x128xf32>
      %c0_42 = arith.constant 0 : index
      %c0_43 = arith.constant 0 : index
      %152 = vector.load %arg12[%c0_42, %c0_43] : memref<128x128xf32, #tpu.memory_space<vmem>>, vector<128x128xf32>
      tpu.vector_store %arg12[%c0_42, %c0_43], %151 {strides = array<i32>} : memref<128x128xf32, #tpu.memory_space<vmem>>, vector<128x128xf32>,
    } else {
    }
    %c0 = arith.constant 0 : index
    %c0_1 = arith.constant 0 : index
    %3 = vector.load %arg8[%c0, %c0_1] : memref<128x128xf32, #tpu.memory_space<vmem>>, vector<128x128xf32>
    %c0_2 = arith.constant 0 : index
    %c0_3 = arith.constant 0 : index
    %c0_4 = arith.constant 0 : index
    %4 = vector.load %arg3[%c0_2, %c0_3, %c0_4] : memref<1x8x128xf32, #tpu.memory_space<vmem>>, vector<1x8x128xf32>
    %5 = vector.shape_cast %4 : vector<1x8x128xf32> to vector<8x128xf32>
    %c0_5 = arith.constant 0 : index
    %c0_6 = arith.constant 0 : index
    %c0_7 = arith.constant 0 : index
    %6 = vector.load %arg5[%c0_5, %c0_6, %c0_7] : memref<1x8x128xf32, #tpu.memory_space<vmem>>, vector<1x8x128xf32>
    %7 = vector.shape_cast %6 : vector<1x8x128xf32> to vector<8x128xf32>
    %c0_8 = arith.constant 0 : index
    %c0_9 = arith.constant 0 : index
    %c0_10 = arith.constant 0 : index
    %8 = vector.load %arg4[%c0_8, %c0_9, %c0_10] : memref<1x8x128xf32, #tpu.memory_space<vmem>>, vector<1x8x128xf32>
    %9 = vector.shape_cast %8 : vector<1x8x128xf32> to vector<8x128xf32>
    %cst = arith.constant 0.000000e+00 : f32
    %10 = vector.broadcast %cst : f32 to vector<8x128xf32>
    %11 = arith.maximumf %9, %10 : vector<8x128xf32>
    %12 = math.absf %9 : vector<8x128xf32>
    %cst_11 = arith.constant 0.000000e+00 : f32
    %13 = vector.broadcast %cst_11 : f32 to vector<8x128xf32>
    %14 = arith.subf %13, %12 : vector<8x128xf32>
    %15 = math.exp %14 : vector<8x128xf32>
    %cst_12 = arith.constant 1.000000e+00 : f32
    %16 = vector.broadcast %cst_12 : f32 to vector<8x128xf32>
    %17 = arith.addf %16, %15 : vector<8x128xf32>
    %18 = math.log %17 : vector<8x128xf32>
    %19 = arith.addf %11, %18 : vector<8x128xf32>
    %c0_13 = arith.constant 0 : index
    %c0_14 = arith.constant 0 : index
    %c0_15 = arith.constant 0 : index
    %20 = vector.load %arg6[%c0_13, %c0_14, %c0_15] : memref<1x8x128xf32, #tpu.memory_space<vmem>>, vector<1x8x128xf32>
    %21 = vector.shape_cast %20 : vector<1x8x128xf32> to vector<8x128xf32>
    %c0_16 = arith.constant 0 : index
    %c0_17 = arith.constant 0 : index
    %c0_18 = arith.constant 0 : index
    %22 = vector.load %arg7[%c0_16, %c0_17, %c0_18] : memref<1x8x128xf32, #tpu.memory_space<vmem>>, vector<1x8x128xf32>
    %23 = vector.shape_cast %22 : vector<1x8x128xf32> to vector<8x128xf32>
    %24 = tpu.transpose %21, [1, 0] : vector<8x128xf32> -> vector<128x8xf32>
    %25 = arith.mulf %19, %5 : vector<8x128xf32>
    %c0_19 = arith.constant 0 : index
    %c0_20 = arith.constant 0 : index
    %26 = vector.load %arg12[%c0_19, %c0_20] : memref<128x128xf32, #tpu.memory_space<vmem>>, vector<128x128xf32>
    %27 = vector.extract_strided_slice %19 {offsets = [7, 0], sizes = [1, 128], strides = [1, 1]} : vector<8x128xf32> to vector<1x128xf32>
    %28 = vector.broadcast %27 : vector<1x128xf32> to vector<128x128xf32>
    %29 = arith.mulf %28, %3 : vector<128x128xf32>
    %30 = math.exp %29 : vector<128x128xf32>
    %31 = vector.extract_strided_slice %24 {offsets = [0, 7], sizes = [128, 1], strides = [1, 1]} : vector<128x8xf32> to vector<128x1xf32>
    %32 = vector.extract_strided_slice %25 {offsets = [7, 0], sizes = [1, 128], strides = [1, 1]} : vector<8x128xf32> to vector<1x128xf32>
    %33 = vector.broadcast %31 : vector<128x1xf32> to vector<128x128xf32>
    %34 = vector.broadcast %32 : vector<1x128xf32> to vector<128x128xf32>
    %35 = arith.mulf %33, %34 : vector<128x128xf32>
    %36 = arith.mulf %30, %26 : vector<128x128xf32>
    %37 = arith.addf %36, %35 : vector<128x128xf32>
    %38 = vector.extract_strided_slice %23 {offsets = [7, 0], sizes = [1, 128], strides = [1, 1]} : vector<8x128xf32> to vector<1x128xf32>
    %cst_21 = arith.constant dense<0.000000e+00> : vector<1x128xf32>
    %39 = tpu.matmul %38, %37, %cst_21 {dimension_numbers = #tpu.dot_dimension_numbers<[1], [0], [0], [1], [0, 0, 1, 1], [], []>} : vector<1x128xf32>, vector<128x128xf32>, vector<1x128xf32> -> vector<1x128xf32>
    %40 = vector.extract_strided_slice %19 {offsets = [6, 0], sizes = [1, 128], strides = [1, 1]} : vector<8x128xf32> to vector<1x128xf32>
    %41 = vector.broadcast %40 : vector<1x128xf32> to vector<128x128xf32>
    %42 = arith.mulf %41, %3 : vector<128x128xf32>
    %43 = math.exp %42 : vector<128x128xf32>
    %44 = vector.extract_strided_slice %24 {offsets = [0, 6], sizes = [128, 1], strides = [1, 1]} : vector<128x8xf32> to vector<128x1xf32>
    %45 = vector.extract_strided_slice %25 {offsets = [6, 0], sizes = [1, 128], strides = [1, 1]} : vector<8x128xf32> to vector<1x128xf32>
    %46 = vector.broadcast %44 : vector<128x1xf32> to vector<128x128xf32>
    %47 = vector.broadcast %45 : vector<1x128xf32> to vector<128x128xf32>
    %48 = arith.mulf %46, %47 : vector<128x128xf32>
    %49 = arith.mulf %43, %37 : vector<128x128xf32>
    %50 = arith.addf %49, %48 : vector<128x128xf32>
    %51 = vector.extract_strided_slice %23 {offsets = [6, 0], sizes = [1, 128], strides = [1, 1]} : vector<8x128xf32> to vector<1x128xf32>
    %cst_22 = arith.constant dense<0.000000e+00> : vector<1x128xf32>
    %52 = tpu.matmul %51, %50, %cst_22 {dimension_numbers = #tpu.dot_dimension_numbers<[1], [0], [0], [1], [0, 0, 1, 1], [], []>} : vector<1x128xf32>, vector<128x128xf32>, vector<1x128xf32> -> vector<1x128xf32>
    %53 = vector.extract_strided_slice %19 {offsets = [5, 0], sizes = [1, 128], strides = [1, 1]} : vector<8x128xf32> to vector<1x128xf32>
    %54 = vector.broadcast %53 : vector<1x128xf32> to vector<128x128xf32>
    %55 = arith.mulf %54, %3 : vector<128x128xf32>
    %56 = math.exp %55 : vector<128x128xf32>
    %57 = vector.extract_strided_slice %24 {offsets = [0, 5], sizes = [128, 1], strides = [1, 1]} : vector<128x8xf32> to vector<128x1xf32>
    %58 = vector.extract_strided_slice %25 {offsets = [5, 0], sizes = [1, 128], strides = [1, 1]} : vector<8x128xf32> to vector<1x128xf32>
    %59 = vector.broadcast %57 : vector<128x1xf32> to vector<128x128xf32>
    %60 = vector.broadcast %58 : vector<1x128xf32> to vector<128x128xf32>
    %61 = arith.mulf %59, %60 : vector<128x128xf32>
    %62 = arith.mulf %56, %50 : vector<128x128xf32>
    %63 = arith.addf %62, %61 : vector<128x128xf32>
    %64 = vector.extract_strided_slice %23 {offsets = [5, 0], sizes = [1, 128], strides = [1, 1]} : vector<8x128xf32> to vector<1x128xf32>
    %cst_23 = arith.constant dense<0.000000e+00> : vector<1x128xf32>
    %65 = tpu.matmul %64, %63, %cst_23 {dimension_numbers = #tpu.dot_dimension_numbers<[1], [0], [0], [1], [0, 0, 1, 1], [], []>} : vector<1x128xf32>, vector<128x128xf32>, vector<1x128xf32> -> vector<1x128xf32>
    %66 = vector.extract_strided_slice %19 {offsets = [4, 0], sizes = [1, 128], strides = [1, 1]} : vector<8x128xf32> to vector<1x128xf32>
    %67 = vector.broadcast %66 : vector<1x128xf32> to vector<128x128xf32>
    %68 = arith.mulf %67, %3 : vector<128x128xf32>
    %69 = math.exp %68 : vector<128x128xf32>
    %70 = vector.extract_strided_slice %24 {offsets = [0, 4], sizes = [128, 1], strides = [1, 1]} : vector<128x8xf32> to vector<128x1xf32>
    %71 = vector.extract_strided_slice %25 {offsets = [4, 0], sizes = [1, 128], strides = [1, 1]} : vector<8x128xf32> to vector<1x128xf32>
    %72 = vector.broadcast %70 : vector<128x1xf32> to vector<128x128xf32>
    %73 = vector.broadcast %71 : vector<1x128xf32> to vector<128x128xf32>
    %74 = arith.mulf %72, %73 : vector<128x128xf32>
    %75 = arith.mulf %69, %63 : vector<128x128xf32>
    %76 = arith.addf %75, %74 : vector<128x128xf32>
    %77 = vector.extract_strided_slice %23 {offsets = [4, 0], sizes = [1, 128], strides = [1, 1]} : vector<8x128xf32> to vector<1x128xf32>
    %cst_24 = arith.constant dense<0.000000e+00> : vector<1x128xf32>
    %78 = tpu.matmul %77, %76, %cst_24 {dimension_numbers = #tpu.dot_dimension_numbers<[1], [0], [0], [1], [0, 0, 1, 1], [], []>} : vector<1x128xf32>, vector<128x128xf32>, vector<1x128xf32> -> vector<1x128xf32>
    %79 = vector.extract_strided_slice %19 {offsets = [3, 0], sizes = [1, 128], strides = [1, 1]} : vector<8x128xf32> to vector<1x128xf32>
    %80 = vector.broadcast %79 : vector<1x128xf32> to vector<128x128xf32>
    %81 = arith.mulf %80, %3 : vector<128x128xf32>
    %82 = math.exp %81 : vector<128x128xf32>
    %83 = vector.extract_strided_slice %24 {offsets = [0, 3], sizes = [128, 1], strides = [1, 1]} : vector<128x8xf32> to vector<128x1xf32>
    %84 = vector.extract_strided_slice %25 {offsets = [3, 0], sizes = [1, 128], strides = [1, 1]} : vector<8x128xf32> to vector<1x128xf32>
    %85 = vector.broadcast %83 : vector<128x1xf32> to vector<128x128xf32>
    %86 = vector.broadcast %84 : vector<1x128xf32> to vector<128x128xf32>
    %87 = arith.mulf %85, %86 : vector<128x128xf32>
    %88 = arith.mulf %82, %76 : vector<128x128xf32>
    %89 = arith.addf %88, %87 : vector<128x128xf32>
    %90 = vector.extract_strided_slice %23 {offsets = [3, 0], sizes = [1, 128], strides = [1, 1]} : vector<8x128xf32> to vector<1x128xf32>
    %cst_25 = arith.constant dense<0.000000e+00> : vector<1x128xf32>
    %91 = tpu.matmul %90, %89, %cst_25 {dimension_numbers = #tpu.dot_dimension_numbers<[1], [0], [0], [1], [0, 0, 1, 1], [], []>} : vector<1x128xf32>, vector<128x128xf32>, vector<1x128xf32> -> vector<1x128xf32>
    %92 = vector.extract_strided_slice %19 {offsets = [2, 0], sizes = [1, 128], strides = [1, 1]} : vector<8x128xf32> to vector<1x128xf32>
    %93 = vector.broadcast %92 : vector<1x128xf32> to vector<128x128xf32>
    %94 = arith.mulf %93, %3 : vector<128x128xf32>
    %95 = math.exp %94 : vector<128x128xf32>
    %96 = vector.extract_strided_slice %24 {offsets = [0, 2], sizes = [128, 1], strides = [1, 1]} : vector<128x8xf32> to vector<128x1xf32>
    %97 = vector.extract_strided_slice %25 {offsets = [2, 0], sizes = [1, 128], strides = [1, 1]} : vector<8x128xf32> to vector<1x128xf32>
    %98 = vector.broadcast %96 : vector<128x1xf32> to vector<128x128xf32>
    %99 = vector.broadcast %97 : vector<1x128xf32> to vector<128x128xf32>
    %100 = arith.mulf %98, %99 : vector<128x128xf32>
    %101 = arith.mulf %95, %89 : vector<128x128xf32>
    %102 = arith.addf %101, %100 : vector<128x128xf32>
    %103 = vector.extract_strided_slice %23 {offsets = [2, 0], sizes = [1, 128], strides = [1, 1]} : vector<8x128xf32> to vector<1x128xf32>
    %cst_26 = arith.constant dense<0.000000e+00> : vector<1x128xf32>
    %104 = tpu.matmul %103, %102, %cst_26 {dimension_numbers = #tpu.dot_dimension_numbers<[1], [0], [0], [1], [0, 0, 1, 1], [], []>} : vector<1x128xf32>, vector<128x128xf32>, vector<1x128xf32> -> vector<1x128xf32>
    %105 = vector.extract_strided_slice %19 {offsets = [1, 0], sizes = [1, 128], strides = [1, 1]} : vector<8x128xf32> to vector<1x128xf32>
    %106 = vector.broadcast %105 : vector<1x128xf32> to vector<128x128xf32>
    %107 = arith.mulf %106, %3 : vector<128x128xf32>
    %108 = math.exp %107 : vector<128x128xf32>
    %109 = vector.extract_strided_slice %24 {offsets = [0, 1], sizes = [128, 1], strides = [1, 1]} : vector<128x8xf32> to vector<128x1xf32>
    %110 = vector.extract_strided_slice %25 {offsets = [1, 0], sizes = [1, 128], strides = [1, 1]} : vector<8x128xf32> to vector<1x128xf32>
    %111 = vector.broadcast %109 : vector<128x1xf32> to vector<128x128xf32>
    %112 = vector.broadcast %110 : vector<1x128xf32> to vector<128x128xf32>
    %113 = arith.mulf %111, %112 : vector<128x128xf32>
    %114 = arith.mulf %108, %102 : vector<128x128xf32>
    %115 = arith.addf %114, %113 : vector<128x128xf32>
    %116 = vector.extract_strided_slice %23 {offsets = [1, 0], sizes = [1, 128], strides = [1, 1]} : vector<8x128xf32> to vector<1x128xf32>
    %cst_27 = arith.constant dense<0.000000e+00> : vector<1x128xf32>
    %117 = tpu.matmul %116, %115, %cst_27 {dimension_numbers = #tpu.dot_dimension_numbers<[1], [0], [0], [1], [0, 0, 1, 1], [], []>} : vector<1x128xf32>, vector<128x128xf32>, vector<1x128xf32> -> vector<1x128xf32>
    %118 = vector.extract_strided_slice %19 {offsets = [0, 0], sizes = [1, 128], strides = [1, 1]} : vector<8x128xf32> to vector<1x128xf32>
    %119 = vector.broadcast %118 : vector<1x128xf32> to vector<128x128xf32>
    %120 = arith.mulf %119, %3 : vector<128x128xf32>
    %121 = math.exp %120 : vector<128x128xf32>
    %122 = vector.extract_strided_slice %24 {offsets = [0, 0], sizes = [128, 1], strides = [1, 1]} : vector<128x8xf32> to vector<128x1xf32>
    %123 = vector.extract_strided_slice %25 {offsets = [0, 0], sizes = [1, 128], strides = [1, 1]} : vector<8x128xf32> to vector<1x128xf32>
    %124 = vector.broadcast %122 : vector<128x1xf32> to vector<128x128xf32>
    %125 = vector.broadcast %123 : vector<1x128xf32> to vector<128x128xf32>
    %126 = arith.mulf %124, %125 : vector<128x128xf32>
    %127 = arith.mulf %121, %115 : vector<128x128xf32>
    %128 = arith.addf %127, %126 : vector<128x128xf32>
    %129 = vector.extract_strided_slice %23 {offsets = [0, 0], sizes = [1, 128], strides = [1, 1]} : vector<8x128xf32> to vector<1x128xf32>
    %cst_28 = arith.constant dense<0.000000e+00> : vector<1x128xf32>
    %130 = tpu.matmul %129, %128, %cst_28 {dimension_numbers = #tpu.dot_dimension_numbers<[1], [0], [0], [1], [0, 0, 1, 1], [], []>} : vector<1x128xf32>, vector<128x128xf32>, vector<1x128xf32> -> vector<1x128xf32>
    %c0_29 = arith.constant 0 : index
    %c0_30 = arith.constant 0 : index
    %131 = vector.load %arg12[%c0_29, %c0_30] : memref<128x128xf32, #tpu.memory_space<vmem>>, vector<128x128xf32>
    tpu.vector_store %arg12[%c0_29, %c0_30], %128 {strides = array<i32>} : memref<128x128xf32, #tpu.memory_space<vmem>>, vector<128x128xf32>,
    %132 = tpu.concatenate %130, %117, %104, %91, %78, %65, %52, %39 in 0 : vector<1x128xf32>, vector<1x128xf32>, vector<1x128xf32>, vector<1x128xf32>, vector<1x128xf32>, vector<1x128xf32>, vector<1x128xf32>, vector<1x128xf32> -> vector<8x128xf32>
    %c0_31 = arith.constant 0 : index
    %c0_32 = arith.constant 0 : index
    %133 = vector.load %arg9[%c0_31, %c0_32] : memref<1x128xf32, #tpu.memory_space<vmem>>, vector<1x128xf32>
    %134 = vector.broadcast %133 : vector<1x128xf32> to vector<8x128xf32>
    %135 = arith.mulf %134, %5 : vector<8x128xf32>
    %136 = arith.addf %132, %135 : vector<8x128xf32>
    %cst_33 = arith.constant 0.000000e+00 : f32
    %137 = vector.broadcast %cst_33 : f32 to vector<8x128xf32>
    %138 = arith.subf %137, %7 : vector<8x128xf32>
    %139 = math.exp %138 : vector<8x128xf32>
    %cst_34 = arith.constant 1.000000e+00 : f32
    %140 = vector.broadcast %cst_34 : f32 to vector<8x128xf32>
    %141 = arith.addf %140, %139 : vector<8x128xf32>
    %142 = tpu.reciprocal %141 {approx = true} : vector<8x128xf32> -> vector<8x128xf32>
    %143 = arith.mulf %7, %142 : vector<8x128xf32>
    %144 = arith.mulf %136, %143 : vector<8x128xf32>
    %c0_35 = arith.constant 0 : index
    %c0_36 = arith.constant 0 : index
    %c0_37 = arith.constant 0 : index
    %145 = vector.load %arg10[%c0_35, %c0_36, %c0_37] : memref<1x8x128xf32, #tpu.memory_space<vmem>>, vector<1x8x128xf32>
    %146 = vector.shape_cast %145 : vector<1x8x128xf32> to vector<8x128xf32>
    %147 = arith.addf %144, %146 : vector<8x128xf32>
    %c0_38 = arith.constant 0 : index
    %c0_39 = arith.constant 0 : index
    %c0_40 = arith.constant 0 : index
    %148 = vector.load %arg11[%c0_38, %c0_39, %c0_40] : memref<1x8x128xf32, #tpu.memory_space<vmem>>, vector<1x8x128xf32>
    %149 = vector.shape_cast %148 : vector<1x8x128xf32> to vector<8x128xf32>
    %150 = vector.shape_cast %147 : vector<8x128xf32> to vector<1x8x128xf32>
    tpu.vector_store %arg11[%c0_38, %c0_39, %c0_40], %150 {strides = array<i32>} : memref<1x8x128xf32, #tpu.memory_space<vmem>>, vector<1x8x128xf32>,
    return
  }
  func.func @transform_0(%arg0: i32, %arg1: i32, %arg2: i32) -> (i32, i32, i32) {
    %c0_i32 = arith.constant 0 : i32
    %0 = arith.subi %c0_i32, %arg2 : i32
    %c0_i32_0 = arith.constant 0 : i32
    return %arg0, %0, %arg1 : i32, i32, i32
  }
  func.func @transform_1(%arg0: i32, %arg1: i32, %arg2: i32) -> (i32, i32, i32) {
    %c0_i32 = arith.constant 0 : i32
    %0 = arith.subi %c0_i32, %arg2 : i32
    %c0_i32_0 = arith.constant 0 : i32
    return %arg0, %0, %arg1 : i32, i32, i32
  }
  func.func @transform_2(%arg0: i32, %arg1: i32, %arg2: i32) -> (i32, i32, i32) {
    %c0_i32 = arith.constant 0 : i32
    %0 = arith.subi %c0_i32, %arg2 : i32
    %c1_i32 = arith.constant 1 : i32
    %1 = arith.addi %c1_i32, %arg1 : i32
    %c0_i32_0 = arith.constant 0 : i32
    return %arg0, %0, %1 : i32, i32, i32
  }
  func.func @transform_3(%arg0: i32, %arg1: i32, %arg2: i32) -> (i32, i32, i32) {
    %c0_i32 = arith.constant 0 : i32
    %0 = arith.subi %c0_i32, %arg2 : i32
    %c0_i32_0 = arith.constant 0 : i32
    %c0_i32_1 = arith.constant 0 : i32
    return %arg0, %0, %c0_i32_0 : i32, i32, i32
  }
  func.func @transform_4(%arg0: i32, %arg1: i32, %arg2: i32) -> (i32, i32, i32) {
    %c0_i32 = arith.constant 0 : i32
    %0 = arith.subi %c0_i32, %arg2 : i32
    %c1_i32 = arith.constant 1 : i32
    %c0_i32_0 = arith.constant 0 : i32
    return %arg0, %0, %c1_i32 : i32, i32, i32
  }
  func.func @transform_5(%arg0: i32, %arg1: i32, %arg2: i32) -> (i32, i32) {
    %c0_i32 = arith.constant 0 : i32
    %c0_i32_0 = arith.constant 0 : i32
    return %c0_i32, %arg1 : i32, i32
  }
  func.func @transform_6(%arg0: i32, %arg1: i32, %arg2: i32) -> (i32, i32) {
    %c0_i32 = arith.constant 0 : i32
    %c0_i32_0 = arith.constant 0 : i32
    return %c0_i32, %arg1 : i32, i32
  }
  func.func @transform_7(%arg0: i32, %arg1: i32, %arg2: i32) -> (i32, i32, i32) {
    %c0_i32 = arith.constant 0 : i32
    %0 = arith.subi %c0_i32, %arg2 : i32
    %c0_i32_0 = arith.constant 0 : i32
    return %arg0, %0, %arg1 : i32, i32, i32
  }
  func.func @transform_8(%arg0: i32, %arg1: i32, %arg2: i32) -> (i32, i32, i32) {
    %c0_i32 = arith.constant 0 : i32
    %0 = arith.subi %c0_i32, %arg2 : i32
    %c0_i32_0 = arith.constant 0 : i32
    return %arg0, %0, %arg1 : i32, i32, i32
  }
}

module attributes {stable_mosaic.version = 11 : i64} {
  func.func @_linear_kernel(%arg0: i32, %arg1: i32, %arg2: i32, %arg3: memref<16x128xf32, #tpu.memory_space<vmem>>, %arg4: memref<128x128xbf16, #tpu.memory_space<vmem>>, %arg5: memref<16x128xf32, #tpu.memory_space<vmem>>, %arg6: memref<16x128xf32, #tpu.memory_space<vmem>>) attributes {dimension_semantics = [#tpu.dimension_semantics<parallel>, #tpu.dimension_semantics<parallel>, #tpu.dimension_semantics<arbitrary>], iteration_bounds = array<i64: 1, 1, 1>, scalar_prefetch = 0 : i64, scratch_operands = 1 : i64, tpu.core_type = #tpu.core_type<tc>, window_params = [{transform_indices = @transform_0, window_bounds = array<i64: 16, 128>}, {transform_indices = @transform_1, window_bounds = array<i64: 128, 128>}, {transform_indices = @transform_2, window_bounds = array<i64: 16, 128>}]} {
    %c0_i32 = arith.constant 0 : i32
    %0 = arith.cmpi eq, %arg2, %c0_i32 : i32
    %1 = arith.extui %0 : i1 to i32
    %c0_i32_0 = arith.constant 0 : i32
    %2 = arith.cmpi ne, %1, %c0_i32_0 : i32
    scf.if %2 {
      %cst_10 = arith.constant 0.000000e+00 : f32
      %13 = vector.broadcast %cst_10 : f32 to vector<16x128xf32>
      %c0_11 = arith.constant 0 : index
      %c0_12 = arith.constant 0 : index
      %14 = vector.load %arg6[%c0_11, %c0_12] : memref<16x128xf32, #tpu.memory_space<vmem>>, vector<16x128xf32>
      tpu.vector_store %arg6[%c0_11, %c0_12], %13 {strides = array<i32>} : memref<16x128xf32, #tpu.memory_space<vmem>>, vector<16x128xf32>,
    } else {
    }
    %c0 = arith.constant 0 : index
    %c0_1 = arith.constant 0 : index
    %3 = vector.load %arg6[%c0, %c0_1] : memref<16x128xf32, #tpu.memory_space<vmem>>, vector<16x128xf32>
    %c0_2 = arith.constant 0 : index
    %c0_3 = arith.constant 0 : index
    %4 = vector.load %arg3[%c0_2, %c0_3] : memref<16x128xf32, #tpu.memory_space<vmem>>, vector<16x128xf32>
    %5 = arith.truncf %4 : vector<16x128xf32> to vector<16x128xbf16>
    %c0_4 = arith.constant 0 : index
    %c0_5 = arith.constant 0 : index
    %6 = vector.load %arg4[%c0_4, %c0_5] : memref<128x128xbf16, #tpu.memory_space<vmem>>, vector<128x128xbf16>
    %cst = arith.constant dense<0.000000e+00> : vector<16x128xf32>
    %7 = tpu.matmul %5, %6, %cst {dimension_numbers = #tpu.dot_dimension_numbers<[1], [0], [0], [1], [0, 0, 1, 1], [], []>} : vector<16x128xbf16>, vector<128x128xbf16>, vector<16x128xf32> -> vector<16x128xf32>
    %8 = arith.addf %3, %7 : vector<16x128xf32>
    %c0_6 = arith.constant 0 : index
    %c0_7 = arith.constant 0 : index
    %9 = vector.load %arg6[%c0_6, %c0_7] : memref<16x128xf32, #tpu.memory_space<vmem>>, vector<16x128xf32>
    tpu.vector_store %arg6[%c0_6, %c0_7], %8 {strides = array<i32>} : memref<16x128xf32, #tpu.memory_space<vmem>>, vector<16x128xf32>,
    %c0_i32_8 = arith.constant 0 : i32
    %10 = arith.cmpi eq, %arg2, %c0_i32_8 : i32
    %11 = arith.extui %10 : i1 to i32
    %c0_i32_9 = arith.constant 0 : i32
    %12 = arith.cmpi ne, %11, %c0_i32_9 : i32
    scf.if %12 {
      %c0_10 = arith.constant 0 : index
      %c0_11 = arith.constant 0 : index
      %13 = vector.load %arg6[%c0_10, %c0_11] : memref<16x128xf32, #tpu.memory_space<vmem>>, vector<16x128xf32>
      %c0_12 = arith.constant 0 : index
      %c0_13 = arith.constant 0 : index
      %14 = vector.load %arg5[%c0_12, %c0_13] : memref<16x128xf32, #tpu.memory_space<vmem>>, vector<16x128xf32>
      tpu.vector_store %arg5[%c0_12, %c0_13], %13 {strides = array<i32>} : memref<16x128xf32, #tpu.memory_space<vmem>>, vector<16x128xf32>,
    } else {
    }
    return
  }
  func.func @transform_0(%arg0: i32, %arg1: i32, %arg2: i32) -> (i32, i32) {
    %c0_i32 = arith.constant 0 : i32
    return %arg0, %arg2 : i32, i32
  }
  func.func @transform_1(%arg0: i32, %arg1: i32, %arg2: i32) -> (i32, i32) {
    %c0_i32 = arith.constant 0 : i32
    return %arg2, %arg1 : i32, i32
  }
  func.func @transform_2(%arg0: i32, %arg1: i32, %arg2: i32) -> (i32, i32) {
    %c0_i32 = arith.constant 0 : i32
    return %arg0, %arg1 : i32, i32
  }
}

module attributes {stable_mosaic.version = 11 : i64} {
  func.func @_conv_kernel(%arg0: i32, %arg1: i32, %arg2: memref<1x8x128xf32, #tpu.memory_space<vmem>>, %arg3: memref<1x8x128xf32, #tpu.memory_space<vmem>>, %arg4: memref<4x128xf32, #tpu.memory_space<vmem>>, %arg5: memref<1x128xf32, #tpu.memory_space<vmem>>, %arg6: memref<1x8x128xf32, #tpu.memory_space<vmem>>) attributes {dimension_semantics = [#tpu.dimension_semantics<parallel>, #tpu.dimension_semantics<parallel>], iteration_bounds = array<i64: 2, 1>, scalar_prefetch = 0 : i64, scratch_operands = 0 : i64, tpu.core_type = #tpu.core_type<tc>, window_params = [{transform_indices = @transform_0, window_bounds = array<i64: 1, 8, 128>}, {transform_indices = @transform_1, window_bounds = array<i64: 1, 8, 128>}, {pipeline_mode = #tpu.pipeline_mode<synchronous>, transform_indices = @transform_2, window_bounds = array<i64: 4, 128>}, {pipeline_mode = #tpu.pipeline_mode<synchronous>, transform_indices = @transform_3, window_bounds = array<i64: 1, 128>}, {transform_indices = @transform_4, window_bounds = array<i64: 1, 8, 128>}]} {
    %c0 = arith.constant 0 : index
    %c0_0 = arith.constant 0 : index
    %c0_1 = arith.constant 0 : index
    %0 = vector.load %arg2[%c0, %c0_0, %c0_1] : memref<1x8x128xf32, #tpu.memory_space<vmem>>, vector<1x8x128xf32>
    %1 = vector.shape_cast %0 : vector<1x8x128xf32> to vector<8x128xf32>
    %c0_2 = arith.constant 0 : index
    %c0_3 = arith.constant 0 : index
    %c0_4 = arith.constant 0 : index
    %2 = vector.load %arg3[%c0_2, %c0_3, %c0_4] : memref<1x8x128xf32, #tpu.memory_space<vmem>>, vector<1x8x128xf32>
    %3 = vector.shape_cast %2 : vector<1x8x128xf32> to vector<8x128xf32>
    %c0_i32 = arith.constant 0 : i32
    %4 = arith.cmpi eq, %arg1, %c0_i32 : i32
    %5 = vector.extract_strided_slice %3 {offsets = [0, 0], sizes = [3, 128], strides = [1, 1]} : vector<8x128xf32> to vector<3x128xf32>
    %cst = arith.constant 0.000000e+00 : f32
    %6 = vector.broadcast %cst : f32 to vector<3x128xf32>
    %7 = arith.select %4, %6, %5 : vector<3x128xf32>
    %8 = tpu.concatenate %1, %7 in 0 : vector<8x128xf32>, vector<3x128xf32> -> vector<11x128xf32>
    %9 = vector.extract_strided_slice %8 {offsets = [0, 0], sizes = [8, 128], strides = [1, 1]} : vector<11x128xf32> to vector<8x128xf32>
    %c3 = arith.constant 3 : index
    %c0_5 = arith.constant 0 : index
    %10 = vector.load %arg4[%c3, %c0_5] : memref<4x128xf32, #tpu.memory_space<vmem>>, vector<1x128xf32>
    %11 = vector.broadcast %10 : vector<1x128xf32> to vector<8x128xf32>
    %12 = arith.mulf %9, %11 : vector<8x128xf32>
    %13 = vector.extract_strided_slice %8 {offsets = [1, 0], sizes = [8, 128], strides = [1, 1]} : vector<11x128xf32> to vector<8x128xf32>
    %c2 = arith.constant 2 : index
    %c0_6 = arith.constant 0 : index
    %14 = vector.load %arg4[%c2, %c0_6] : memref<4x128xf32, #tpu.memory_space<vmem>>, vector<1x128xf32>
    %15 = vector.broadcast %14 : vector<1x128xf32> to vector<8x128xf32>
    %16 = arith.mulf %13, %15 : vector<8x128xf32>
    %17 = arith.addf %12, %16 : vector<8x128xf32>
    %18 = vector.extract_strided_slice %8 {offsets = [2, 0], sizes = [8, 128], strides = [1, 1]} : vector<11x128xf32> to vector<8x128xf32>
    %c1 = arith.constant 1 : index
    %c0_7 = arith.constant 0 : index
    %19 = vector.load %arg4[%c1, %c0_7] : memref<4x128xf32, #tpu.memory_space<vmem>>, vector<1x128xf32>
    %20 = vector.broadcast %19 : vector<1x128xf32> to vector<8x128xf32>
    %21 = arith.mulf %18, %20 : vector<8x128xf32>
    %22 = arith.addf %17, %21 : vector<8x128xf32>
    %23 = vector.extract_strided_slice %8 {offsets = [3, 0], sizes = [8, 128], strides = [1, 1]} : vector<11x128xf32> to vector<8x128xf32>
    %c0_8 = arith.constant 0 : index
    %c0_9 = arith.constant 0 : index
    %24 = vector.load %arg4[%c0_8, %c0_9] : memref<4x128xf32, #tpu.memory_space<vmem>>, vector<1x128xf32>
    %25 = vector.broadcast %24 : vector<1x128xf32> to vector<8x128xf32>
    %26 = arith.mulf %23, %25 : vector<8x128xf32>
    %27 = arith.addf %22, %26 : vector<8x128xf32>
    %c0_10 = arith.constant 0 : index
    %c0_11 = arith.constant 0 : index
    %28 = vector.load %arg5[%c0_10, %c0_11] : memref<1x128xf32, #tpu.memory_space<vmem>>, vector<1x128xf32>
    %29 = vector.broadcast %28 : vector<1x128xf32> to vector<8x128xf32>
    %30 = arith.addf %27, %29 : vector<8x128xf32>
    %cst_12 = arith.constant 0.000000e+00 : f32
    %31 = vector.broadcast %cst_12 : f32 to vector<8x128xf32>
    %32 = arith.subf %31, %30 : vector<8x128xf32>
    %33 = math.exp %32 : vector<8x128xf32>
    %cst_13 = arith.constant 1.000000e+00 : f32
    %34 = vector.broadcast %cst_13 : f32 to vector<8x128xf32>
    %35 = arith.addf %34, %33 : vector<8x128xf32>
    %36 = tpu.reciprocal %35 {approx = true} : vector<8x128xf32> -> vector<8x128xf32>
    %37 = arith.mulf %30, %36 : vector<8x128xf32>
    %c0_14 = arith.constant 0 : index
    %c0_15 = arith.constant 0 : index
    %c0_16 = arith.constant 0 : index
    %38 = vector.load %arg6[%c0_14, %c0_15, %c0_16] : memref<1x8x128xf32, #tpu.memory_space<vmem>>, vector<1x8x128xf32>
    %39 = vector.shape_cast %38 : vector<1x8x128xf32> to vector<8x128xf32>
    %40 = vector.shape_cast %37 : vector<8x128xf32> to vector<1x8x128xf32>
    tpu.vector_store %arg6[%c0_14, %c0_15, %c0_16], %40 {strides = array<i32>} : memref<1x8x128xf32, #tpu.memory_space<vmem>>, vector<1x8x128xf32>,
    return
  }
  func.func @transform_0(%arg0: i32, %arg1: i32) -> (i32, i32, i32) {
    %c0_i32 = arith.constant 0 : i32
    %c0_i32_0 = arith.constant 0 : i32
    return %arg0, %arg1, %c0_i32 : i32, i32, i32
  }
  func.func @transform_1(%arg0: i32, %arg1: i32) -> (i32, i32, i32) {
    %c1_i32 = arith.constant 1 : i32
    %0 = arith.addi %arg1, %c1_i32 : i32
    %c0_i32 = arith.constant 0 : i32
    %1 = arith.minsi %0, %c0_i32 : i32
    %c0_i32_0 = arith.constant 0 : i32
    %c0_i32_1 = arith.constant 0 : i32
    return %arg0, %1, %c0_i32_0 : i32, i32, i32
  }
  func.func @transform_2(%arg0: i32, %arg1: i32) -> (i32, i32) {
    %c0_i32 = arith.constant 0 : i32
    %c0_i32_0 = arith.constant 0 : i32
    %c0_i32_1 = arith.constant 0 : i32
    return %c0_i32, %c0_i32_0 : i32, i32
  }
  func.func @transform_3(%arg0: i32, %arg1: i32) -> (i32, i32) {
    %c0_i32 = arith.constant 0 : i32
    %c0_i32_0 = arith.constant 0 : i32
    %c0_i32_1 = arith.constant 0 : i32
    return %c0_i32, %c0_i32_0 : i32, i32
  }
  func.func @transform_4(%arg0: i32, %arg1: i32) -> (i32, i32, i32) {
    %c0_i32 = arith.constant 0 : i32
    %c0_i32_0 = arith.constant 0 : i32
    return %arg0, %arg1, %c0_i32 : i32, i32, i32
  }
}

module attributes {stable_mosaic.version = 11 : i64} {
  func.func @_linear_kernel(%arg0: i32, %arg1: i32, %arg2: i32, %arg3: memref<16x128xf32, #tpu.memory_space<vmem>>, %arg4: memref<128x128xbf16, #tpu.memory_space<vmem>>, %arg5: memref<1x128xf32, #tpu.memory_space<vmem>>, %arg6: memref<16x128xf32, #tpu.memory_space<vmem>>, %arg7: memref<16x128xf32, #tpu.memory_space<vmem>>) attributes {dimension_semantics = [#tpu.dimension_semantics<parallel>, #tpu.dimension_semantics<parallel>, #tpu.dimension_semantics<arbitrary>], iteration_bounds = array<i64: 1, 1, 1>, scalar_prefetch = 0 : i64, scratch_operands = 1 : i64, tpu.core_type = #tpu.core_type<tc>, window_params = [{transform_indices = @transform_0, window_bounds = array<i64: 16, 128>}, {transform_indices = @transform_1, window_bounds = array<i64: 128, 128>}, {transform_indices = @transform_2, window_bounds = array<i64: 1, 128>}, {transform_indices = @transform_3, window_bounds = array<i64: 16, 128>}]} {
    %c0_i32 = arith.constant 0 : i32
    %0 = arith.cmpi eq, %arg2, %c0_i32 : i32
    %1 = arith.extui %0 : i1 to i32
    %c0_i32_0 = arith.constant 0 : i32
    %2 = arith.cmpi ne, %1, %c0_i32_0 : i32
    scf.if %2 {
      %cst_10 = arith.constant 0.000000e+00 : f32
      %13 = vector.broadcast %cst_10 : f32 to vector<16x128xf32>
      %c0_11 = arith.constant 0 : index
      %c0_12 = arith.constant 0 : index
      %14 = vector.load %arg7[%c0_11, %c0_12] : memref<16x128xf32, #tpu.memory_space<vmem>>, vector<16x128xf32>
      tpu.vector_store %arg7[%c0_11, %c0_12], %13 {strides = array<i32>} : memref<16x128xf32, #tpu.memory_space<vmem>>, vector<16x128xf32>,
    } else {
    }
    %c0 = arith.constant 0 : index
    %c0_1 = arith.constant 0 : index
    %3 = vector.load %arg7[%c0, %c0_1] : memref<16x128xf32, #tpu.memory_space<vmem>>, vector<16x128xf32>
    %c0_2 = arith.constant 0 : index
    %c0_3 = arith.constant 0 : index
    %4 = vector.load %arg3[%c0_2, %c0_3] : memref<16x128xf32, #tpu.memory_space<vmem>>, vector<16x128xf32>
    %5 = arith.truncf %4 : vector<16x128xf32> to vector<16x128xbf16>
    %c0_4 = arith.constant 0 : index
    %c0_5 = arith.constant 0 : index
    %6 = vector.load %arg4[%c0_4, %c0_5] : memref<128x128xbf16, #tpu.memory_space<vmem>>, vector<128x128xbf16>
    %cst = arith.constant dense<0.000000e+00> : vector<16x128xf32>
    %7 = tpu.matmul %5, %6, %cst {dimension_numbers = #tpu.dot_dimension_numbers<[1], [0], [0], [1], [0, 0, 1, 1], [], []>} : vector<16x128xbf16>, vector<128x128xbf16>, vector<16x128xf32> -> vector<16x128xf32>
    %8 = arith.addf %3, %7 : vector<16x128xf32>
    %c0_6 = arith.constant 0 : index
    %c0_7 = arith.constant 0 : index
    %9 = vector.load %arg7[%c0_6, %c0_7] : memref<16x128xf32, #tpu.memory_space<vmem>>, vector<16x128xf32>
    tpu.vector_store %arg7[%c0_6, %c0_7], %8 {strides = array<i32>} : memref<16x128xf32, #tpu.memory_space<vmem>>, vector<16x128xf32>,
    %c0_i32_8 = arith.constant 0 : i32
    %10 = arith.cmpi eq, %arg2, %c0_i32_8 : i32
    %11 = arith.extui %10 : i1 to i32
    %c0_i32_9 = arith.constant 0 : i32
    %12 = arith.cmpi ne, %11, %c0_i32_9 : i32
    scf.if %12 {
      %c0_10 = arith.constant 0 : index
      %c0_11 = arith.constant 0 : index
      %13 = vector.load %arg7[%c0_10, %c0_11] : memref<16x128xf32, #tpu.memory_space<vmem>>, vector<16x128xf32>
      %c0_12 = arith.constant 0 : index
      %c0_13 = arith.constant 0 : index
      %14 = vector.load %arg5[%c0_12, %c0_13] : memref<1x128xf32, #tpu.memory_space<vmem>>, vector<1x128xf32>
      %15 = vector.broadcast %14 : vector<1x128xf32> to vector<16x128xf32>
      %16 = arith.addf %13, %15 : vector<16x128xf32>
      %cst_14 = arith.constant 5.000000e-01 : f32
      %17 = vector.broadcast %cst_14 : f32 to vector<16x128xf32>
      %18 = arith.mulf %17, %16 : vector<16x128xf32>
      %cst_15 = arith.constant 4.471500e-02 : f32
      %19 = vector.broadcast %cst_15 : f32 to vector<16x128xf32>
      %20 = arith.mulf %19, %16 : vector<16x128xf32>
      %21 = arith.mulf %20, %16 : vector<16x128xf32>
      %22 = arith.mulf %21, %16 : vector<16x128xf32>
      %23 = arith.addf %16, %22 : vector<16x128xf32>
      %cst_16 = arith.constant 0.797884583 : f32
      %24 = vector.broadcast %cst_16 : f32 to vector<16x128xf32>
      %25 = arith.mulf %24, %23 : vector<16x128xf32>
      %26 = math.tanh %25 : vector<16x128xf32>
      %cst_17 = arith.constant 1.000000e+00 : f32
      %27 = vector.broadcast %cst_17 : f32 to vector<16x128xf32>
      %28 = arith.addf %27, %26 : vector<16x128xf32>
      %29 = arith.mulf %18, %28 : vector<16x128xf32>
      %c0_18 = arith.constant 0 : index
      %c0_19 = arith.constant 0 : index
      %30 = vector.load %arg6[%c0_18, %c0_19] : memref<16x128xf32, #tpu.memory_space<vmem>>, vector<16x128xf32>
      tpu.vector_store %arg6[%c0_18, %c0_19], %29 {strides = array<i32>} : memref<16x128xf32, #tpu.memory_space<vmem>>, vector<16x128xf32>,
    } else {
    }
    return
  }
  func.func @transform_0(%arg0: i32, %arg1: i32, %arg2: i32) -> (i32, i32) {
    %c0_i32 = arith.constant 0 : i32
    return %arg0, %arg2 : i32, i32
  }
  func.func @transform_1(%arg0: i32, %arg1: i32, %arg2: i32) -> (i32, i32) {
    %c0_i32 = arith.constant 0 : i32
    return %arg2, %arg1 : i32, i32
  }
  func.func @transform_2(%arg0: i32, %arg1: i32, %arg2: i32) -> (i32, i32) {
    %c0_i32 = arith.constant 0 : i32
    %c0_i32_0 = arith.constant 0 : i32
    return %c0_i32, %arg1 : i32, i32
  }
  func.func @transform_3(%arg0: i32, %arg1: i32, %arg2: i32) -> (i32, i32) {
    %c0_i32 = arith.constant 0 : i32
    return %arg0, %arg1 : i32, i32
  }
}

module attributes {stable_mosaic.version = 11 : i64} {
  func.func @_linear_ln_residual_kernel(%arg0: i32, %arg1: i32, %arg2: memref<16x128xf32, #tpu.memory_space<vmem>>, %arg3: memref<128x128xbf16, #tpu.memory_space<vmem>>, %arg4: memref<1x128xf32, #tpu.memory_space<vmem>>, %arg5: memref<1x128xf32, #tpu.memory_space<vmem>>, %arg6: memref<1x128xf32, #tpu.memory_space<vmem>>, %arg7: memref<16x128xf32, #tpu.memory_space<vmem>>, %arg8: memref<16x128xf32, #tpu.memory_space<vmem>>, %arg9: memref<16x128xf32, #tpu.memory_space<vmem>>) attributes {dimension_semantics = [#tpu.dimension_semantics<parallel>, #tpu.dimension_semantics<arbitrary>], iteration_bounds = array<i64: 1, 1>, scalar_prefetch = 0 : i64, scratch_operands = 1 : i64, tpu.core_type = #tpu.core_type<tc>, window_params = [{transform_indices = @transform_0, window_bounds = array<i64: 16, 128>}, {transform_indices = @transform_1, window_bounds = array<i64: 128, 128>}, {pipeline_mode = #tpu.pipeline_mode<synchronous>, transform_indices = @transform_2, window_bounds = array<i64: 1, 128>}, {pipeline_mode = #tpu.pipeline_mode<synchronous>, transform_indices = @transform_3, window_bounds = array<i64: 1, 128>}, {pipeline_mode = #tpu.pipeline_mode<synchronous>, transform_indices = @transform_4, window_bounds = array<i64: 1, 128>}, {transform_indices = @transform_5, window_bounds = array<i64: 16, 128>}, {transform_indices = @transform_6, window_bounds = array<i64: 16, 128>}]} {
    %c0_i32 = arith.constant 0 : i32
    %0 = arith.cmpi eq, %arg1, %c0_i32 : i32
    %1 = arith.extui %0 : i1 to i32
    %c0_i32_0 = arith.constant 0 : i32
    %2 = arith.cmpi ne, %1, %c0_i32_0 : i32
    scf.if %2 {
      %cst_10 = arith.constant 0.000000e+00 : f32
      %13 = vector.broadcast %cst_10 : f32 to vector<16x128xf32>
      %c0_11 = arith.constant 0 : index
      %c0_12 = arith.constant 0 : index
      %14 = vector.load %arg9[%c0_11, %c0_12] : memref<16x128xf32, #tpu.memory_space<vmem>>, vector<16x128xf32>
      tpu.vector_store %arg9[%c0_11, %c0_12], %13 {strides = array<i32>} : memref<16x128xf32, #tpu.memory_space<vmem>>, vector<16x128xf32>,
    } else {
    }
    %c0 = arith.constant 0 : index
    %c0_1 = arith.constant 0 : index
    %3 = vector.load %arg9[%c0, %c0_1] : memref<16x128xf32, #tpu.memory_space<vmem>>, vector<16x128xf32>
    %c0_2 = arith.constant 0 : index
    %c0_3 = arith.constant 0 : index
    %4 = vector.load %arg2[%c0_2, %c0_3] : memref<16x128xf32, #tpu.memory_space<vmem>>, vector<16x128xf32>
    %5 = arith.truncf %4 : vector<16x128xf32> to vector<16x128xbf16>
    %c0_4 = arith.constant 0 : index
    %c0_5 = arith.constant 0 : index
    %6 = vector.load %arg3[%c0_4, %c0_5] : memref<128x128xbf16, #tpu.memory_space<vmem>>, vector<128x128xbf16>
    %cst = arith.constant dense<0.000000e+00> : vector<16x128xf32>
    %7 = tpu.matmul %5, %6, %cst {dimension_numbers = #tpu.dot_dimension_numbers<[1], [0], [0], [1], [0, 0, 1, 1], [], []>} : vector<16x128xbf16>, vector<128x128xbf16>, vector<16x128xf32> -> vector<16x128xf32>
    %8 = arith.addf %3, %7 : vector<16x128xf32>
    %c0_6 = arith.constant 0 : index
    %c0_7 = arith.constant 0 : index
    %9 = vector.load %arg9[%c0_6, %c0_7] : memref<16x128xf32, #tpu.memory_space<vmem>>, vector<16x128xf32>
    tpu.vector_store %arg9[%c0_6, %c0_7], %8 {strides = array<i32>} : memref<16x128xf32, #tpu.memory_space<vmem>>, vector<16x128xf32>,
    %c0_i32_8 = arith.constant 0 : i32
    %10 = arith.cmpi eq, %arg1, %c0_i32_8 : i32
    %11 = arith.extui %10 : i1 to i32
    %c0_i32_9 = arith.constant 0 : i32
    %12 = arith.cmpi ne, %11, %c0_i32_9 : i32
    scf.if %12 {
      %c0_10 = arith.constant 0 : index
      %c0_11 = arith.constant 0 : index
      %13 = vector.load %arg9[%c0_10, %c0_11] : memref<16x128xf32, #tpu.memory_space<vmem>>, vector<16x128xf32>
      %c0_12 = arith.constant 0 : index
      %c0_13 = arith.constant 0 : index
      %14 = vector.load %arg4[%c0_12, %c0_13] : memref<1x128xf32, #tpu.memory_space<vmem>>, vector<1x128xf32>
      %15 = vector.broadcast %14 : vector<1x128xf32> to vector<16x128xf32>
      %16 = arith.addf %13, %15 : vector<16x128xf32>
      %17 = tpu.iota {dimensions = array<i32: 1>} : vector<16x128xi32>
      %c32_i32 = arith.constant 32 : i32
      %18 = vector.broadcast %c32_i32 : i32 to vector<16x128xi32>
      %19 = arith.cmpi slt, %17, %18 : vector<16x128xi32>
      %cst_14 = arith.constant 0.000000e+00 : f32
      %20 = vector.broadcast %cst_14 : f32 to vector<16x128xf32>
      %21 = arith.select %19, %16, %20 : vector<16x128xi1>, vector<16x128xf32>
      %cst_15 = arith.constant dense<0.000000e+00> : vector<16xf32>
      %22 = vector.multi_reduction <add>, %21, %cst_15 [1] : vector<16x128xf32> to vector<16xf32>
      %23 = vector.shape_cast %22 : vector<16xf32> to vector<16x1xf32>
      %cst_16 = arith.constant 3.125000e-02 : f32
      %24 = vector.broadcast %cst_16 : f32 to vector<16x1xf32>
      %25 = arith.mulf %23, %24 : vector<16x1xf32>
      %26 = vector.broadcast %25 : vector<16x1xf32> to vector<16x128xf32>
      %27 = arith.subf %16, %26 : vector<16x128xf32>
      %cst_17 = arith.constant 0.000000e+00 : f32
      %28 = vector.broadcast %cst_17 : f32 to vector<16x128xf32>
      %29 = arith.select %19, %27, %28 : vector<16x128xi1>, vector<16x128xf32>
      %30 = arith.mulf %29, %29 : vector<16x128xf32>
      %cst_18 = arith.constant dense<0.000000e+00> : vector<16xf32>
      %31 = vector.multi_reduction <add>, %30, %cst_18 [1] : vector<16x128xf32> to vector<16xf32>
      %32 = vector.shape_cast %31 : vector<16xf32> to vector<16x1xf32>
      %cst_19 = arith.constant 3.125000e-02 : f32
      %33 = vector.broadcast %cst_19 : f32 to vector<16x1xf32>
      %34 = arith.mulf %32, %33 : vector<16x1xf32>
      %cst_20 = arith.constant 9.99999974E-6 : f32
      %35 = vector.broadcast %cst_20 : f32 to vector<16x1xf32>
      %36 = arith.addf %34, %35 : vector<16x1xf32>
      %37 = math.rsqrt %36 : vector<16x1xf32>
      %38 = vector.broadcast %37 : vector<16x1xf32> to vector<16x128xf32>
      %39 = arith.mulf %29, %38 : vector<16x128xf32>
      %c0_21 = arith.constant 0 : index
      %c0_22 = arith.constant 0 : index
      %40 = vector.load %arg5[%c0_21, %c0_22] : memref<1x128xf32, #tpu.memory_space<vmem>>, vector<1x128xf32>
      %41 = vector.broadcast %40 : vector<1x128xf32> to vector<16x128xf32>
      %42 = arith.mulf %39, %41 : vector<16x128xf32>
      %c0_23 = arith.constant 0 : index
      %c0_24 = arith.constant 0 : index
      %43 = vector.load %arg6[%c0_23, %c0_24] : memref<1x128xf32, #tpu.memory_space<vmem>>, vector<1x128xf32>
      %44 = vector.broadcast %43 : vector<1x128xf32> to vector<16x128xf32>
      %45 = arith.addf %42, %44 : vector<16x128xf32>
      %c0_25 = arith.constant 0 : index
      %c0_26 = arith.constant 0 : index
      %46 = vector.load %arg7[%c0_25, %c0_26] : memref<16x128xf32, #tpu.memory_space<vmem>>, vector<16x128xf32>
      %47 = arith.addf %46, %45 : vector<16x128xf32>
      %c0_27 = arith.constant 0 : index
      %c0_28 = arith.constant 0 : index
      %48 = vector.load %arg8[%c0_27, %c0_28] : memref<16x128xf32, #tpu.memory_space<vmem>>, vector<16x128xf32>
      tpu.vector_store %arg8[%c0_27, %c0_28], %47 {strides = array<i32>} : memref<16x128xf32, #tpu.memory_space<vmem>>, vector<16x128xf32>,
    } else {
    }
    return
  }
  func.func @transform_0(%arg0: i32, %arg1: i32) -> (i32, i32) {
    %c0_i32 = arith.constant 0 : i32
    return %arg0, %arg1 : i32, i32
  }
  func.func @transform_1(%arg0: i32, %arg1: i32) -> (i32, i32) {
    %c0_i32 = arith.constant 0 : i32
    %c0_i32_0 = arith.constant 0 : i32
    return %arg1, %c0_i32 : i32, i32
  }
  func.func @transform_2(%arg0: i32, %arg1: i32) -> (i32, i32) {
    %c0_i32 = arith.constant 0 : i32
    %c0_i32_0 = arith.constant 0 : i32
    %c0_i32_1 = arith.constant 0 : i32
    return %c0_i32, %c0_i32_0 : i32, i32
  }
  func.func @transform_3(%arg0: i32, %arg1: i32) -> (i32, i32) {
    %c0_i32 = arith.constant 0 : i32
    %c0_i32_0 = arith.constant 0 : i32
    %c0_i32_1 = arith.constant 0 : i32
    return %c0_i32, %c0_i32_0 : i32, i32
  }
  func.func @transform_4(%arg0: i32, %arg1: i32) -> (i32, i32) {
    %c0_i32 = arith.constant 0 : i32
    %c0_i32_0 = arith.constant 0 : i32
    %c0_i32_1 = arith.constant 0 : i32
    return %c0_i32, %c0_i32_0 : i32, i32
  }
  func.func @transform_5(%arg0: i32, %arg1: i32) -> (i32, i32) {
    %c0_i32 = arith.constant 0 : i32
    %c0_i32_0 = arith.constant 0 : i32
    return %arg0, %c0_i32 : i32, i32
  }
  func.func @transform_6(%arg0: i32, %arg1: i32) -> (i32, i32) {
    %c0_i32 = arith.constant 0 : i32
    %c0_i32_0 = arith.constant 0 : i32
    return %arg0, %c0_i32 : i32, i32
  }
}

module attributes {stable_mosaic.version = 11 : i64} {
  func.func @_linear_kernel(%arg0: i32, %arg1: i32, %arg2: i32, %arg3: memref<8x128xf32, #tpu.memory_space<vmem>>, %arg4: memref<128x128xbf16, #tpu.memory_space<vmem>>, %arg5: memref<1x128xf32, #tpu.memory_space<vmem>>, %arg6: memref<8x128xf32, #tpu.memory_space<vmem>>, %arg7: memref<8x128xf32, #tpu.memory_space<vmem>>) attributes {dimension_semantics = [#tpu.dimension_semantics<parallel>, #tpu.dimension_semantics<parallel>, #tpu.dimension_semantics<arbitrary>], iteration_bounds = array<i64: 1, 1, 1>, scalar_prefetch = 0 : i64, scratch_operands = 1 : i64, tpu.core_type = #tpu.core_type<tc>, window_params = [{transform_indices = @transform_0, window_bounds = array<i64: 8, 128>}, {transform_indices = @transform_1, window_bounds = array<i64: 128, 128>}, {transform_indices = @transform_2, window_bounds = array<i64: 1, 128>}, {transform_indices = @transform_3, window_bounds = array<i64: 8, 128>}]} {
    %c0_i32 = arith.constant 0 : i32
    %0 = arith.cmpi eq, %arg2, %c0_i32 : i32
    %1 = arith.extui %0 : i1 to i32
    %c0_i32_0 = arith.constant 0 : i32
    %2 = arith.cmpi ne, %1, %c0_i32_0 : i32
    scf.if %2 {
      %cst_10 = arith.constant 0.000000e+00 : f32
      %13 = vector.broadcast %cst_10 : f32 to vector<8x128xf32>
      %c0_11 = arith.constant 0 : index
      %c0_12 = arith.constant 0 : index
      %14 = vector.load %arg7[%c0_11, %c0_12] : memref<8x128xf32, #tpu.memory_space<vmem>>, vector<8x128xf32>
      tpu.vector_store %arg7[%c0_11, %c0_12], %13 {strides = array<i32>} : memref<8x128xf32, #tpu.memory_space<vmem>>, vector<8x128xf32>,
    } else {
    }
    %c0 = arith.constant 0 : index
    %c0_1 = arith.constant 0 : index
    %3 = vector.load %arg7[%c0, %c0_1] : memref<8x128xf32, #tpu.memory_space<vmem>>, vector<8x128xf32>
    %c0_2 = arith.constant 0 : index
    %c0_3 = arith.constant 0 : index
    %4 = vector.load %arg3[%c0_2, %c0_3] : memref<8x128xf32, #tpu.memory_space<vmem>>, vector<8x128xf32>
    %5 = arith.truncf %4 : vector<8x128xf32> to vector<8x128xbf16>
    %c0_4 = arith.constant 0 : index
    %c0_5 = arith.constant 0 : index
    %6 = vector.load %arg4[%c0_4, %c0_5] : memref<128x128xbf16, #tpu.memory_space<vmem>>, vector<128x128xbf16>
    %cst = arith.constant dense<0.000000e+00> : vector<8x128xf32>
    %7 = tpu.matmul %5, %6, %cst {dimension_numbers = #tpu.dot_dimension_numbers<[1], [0], [0], [1], [0, 0, 1, 1], [], []>} : vector<8x128xbf16>, vector<128x128xbf16>, vector<8x128xf32> -> vector<8x128xf32>
    %8 = arith.addf %3, %7 : vector<8x128xf32>
    %c0_6 = arith.constant 0 : index
    %c0_7 = arith.constant 0 : index
    %9 = vector.load %arg7[%c0_6, %c0_7] : memref<8x128xf32, #tpu.memory_space<vmem>>, vector<8x128xf32>
    tpu.vector_store %arg7[%c0_6, %c0_7], %8 {strides = array<i32>} : memref<8x128xf32, #tpu.memory_space<vmem>>, vector<8x128xf32>,
    %c0_i32_8 = arith.constant 0 : i32
    %10 = arith.cmpi eq, %arg2, %c0_i32_8 : i32
    %11 = arith.extui %10 : i1 to i32
    %c0_i32_9 = arith.constant 0 : i32
    %12 = arith.cmpi ne, %11, %c0_i32_9 : i32
    scf.if %12 {
      %c0_10 = arith.constant 0 : index
      %c0_11 = arith.constant 0 : index
      %13 = vector.load %arg7[%c0_10, %c0_11] : memref<8x128xf32, #tpu.memory_space<vmem>>, vector<8x128xf32>
      %c0_12 = arith.constant 0 : index
      %c0_13 = arith.constant 0 : index
      %14 = vector.load %arg5[%c0_12, %c0_13] : memref<1x128xf32, #tpu.memory_space<vmem>>, vector<1x128xf32>
      %15 = vector.broadcast %14 : vector<1x128xf32> to vector<8x128xf32>
      %16 = arith.addf %13, %15 : vector<8x128xf32>
      %c0_14 = arith.constant 0 : index
      %c0_15 = arith.constant 0 : index
      %17 = vector.load %arg6[%c0_14, %c0_15] : memref<8x128xf32, #tpu.memory_space<vmem>>, vector<8x128xf32>
      tpu.vector_store %arg6[%c0_14, %c0_15], %16 {strides = array<i32>} : memref<8x128xf32, #tpu.memory_space<vmem>>, vector<8x128xf32>,
    } else {
    }
    return
  }
  func.func @transform_0(%arg0: i32, %arg1: i32, %arg2: i32) -> (i32, i32) {
    %c0_i32 = arith.constant 0 : i32
    return %arg0, %arg2 : i32, i32
  }
  func.func @transform_1(%arg0: i32, %arg1: i32, %arg2: i32) -> (i32, i32) {
    %c0_i32 = arith.constant 0 : i32
    return %arg2, %arg1 : i32, i32
  }
  func.func @transform_2(%arg0: i32, %arg1: i32, %arg2: i32) -> (i32, i32) {
    %c0_i32 = arith.constant 0 : i32
    %c0_i32_0 = arith.constant 0 : i32
    return %c0_i32, %arg1 : i32, i32
  }
  func.func @transform_3(%arg0: i32, %arg1: i32, %arg2: i32) -> (i32, i32) {
    %c0_i32 = arith.constant 0 : i32
    return %arg0, %arg1 : i32, i32
  }
}

</mosaic_0001>

<llo_original>
// kernel: _lambda_.27
$region0: #{_lambda_.27}
  #allocation0 [shape = 'u32[]', space=smem, size = 0x4, offset = 0x4, fixed_abs, tag = 'smem constant byte address 0x4 - core index']
  #allocation1 [shape = 'u32[144,128]{1,0:T(1,128)}', space=vmem, size = 0x12000, scoped, tag = 'internal scratch']
  #allocation2 [shape = 'f32[16,256]{1,0:T(8,128)}', space=vmem, size = 0x4000, scoped, tag = 'scratch operand']
  %s0 = inlined_call_operand.vmem [shape: f32[16,128], index: 0, kind: input, shape index: {}]
  %s1 = inlined_call_operand.vmem [shape: bf16[128,256], index: 1, kind: input, shape index: {}]
  %s2 = inlined_call_operand.vmem [shape: f32[16,256], index: 2, kind: output, shape index: {}]
  %s3 = sld [smem:[#allocation0]]
  $region26: #{_lambda_.27} parent=0
    _
  %s5 = ssub.s32 1, %s3
  %s6 = scalar_select 0, %s5, %s3
  // Predicated region
  $region2: #{_lambda_.27} parent=0 // pred_check
    _
  $region3: #{_lambda_.27} parent=0 // pred_check_branch
    %8 = sbr.rel (0) target = $region5
  $region4: #{_lambda_.27} parent=0 // pred_region
    _
  $region5: #{_lambda_.27} parent=0 // pred_fallthru
    _
  // Predicated region
  $region6: #{_lambda_.27} parent=0 // pred_check
    _
  $region7: #{_lambda_.27} parent=0 // pred_check_branch
    %10 = sbr.rel (0) target = $region9
  $region8: #{_lambda_.27} parent=0 // pred_region
    _
  $region9: #{_lambda_.27} parent=0 // pred_fallthru
    _
  %p12 = scmp.eq.s32.totalorder 0, 0
  // Predicated region
  $region10: #{_lambda_.27} parent=0 // pred_check
    %p13 = pneg %p12
  $region11: #{_lambda_.27} parent=0 // pred_check_branch
    %15 = sbr.rel (%p13) target = $region13
  $region12: #{_lambda_.27} parent=0 // pred_region
    %16 = vst [vmem:[#allocation2] sm:$0xff] 0.0
    %17 = vst [vmem:[#allocation2 + $0x8] sm:$0xff] 0.0
    %18 = vst [vmem:[#allocation2 + $0x10] sm:$0xff] 0.0
    %19 = vst [vmem:[#allocation2 + $0x18] sm:$0xff] 0.0
  $region13: #{_lambda_.27} parent=0 // pred_fallthru
    _
  %v20 = vld [vmem:[#allocation2] sm:$0xff]
  %v21 = vld [vmem:[#allocation2 + $0x8] sm:$0xff]
  %v22 = vld [vmem:[#allocation2 + $0x10] sm:$0xff]
  %v23 = vld [vmem:[#allocation2 + $0x18] sm:$0xff]
  %v24 = vld [vmem:[%s0] sm:$0xff]
  %v25 = vld [vmem:[%s0 + $0x8] sm:$0xff]
  %v26 = vpack.c.bf16 %v25, %v24
  %v27 = vld [vmem:[%s1] sm:$0xff]
  %v28 = vld [vmem:[%s1 + $0x8] sm:$0xff]
  %v29 = vld [vmem:[%s1 + $0x10] sm:$0xff]
  %v30 = vld [vmem:[%s1 + $0x18] sm:$0xff]
  %v31 = vld [vmem:[%s1 + $0x20] sm:$0xff]
  %v32 = vld [vmem:[%s1 + $0x28] sm:$0xff]
  %v33 = vld [vmem:[%s1 + $0x30] sm:$0xff]
  %v34 = vld [vmem:[%s1 + $0x38] sm:$0xff]
  %v35 = vld [vmem:[%s1 + $0x40] sm:$0xff]
  %v36 = vld [vmem:[%s1 + $0x48] sm:$0xff]
  %v37 = vld [vmem:[%s1 + $0x50] sm:$0xff]
  %v38 = vld [vmem:[%s1 + $0x58] sm:$0xff]
  %v39 = vld [vmem:[%s1 + $0x60] sm:$0xff]
  %v40 = vld [vmem:[%s1 + $0x68] sm:$0xff]
  %v41 = vld [vmem:[%s1 + $0x70] sm:$0xff]
  %v42 = vld [vmem:[%s1 + $0x78] sm:$0xff]
  %v59 = vunpack.c.l.b16 %v27
  %v60 = vunpack.c.h.b16 %v27
  %v61 = vunpack.c.l.b16 %v28
  %v62 = vunpack.c.h.b16 %v28
  %v63 = vunpack.c.l.b16 %v29
  %v64 = vunpack.c.h.b16 %v29
  %v65 = vunpack.c.l.b16 %v30
  %v66 = vunpack.c.h.b16 %v30
  %v67 = vunpack.c.l.b16 %v31
  %v68 = vunpack.c.h.b16 %v31
  %v69 = vunpack.c.l.b16 %v32
  %v70 = vunpack.c.h.b16 %v32
  %v71 = vunpack.c.l.b16 %v33
  %v72 = vunpack.c.h.b16 %v33
  %v73 = vunpack.c.l.b16 %v34
  %v74 = vunpack.c.h.b16 %v34
  %v75 = vunpack.c.l.b16 %v35
  %v76 = vunpack.c.h.b16 %v35
  %v77 = vunpack.c.l.b16 %v36
  %v78 = vunpack.c.h.b16 %v36
  %v79 = vunpack.c.l.b16 %v37
  %v80 = vunpack.c.h.b16 %v37
  %v81 = vunpack.c.l.b16 %v38
  %v82 = vunpack.c.h.b16 %v38
  %v83 = vunpack.c.l.b16 %v39
  %v84 = vunpack.c.h.b16 %v39
  %v85 = vunpack.c.l.b16 %v40
  %v86 = vunpack.c.h.b16 %v40
  %v87 = vunpack.c.l.b16 %v41
  %v88 = vunpack.c.h.b16 %v41
  %v89 = vunpack.c.l.b16 %v42
  %v90 = vunpack.c.h.b16 %v42
  %v91 = vpack.c.b16 %v61, %v59
  %v92 = vpack.c.b16 %v62, %v60
  %v93 = vpack.c.b16 %v65, %v63
  %v94 = vpack.c.b16 %v66, %v64
  %v95 = vpack.c.b16 %v69, %v67
  %v96 = vpack.c.b16 %v70, %v68
  %v97 = vpack.c.b16 %v73, %v71
  %v98 = vpack.c.b16 %v74, %v72
  %v99 = vpack.c.b16 %v77, %v75
  %v100 = vpack.c.b16 %v78, %v76
  %v101 = vpack.c.b16 %v81, %v79
  %v102 = vpack.c.b16 %v82, %v80
  %v103 = vpack.c.b16 %v85, %v83
  %v104 = vpack.c.b16 %v86, %v84
  %v105 = vpack.c.b16 %v89, %v87
  %v106 = vpack.c.b16 %v90, %v88
  %123 = vmatprep.subr.bf16.mxu0 %v106
  %124 = vmatpush1.bf16.msra.mxu0 %v105
  %125 = vmatprep.subr.bf16.mxu0 %v104
  %126 = vmatpush1.bf16.msra.mxu0 %v103
  %127 = vmatprep.subr.bf16.mxu0 %v102
  %128 = vmatpush1.bf16.msra.mxu0 %v101
  %129 = vmatprep.subr.bf16.mxu0 %v100
  %130 = vmatpush1.bf16.msra.mxu0 %v99
  %131 = vmatprep.subr.bf16.mxu0 %v98
  %132 = vmatpush1.bf16.msra.mxu0 %v97
  %133 = vmatprep.subr.bf16.mxu0 %v96
  %134 = vmatpush1.bf16.msra.mxu0 %v95
  %135 = vmatprep.subr.bf16.mxu0 %v94
  %136 = vmatpush1.bf16.msra.mxu0 %v93
  %137 = vmatprep.subr.bf16.mxu0 %v92
  %138 = vmatpush1.bf16.msra.mxu0 %v91
  %139 = vmatprep.subr.bf16.mxu0 0
  %140 = vmatpush2.bf16.msra.mxu0 0
  %141 = vmatprep.subr.bf16.mxu0 0
  %142 = vmatpush2.bf16.msra.mxu0 0
  %143 = vmatprep.subr.bf16.mxu0 0
  %144 = vmatpush2.bf16.msra.mxu0 0
  %145 = vmatprep.subr.bf16.mxu0 0
  %146 = vmatpush2.bf16.msra.mxu0 0
  %147 = vmatprep.subr.bf16.mxu0 0
  %148 = vmatpush2.bf16.msra.mxu0 0
  %149 = vmatprep.subr.bf16.mxu0 0
  %150 = vmatpush2.bf16.msra.mxu0 0
  %151 = vmatprep.subr.bf16.mxu0 0
  %152 = vmatpush2.bf16.msra.mxu0 0
  %153 = vmatprep.subr.bf16.mxu0 0
  %154 = vmatpush2.bf16.msra.mxu0 0
  %155 = vmatprep.mubr.bf16.mxu0 0
  %156 = vmatmul.mubr.bf16.gmra.mxu0 %v26
  %v157 = vpop.f32.mrf.mxu0
  %v158 = vadd.f32 0.0, %v157
  %v159 = vpop.f32.mrf.mxu0
  %v160 = vadd.f32 0.0, %v159
  %v161 = vpop.f32.mrf.mxu0
  %v162 = vadd.f32 0.0, %v161
  %v163 = vpop.f32.mrf.mxu0
  %v164 = vadd.f32 0.0, %v163
  %165 = vdwg.mxu0
  %v166 = vadd.f32 %v20, %v158
  %v167 = vadd.f32 %v21, %v160
  %v168 = vadd.f32 %v22, %v162
  %v169 = vadd.f32 %v23, %v164
  %170 = vst [vmem:[#allocation2] sm:$0xff] %v166
  %171 = vst [vmem:[#allocation2 + $0x8] sm:$0xff] %v167
  %172 = vst [vmem:[#allocation2 + $0x10] sm:$0xff] %v168
  %173 = vst [vmem:[#allocation2 + $0x18] sm:$0xff] %v169
  // Predicated region
  $region14: #{_lambda_.27} parent=0 // pred_check
    %p174 = pneg %p12
  $region15: #{_lambda_.27} parent=0 // pred_check_branch
    %176 = sbr.rel (%p174) target = $region17
  $region16: #{_lambda_.27} parent=0 // pred_region
    %v177 = vld [vmem:[#allocation2] sm:$0xff]
    %v178 = vld [vmem:[#allocation2 + $0x8] sm:$0xff]
    %v179 = vld [vmem:[#allocation2 + $0x10] sm:$0xff]
    %v180 = vld [vmem:[#allocation2 + $0x18] sm:$0xff]
    %181 = vst [vmem:[%s2] sm:$0xff] %v177
    %182 = vst [vmem:[%s2 + $0x8] sm:$0xff] %v178
    %183 = vst [vmem:[%s2 + $0x10] sm:$0xff] %v179
    %184 = vst [vmem:[%s2 + $0x18] sm:$0xff] %v180
  $region17: #{_lambda_.27} parent=0 // pred_fallthru
    _
  // Predicated region
  $region18: #{_lambda_.27} parent=0 // pred_check
    _
  $region19: #{_lambda_.27} parent=0 // pred_check_branch
    %186 = sbr.rel (0) target = $region21
  $region20: #{_lambda_.27} parent=0 // pred_region
    _
  $region21: #{_lambda_.27} parent=0 // pred_fallthru
    _
  // Predicated region
  $region22: #{_lambda_.27} parent=0 // pred_check
    _
  $region23: #{_lambda_.27} parent=0 // pred_check_branch
    %188 = sbr.rel (0) target = $region25
  $region24: #{_lambda_.27} parent=0 // pred_region
    _
  $region25: #{_lambda_.27} parent=0 // pred_fallthru
    _

// kernel: _lambda_.26
$region0: #{_lambda_.26}
  #allocation0 [shape = 'u32[]', space=smem, size = 0x4, offset = 0x4, fixed_abs, tag = 'smem constant byte address 0x4 - core index']
  #allocation1 [shape = 'u32[144,128]{1,0:T(1,128)}', space=vmem, size = 0x12000, scoped, tag = 'internal scratch']
  #allocation2 [shape = 'f32[16,128]{1,0:T(8,128)}', space=vmem, size = 0x2000, scoped, tag = 'scratch operand']
  %s0 = inlined_call_operand.vmem [shape: f32[16,128], index: 0, kind: input, shape index: {}]
  %s1 = inlined_call_operand.vmem [shape: bf16[128,128], index: 1, kind: input, shape index: {}]
  %s2 = inlined_call_operand.vmem [shape: f32[1,128], index: 2, kind: input, shape index: {}]
  %s3 = inlined_call_operand.vmem [shape: f32[16,128], index: 3, kind: output, shape index: {}]
  %s4 = sld [smem:[#allocation0]]
  $region30: #{_lambda_.26} parent=0
    _
  %s6 = ssub.s32 1, %s4
  %s7 = scalar_select 0, %s6, %s4
  // Predicated region
  $region2: #{_lambda_.26} parent=0 // pred_check
    _
  $region3: #{_lambda_.26} parent=0 // pred_check_branch
    %9 = sbr.rel (0) target = $region5
  $region4: #{_lambda_.26} parent=0 // pred_region
    _
  $region5: #{_lambda_.26} parent=0 // pred_fallthru
    _
  // Predicated region
  $region6: #{_lambda_.26} parent=0 // pred_check
    _
  $region7: #{_lambda_.26} parent=0 // pred_check_branch
    %11 = sbr.rel (0) target = $region9
  $region8: #{_lambda_.26} parent=0 // pred_region
    _
  $region9: #{_lambda_.26} parent=0 // pred_fallthru
    _
  // Predicated region
  $region10: #{_lambda_.26} parent=0 // pred_check
    _
  $region11: #{_lambda_.26} parent=0 // pred_check_branch
    %13 = sbr.rel (0) target = $region13
  $region12: #{_lambda_.26} parent=0 // pred_region
    _
  $region13: #{_lambda_.26} parent=0 // pred_fallthru
    _
  %p15 = scmp.eq.s32.totalorder 0, 0
  // Predicated region
  $region14: #{_lambda_.26} parent=0 // pred_check
    %p16 = pneg %p15
  $region15: #{_lambda_.26} parent=0 // pred_check_branch
    %18 = sbr.rel (%p16) target = $region17
  $region16: #{_lambda_.26} parent=0 // pred_region
    %19 = vst [vmem:[#allocation2] sm:$0xff] 0.0
    %20 = vst [vmem:[#allocation2 + $0x8] sm:$0xff] 0.0
  $region17: #{_lambda_.26} parent=0 // pred_fallthru
    _
  %v21 = vld [vmem:[#allocation2] sm:$0xff]
  %v22 = vld [vmem:[#allocation2 + $0x8] sm:$0xff]
  %v23 = vld [vmem:[%s0] sm:$0xff]
  %v24 = vld [vmem:[%s0 + $0x8] sm:$0xff]
  %v25 = vpack.c.bf16 %v24, %v23
  %v26 = vld [vmem:[%s1] sm:$0xf]
  %v27 = vld [vmem:[%s1 + $0x4] sm:$0xf]
  %v28 = vld [vmem:[%s1 + $0x8] sm:$0xf]
  %v29 = vld [vmem:[%s1 + $0xc] sm:$0xf]
  %v30 = vld [vmem:[%s1 + $0x10] sm:$0xf]
  %v31 = vld [vmem:[%s1 + $0x14] sm:$0xf]
  %v32 = vld [vmem:[%s1 + $0x18] sm:$0xf]
  %v33 = vld [vmem:[%s1 + $0x1c] sm:$0xf]
  %v34 = vld [vmem:[%s1 + $0x20] sm:$0xf]
  %v35 = vld [vmem:[%s1 + $0x24] sm:$0xf]
  %v36 = vld [vmem:[%s1 + $0x28] sm:$0xf]
  %v37 = vld [vmem:[%s1 + $0x2c] sm:$0xf]
  %v38 = vld [vmem:[%s1 + $0x30] sm:$0xf]
  %v39 = vld [vmem:[%s1 + $0x34] sm:$0xf]
  %v40 = vld [vmem:[%s1 + $0x38] sm:$0xf]
  %v41 = vld [vmem:[%s1 + $0x3c] sm:$0xf]
  %v58 = vunpack.c.l.b16 %v26
  %v59 = vunpack.c.l.b16 %v27
  %v60 = vunpack.c.l.b16 %v28
  %v61 = vunpack.c.l.b16 %v29
  %v62 = vunpack.c.l.b16 %v30
  %v63 = vunpack.c.l.b16 %v31
  %v64 = vunpack.c.l.b16 %v32
  %v65 = vunpack.c.l.b16 %v33
  %v66 = vunpack.c.l.b16 %v34
  %v67 = vunpack.c.l.b16 %v35
  %v68 = vunpack.c.l.b16 %v36
  %v69 = vunpack.c.l.b16 %v37
  %v70 = vunpack.c.l.b16 %v38
  %v71 = vunpack.c.l.b16 %v39
  %v72 = vunpack.c.l.b16 %v40
  %v73 = vunpack.c.l.b16 %v41
  %v74 = vpack.c.b16 %v59, %v58
  %v75 = vpack.c.b16 %v61, %v60
  %v76 = vpack.c.b16 %v63, %v62
  %v77 = vpack.c.b16 %v65, %v64
  %v78 = vpack.c.b16 %v67, %v66
  %v79 = vpack.c.b16 %v69, %v68
  %v80 = vpack.c.b16 %v71, %v70
  %v81 = vpack.c.b16 %v73, %v72
  %90 = vmatprep.subr.bf16.mxu0 0
  %91 = vmatpush1.bf16.msra.mxu0 %v81
  %92 = vmatprep.subr.bf16.mxu0 0
  %93 = vmatpush1.bf16.msra.mxu0 %v80
  %94 = vmatprep.subr.bf16.mxu0 0
  %95 = vmatpush1.bf16.msra.mxu0 %v79
  %96 = vmatprep.subr.bf16.mxu0 0
  %97 = vmatpush1.bf16.msra.mxu0 %v78
  %98 = vmatprep.subr.bf16.mxu0 0
  %99 = vmatpush1.bf16.msra.mxu0 %v77
  %100 = vmatprep.subr.bf16.mxu0 0
  %101 = vmatpush1.bf16.msra.mxu0 %v76
  %102 = vmatprep.subr.bf16.mxu0 0
  %103 = vmatpush1.bf16.msra.mxu0 %v75
  %104 = vmatprep.subr.bf16.mxu0 0
  %105 = vmatpush1.bf16.msra.mxu0 %v74
  %106 = vmatprep.subr.bf16.mxu0 0
  %107 = vmatpush2.bf16.msra.mxu0 0
  %108 = vmatprep.subr.bf16.mxu0 0
  %109 = vmatpush2.bf16.msra.mxu0 0
  %110 = vmatprep.subr.bf16.mxu0 0
  %111 = vmatpush2.bf16.msra.mxu0 0
  %112 = vmatprep.subr.bf16.mxu0 0
  %113 = vmatpush2.bf16.msra.mxu0 0
  %114 = vmatprep.subr.bf16.mxu0 0
  %115 = vmatpush2.bf16.msra.mxu0 0
  %116 = vmatprep.subr.bf16.mxu0 0
  %117 = vmatpush2.bf16.msra.mxu0 0
  %118 = vmatprep.subr.bf16.mxu0 0
  %119 = vmatpush2.bf16.msra.mxu0 0
  %120 = vmatprep.subr.bf16.mxu0 0
  %121 = vmatpush2.bf16.msra.mxu0 0
  %122 = vmatprep.mubr.bf16.mxu0 0
  %123 = vmatmul.mubr.bf16.gmra.mxu0 %v25
  %v124 = vpop.f32.mrf.mxu0
  %v125 = vadd.f32 0.0, %v124
  %v126 = vpop.f32.mrf.mxu0
  %v127 = vpop.f32.mrf.mxu0
  %v128 = vadd.f32 0.0, %v127
  %v129 = vpop.f32.mrf.mxu0
  %130 = vdwg.mxu0
  %v131 = vadd.f32 %v21, %v125
  %v132 = vadd.f32 %v22, %v128
  %133 = vst [vmem:[#allocation2] sm:$0xff] %v131
  %134 = vst [vmem:[#allocation2 + $0x8] sm:$0xff] %v132
  // Predicated region
  $region18: #{_lambda_.26} parent=0 // pred_check
    %p135 = pneg %p15
  $region19: #{_lambda_.26} parent=0 // pred_check_branch
    %137 = sbr.rel (%p135) target = $region21
  $region20: #{_lambda_.26} parent=0 // pred_region
    %v138 = vld [vmem:[#allocation2] sm:$0xff]
    %v139 = vld [vmem:[#allocation2 + $0x8] sm:$0xff]
    %v140 = vld [vmem:[%s2] sm:$0x1]
    %v142 = vlaneseq
    %v143 = vshrl.u32 %v142, 7
    %v144 = vsub.s32 0, %v143
    %v145 = vrot.slane %v140, %v144
    %v147 = vadd.f32 %v138, %v145
    %v148 = vadd.f32 %v139, %v145
    %149 = vst [vmem:[%s3] sm:$0xff] %v147
    %150 = vst [vmem:[%s3 + $0x8] sm:$0xff] %v148
  $region21: #{_lambda_.26} parent=0 // pred_fallthru
    _
  // Predicated region
  $region22: #{_lambda_.26} parent=0 // pred_check
    _
  $region23: #{_lambda_.26} parent=0 // pred_check_branch
    %152 = sbr.rel (0) target = $region25
  $region24: #{_lambda_.26} parent=0 // pred_region
    _
  $region25: #{_lambda_.26} parent=0 // pred_fallthru
    _
  // Predicated region
  $region26: #{_lambda_.26} parent=0 // pred_check
    _
  $region27: #{_lambda_.26} parent=0 // pred_check_branch
    %154 = sbr.rel (0) target = $region29
  $region28: #{_lambda_.26} parent=0 // pred_region
    _
  $region29: #{_lambda_.26} parent=0 // pred_fallthru
    _

// kernel: _lambda_.28
$region0: #{_lambda_.28}
  #allocation0 [shape = 'u32[]', space=smem, size = 0x4, offset = 0x4, fixed_abs, tag = 'smem constant byte address 0x4 - core index']
  #allocation1 [shape = 'u32[144,128]{1,0:T(1,128)}', space=vmem, size = 0x12000, scoped, tag = 'internal scratch']
  %s0 = inlined_call_operand.vmem [shape: f32[2,8,256], index: 0, kind: input, shape index: {}, may-alias: {0,1}]
  %s1 = inlined_call_operand.vmem [shape: f32[2,8,256], index: 1, kind: input, shape index: {}, may-alias: {0,1}]
  %s2 = inlined_call_operand.vmem [shape: f32[4,128], index: 2, kind: input, shape index: {}]
  %s3 = inlined_call_operand.vmem [shape: f32[1,128], index: 3, kind: input, shape index: {}]
  %s4 = inlined_call_operand.vmem [shape: f32[2,8,128], index: 4, kind: output, shape index: {}]
  %s5 = sld [smem:[#allocation0]]
  $region49: #{_lambda_.28} parent=0
    _
  %s7 = ssub.s32 1, %s5
  %s8 = scalar_select 0, %s7, %s5
  loop: start=0, step=1, limit=4
  $region2: #{_lambda_.28} parent=0 // loop_pre_header
    _
  $region3: #{_lambda_.28} parent=0 // loop_header
    %s10 = sphi 0, %s14
    %p11 = scmp.ge.s32.totalorder %s10, 4
    %s17 = sphi 0, %s29
    %s18 = sphi 0, %s25
    %s19 = sphi 0, %s17
    %s20 = sphi 0, %s18
    %s21 = sphi 0, %s19
    %s22 = sphi 0, %s20
    %s34 = sphi 0, %s36
    %s37 = sphi 0, %s34
    %s38 = sphi 0, %s37
    %s54 = sphi 0, %s38
    %s68 = sphi 0, %s70
    %s71 = sphi 0, %s68
    %s72 = sphi 0, %s71
    %s88 = sphi 0, %s72
    %s92 = sphi 0, %s92
    %s94 = sphi 0, %s92
    %s95 = sphi 0, %s94
    %s109 = sphi 0, %s95
    %s113 = sphi 0, %s113
    %s115 = sphi 0, %s113
    %s116 = sphi 0, %s115
    %s130 = sphi 0, %s116
    %s138 = sphi 0, %s140
    %s141 = sphi 0, %s138
    %s142 = sphi 0, %s141
    %s158 = sphi 0, %s142
  $region4: #{_lambda_.28} parent=0 // loop_header_branch
    %13 = sbr.rel (%p11) target = $region8
  $region5: #{_lambda_.28} parent=0 // loop_body
    %s15 = ssub.s32 %s10, 1
    %s16 = ssub.s32 %s10, 2
    %s23 = sadd.s32 1, %s18
    %p24 = scmp.ge.s32.totalorder %s23, 1
    %s25 = scalar_select %p24, 0, %s23
    %s26 = sadd.s32 1, %s17
    %s27 = scalar_select %p24, %s26, %s17
    %p28 = scmp.ge.s32.totalorder %s27, 2
    %s29 = scalar_select %p28, 0, %s27
    %s30 = ssub.s32 %s17, %s29
    %s31 = ssub.s32 %s18, %s25
    %s32 = sor.u32 %s30, %s31
    %p33 = scmp.eq.s32.totalorder %s32, 0
    %s35 = sadd.s32 %s34, 1
    %s36 = scalar_select %p33, %s34, %s35
    %p39 = pneg %p33
    %p40 = scmp.eq.s32.totalorder %s10, 1
    %p41 = por %p39, %p40
    %p42 = scmp.ne.s32.totalorder %s34, %s37
    %p43 = scmp.eq.s32.totalorder %s10, 0
    %p44 = por %p42, %p43
    %p45 = scmp.ne.s32.totalorder %s34, %s37
    %p46 = scmp.eq.s32.totalorder %s15, 1
    %p47 = por %p45, %p46
    %p48 = scmp.ne.s32.totalorder %s37, %s38
    %p49 = scmp.eq.s32.totalorder %s15, 0
    %p50 = por %p48, %p49
    %p51 = scmp.ne.s32.totalorder %s37, %s38
    %p52 = scmp.eq.s32.totalorder %s16, 1
    %p53 = por %p51, %p52
    %p55 = scmp.ne.s32.totalorder %s38, %s54
    %p56 = scmp.eq.s32.totalorder %s16, 0
    %p57 = por %p55, %p56
    %s58 = ssub.s32 %s18, 1
    %p59 = scmp.gt.s32.totalorder %s58, 0
    %s60 = scalar_select %p59, %s58, 0
    %s61 = ssub.s32 %s25, 1
    %p62 = scmp.gt.s32.totalorder %s61, 0
    %s63 = scalar_select %p62, %s61, 0
    %s64 = ssub.s32 %s17, %s29
    %s65 = ssub.s32 %s60, %s63
    %s66 = sor.u32 %s64, %s65
    %p67 = scmp.eq.s32.totalorder %s66, 0
    %s69 = sadd.s32 %s68, 1
    %s70 = scalar_select %p67, %s68, %s69
    %p73 = pneg %p67
    %p74 = scmp.eq.s32.totalorder %s10, 1
    %p75 = por %p73, %p74
    %p76 = scmp.ne.s32.totalorder %s68, %s71
    %p77 = scmp.eq.s32.totalorder %s10, 0
    %p78 = por %p76, %p77
    %p79 = scmp.ne.s32.totalorder %s68, %s71
    %p80 = scmp.eq.s32.totalorder %s15, 1
    %p81 = por %p79, %p80
    %p82 = scmp.ne.s32.totalorder %s71, %s72
    %p83 = scmp.eq.s32.totalorder %s15, 0
    %p84 = por %p82, %p83
    %p85 = scmp.ne.s32.totalorder %s71, %s72
    %p86 = scmp.eq.s32.totalorder %s16, 1
    %p87 = por %p85, %p86
    %p89 = scmp.ne.s32.totalorder %s72, %s88
    %p90 = scmp.eq.s32.totalorder %s16, 0
    %p91 = por %p89, %p90
    %s93 = sadd.s32 %s92, 1
    %p96 = scmp.eq.s32.totalorder %s10, 1
    %p97 = scmp.ne.s32.totalorder %s92, %s94
    %p98 = scmp.eq.s32.totalorder %s10, 0
    %p99 = por %p97, %p98
    %p100 = scmp.ne.s32.totalorder %s92, %s94
    %p101 = scmp.eq.s32.totalorder %s15, 1
    %p102 = por %p100, %p101
    %p103 = scmp.ne.s32.totalorder %s94, %s95
    %p104 = scmp.eq.s32.totalorder %s15, 0
    %p105 = por %p103, %p104
    %p106 = scmp.ne.s32.totalorder %s94, %s95
    %p107 = scmp.eq.s32.totalorder %s16, 1
    %p108 = por %p106, %p107
    %p110 = scmp.ne.s32.totalorder %s95, %s109
    %p111 = scmp.eq.s32.totalorder %s16, 0
    %p112 = por %p110, %p111
    %s114 = sadd.s32 %s113, 1
    %p117 = scmp.eq.s32.totalorder %s10, 1
    %p118 = scmp.ne.s32.totalorder %s113, %s115
    %p119 = scmp.eq.s32.totalorder %s10, 0
    %p120 = por %p118, %p119
    %p121 = scmp.ne.s32.totalorder %s113, %s115
    %p122 = scmp.eq.s32.totalorder %s15, 1
    %p123 = por %p121, %p122
    %p124 = scmp.ne.s32.totalorder %s115, %s116
    %p125 = scmp.eq.s32.totalorder %s15, 0
    %p126 = por %p124, %p125
    %p127 = scmp.ne.s32.totalorder %s115, %s116
    %p128 = scmp.eq.s32.totalorder %s16, 1
    %p129 = por %p127, %p128
    %p131 = scmp.ne.s32.totalorder %s116, %s130
    %p132 = scmp.eq.s32.totalorder %s16, 0
    %p133 = por %p131, %p132
    %s134 = ssub.s32 %s17, %s29
    %s135 = ssub.s32 %s18, %s25
    %s136 = sor.u32 %s134, %s135
    %p137 = scmp.eq.s32.totalorder %s136, 0
    %s139 = sadd.s32 %s138, 1
    %s140 = scalar_select %p137, %s138, %s139
    %p143 = pneg %p137
    %p144 = scmp.eq.s32.totalorder %s10, 1
    %p145 = por %p143, %p144
    %p146 = scmp.ne.s32.totalorder %s138, %s141
    %p147 = scmp.eq.s32.totalorder %s10, 0
    %p148 = por %p146, %p147
    %p149 = scmp.ne.s32.totalorder %s138, %s141
    %p150 = scmp.eq.s32.totalorder %s15, 1
    %p151 = por %p149, %p150
    %p152 = scmp.ne.s32.totalorder %s141, %s142
    %p153 = scmp.eq.s32.totalorder %s15, 0
    %p154 = por %p152, %p153
    %p155 = scmp.ne.s32.totalorder %s141, %s142
    %p156 = scmp.eq.s32.totalorder %s16, 1
    %p157 = por %p155, %p156
    %p159 = scmp.ne.s32.totalorder %s142, %s158
    %p160 = scmp.eq.s32.totalorder %s16, 0
    %p161 = por %p159, %p160
    %p162 = scmp.le.s32.totalorder 1, %s10
    %p163 = scmp.lt.s32.totalorder %s10, 3
    %p164 = pnand %p162, %p163
    %p165 = pneg %p164
    // Predicated region
    $region9: #{_lambda_.28} parent=5 // pred_check
      _
    $region10: #{_lambda_.28} parent=5 // pred_check_branch
      %167 = sbr.rel (%p164) target = $region12
    $region11: #{_lambda_.28} parent=5 // pred_region
      %s168 = ssub.s32 %s10, 1
      // Predicated region
      $region13: #{_lambda_.28} parent=11 // pred_check
        %p169 = pneg %p105
      $region14: #{_lambda_.28} parent=11 // pred_check_branch
        %171 = sbr.rel (%p169) target = $region16
      $region15: #{_lambda_.28} parent=11 // pred_region
        _
      $region16: #{_lambda_.28} parent=11 // pred_fallthru
        _
      // Predicated region
      $region17: #{_lambda_.28} parent=11 // pred_check
        %p172 = pneg %p126
      $region18: #{_lambda_.28} parent=11 // pred_check_branch
        %174 = sbr.rel (%p172) target = $region20
      $region19: #{_lambda_.28} parent=11 // pred_region
        _
      $region20: #{_lambda_.28} parent=11 // pred_fallthru
        _
    $region12: #{_lambda_.28} parent=5 // pred_fallthru
      _
    %p175 = scmp.lt.s32.totalorder %s10, 2
    // Predicated region
    $region21: #{_lambda_.28} parent=5 // pred_check
      %p176 = pneg %p175
    $region22: #{_lambda_.28} parent=5 // pred_check_branch
      %178 = sbr.rel (%p176) target = $region24
    $region23: #{_lambda_.28} parent=5 // pred_region
      // Predicated region
      $region25: #{_lambda_.28} parent=23 // pred_check
        %p179 = pneg %p44
      $region26: #{_lambda_.28} parent=23 // pred_check_branch
        %181 = sbr.rel (%p179) target = $region28
      $region27: #{_lambda_.28} parent=23 // pred_region
        %p182 = scmp.lt.s32.totalorder %s17, 1
        %s183 = scalar_select %p182, %s17, 1
        %p184 = scmp.lt.s32.totalorder %s18, 0
        %s185 = scalar_select %p184, %s18, 0
        %s186 = smul.addr %s185, 2
        %s187 = smul.addr %s183, 2
        %s188 = sadd.s32 %s186, %s187
        %s189 = smul.addr %s188, 8
        %s190 = scalar_lea.vmem %s0, %s189
      $region28: #{_lambda_.28} parent=23 // pred_fallthru
        _
      // Predicated region
      $region29: #{_lambda_.28} parent=23 // pred_check
        %p191 = pneg %p78
      $region30: #{_lambda_.28} parent=23 // pred_check_branch
        %193 = sbr.rel (%p191) target = $region32
      $region31: #{_lambda_.28} parent=23 // pred_region
        %s194 = ssub.s32 %s18, 1
        %p195 = scmp.gt.s32.totalorder %s194, 0
        %s196 = scalar_select %p195, %s194, 0
        %p197 = scmp.lt.s32.totalorder %s17, 1
        %s198 = scalar_select %p197, %s17, 1
        %p199 = scmp.lt.s32.totalorder %s196, 0
        %s200 = scalar_select %p199, %s196, 0
        %s201 = smul.addr %s200, 2
        %s202 = smul.addr %s198, 2
        %s203 = sadd.s32 %s201, %s202
        %s204 = smul.addr %s203, 8
        %s205 = scalar_lea.vmem %s1, %s204
        %s206 = ssub.s32 %s18, 1
        %p207 = scmp.gt.s32.totalorder %s206, 0
        %s208 = scalar_select %p207, %s206, 0
      $region32: #{_lambda_.28} parent=23 // pred_fallthru
        _
    $region24: #{_lambda_.28} parent=5 // pred_fallthru
      _
    %p209 = scmp.le.s32.totalorder 1, %s10
    %p210 = scmp.lt.s32.totalorder %s10, 3
    %p211 = pnand %p209, %p210
    %p212 = pneg %p211
    // Predicated region
    $region33: #{_lambda_.28} parent=5 // pred_check
      _
    $region34: #{_lambda_.28} parent=5 // pred_check_branch
      %214 = sbr.rel (%p211) target = $region36
    $region35: #{_lambda_.28} parent=5 // pred_region
      %s215 = ssub.s32 %s10, 1
      %p216 = scmp.lt.s32.totalorder %s19, 1
      %s217 = scalar_select %p216, %s19, 1
      %p218 = scmp.lt.s32.totalorder %s20, 0
      %s219 = scalar_select %p218, %s20, 0
      %s220 = smul.addr %s219, 2
      %s221 = smul.addr %s217, 2
      %s222 = sadd.s32 %s220, %s221
      %s223 = smul.addr %s222, 8
      %s224 = scalar_lea.vmem %s0, %s223
      %p225 = pneg %p50
      %p226 = pneg %p47
      %s227 = ssub.s32 %s20, 1
      %p228 = scmp.gt.s32.totalorder %s227, 0
      %s229 = scalar_select %p228, %s227, 0
      %p230 = scmp.lt.s32.totalorder %s19, 1
      %s231 = scalar_select %p230, %s19, 1
      %p232 = scmp.lt.s32.totalorder %s229, 0
      %s233 = scalar_select %p232, %s229, 0
      %s234 = smul.addr %s233, 2
      %s235 = smul.addr %s231, 2
      %s236 = sadd.s32 %s234, %s235
      %s237 = smul.addr %s236, 8
      %s238 = scalar_lea.vmem %s1, %s237
      %p239 = pneg %p84
      %p240 = pneg %p81
      %p241 = pneg %p105
      %p242 = pneg %p102
      %p243 = pneg %p126
      %p244 = pneg %p123
      %p245 = pneg %p154
      %p246 = pneg %p151
      %p247 = scmp.lt.s32.totalorder %s19, 1
      %s248 = scalar_select %p247, %s19, 1
      %p249 = scmp.lt.s32.totalorder %s20, 0
      %s250 = scalar_select %p249, %s20, 0
      %s251 = sadd.s32 %s250, %s248
      %s252 = smul.addr %s251, 8
      %s253 = scalar_lea.vmem %s4, %s252
      %p254 = scmp.lt.s32.totalorder %s19, 1
      %s255 = scalar_select %p254, %s19, 1
      %p256 = scmp.lt.s32.totalorder %s20, 0
      %s257 = scalar_select %p256, %s20, 0
      %s258 = smul.addr %s257, 2
      %s259 = smul.addr %s255, 2
      %s260 = sadd.s32 %s258, %s259
      %s261 = smul.addr %s260, 8
      %s262 = scalar_lea.vmem %s0, %s261
      %s263 = ssub.s32 %s20, 1
      %p264 = scmp.gt.s32.totalorder %s263, 0
      %s265 = scalar_select %p264, %s263, 0
      %p266 = scmp.lt.s32.totalorder %s19, 1
      %s267 = scalar_select %p266, %s19, 1
      %p268 = scmp.lt.s32.totalorder %s265, 0
      %s269 = scalar_select %p268, %s265, 0
      %s270 = smul.addr %s269, 2
      %s271 = smul.addr %s267, 2
      %s272 = sadd.s32 %s270, %s271
      %s273 = smul.addr %s272, 8
      %s274 = scalar_lea.vmem %s1, %s273
      %s275 = ssub.s32 %s20, 1
      %p276 = scmp.gt.s32.totalorder %s275, 0
      %s277 = scalar_select %p276, %s275, 0
      %p278 = scmp.lt.s32.totalorder %s19, 1
      %s279 = scalar_select %p278, %s19, 1
      %p280 = scmp.lt.s32.totalorder %s20, 0
      %s281 = scalar_select %p280, %s20, 0
      %s282 = sadd.s32 %s281, %s279
      %s283 = smul.addr %s282, 8
      %s284 = scalar_lea.vmem %s4, %s283
      %v285 = vld [vmem:[%s262] sm:$0xff]
      %v286 = vld [vmem:[%s274] sm:$0xff]
      %p287 = scmp.eq.s32.totalorder %s20, 0
      %s288 = scalar_select %p287, 1, 0
      %v289 = vstv %s288
      %vm290 = vcmp.eq.s32.totalorder %v289, 1
      %v291 = vsel %vm290, 0.0, %v286
      %v293 = vrot.slane %v291, 5
      %v296 = vrot.slane %v285, 5
      %vm298 = vcmask 1042432
      %v299 = vsel %vm298, %v293, %v296
      %v300 = vld [vmem:[%s2 + $0x3] sm:$0x1]
      %v301 = vlaneseq
      %v302 = vshrl.u32 %v301, 7
      %v303 = vsub.s32 0, %v302
      %v304 = vrot.slane %v300, %v303
      %v305 = vmul.f32 %v299, %v304
      %v306 = vmul.f32 %v296, %v304
      %v307 = vld [vmem:[%s2] sm:$0x1]
      %v308 = vlaneseq
      %v309 = vshrl.u32 %v308, 7
      %v310 = vsub.s32 0, %v309
      %v311 = vrot.slane %v307, %v310
      %v312 = vmul.f32 %v299, %v311
      %v314 = vrot.slane %v312, 5
      %v316 = vadd.f32 %v305, %v314
      %v317 = vadd.f32 %v306, %v314
      %v318 = vld [vmem:[%s2 + $0x1] sm:$0x1]
      %v319 = vlaneseq
      %v320 = vshrl.u32 %v319, 7
      %v321 = vsub.s32 0, %v320
      %v322 = vrot.slane %v318, %v321
      %v323 = vmul.f32 %v299, %v322
      %v324 = vmul.f32 %v296, %v322
      %vm327 = vcmask 1041408
      %v328 = vrot.slane %v323, 6
      %v329 = vrot.slane %v324, 6
      %v330 = vsel %vm327, %v328, %v329
      %v333 = vadd.f32 %v316, %v328
      %v334 = vadd.f32 %v317, %v330
      %v335 = vld [vmem:[%s2 + $0x2] sm:$0x1]
      %v336 = vlaneseq
      %v337 = vshrl.u32 %v336, 7
      %v338 = vsub.s32 0, %v337
      %v339 = vrot.slane %v335, %v338
      %v340 = vmul.f32 %v299, %v339
      %v341 = vmul.f32 %v296, %v339
      %vm344 = vcmask 1040384
      %v345 = vrot.slane %v340, 7
      %v346 = vrot.slane %v341, 7
      %v347 = vsel %vm344, %v345, %v346
      %v350 = vadd.f32 %v333, %v345
      %v351 = vadd.f32 %v334, %v347
      %v352 = vld [vmem:[%s3] sm:$0x1]
      %v354 = vlaneseq
      %v355 = vshrl.u32 %v354, 7
      %v356 = vsub.s32 0, %v355
      %v357 = vrot.slane %v352, %v356
      %v359 = vadd.f32 %v350, %v357
      %v360 = vadd.f32 %v351, %v357
      %v361 = vsub.f32 0.0, %v359
      %v362 = vsub.f32 0.0, %v360
      %v363 = vmul.f32 %v361, 1.442695
      %v364 = vpow.pop %v363
      %v365 = vmul.f32 %v362, 1.442695
      %v366 = vpow.pop %v365
      %v367 = vadd.f32 %v364, 1.0
      %v368 = vadd.f32 %v366, 1.0
      %v369 = vrcp.pop %v367
      %v370 = vrcp.pop %v368
      %v371 = vmul.f32 %v359, %v369
      %v372 = vmul.f32 %v360, %v370
      %373 = vst [vmem:[%s284 - $0x3] sm:$0xf8] %v371
      %374 = vst [vmem:[%s284 + $0x5] sm:$0x7] %v372
      %p375 = scmp.lt.s32.totalorder %s19, 1
      %s376 = scalar_select %p375, %s19, 1
      %p377 = scmp.lt.s32.totalorder %s20, 0
      %s378 = scalar_select %p377, %s20, 0
      %s379 = sadd.s32 %s378, %s376
      %s380 = smul.addr %s379, 8
      %s381 = scalar_lea.vmem %s4, %s380
      // Predicated region
      $region37: #{_lambda_.28} parent=35 // pred_check
        %p382 = pneg %p151
      $region38: #{_lambda_.28} parent=35 // pred_check_branch
        %384 = sbr.rel (%p382) target = $region40
      $region39: #{_lambda_.28} parent=35 // pred_region
        _
      $region40: #{_lambda_.28} parent=35 // pred_fallthru
        _
    $region36: #{_lambda_.28} parent=5 // pred_fallthru
      _
    %p385 = scmp.le.s32.totalorder 2, %s10
    // Predicated region
    $region41: #{_lambda_.28} parent=5 // pred_check
      %p386 = pneg %p385
    $region42: #{_lambda_.28} parent=5 // pred_check_branch
      %388 = sbr.rel (%p386) target = $region44
    $region43: #{_lambda_.28} parent=5 // pred_region
      %s389 = ssub.s32 %s10, 2
      // Predicated region
      $region45: #{_lambda_.28} parent=43 // pred_check
        %p390 = pneg %p157
      $region46: #{_lambda_.28} parent=43 // pred_check_branch
        %392 = sbr.rel (%p390) target = $region48
      $region47: #{_lambda_.28} parent=43 // pred_region
        %p393 = scmp.lt.s32.totalorder %s21, 1
        %s394 = scalar_select %p393, %s21, 1
        %p395 = scmp.lt.s32.totalorder %s22, 0
        %s396 = scalar_select %p395, %s22, 0
        %s397 = sadd.s32 %s396, %s394
        %s398 = smul.addr %s397, 8
        %s399 = scalar_lea.vmem %s4, %s398
      $region48: #{_lambda_.28} parent=43 // pred_fallthru
        _
    $region44: #{_lambda_.28} parent=5 // pred_fallthru
      _
  $region6: #{_lambda_.28} parent=0 // loop_footer
    %s14 = sadd.s32 1, %s10
  $region7: #{_lambda_.28} parent=0 // loop_footer_branch
    %9 = sbr.rel target = $region3
  $region8: #{_lambda_.28} parent=0 // loop_exit
    _

// kernel: _lambda_.36
$region0: #{_lambda_.36}
  #allocation0 [shape = 'u32[]', space=smem, size = 0x4, offset = 0x4, fixed_abs, tag = 'smem constant byte address 0x4 - core index']
  #allocation1 [shape = 'u32[144,128]{1,0:T(1,128)}', space=vmem, size = 0x12000, scoped, tag = 'internal scratch']
  #allocation2 [shape = 'f32[16,128]{1,0:T(8,128)}', space=vmem, size = 0x2000, scoped, tag = 'scratch operand']
  %s0 = inlined_call_operand.vmem [shape: f32[16,128], index: 0, kind: input, shape index: {}]
  %s1 = inlined_call_operand.vmem [shape: bf16[128,128], index: 1, kind: input, shape index: {}]
  %s2 = inlined_call_operand.vmem [shape: f32[16,128], index: 2, kind: output, shape index: {}]
  %s3 = sld [smem:[#allocation0]]
  $region26: #{_lambda_.36} parent=0
    _
  %s5 = ssub.s32 1, %s3
  %s6 = scalar_select 0, %s5, %s3
  // Predicated region
  $region2: #{_lambda_.36} parent=0 // pred_check
    _
  $region3: #{_lambda_.36} parent=0 // pred_check_branch
    %8 = sbr.rel (0) target = $region5
  $region4: #{_lambda_.36} parent=0 // pred_region
    _
  $region5: #{_lambda_.36} parent=0 // pred_fallthru
    _
  // Predicated region
  $region6: #{_lambda_.36} parent=0 // pred_check
    _
  $region7: #{_lambda_.36} parent=0 // pred_check_branch
    %10 = sbr.rel (0) target = $region9
  $region8: #{_lambda_.36} parent=0 // pred_region
    _
  $region9: #{_lambda_.36} parent=0 // pred_fallthru
    _
  %p12 = scmp.eq.s32.totalorder 0, 0
  // Predicated region
  $region10: #{_lambda_.36} parent=0 // pred_check
    %p13 = pneg %p12
  $region11: #{_lambda_.36} parent=0 // pred_check_branch
    %15 = sbr.rel (%p13) target = $region13
  $region12: #{_lambda_.36} parent=0 // pred_region
    %16 = vst [vmem:[#allocation2] sm:$0xff] 0.0
    %17 = vst [vmem:[#allocation2 + $0x8] sm:$0xff] 0.0
  $region13: #{_lambda_.36} parent=0 // pred_fallthru
    _
  %v18 = vld [vmem:[#allocation2] sm:$0xff]
  %v19 = vld [vmem:[#allocation2 + $0x8] sm:$0xff]
  %v20 = vld [vmem:[%s0] sm:$0xff]
  %v21 = vld [vmem:[%s0 + $0x8] sm:$0xff]
  %v22 = vpack.c.bf16 %v21, %v20
  %v23 = vld [vmem:[%s1] sm:$0xf]
  %v24 = vld [vmem:[%s1 + $0x4] sm:$0xf]
  %v25 = vld [vmem:[%s1 + $0x8] sm:$0xf]
  %v26 = vld [vmem:[%s1 + $0xc] sm:$0xf]
  %v27 = vld [vmem:[%s1 + $0x10] sm:$0xf]
  %v28 = vld [vmem:[%s1 + $0x14] sm:$0xf]
  %v29 = vld [vmem:[%s1 + $0x18] sm:$0xf]
  %v30 = vld [vmem:[%s1 + $0x1c] sm:$0xf]
  %v31 = vld [vmem:[%s1 + $0x20] sm:$0xf]
  %v32 = vld [vmem:[%s1 + $0x24] sm:$0xf]
  %v33 = vld [vmem:[%s1 + $0x28] sm:$0xf]
  %v34 = vld [vmem:[%s1 + $0x2c] sm:$0xf]
  %v35 = vld [vmem:[%s1 + $0x30] sm:$0xf]
  %v36 = vld [vmem:[%s1 + $0x34] sm:$0xf]
  %v37 = vld [vmem:[%s1 + $0x38] sm:$0xf]
  %v38 = vld [vmem:[%s1 + $0x3c] sm:$0xf]
  %v55 = vunpack.c.l.b16 %v23
  %v56 = vunpack.c.l.b16 %v24
  %v57 = vunpack.c.l.b16 %v25
  %v58 = vunpack.c.l.b16 %v26
  %v59 = vunpack.c.l.b16 %v27
  %v60 = vunpack.c.l.b16 %v28
  %v61 = vunpack.c.l.b16 %v29
  %v62 = vunpack.c.l.b16 %v30
  %v63 = vunpack.c.l.b16 %v31
  %v64 = vunpack.c.l.b16 %v32
  %v65 = vunpack.c.l.b16 %v33
  %v66 = vunpack.c.l.b16 %v34
  %v67 = vunpack.c.l.b16 %v35
  %v68 = vunpack.c.l.b16 %v36
  %v69 = vunpack.c.l.b16 %v37
  %v70 = vunpack.c.l.b16 %v38
  %v71 = vpack.c.b16 %v56, %v55
  %v72 = vpack.c.b16 %v58, %v57
  %v73 = vpack.c.b16 %v60, %v59
  %v74 = vpack.c.b16 %v62, %v61
  %v75 = vpack.c.b16 %v64, %v63
  %v76 = vpack.c.b16 %v66, %v65
  %v77 = vpack.c.b16 %v68, %v67
  %v78 = vpack.c.b16 %v70, %v69
  %87 = vmatprep.subr.bf16.mxu0 0
  %88 = vmatpush1.bf16.msra.mxu0 %v78
  %89 = vmatprep.subr.bf16.mxu0 0
  %90 = vmatpush1.bf16.msra.mxu0 %v77
  %91 = vmatprep.subr.bf16.mxu0 0
  %92 = vmatpush1.bf16.msra.mxu0 %v76
  %93 = vmatprep.subr.bf16.mxu0 0
  %94 = vmatpush1.bf16.msra.mxu0 %v75
  %95 = vmatprep.subr.bf16.mxu0 0
  %96 = vmatpush1.bf16.msra.mxu0 %v74
  %97 = vmatprep.subr.bf16.mxu0 0
  %98 = vmatpush1.bf16.msra.mxu0 %v73
  %99 = vmatprep.subr.bf16.mxu0 0
  %100 = vmatpush1.bf16.msra.mxu0 %v72
  %101 = vmatprep.subr.bf16.mxu0 0
  %102 = vmatpush1.bf16.msra.mxu0 %v71
  %103 = vmatprep.subr.bf16.mxu0 0
  %104 = vmatpush2.bf16.msra.mxu0 0
  %105 = vmatprep.subr.bf16.mxu0 0
  %106 = vmatpush2.bf16.msra.mxu0 0
  %107 = vmatprep.subr.bf16.mxu0 0
  %108 = vmatpush2.bf16.msra.mxu0 0
  %109 = vmatprep.subr.bf16.mxu0 0
  %110 = vmatpush2.bf16.msra.mxu0 0
  %111 = vmatprep.subr.bf16.mxu0 0
  %112 = vmatpush2.bf16.msra.mxu0 0
  %113 = vmatprep.subr.bf16.mxu0 0
  %114 = vmatpush2.bf16.msra.mxu0 0
  %115 = vmatprep.subr.bf16.mxu0 0
  %116 = vmatpush2.bf16.msra.mxu0 0
  %117 = vmatprep.subr.bf16.mxu0 0
  %118 = vmatpush2.bf16.msra.mxu0 0
  %119 = vmatprep.mubr.bf16.mxu0 0
  %120 = vmatmul.mubr.bf16.gmra.mxu0 %v22
  %v121 = vpop.f32.mrf.mxu0
  %v122 = vadd.f32 0.0, %v121
  %v123 = vpop.f32.mrf.mxu0
  %v124 = vpop.f32.mrf.mxu0
  %v125 = vadd.f32 0.0, %v124
  %v126 = vpop.f32.mrf.mxu0
  %127 = vdwg.mxu0
  %v128 = vadd.f32 %v18, %v122
  %v129 = vadd.f32 %v19, %v125
  %130 = vst [vmem:[#allocation2] sm:$0xff] %v128
  %131 = vst [vmem:[#allocation2 + $0x8] sm:$0xff] %v129
  // Predicated region
  $region14: #{_lambda_.36} parent=0 // pred_check
    %p132 = pneg %p12
  $region15: #{_lambda_.36} parent=0 // pred_check_branch
    %134 = sbr.rel (%p132) target = $region17
  $region16: #{_lambda_.36} parent=0 // pred_region
    %v135 = vld [vmem:[#allocation2] sm:$0xff]
    %v136 = vld [vmem:[#allocation2 + $0x8] sm:$0xff]
    %137 = vst [vmem:[%s2] sm:$0xff] %v135
    %138 = vst [vmem:[%s2 + $0x8] sm:$0xff] %v136
  $region17: #{_lambda_.36} parent=0 // pred_fallthru
    _
  // Predicated region
  $region18: #{_lambda_.36} parent=0 // pred_check
    _
  $region19: #{_lambda_.36} parent=0 // pred_check_branch
    %140 = sbr.rel (0) target = $region21
  $region20: #{_lambda_.36} parent=0 // pred_region
    _
  $region21: #{_lambda_.36} parent=0 // pred_fallthru
    _
  // Predicated region
  $region22: #{_lambda_.36} parent=0 // pred_check
    _
  $region23: #{_lambda_.36} parent=0 // pred_check_branch
    %142 = sbr.rel (0) target = $region25
  $region24: #{_lambda_.36} parent=0 // pred_region
    _
  $region25: #{_lambda_.36} parent=0 // pred_fallthru
    _

// kernel: _lambda_.31
$region0: #{_lambda_.31}
  #allocation0 [shape = 'u32[]', space=smem, size = 0x4, offset = 0x4, fixed_abs, tag = 'smem constant byte address 0x4 - core index']
  #allocation1 [shape = 'u32[144,128]{1,0:T(1,128)}', space=vmem, size = 0x12000, scoped, tag = 'internal scratch']
  #allocation2 [shape = 'f32[128,128]{1,0:T(8,128)}', space=vmem, size = 0x10000, scoped, tag = 'scratch operand']
  %s0 = inlined_call_operand.vmem [shape: f32[2,8,128], index: 0, kind: input, shape index: {}]
  %s1 = inlined_call_operand.vmem [shape: f32[2,8,128], index: 1, kind: input, shape index: {}]
  %s2 = inlined_call_operand.vmem [shape: f32[2,8,256], index: 2, kind: input, shape index: {}]
  %s3 = inlined_call_operand.vmem [shape: f32[2,8,256], index: 3, kind: input, shape index: {}, may-alias: {3,4}]
  %s4 = inlined_call_operand.vmem [shape: f32[2,8,256], index: 4, kind: input, shape index: {}, may-alias: {3,4}]
  %s5 = inlined_call_operand.vmem [shape: f32[128,128], index: 5, kind: input, shape index: {}]
  %s6 = inlined_call_operand.vmem [shape: f32[1,128], index: 6, kind: input, shape index: {}]
  %s7 = inlined_call_operand.vmem [shape: f32[2,8,128], index: 7, kind: output, shape index: {}]
  %s8 = sld [smem:[#allocation0]]
  $region65: #{_lambda_.31} parent=0
    _
  %s10 = ssub.s32 1, %s8
  %s11 = scalar_select 0, %s10, %s8
  loop: start=0, step=1, limit=4
  $region2: #{_lambda_.31} parent=0 // loop_pre_header
    _
  $region3: #{_lambda_.31} parent=0 // loop_header
    %s13 = sphi 0, %s17
    %p14 = scmp.ge.s32.totalorder %s13, 4
    %s20 = sphi 0, %s39
    %s21 = sphi 0, %s35
    %s22 = sphi 0, %s31
    %s23 = sphi 0, %s20
    %s24 = sphi 0, %s21
    %s25 = sphi 0, %s22
    %s26 = sphi 0, %s23
    %s27 = sphi 0, %s24
    %s28 = sphi 0, %s25
    %s46 = sphi 0, %s48
    %s49 = sphi 0, %s46
    %s50 = sphi 0, %s49
    %s66 = sphi 0, %s50
    %s76 = sphi 0, %s78
    %s79 = sphi 0, %s76
    %s80 = sphi 0, %s79
    %s96 = sphi 0, %s80
    %s108 = sphi 0, %s110
    %s111 = sphi 0, %s108
    %s112 = sphi 0, %s111
    %s128 = sphi 0, %s112
    %s136 = sphi 0, %s138
    %s139 = sphi 0, %s136
    %s140 = sphi 0, %s139
    %s156 = sphi 0, %s140
    %s164 = sphi 0, %s166
    %s167 = sphi 0, %s164
    %s168 = sphi 0, %s167
    %s184 = sphi 0, %s168
    %s190 = sphi 0, %s192
    %s193 = sphi 0, %s190
    %s194 = sphi 0, %s193
    %s210 = sphi 0, %s194
    %s216 = sphi 0, %s218
    %s219 = sphi 0, %s216
    %s220 = sphi 0, %s219
    %s236 = sphi 0, %s220
    %s246 = sphi 0, %s248
    %s249 = sphi 0, %s246
    %s250 = sphi 0, %s249
    %s266 = sphi 0, %s250
  $region4: #{_lambda_.31} parent=0 // loop_header_branch
    %16 = sbr.rel (%p14) target = $region8
  $region5: #{_lambda_.31} parent=0 // loop_body
    %s18 = ssub.s32 %s13, 1
    %s19 = ssub.s32 %s13, 2
    %s29 = sadd.s32 1, %s22
    %p30 = scmp.ge.s32.totalorder %s29, 1
    %s31 = scalar_select %p30, 0, %s29
    %s32 = sadd.s32 1, %s21
    %s33 = scalar_select %p30, %s32, %s21
    %p34 = scmp.ge.s32.totalorder %s33, 1
    %s35 = scalar_select %p34, 0, %s33
    %s36 = sadd.s32 1, %s20
    %s37 = scalar_select %p34, %s36, %s20
    %p38 = scmp.ge.s32.totalorder %s37, 2
    %s39 = scalar_select %p38, 0, %s37
    %s40 = ssub.s32 %s20, %s39
    %s41 = ssub.s32 %s22, %s31
    %s42 = sor.u32 %s40, %s41
    %s43 = ssub.s32 %s21, %s35
    %s44 = sor.u32 %s42, %s43
    %p45 = scmp.eq.s32.totalorder %s44, 0
    %s47 = sadd.s32 %s46, 1
    %s48 = scalar_select %p45, %s46, %s47
    %p51 = pneg %p45
    %p52 = scmp.eq.s32.totalorder %s13, 1
    %p53 = por %p51, %p52
    %p54 = scmp.ne.s32.totalorder %s46, %s49
    %p55 = scmp.eq.s32.totalorder %s13, 0
    %p56 = por %p54, %p55
    %p57 = scmp.ne.s32.totalorder %s46, %s49
    %p58 = scmp.eq.s32.totalorder %s18, 1
    %p59 = por %p57, %p58
    %p60 = scmp.ne.s32.totalorder %s49, %s50
    %p61 = scmp.eq.s32.totalorder %s18, 0
    %p62 = por %p60, %p61
    %p63 = scmp.ne.s32.totalorder %s49, %s50
    %p64 = scmp.eq.s32.totalorder %s19, 1
    %p65 = por %p63, %p64
    %p67 = scmp.ne.s32.totalorder %s50, %s66
    %p68 = scmp.eq.s32.totalorder %s19, 0
    %p69 = por %p67, %p68
    %s70 = ssub.s32 %s20, %s39
    %s71 = ssub.s32 %s22, %s31
    %s72 = sor.u32 %s70, %s71
    %s73 = ssub.s32 %s21, %s35
    %s74 = sor.u32 %s72, %s73
    %p75 = scmp.eq.s32.totalorder %s74, 0
    %s77 = sadd.s32 %s76, 1
    %s78 = scalar_select %p75, %s76, %s77
    %p81 = pneg %p75
    %p82 = scmp.eq.s32.totalorder %s13, 1
    %p83 = por %p81, %p82
    %p84 = scmp.ne.s32.totalorder %s76, %s79
    %p85 = scmp.eq.s32.totalorder %s13, 0
    %p86 = por %p84, %p85
    %p87 = scmp.ne.s32.totalorder %s76, %s79
    %p88 = scmp.eq.s32.totalorder %s18, 1
    %p89 = por %p87, %p88
    %p90 = scmp.ne.s32.totalorder %s79, %s80
    %p91 = scmp.eq.s32.totalorder %s18, 0
    %p92 = por %p90, %p91
    %p93 = scmp.ne.s32.totalorder %s79, %s80
    %p94 = scmp.eq.s32.totalorder %s19, 1
    %p95 = por %p93, %p94
    %p97 = scmp.ne.s32.totalorder %s80, %s96
    %p98 = scmp.eq.s32.totalorder %s19, 0
    %p99 = por %p97, %p98
    %s100 = sadd.s32 %s21, 1
    %s101 = sadd.s32 %s35, 1
    %s102 = ssub.s32 %s20, %s39
    %s103 = ssub.s32 %s22, %s31
    %s104 = sor.u32 %s102, %s103
    %s105 = ssub.s32 %s100, %s101
    %s106 = sor.u32 %s104, %s105
    %p107 = scmp.eq.s32.totalorder %s106, 0
    %s109 = sadd.s32 %s108, 1
    %s110 = scalar_select %p107, %s108, %s109
    %p113 = pneg %p107
    %p114 = scmp.eq.s32.totalorder %s13, 1
    %p115 = por %p113, %p114
    %p116 = scmp.ne.s32.totalorder %s108, %s111
    %p117 = scmp.eq.s32.totalorder %s13, 0
    %p118 = por %p116, %p117
    %p119 = scmp.ne.s32.totalorder %s108, %s111
    %p120 = scmp.eq.s32.totalorder %s18, 1
    %p121 = por %p119, %p120
    %p122 = scmp.ne.s32.totalorder %s111, %s112
    %p123 = scmp.eq.s32.totalorder %s18, 0
    %p124 = por %p122, %p123
    %p125 = scmp.ne.s32.totalorder %s111, %s112
    %p126 = scmp.eq.s32.totalorder %s19, 1
    %p127 = por %p125, %p126
    %p129 = scmp.ne.s32.totalorder %s112, %s128
    %p130 = scmp.eq.s32.totalorder %s19, 0
    %p131 = por %p129, %p130
    %s132 = ssub.s32 %s20, %s39
    %s133 = ssub.s32 %s22, %s31
    %s134 = sor.u32 %s132, %s133
    %p135 = scmp.eq.s32.totalorder %s134, 0
    %s137 = sadd.s32 %s136, 1
    %s138 = scalar_select %p135, %s136, %s137
    %p141 = pneg %p135
    %p142 = scmp.eq.s32.totalorder %s13, 1
    %p143 = por %p141, %p142
    %p144 = scmp.ne.s32.totalorder %s136, %s139
    %p145 = scmp.eq.s32.totalorder %s13, 0
    %p146 = por %p144, %p145
    %p147 = scmp.ne.s32.totalorder %s136, %s139
    %p148 = scmp.eq.s32.totalorder %s18, 1
    %p149 = por %p147, %p148
    %p150 = scmp.ne.s32.totalorder %s139, %s140
    %p151 = scmp.eq.s32.totalorder %s18, 0
    %p152 = por %p150, %p151
    %p153 = scmp.ne.s32.totalorder %s139, %s140
    %p154 = scmp.eq.s32.totalorder %s19, 1
    %p155 = por %p153, %p154
    %p157 = scmp.ne.s32.totalorder %s140, %s156
    %p158 = scmp.eq.s32.totalorder %s19, 0
    %p159 = por %p157, %p158
    %s160 = ssub.s32 %s20, %s39
    %s161 = ssub.s32 %s22, %s31
    %s162 = sor.u32 %s160, %s161
    %p163 = scmp.eq.s32.totalorder %s162, 0
    %s165 = sadd.s32 %s164, 1
    %s166 = scalar_select %p163, %s164, %s165
    %p169 = pneg %p163
    %p170 = scmp.eq.s32.totalorder %s13, 1
    %p171 = por %p169, %p170
    %p172 = scmp.ne.s32.totalorder %s164, %s167
    %p173 = scmp.eq.s32.totalorder %s13, 0
    %p174 = por %p172, %p173
    %p175 = scmp.ne.s32.totalorder %s164, %s167
    %p176 = scmp.eq.s32.totalorder %s18, 1
    %p177 = por %p175, %p176
    %p178 = scmp.ne.s32.totalorder %s167, %s168
    %p179 = scmp.eq.s32.totalorder %s18, 0
    %p180 = por %p178, %p179
    %p181 = scmp.ne.s32.totalorder %s167, %s168
    %p182 = scmp.eq.s32.totalorder %s19, 1
    %p183 = por %p181, %p182
    %p185 = scmp.ne.s32.totalorder %s168, %s184
    %p186 = scmp.eq.s32.totalorder %s19, 0
    %p187 = por %p185, %p186
    %s188 = ssub.s32 %s21, %s35
    %p189 = scmp.eq.s32.totalorder %s188, 0
    %s191 = sadd.s32 %s190, 1
    %s192 = scalar_select %p189, %s190, %s191
    %p195 = pneg %p189
    %p196 = scmp.eq.s32.totalorder %s13, 1
    %p197 = por %p195, %p196
    %p198 = scmp.ne.s32.totalorder %s190, %s193
    %p199 = scmp.eq.s32.totalorder %s13, 0
    %p200 = por %p198, %p199
    %p201 = scmp.ne.s32.totalorder %s190, %s193
    %p202 = scmp.eq.s32.totalorder %s18, 1
    %p203 = por %p201, %p202
    %p204 = scmp.ne.s32.totalorder %s193, %s194
    %p205 = scmp.eq.s32.totalorder %s18, 0
    %p206 = por %p204, %p205
    %p207 = scmp.ne.s32.totalorder %s193, %s194
    %p208 = scmp.eq.s32.totalorder %s19, 1
    %p209 = por %p207, %p208
    %p211 = scmp.ne.s32.totalorder %s194, %s210
    %p212 = scmp.eq.s32.totalorder %s19, 0
    %p213 = por %p211, %p212
    %s214 = ssub.s32 %s21, %s35
    %p215 = scmp.eq.s32.totalorder %s214, 0
    %s217 = sadd.s32 %s216, 1
    %s218 = scalar_select %p215, %s216, %s217
    %p221 = pneg %p215
    %p222 = scmp.eq.s32.totalorder %s13, 1
    %p223 = por %p221, %p222
    %p224 = scmp.ne.s32.totalorder %s216, %s219
    %p225 = scmp.eq.s32.totalorder %s13, 0
    %p226 = por %p224, %p225
    %p227 = scmp.ne.s32.totalorder %s216, %s219
    %p228 = scmp.eq.s32.totalorder %s18, 1
    %p229 = por %p227, %p228
    %p230 = scmp.ne.s32.totalorder %s219, %s220
    %p231 = scmp.eq.s32.totalorder %s18, 0
    %p232 = por %p230, %p231
    %p233 = scmp.ne.s32.totalorder %s219, %s220
    %p234 = scmp.eq.s32.totalorder %s19, 1
    %p235 = por %p233, %p234
    %p237 = scmp.ne.s32.totalorder %s220, %s236
    %p238 = scmp.eq.s32.totalorder %s19, 0
    %p239 = por %p237, %p238
    %s240 = ssub.s32 %s20, %s39
    %s241 = ssub.s32 %s22, %s31
    %s242 = sor.u32 %s240, %s241
    %s243 = ssub.s32 %s21, %s35
    %s244 = sor.u32 %s242, %s243
    %p245 = scmp.eq.s32.totalorder %s244, 0
    %s247 = sadd.s32 %s246, 1
    %s248 = scalar_select %p245, %s246, %s247
    %p251 = pneg %p245
    %p252 = scmp.eq.s32.totalorder %s13, 1
    %p253 = por %p251, %p252
    %p254 = scmp.ne.s32.totalorder %s246, %s249
    %p255 = scmp.eq.s32.totalorder %s13, 0
    %p256 = por %p254, %p255
    %p257 = scmp.ne.s32.totalorder %s246, %s249
    %p258 = scmp.eq.s32.totalorder %s18, 1
    %p259 = por %p257, %p258
    %p260 = scmp.ne.s32.totalorder %s249, %s250
    %p261 = scmp.eq.s32.totalorder %s18, 0
    %p262 = por %p260, %p261
    %p263 = scmp.ne.s32.totalorder %s249, %s250
    %p264 = scmp.eq.s32.totalorder %s19, 1
    %p265 = por %p263, %p264
    %p267 = scmp.ne.s32.totalorder %s250, %s266
    %p268 = scmp.eq.s32.totalorder %s19, 0
    %p269 = por %p267, %p268
    %p270 = scmp.le.s32.totalorder 1, %s13
    %p271 = scmp.lt.s32.totalorder %s13, 3
    %p272 = pnand %p270, %p271
    %p273 = pneg %p272
    // Predicated region
    $region9: #{_lambda_.31} parent=5 // pred_check
      _
    $region10: #{_lambda_.31} parent=5 // pred_check_branch
      %275 = sbr.rel (%p272) target = $region12
    $region11: #{_lambda_.31} parent=5 // pred_region
      %s276 = ssub.s32 %s13, 1
      // Predicated region
      $region13: #{_lambda_.31} parent=11 // pred_check
        %p277 = pneg %p206
      $region14: #{_lambda_.31} parent=11 // pred_check_branch
        %279 = sbr.rel (%p277) target = $region16
      $region15: #{_lambda_.31} parent=11 // pred_region
        %p280 = scmp.lt.s32.totalorder %s24, 0
        %s281 = scalar_select %p280, %s24, 0
        %s282 = smul.addr %s281, 8
        %s283 = scalar_lea.vmem %s5, %s282
      $region16: #{_lambda_.31} parent=11 // pred_fallthru
        _
      // Predicated region
      $region17: #{_lambda_.31} parent=11 // pred_check
        %p284 = pneg %p232
      $region18: #{_lambda_.31} parent=11 // pred_check_branch
        %286 = sbr.rel (%p284) target = $region20
      $region19: #{_lambda_.31} parent=11 // pred_region
        %p287 = scmp.lt.s32.totalorder %s24, 0
        %s288 = scalar_select %p287, %s24, 0
        %s289 = scalar_lea.vmem %s6, %s288
      $region20: #{_lambda_.31} parent=11 // pred_fallthru
        _
    $region12: #{_lambda_.31} parent=5 // pred_fallthru
      _
    %p290 = scmp.lt.s32.totalorder %s13, 2
    // Predicated region
    $region21: #{_lambda_.31} parent=5 // pred_check
      %p291 = pneg %p290
    $region22: #{_lambda_.31} parent=5 // pred_check_branch
      %293 = sbr.rel (%p291) target = $region24
    $region23: #{_lambda_.31} parent=5 // pred_region
      // Predicated region
      $region25: #{_lambda_.31} parent=23 // pred_check
        %p294 = pneg %p56
      $region26: #{_lambda_.31} parent=23 // pred_check_branch
        %296 = sbr.rel (%p294) target = $region28
      $region27: #{_lambda_.31} parent=23 // pred_region
        %p297 = scmp.lt.s32.totalorder %s20, 1
        %s298 = scalar_select %p297, %s20, 1
        %p299 = scmp.lt.s32.totalorder %s22, 0
        %s300 = scalar_select %p299, %s22, 0
        %p301 = scmp.lt.s32.totalorder %s21, 0
        %s302 = scalar_select %p301, %s21, 0
        %s303 = sadd.s32 %s302, %s300
        %s304 = sadd.s32 %s303, %s298
        %s305 = smul.addr %s304, 8
        %s306 = scalar_lea.vmem %s0, %s305
      $region28: #{_lambda_.31} parent=23 // pred_fallthru
        _
      // Predicated region
      $region29: #{_lambda_.31} parent=23 // pred_check
        %p307 = pneg %p86
      $region30: #{_lambda_.31} parent=23 // pred_check_branch
        %309 = sbr.rel (%p307) target = $region32
      $region31: #{_lambda_.31} parent=23 // pred_region
        %p310 = scmp.lt.s32.totalorder %s20, 1
        %s311 = scalar_select %p310, %s20, 1
        %p312 = scmp.lt.s32.totalorder %s22, 0
        %s313 = scalar_select %p312, %s22, 0
        %p314 = scmp.lt.s32.totalorder %s21, 0
        %s315 = scalar_select %p314, %s21, 0
        %s316 = sadd.s32 %s315, %s313
        %s317 = sadd.s32 %s316, %s311
        %s318 = smul.addr %s317, 8
        %s319 = scalar_lea.vmem %s1, %s318
      $region32: #{_lambda_.31} parent=23 // pred_fallthru
        _
      // Predicated region
      $region33: #{_lambda_.31} parent=23 // pred_check
        %p320 = pneg %p118
      $region34: #{_lambda_.31} parent=23 // pred_check_branch
        %322 = sbr.rel (%p320) target = $region36
      $region35: #{_lambda_.31} parent=23 // pred_region
        %s323 = sadd.s32 %s21, 1
        %p324 = scmp.lt.s32.totalorder %s20, 1
        %s325 = scalar_select %p324, %s20, 1
        %p326 = scmp.lt.s32.totalorder %s22, 0
        %s327 = scalar_select %p326, %s22, 0
        %p328 = scmp.lt.s32.totalorder %s323, 1
        %s329 = scalar_select %p328, %s323, 1
        %s330 = smul.addr %s327, 2
        %s331 = sadd.s32 %s329, %s330
        %s332 = smul.addr %s325, 2
        %s333 = sadd.s32 %s331, %s332
        %s334 = smul.addr %s333, 8
        %s335 = scalar_lea.vmem %s2, %s334
        %s336 = sadd.s32 %s21, 1
      $region36: #{_lambda_.31} parent=23 // pred_fallthru
        _
      // Predicated region
      $region37: #{_lambda_.31} parent=23 // pred_check
        %p337 = pneg %p146
      $region38: #{_lambda_.31} parent=23 // pred_check_branch
        %339 = sbr.rel (%p337) target = $region40
      $region39: #{_lambda_.31} parent=23 // pred_region
        %p340 = scmp.lt.s32.totalorder %s20, 1
        %s341 = scalar_select %p340, %s20, 1
        %p342 = scmp.lt.s32.totalorder %s22, 0
        %s343 = scalar_select %p342, %s22, 0
        %s344 = smul.addr %s343, 2
        %s345 = smul.addr %s341, 2
        %s346 = sadd.s32 %s344, %s345
        %s347 = smul.addr %s346, 8
        %s348 = scalar_lea.vmem %s3, %s347
      $region40: #{_lambda_.31} parent=23 // pred_fallthru
        _
      // Predicated region
      $region41: #{_lambda_.31} parent=23 // pred_check
        %p349 = pneg %p174
      $region42: #{_lambda_.31} parent=23 // pred_check_branch
        %351 = sbr.rel (%p349) target = $region44
      $region43: #{_lambda_.31} parent=23 // pred_region
        %p352 = scmp.lt.s32.totalorder %s20, 1
        %s353 = scalar_select %p352, %s20, 1
        %p354 = scmp.lt.s32.totalorder %s22, 0
        %s355 = scalar_select %p354, %s22, 0
        %s356 = smul.addr %s355, 2
        %s357 = sadd.s32 1, %s356
        %s358 = smul.addr %s353, 2
        %s359 = sadd.s32 %s357, %s358
        %s360 = smul.addr %s359, 8
        %s361 = scalar_lea.vmem %s4, %s360
      $region44: #{_lambda_.31} parent=23 // pred_fallthru
        _
    $region24: #{_lambda_.31} parent=5 // pred_fallthru
      _
    %p362 = scmp.le.s32.totalorder 1, %s13
    %p363 = scmp.lt.s32.totalorder %s13, 3
    %p364 = pnand %p362, %p363
    %p365 = pneg %p364
    // Predicated region
    $region45: #{_lambda_.31} parent=5 // pred_check
      _
    $region46: #{_lambda_.31} parent=5 // pred_check_branch
      %367 = sbr.rel (%p364) target = $region48
    $region47: #{_lambda_.31} parent=5 // pred_region
      %s368 = ssub.s32 %s13, 1
      %p369 = scmp.lt.s32.totalorder %s23, 1
      %s370 = scalar_select %p369, %s23, 1
      %p371 = scmp.lt.s32.totalorder %s25, 0
      %s372 = scalar_select %p371, %s25, 0
      %p373 = scmp.lt.s32.totalorder %s24, 0
      %s374 = scalar_select %p373, %s24, 0
      %s375 = sadd.s32 %s374, %s372
      %s376 = sadd.s32 %s375, %s370
      %s377 = smul.addr %s376, 8
      %s378 = scalar_lea.vmem %s0, %s377
      %p379 = pneg %p62
      %p380 = pneg %p59
      %p381 = scmp.lt.s32.totalorder %s23, 1
      %s382 = scalar_select %p381, %s23, 1
      %p383 = scmp.lt.s32.totalorder %s25, 0
      %s384 = scalar_select %p383, %s25, 0
      %p385 = scmp.lt.s32.totalorder %s24, 0
      %s386 = scalar_select %p385, %s24, 0
      %s387 = sadd.s32 %s386, %s384
      %s388 = sadd.s32 %s387, %s382
      %s389 = smul.addr %s388, 8
      %s390 = scalar_lea.vmem %s1, %s389
      %p391 = pneg %p92
      %p392 = pneg %p89
      %s393 = sadd.s32 %s24, 1
      %p394 = scmp.lt.s32.totalorder %s23, 1
      %s395 = scalar_select %p394, %s23, 1
      %p396 = scmp.lt.s32.totalorder %s25, 0
      %s397 = scalar_select %p396, %s25, 0
      %p398 = scmp.lt.s32.totalorder %s393, 1
      %s399 = scalar_select %p398, %s393, 1
      %s400 = smul.addr %s397, 2
      %s401 = sadd.s32 %s399, %s400
      %s402 = smul.addr %s395, 2
      %s403 = sadd.s32 %s401, %s402
      %s404 = smul.addr %s403, 8
      %s405 = scalar_lea.vmem %s2, %s404
      %p406 = pneg %p124
      %p407 = pneg %p121
      %p408 = scmp.lt.s32.totalorder %s23, 1
      %s409 = scalar_select %p408, %s23, 1
      %p410 = scmp.lt.s32.totalorder %s25, 0
      %s411 = scalar_select %p410, %s25, 0
      %s412 = smul.addr %s411, 2
      %s413 = smul.addr %s409, 2
      %s414 = sadd.s32 %s412, %s413
      %s415 = smul.addr %s414, 8
      %s416 = scalar_lea.vmem %s3, %s415
      %p417 = pneg %p152
      %p418 = pneg %p149
      %p419 = scmp.lt.s32.totalorder %s23, 1
      %s420 = scalar_select %p419, %s23, 1
      %p421 = scmp.lt.s32.totalorder %s25, 0
      %s422 = scalar_select %p421, %s25, 0
      %s423 = smul.addr %s422, 2
      %s424 = sadd.s32 1, %s423
      %s425 = smul.addr %s420, 2
      %s426 = sadd.s32 %s424, %s425
      %s427 = smul.addr %s426, 8
      %s428 = scalar_lea.vmem %s4, %s427
      %p429 = pneg %p180
      %p430 = pneg %p177
      %p431 = scmp.lt.s32.totalorder %s24, 0
      %s432 = scalar_select %p431, %s24, 0
      %s433 = smul.addr %s432, 8
      %s434 = scalar_lea.vmem %s5, %s433
      %p435 = pneg %p206
      %p436 = pneg %p203
      %p437 = scmp.lt.s32.totalorder %s24, 0
      %s438 = scalar_select %p437, %s24, 0
      %s439 = scalar_lea.vmem %s6, %s438
      %p440 = pneg %p232
      %p441 = pneg %p229
      %p442 = pneg %p262
      %p443 = pneg %p259
      %p444 = scmp.lt.s32.totalorder %s23, 1
      %s445 = scalar_select %p444, %s23, 1
      %p446 = scmp.lt.s32.totalorder %s25, 0
      %s447 = scalar_select %p446, %s25, 0
      %p448 = scmp.lt.s32.totalorder %s24, 0
      %s449 = scalar_select %p448, %s24, 0
      %s450 = sadd.s32 %s449, %s447
      %s451 = sadd.s32 %s450, %s445
      %s452 = smul.addr %s451, 8
      %s453 = scalar_lea.vmem %s7, %s452
      %p454 = scmp.lt.s32.totalorder %s23, 1
      %s455 = scalar_select %p454, %s23, 1
      %p456 = scmp.lt.s32.totalorder %s25, 0
      %s457 = scalar_select %p456, %s25, 0
      %p458 = scmp.lt.s32.totalorder %s24, 0
      %s459 = scalar_select %p458, %s24, 0
      %s460 = sadd.s32 %s459, %s457
      %s461 = sadd.s32 %s460, %s455
      %s462 = smul.addr %s461, 8
      %s463 = scalar_lea.vmem %s0, %s462
      %p464 = scmp.lt.s32.totalorder %s23, 1
      %s465 = scalar_select %p464, %s23, 1
      %p466 = scmp.lt.s32.totalorder %s25, 0
      %s467 = scalar_select %p466, %s25, 0
      %p468 = scmp.lt.s32.totalorder %s24, 0
      %s469 = scalar_select %p468, %s24, 0
      %s470 = sadd.s32 %s469, %s467
      %s471 = sadd.s32 %s470, %s465
      %s472 = smul.addr %s471, 8
      %s473 = scalar_lea.vmem %s1, %s472
      %s474 = sadd.s32 %s24, 1
      %p475 = scmp.lt.s32.totalorder %s23, 1
      %s476 = scalar_select %p475, %s23, 1
      %p477 = scmp.lt.s32.totalorder %s25, 0
      %s478 = scalar_select %p477, %s25, 0
      %p479 = scmp.lt.s32.totalorder %s474, 1
      %s480 = scalar_select %p479, %s474, 1
      %s481 = smul.addr %s478, 2
      %s482 = sadd.s32 %s480, %s481
      %s483 = smul.addr %s476, 2
      %s484 = sadd.s32 %s482, %s483
      %s485 = smul.addr %s484, 8
      %s486 = scalar_lea.vmem %s2, %s485
      %s487 = sadd.s32 %s24, 1
      %p488 = scmp.lt.s32.totalorder %s23, 1
      %s489 = scalar_select %p488, %s23, 1
      %p490 = scmp.lt.s32.totalorder %s25, 0
      %s491 = scalar_select %p490, %s25, 0
      %s492 = smul.addr %s491, 2
      %s493 = smul.addr %s489, 2
      %s494 = sadd.s32 %s492, %s493
      %s495 = smul.addr %s494, 8
      %s496 = scalar_lea.vmem %s3, %s495
      %p497 = scmp.lt.s32.totalorder %s23, 1
      %s498 = scalar_select %p497, %s23, 1
      %p499 = scmp.lt.s32.totalorder %s25, 0
      %s500 = scalar_select %p499, %s25, 0
      %s501 = smul.addr %s500, 2
      %s502 = sadd.s32 1, %s501
      %s503 = smul.addr %s498, 2
      %s504 = sadd.s32 %s502, %s503
      %s505 = smul.addr %s504, 8
      %s506 = scalar_lea.vmem %s4, %s505
      %p507 = scmp.lt.s32.totalorder %s24, 0
      %s508 = scalar_select %p507, %s24, 0
      %s509 = smul.addr %s508, 8
      %s510 = scalar_lea.vmem %s5, %s509
      %p511 = scmp.lt.s32.totalorder %s24, 0
      %s512 = scalar_select %p511, %s24, 0
      %s513 = scalar_lea.vmem %s6, %s512
      %p514 = scmp.lt.s32.totalorder %s23, 1
      %s515 = scalar_select %p514, %s23, 1
      %p516 = scmp.lt.s32.totalorder %s25, 0
      %s517 = scalar_select %p516, %s25, 0
      %p518 = scmp.lt.s32.totalorder %s24, 0
      %s519 = scalar_select %p518, %s24, 0
      %s520 = sadd.s32 %s519, %s517
      %s521 = sadd.s32 %s520, %s515
      %s522 = smul.addr %s521, 8
      %s523 = scalar_lea.vmem %s7, %s522
      %p524 = scmp.eq.s32.totalorder %s25, 0
      // Predicated region
      $region49: #{_lambda_.31} parent=47 // pred_check
        %p525 = pneg %p524
      $region50: #{_lambda_.31} parent=47 // pred_check_branch
        %527 = sbr.rel (%p525) target = $region52
      $region51: #{_lambda_.31} parent=47 // pred_region
        %528 = vst [vmem:[#allocation2] sm:$0xff] 0.0
        %529 = vst [vmem:[#allocation2 + $0x8] sm:$0xff] 0.0
        %530 = vst [vmem:[#allocation2 + $0x10] sm:$0xff] 0.0
        %531 = vst [vmem:[#allocation2 + $0x18] sm:$0xff] 0.0
        %532 = vst [vmem:[#allocation2 + $0x20] sm:$0xff] 0.0
        %533 = vst [vmem:[#allocation2 + $0x28] sm:$0xff] 0.0
        %534 = vst [vmem:[#allocation2 + $0x30] sm:$0xff] 0.0
        %535 = vst [vmem:[#allocation2 + $0x38] sm:$0xff] 0.0
        %536 = vst [vmem:[#allocation2 + $0x40] sm:$0xff] 0.0
        %537 = vst [vmem:[#allocation2 + $0x48] sm:$0xff] 0.0
        %538 = vst [vmem:[#allocation2 + $0x50] sm:$0xff] 0.0
        %539 = vst [vmem:[#allocation2 + $0x58] sm:$0xff] 0.0
        %540 = vst [vmem:[#allocation2 + $0x60] sm:$0xff] 0.0
        %541 = vst [vmem:[#allocation2 + $0x68] sm:$0xff] 0.0
        %542 = vst [vmem:[#allocation2 + $0x70] sm:$0xff] 0.0
        %543 = vst [vmem:[#allocation2 + $0x78] sm:$0xff] 0.0
      $region52: #{_lambda_.31} parent=47 // pred_fallthru
        _
      %v544 = vld [vmem:[%s510] sm:$0xff]
      %v545 = vld [vmem:[%s510 + $0x8] sm:$0xff]
      %v546 = vld [vmem:[%s510 + $0x10] sm:$0xff]
      %v547 = vld [vmem:[%s510 + $0x18] sm:$0xff]
      %v548 = vld [vmem:[%s510 + $0x20] sm:$0xff]
      %v549 = vld [vmem:[%s510 + $0x28] sm:$0xff]
      %v550 = vld [vmem:[%s510 + $0x30] sm:$0xff]
      %v551 = vld [vmem:[%s510 + $0x38] sm:$0xff]
      %v552 = vld [vmem:[%s510 + $0x40] sm:$0xff]
      %v553 = vld [vmem:[%s510 + $0x48] sm:$0xff]
      %v554 = vld [vmem:[%s510 + $0x50] sm:$0xff]
      %v555 = vld [vmem:[%s510 + $0x58] sm:$0xff]
      %v556 = vld [vmem:[%s510 + $0x60] sm:$0xff]
      %v557 = vld [vmem:[%s510 + $0x68] sm:$0xff]
      %v558 = vld [vmem:[%s510 + $0x70] sm:$0xff]
      %v559 = vld [vmem:[%s510 + $0x78] sm:$0xff]
      %v560 = vld [vmem:[%s463] sm:$0xff]
      %v561 = vld [vmem:[%s486] sm:$0xff]
      %v562 = vld [vmem:[%s473] sm:$0xff]
      %v563 = vmax.f32 %v562, 0.0
      %v564 = vand.u32 2147483647, %v562
      %v565 = vsub.f32 0.0, %v564
      %v566 = vmul.f32 %v565, 1.442695
      %v567 = vpow.pop %v566
      %v568 = vadd.f32 %v567, 1.0
      %v569 = vlog2.pop %v568
      %v570 = vmul.f32 %v569, 0.6931472
      %v571 = vadd.f32 %v563, %v570
      %v572 = vld [vmem:[%s496] sm:$0xff]
      %v573 = vld [vmem:[%s506] sm:$0xff]
      %574 = vxpose.xlu0.b32.start [1/16] %v572, 128
      %575 = vxpose.xlu0.b32.cont [2/16] 0.0, 128
      %576 = vxpose.xlu0.b32.cont [3/16] 0.0, 128
      %577 = vxpose.xlu0.b32.cont [4/16] 0.0, 128
      %578 = vxpose.xlu0.b32.cont [5/16] 0.0, 128
      %579 = vxpose.xlu0.b32.cont [6/16] 0.0, 128
      %580 = vxpose.xlu0.b32.cont [7/16] 0.0, 128
      %581 = vxpose.xlu0.b32.cont [8/16] 0.0, 128
      %582 = vxpose.xlu0.b32.cont [9/16] 0.0, 128
      %583 = vxpose.xlu0.b32.cont [10/16] 0.0, 128
      %584 = vxpose.xlu0.b32.cont [11/16] 0.0, 128
      %585 = vxpose.xlu0.b32.cont [12/16] 0.0, 128
      %586 = vxpose.xlu0.b32.cont [13/16] 0.0, 128
      %587 = vxpose.xlu0.b32.cont [14/16] 0.0, 128
      %588 = vxpose.xlu0.b32.cont [15/16] 0.0, 128
      %589 = vxpose.xlu0.b32.end [16/16] 0.0, 128
      %v590 = vpop.trf.xlu0
      %v591 = vpop.trf.xlu0
      %v592 = vpop.trf.xlu0
      %v593 = vpop.trf.xlu0
      %v594 = vpop.trf.xlu0
      %v595 = vpop.trf.xlu0
      %v596 = vpop.trf.xlu0
      %v597 = vpop.trf.xlu0
      %v598 = vpop.trf.xlu0
      %v599 = vpop.trf.xlu0
      %v600 = vpop.trf.xlu0
      %v601 = vpop.trf.xlu0
      %v602 = vpop.trf.xlu0
      %v603 = vpop.trf.xlu0
      %v604 = vpop.trf.xlu0
      %v605 = vpop.trf.xlu0
      %v606 = vmul.f32 %v571, %v560
      %v607 = vld [vmem:[#allocation2] sm:$0xff]
      %v608 = vld [vmem:[#allocation2 + $0x8] sm:$0xff]
      %v609 = vld [vmem:[#allocation2 + $0x10] sm:$0xff]
      %v610 = vld [vmem:[#allocation2 + $0x18] sm:$0xff]
      %v611 = vld [vmem:[#allocation2 + $0x20] sm:$0xff]
      %v612 = vld [vmem:[#allocation2 + $0x28] sm:$0xff]
      %v613 = vld [vmem:[#allocation2 + $0x30] sm:$0xff]
      %v614 = vld [vmem:[#allocation2 + $0x38] sm:$0xff]
      %v615 = vld [vmem:[#allocation2 + $0x40] sm:$0xff]
      %v616 = vld [vmem:[#allocation2 + $0x48] sm:$0xff]
      %v617 = vld [vmem:[#allocation2 + $0x50] sm:$0xff]
      %v618 = vld [vmem:[#allocation2 + $0x58] sm:$0xff]
      %v619 = vld [vmem:[#allocation2 + $0x60] sm:$0xff]
      %v620 = vld [vmem:[#allocation2 + $0x68] sm:$0xff]
      %v621 = vld [vmem:[#allocation2 + $0x70] sm:$0xff]
      %v622 = vld [vmem:[#allocation2 + $0x78] sm:$0xff]
      %v623 = vlaneseq
      %v624 = vshrl.u32 %v623, 7
      %v625 = vsub.s32 0, %v624
      %v626 = vrot.slane %v571, %v625
      %v627 = vmul.f32 %v626, %v544
      %v628 = vmul.f32 %v626, %v545
      %v629 = vmul.f32 %v626, %v546
      %v630 = vmul.f32 %v626, %v547
      %v631 = vmul.f32 %v626, %v548
      %v632 = vmul.f32 %v626, %v549
      %v633 = vmul.f32 %v626, %v550
      %v634 = vmul.f32 %v626, %v551
      %v635 = vmul.f32 %v626, %v552
      %v636 = vmul.f32 %v626, %v553
      %v637 = vmul.f32 %v626, %v554
      %v638 = vmul.f32 %v626, %v555
      %v639 = vmul.f32 %v626, %v556
      %v640 = vmul.f32 %v626, %v557
      %v641 = vmul.f32 %v626, %v558
      %v642 = vmul.f32 %v626, %v559
      %v643 = vmul.f32 %v627, 1.442695
      %v644 = vpow.pop %v643
      %v645 = vmul.f32 %v628, 1.442695
      %v646 = vpow.pop %v645
      %v647 = vmul.f32 %v629, 1.442695
      %v648 = vpow.pop %v647
      %v649 = vmul.f32 %v630, 1.442695
      %v650 = vpow.pop %v649
      %v651 = vmul.f32 %v631, 1.442695
      %v652 = vpow.pop %v651
      %v653 = vmul.f32 %v632, 1.442695
      %v654 = vpow.pop %v653
      %v655 = vmul.f32 %v633, 1.442695
      %v656 = vpow.pop %v655
      %v657 = vmul.f32 %v634, 1.442695
      %v658 = vpow.pop %v657
      %v659 = vmul.f32 %v635, 1.442695
      %v660 = vpow.pop %v659
      %v661 = vmul.f32 %v636, 1.442695
      %v662 = vpow.pop %v661
      %v663 = vmul.f32 %v637, 1.442695
      %v664 = vpow.pop %v663
      %v665 = vmul.f32 %v638, 1.442695
      %v666 = vpow.pop %v665
      %v667 = vmul.f32 %v639, 1.442695
      %v668 = vpow.pop %v667
      %v669 = vmul.f32 %v640, 1.442695
      %v670 = vpow.pop %v669
      %v671 = vmul.f32 %v641, 1.442695
      %v672 = vpow.pop %v671
      %v673 = vmul.f32 %v642, 1.442695
      %v674 = vpow.pop %v673
      %676 = vset.pattern.permute.xlu0 0
      %677 = vperm.xlu0 %676, %v590
      %v678 = vpop.permute.xlu0 %677
      %681 = vset.pattern.permute.xlu0 0
      %682 = vperm.xlu0 %681, %v591
      %v683 = vpop.permute.xlu0 %682
      %686 = vset.pattern.permute.xlu0 0
      %687 = vperm.xlu0 %686, %v592
      %v688 = vpop.permute.xlu0 %687
      %691 = vset.pattern.permute.xlu0 0
      %692 = vperm.xlu0 %691, %v593
      %v693 = vpop.permute.xlu0 %692
      %696 = vset.pattern.permute.xlu0 0
      %697 = vperm.xlu0 %696, %v594
      %v698 = vpop.permute.xlu0 %697
      %701 = vset.pattern.permute.xlu0 0
      %702 = vperm.xlu0 %701, %v595
      %v703 = vpop.permute.xlu0 %702
      %706 = vset.pattern.permute.xlu0 0
      %707 = vperm.xlu0 %706, %v596
      %v708 = vpop.permute.xlu0 %707
      %711 = vset.pattern.permute.xlu0 0
      %712 = vperm.xlu0 %711, %v597
      %v713 = vpop.permute.xlu0 %712
      %716 = vset.pattern.permute.xlu0 0
      %717 = vperm.xlu0 %716, %v598
      %v718 = vpop.permute.xlu0 %717
      %721 = vset.pattern.permute.xlu0 0
      %722 = vperm.xlu0 %721, %v599
      %v723 = vpop.permute.xlu0 %722
      %726 = vset.pattern.permute.xlu0 0
      %727 = vperm.xlu0 %726, %v600
      %v728 = vpop.permute.xlu0 %727
      %731 = vset.pattern.permute.xlu0 0
      %732 = vperm.xlu0 %731, %v601
      %v733 = vpop.permute.xlu0 %732
      %736 = vset.pattern.permute.xlu0 0
      %737 = vperm.xlu0 %736, %v602
      %v738 = vpop.permute.xlu0 %737
      %741 = vset.pattern.permute.xlu0 0
      %742 = vperm.xlu0 %741, %v603
      %v743 = vpop.permute.xlu0 %742
      %746 = vset.pattern.permute.xlu0 0
      %747 = vperm.xlu0 %746, %v604
      %v748 = vpop.permute.xlu0 %747
      %751 = vset.pattern.permute.xlu0 0
      %752 = vperm.xlu0 %751, %v605
      %v753 = vpop.permute.xlu0 %752
      %v755 = vlaneseq
      %v756 = vshrl.u32 %v755, 7
      %v757 = vsub.s32 0, %v756
      %v758 = vrot.slane %v606, %v757
      %v759 = vmul.f32 %v678, %v758
      %v760 = vmul.f32 %v683, %v758
      %v761 = vmul.f32 %v688, %v758
      %v762 = vmul.f32 %v693, %v758
      %v763 = vmul.f32 %v698, %v758
      %v764 = vmul.f32 %v703, %v758
      %v765 = vmul.f32 %v708, %v758
      %v766 = vmul.f32 %v713, %v758
      %v767 = vmul.f32 %v718, %v758
      %v768 = vmul.f32 %v723, %v758
      %v769 = vmul.f32 %v728, %v758
      %v770 = vmul.f32 %v733, %v758
      %v771 = vmul.f32 %v738, %v758
      %v772 = vmul.f32 %v743, %v758
      %v773 = vmul.f32 %v748, %v758
      %v774 = vmul.f32 %v753, %v758
      %v775 = vmul.f32 %v644, %v607
      %v776 = vmul.f32 %v646, %v608
      %v777 = vmul.f32 %v648, %v609
      %v778 = vmul.f32 %v650, %v610
      %v779 = vmul.f32 %v652, %v611
      %v780 = vmul.f32 %v654, %v612
      %v781 = vmul.f32 %v656, %v613
      %v782 = vmul.f32 %v658, %v614
      %v783 = vmul.f32 %v660, %v615
      %v784 = vmul.f32 %v662, %v616
      %v785 = vmul.f32 %v664, %v617
      %v786 = vmul.f32 %v666, %v618
      %v787 = vmul.f32 %v668, %v619
      %v788 = vmul.f32 %v670, %v620
      %v789 = vmul.f32 %v672, %v621
      %v790 = vmul.f32 %v674, %v622
      %v791 = vadd.f32 %v775, %v759
      %v792 = vadd.f32 %v776, %v760
      %v793 = vadd.f32 %v777, %v761
      %v794 = vadd.f32 %v778, %v762
      %v795 = vadd.f32 %v779, %v763
      %v796 = vadd.f32 %v780, %v764
      %v797 = vadd.f32 %v781, %v765
      %v798 = vadd.f32 %v782, %v766
      %v799 = vadd.f32 %v783, %v767
      %v800 = vadd.f32 %v784, %v768
      %v801 = vadd.f32 %v785, %v769
      %v802 = vadd.f32 %v786, %v770
      %v803 = vadd.f32 %v787, %v771
      %v804 = vadd.f32 %v788, %v772
      %v805 = vadd.f32 %v789, %v773
      %v806 = vadd.f32 %v790, %v774
      %807 = vmatprep.subr.mxu0 0.0
      %808 = vmatpush1.msra.mxu0 %v806
      %809 = vmatprep.subr.mxu0 0.0
      %810 = vmatpush1.msra.mxu0 %v805
      %811 = vmatprep.subr.mxu0 0.0
      %812 = vmatpush1.msra.mxu0 %v804
      %813 = vmatprep.subr.mxu0 0.0
      %814 = vmatpush1.msra.mxu0 %v803
      %815 = vmatprep.subr.mxu0 0.0
      %816 = vmatpush1.msra.mxu0 %v802
      %817 = vmatprep.subr.mxu0 0.0
      %818 = vmatpush1.msra.mxu0 %v801
      %819 = vmatprep.subr.mxu0 0.0
      %820 = vmatpush1.msra.mxu0 %v800
      %821 = vmatprep.subr.mxu0 0.0
      %822 = vmatpush1.msra.mxu0 %v799
      %823 = vmatprep.subr.mxu0 0.0
      %824 = vmatpush1.msra.mxu0 %v798
      %825 = vmatprep.subr.mxu0 0.0
      %826 = vmatpush1.msra.mxu0 %v797
      %827 = vmatprep.subr.mxu0 0.0
      %828 = vmatpush1.msra.mxu0 %v796
      %829 = vmatprep.subr.mxu0 0.0
      %830 = vmatpush1.msra.mxu0 %v795
      %831 = vmatprep.subr.mxu0 0.0
      %832 = vmatpush1.msra.mxu0 %v794
      %833 = vmatprep.subr.mxu0 0.0
      %834 = vmatpush1.msra.mxu0 %v793
      %835 = vmatprep.subr.mxu0 0.0
      %836 = vmatpush1.msra.mxu0 %v792
      %837 = vmatprep.subr.mxu0 0.0
      %838 = vmatpush1.msra.mxu0 %v791
      %839 = vmatprep.subr.mxu0 0.0
      %840 = vmatpush2.msra.mxu0 0.0
      %841 = vmatprep.subr.mxu0 0.0
      %842 = vmatpush2.msra.mxu0 0.0
      %843 = vmatprep.subr.mxu0 0.0
      %844 = vmatpush2.msra.mxu0 0.0
      %845 = vmatprep.subr.mxu0 0.0
      %846 = vmatpush2.msra.mxu0 0.0
      %847 = vmatprep.subr.mxu0 0.0
      %848 = vmatpush2.msra.mxu0 0.0
      %849 = vmatprep.subr.mxu0 0.0
      %850 = vmatpush2.msra.mxu0 0.0
      %851 = vmatprep.subr.mxu0 0.0
      %852 = vmatpush2.msra.mxu0 0.0
      %853 = vmatprep.subr.mxu0 0.0
      %854 = vmatpush2.msra.mxu0 0.0
      %855 = vmatprep.subr.mxu0 0.0
      %856 = vmatpush2.msra.mxu0 0.0
      %857 = vmatprep.subr.mxu0 0.0
      %858 = vmatpush2.msra.mxu0 0.0
      %859 = vmatprep.subr.mxu0 0.0
      %860 = vmatpush2.msra.mxu0 0.0
      %861 = vmatprep.subr.mxu0 0.0
      %862 = vmatpush2.msra.mxu0 0.0
      %863 = vmatprep.subr.mxu0 0.0
      %864 = vmatpush2.msra.mxu0 0.0
      %865 = vmatprep.subr.mxu0 0.0
      %866 = vmatpush2.msra.mxu0 0.0
      %867 = vmatprep.subr.mxu0 0.0
      %868 = vmatpush2.msra.mxu0 0.0
      %869 = vmatprep.subr.mxu0 0.0
      %870 = vmatpush2.msra.mxu0 0.0
      %871 = vmatprep.mubr.f32.mxu0 0.0
      %872 = vmatmul.mubr.f32.gmra.mxu0 %v573
      %v873 = vpop.f32.mrf.mxu0
      %v874 = vadd.f32 0.0, %v873
      %v875 = vpop.f32.mrf.mxu0
      %876 = vdwg.mxu0
      %v877 = vlaneseq
      %v878 = vshrl.u32 %v877, 7
      %v879 = vsub.s32 1, %v878
      %v880 = vrot.slane %v571, %v879
      %v881 = vmul.f32 %v880, %v544
      %v882 = vmul.f32 %v880, %v545
      %v883 = vmul.f32 %v880, %v546
      %v884 = vmul.f32 %v880, %v547
      %v885 = vmul.f32 %v880, %v548
      %v886 = vmul.f32 %v880, %v549
      %v887 = vmul.f32 %v880, %v550
      %v888 = vmul.f32 %v880, %v551
      %v889 = vmul.f32 %v880, %v552
      %v890 = vmul.f32 %v880, %v553
      %v891 = vmul.f32 %v880, %v554
      %v892 = vmul.f32 %v880, %v555
      %v893 = vmul.f32 %v880, %v556
      %v894 = vmul.f32 %v880, %v557
      %v895 = vmul.f32 %v880, %v558
      %v896 = vmul.f32 %v880, %v559
      %v897 = vmul.f32 %v881, 1.442695
      %v898 = vpow.pop %v897
      %v899 = vmul.f32 %v882, 1.442695
      %v900 = vpow.pop %v899
      %v901 = vmul.f32 %v883, 1.442695
      %v902 = vpow.pop %v901
      %v903 = vmul.f32 %v884, 1.442695
      %v904 = vpow.pop %v903
      %v905 = vmul.f32 %v885, 1.442695
      %v906 = vpow.pop %v905
      %v907 = vmul.f32 %v886, 1.442695
      %v908 = vpow.pop %v907
      %v909 = vmul.f32 %v887, 1.442695
      %v910 = vpow.pop %v909
      %v911 = vmul.f32 %v888, 1.442695
      %v912 = vpow.pop %v911
      %v913 = vmul.f32 %v889, 1.442695
      %v914 = vpow.pop %v913
      %v915 = vmul.f32 %v890, 1.442695
      %v916 = vpow.pop %v915
      %v917 = vmul.f32 %v891, 1.442695
      %v918 = vpow.pop %v917
      %v919 = vmul.f32 %v892, 1.442695
      %v920 = vpow.pop %v919
      %v921 = vmul.f32 %v893, 1.442695
      %v922 = vpow.pop %v921
      %v923 = vmul.f32 %v894, 1.442695
      %v924 = vpow.pop %v923
      %v925 = vmul.f32 %v895, 1.442695
      %v926 = vpow.pop %v925
      %v927 = vmul.f32 %v896, 1.442695
      %v928 = vpow.pop %v927
      %929 = vset.pattern.permute.xlu0 1
      %930 = vperm.xlu0 %929, %v590
      %v931 = vpop.permute.xlu0 %930
      %933 = vset.pattern.permute.xlu0 1
      %934 = vperm.xlu0 %933, %v591
      %v935 = vpop.permute.xlu0 %934
      %937 = vset.pattern.permute.xlu0 1
      %938 = vperm.xlu0 %937, %v592
      %v939 = vpop.permute.xlu0 %938
      %941 = vset.pattern.permute.xlu0 1
      %942 = vperm.xlu0 %941, %v593
      %v943 = vpop.permute.xlu0 %942
      %945 = vset.pattern.permute.xlu0 1
      %946 = vperm.xlu0 %945, %v594
      %v947 = vpop.permute.xlu0 %946
      %949 = vset.pattern.permute.xlu0 1
      %950 = vperm.xlu0 %949, %v595
      %v951 = vpop.permute.xlu0 %950
      %953 = vset.pattern.permute.xlu0 1
      %954 = vperm.xlu0 %953, %v596
      %v955 = vpop.permute.xlu0 %954
      %957 = vset.pattern.permute.xlu0 1
      %958 = vperm.xlu0 %957, %v597
      %v959 = vpop.permute.xlu0 %958
      %961 = vset.pattern.permute.xlu0 1
      %962 = vperm.xlu0 %961, %v598
      %v963 = vpop.permute.xlu0 %962
      %965 = vset.pattern.permute.xlu0 1
      %966 = vperm.xlu0 %965, %v599
      %v967 = vpop.permute.xlu0 %966
      %969 = vset.pattern.permute.xlu0 1
      %970 = vperm.xlu0 %969, %v600
      %v971 = vpop.permute.xlu0 %970
      %973 = vset.pattern.permute.xlu0 1
      %974 = vperm.xlu0 %973, %v601
      %v975 = vpop.permute.xlu0 %974
      %977 = vset.pattern.permute.xlu0 1
      %978 = vperm.xlu0 %977, %v602
      %v979 = vpop.permute.xlu0 %978
      %981 = vset.pattern.permute.xlu0 1
      %982 = vperm.xlu0 %981, %v603
      %v983 = vpop.permute.xlu0 %982
      %985 = vset.pattern.permute.xlu0 1
      %986 = vperm.xlu0 %985, %v604
      %v987 = vpop.permute.xlu0 %986
      %989 = vset.pattern.permute.xlu0 1
      %990 = vperm.xlu0 %989, %v605
      %v991 = vpop.permute.xlu0 %990
      %v993 = vlaneseq
      %v994 = vshrl.u32 %v993, 7
      %v995 = vsub.s32 1, %v994
      %v996 = vrot.slane %v606, %v995
      %v997 = vmul.f32 %v931, %v996
      %v998 = vmul.f32 %v935, %v996
      %v999 = vmul.f32 %v939, %v996
      %v1000 = vmul.f32 %v943, %v996
      %v1001 = vmul.f32 %v947, %v996
      %v1002 = vmul.f32 %v951, %v996
      %v1003 = vmul.f32 %v955, %v996
      %v1004 = vmul.f32 %v959, %v996
      %v1005 = vmul.f32 %v963, %v996
      %v1006 = vmul.f32 %v967, %v996
      %v1007 = vmul.f32 %v971, %v996
      %v1008 = vmul.f32 %v975, %v996
      %v1009 = vmul.f32 %v979, %v996
      %v1010 = vmul.f32 %v983, %v996
      %v1011 = vmul.f32 %v987, %v996
      %v1012 = vmul.f32 %v991, %v996
      %v1013 = vmul.f32 %v898, %v791
      %v1014 = vmul.f32 %v900, %v792
      %v1015 = vmul.f32 %v902, %v793
      %v1016 = vmul.f32 %v904, %v794
      %v1017 = vmul.f32 %v906, %v795
      %v1018 = vmul.f32 %v908, %v796
      %v1019 = vmul.f32 %v910, %v797
      %v1020 = vmul.f32 %v912, %v798
      %v1021 = vmul.f32 %v914, %v799
      %v1022 = vmul.f32 %v916, %v800
      %v1023 = vmul.f32 %v918, %v801
      %v1024 = vmul.f32 %v920, %v802
      %v1025 = vmul.f32 %v922, %v803
      %v1026 = vmul.f32 %v924, %v804
      %v1027 = vmul.f32 %v926, %v805
      %v1028 = vmul.f32 %v928, %v806
      %v1029 = vadd.f32 %v1013, %v997
      %v1030 = vadd.f32 %v1014, %v998
      %v1031 = vadd.f32 %v1015, %v999
      %v1032 = vadd.f32 %v1016, %v1000
      %v1033 = vadd.f32 %v1017, %v1001
      %v1034 = vadd.f32 %v1018, %v1002
      %v1035 = vadd.f32 %v1019, %v1003
      %v1036 = vadd.f32 %v1020, %v1004
      %v1037 = vadd.f32 %v1021, %v1005
      %v1038 = vadd.f32 %v1022, %v1006
      %v1039 = vadd.f32 %v1023, %v1007
      %v1040 = vadd.f32 %v1024, %v1008
      %v1041 = vadd.f32 %v1025, %v1009
      %v1042 = vadd.f32 %v1026, %v1010
      %v1043 = vadd.f32 %v1027, %v1011
      %v1044 = vadd.f32 %v1028, %v1012
      %v1046 = vrot.slane %v573, 1
      %1048 = vmatprep.subr.mxu0 0.0
      %1049 = vmatpush1.msra.mxu0 %v1044
      %1050 = vmatprep.subr.mxu0 0.0
      %1051 = vmatpush1.msra.mxu0 %v1043
      %1052 = vmatprep.subr.mxu0 0.0
      %1053 = vmatpush1.msra.mxu0 %v1042
      %1054 = vmatprep.subr.mxu0 0.0
      %1055 = vmatpush1.msra.mxu0 %v1041
      %1056 = vmatprep.subr.mxu0 0.0
      %1057 = vmatpush1.msra.mxu0 %v1040
      %1058 = vmatprep.subr.mxu0 0.0
      %1059 = vmatpush1.msra.mxu0 %v1039
      %1060 = vmatprep.subr.mxu0 0.0
      %1061 = vmatpush1.msra.mxu0 %v1038
      %1062 = vmatprep.subr.mxu0 0.0
      %1063 = vmatpush1.msra.mxu0 %v1037
      %1064 = vmatprep.subr.mxu0 0.0
      %1065 = vmatpush1.msra.mxu0 %v1036
      %1066 = vmatprep.subr.mxu0 0.0
      %1067 = vmatpush1.msra.mxu0 %v1035
      %1068 = vmatprep.subr.mxu0 0.0
      %1069 = vmatpush1.msra.mxu0 %v1034
      %1070 = vmatprep.subr.mxu0 0.0
      %1071 = vmatpush1.msra.mxu0 %v1033
      %1072 = vmatprep.subr.mxu0 0.0
      %1073 = vmatpush1.msra.mxu0 %v1032
      %1074 = vmatprep.subr.mxu0 0.0
      %1075 = vmatpush1.msra.mxu0 %v1031
      %1076 = vmatprep.subr.mxu0 0.0
      %1077 = vmatpush1.msra.mxu0 %v1030
      %1078 = vmatprep.subr.mxu0 0.0
      %1079 = vmatpush1.msra.mxu0 %v1029
      %1080 = vmatprep.subr.mxu0 0.0
      %1081 = vmatpush2.msra.mxu0 0.0
      %1082 = vmatprep.subr.mxu0 0.0
      %1083 = vmatpush2.msra.mxu0 0.0
      %1084 = vmatprep.subr.mxu0 0.0
      %1085 = vmatpush2.msra.mxu0 0.0
      %1086 = vmatprep.subr.mxu0 0.0
      %1087 = vmatpush2.msra.mxu0 0.0
      %1088 = vmatprep.subr.mxu0 0.0
      %1089 = vmatpush2.msra.mxu0 0.0
      %1090 = vmatprep.subr.mxu0 0.0
      %1091 = vmatpush2.msra.mxu0 0.0
      %1092 = vmatprep.subr.mxu0 0.0
      %1093 = vmatpush2.msra.mxu0 0.0
      %1094 = vmatprep.subr.mxu0 0.0
      %1095 = vmatpush2.msra.mxu0 0.0
      %1096 = vmatprep.subr.mxu0 0.0
      %1097 = vmatpush2.msra.mxu0 0.0
      %1098 = vmatprep.subr.mxu0 0.0
      %1099 = vmatpush2.msra.mxu0 0.0
      %1100 = vmatprep.subr.mxu0 0.0
      %1101 = vmatpush2.msra.mxu0 0.0
      %1102 = vmatprep.subr.mxu0 0.0
      %1103 = vmatpush2.msra.mxu0 0.0
      %1104 = vmatprep.subr.mxu0 0.0
      %1105 = vmatpush2.msra.mxu0 0.0
      %1106 = vmatprep.subr.mxu0 0.0
      %1107 = vmatpush2.msra.mxu0 0.0
      %1108 = vmatprep.subr.mxu0 0.0
      %1109 = vmatpush2.msra.mxu0 0.0
      %1110 = vmatprep.subr.mxu0 0.0
      %1111 = vmatpush2.msra.mxu0 0.0
      %1112 = vmatprep.mubr.f32.mxu0 0.0
      %1113 = vmatmul.mubr.f32.gmra.mxu0 %v1046
      %v1114 = vpop.f32.mrf.mxu0
      %v1115 = vadd.f32 0.0, %v1114
      %v1116 = vpop.f32.mrf.mxu0
      %1117 = vdwg.mxu0
      %v1118 = vlaneseq
      %v1119 = vshrl.u32 %v1118, 7
      %v1120 = vsub.s32 2, %v1119
      %v1121 = vrot.slane %v571, %v1120
      %v1122 = vmul.f32 %v1121, %v544
      %v1123 = vmul.f32 %v1121, %v545
      %v1124 = vmul.f32 %v1121, %v546
      %v1125 = vmul.f32 %v1121, %v547
      %v1126 = vmul.f32 %v1121, %v548
      %v1127 = vmul.f32 %v1121, %v549
      %v1128 = vmul.f32 %v1121, %v550
      %v1129 = vmul.f32 %v1121, %v551
      %v1130 = vmul.f32 %v1121, %v552
      %v1131 = vmul.f32 %v1121, %v553
      %v1132 = vmul.f32 %v1121, %v554
      %v1133 = vmul.f32 %v1121, %v555
      %v1134 = vmul.f32 %v1121, %v556
      %v1135 = vmul.f32 %v1121, %v557
      %v1136 = vmul.f32 %v1121, %v558
      %v1137 = vmul.f32 %v1121, %v559
      %v1138 = vmul.f32 %v1122, 1.442695
      %v1139 = vpow.pop %v1138
      %v1140 = vmul.f32 %v1123, 1.442695
      %v1141 = vpow.pop %v1140
      %v1142 = vmul.f32 %v1124, 1.442695
      %v1143 = vpow.pop %v1142
      %v1144 = vmul.f32 %v1125, 1.442695
      %v1145 = vpow.pop %v1144
      %v1146 = vmul.f32 %v1126, 1.442695
      %v1147 = vpow.pop %v1146
      %v1148 = vmul.f32 %v1127, 1.442695
      %v1149 = vpow.pop %v1148
      %v1150 = vmul.f32 %v1128, 1.442695
      %v1151 = vpow.pop %v1150
      %v1152 = vmul.f32 %v1129, 1.442695
      %v1153 = vpow.pop %v1152
      %v1154 = vmul.f32 %v1130, 1.442695
      %v1155 = vpow.pop %v1154
      %v1156 = vmul.f32 %v1131, 1.442695
      %v1157 = vpow.pop %v1156
      %v1158 = vmul.f32 %v1132, 1.442695
      %v1159 = vpow.pop %v1158
      %v1160 = vmul.f32 %v1133, 1.442695
      %v1161 = vpow.pop %v1160
      %v1162 = vmul.f32 %v1134, 1.442695
      %v1163 = vpow.pop %v1162
      %v1164 = vmul.f32 %v1135, 1.442695
      %v1165 = vpow.pop %v1164
      %v1166 = vmul.f32 %v1136, 1.442695
      %v1167 = vpow.pop %v1166
      %v1168 = vmul.f32 %v1137, 1.442695
      %v1169 = vpow.pop %v1168
      %1170 = vset.pattern.permute.xlu0 2
      %1171 = vperm.xlu0 %1170, %v590
      %v1172 = vpop.permute.xlu0 %1171
      %1174 = vset.pattern.permute.xlu0 2
      %1175 = vperm.xlu0 %1174, %v591
      %v1176 = vpop.permute.xlu0 %1175
      %1178 = vset.pattern.permute.xlu0 2
      %1179 = vperm.xlu0 %1178, %v592
      %v1180 = vpop.permute.xlu0 %1179
      %1182 = vset.pattern.permute.xlu0 2
      %1183 = vperm.xlu0 %1182, %v593
      %v1184 = vpop.permute.xlu0 %1183
      %1186 = vset.pattern.permute.xlu0 2
      %1187 = vperm.xlu0 %1186, %v594
      %v1188 = vpop.permute.xlu0 %1187
      %1190 = vset.pattern.permute.xlu0 2
      %1191 = vperm.xlu0 %1190, %v595
      %v1192 = vpop.permute.xlu0 %1191
      %1194 = vset.pattern.permute.xlu0 2
      %1195 = vperm.xlu0 %1194, %v596
      %v1196 = vpop.permute.xlu0 %1195
      %1198 = vset.pattern.permute.xlu0 2
      %1199 = vperm.xlu0 %1198, %v597
      %v1200 = vpop.permute.xlu0 %1199
      %1202 = vset.pattern.permute.xlu0 2
      %1203 = vperm.xlu0 %1202, %v598
      %v1204 = vpop.permute.xlu0 %1203
      %1206 = vset.pattern.permute.xlu0 2
      %1207 = vperm.xlu0 %1206, %v599
      %v1208 = vpop.permute.xlu0 %1207
      %1210 = vset.pattern.permute.xlu0 2
      %1211 = vperm.xlu0 %1210, %v600
      %v1212 = vpop.permute.xlu0 %1211
      %1214 = vset.pattern.permute.xlu0 2
      %1215 = vperm.xlu0 %1214, %v601
      %v1216 = vpop.permute.xlu0 %1215
      %1218 = vset.pattern.permute.xlu0 2
      %1219 = vperm.xlu0 %1218, %v602
      %v1220 = vpop.permute.xlu0 %1219
      %1222 = vset.pattern.permute.xlu0 2
      %1223 = vperm.xlu0 %1222, %v603
      %v1224 = vpop.permute.xlu0 %1223
      %1226 = vset.pattern.permute.xlu0 2
      %1227 = vperm.xlu0 %1226, %v604
      %v1228 = vpop.permute.xlu0 %1227
      %1230 = vset.pattern.permute.xlu0 2
      %1231 = vperm.xlu0 %1230, %v605
      %v1232 = vpop.permute.xlu0 %1231
      %v1234 = vlaneseq
      %v1235 = vshrl.u32 %v1234, 7
      %v1236 = vsub.s32 2, %v1235
      %v1237 = vrot.slane %v606, %v1236
      %v1238 = vmul.f32 %v1172, %v1237
      %v1239 = vmul.f32 %v1176, %v1237
      %v1240 = vmul.f32 %v1180, %v1237
      %v1241 = vmul.f32 %v1184, %v1237
      %v1242 = vmul.f32 %v1188, %v1237
      %v1243 = vmul.f32 %v1192, %v1237
      %v1244 = vmul.f32 %v1196, %v1237
      %v1245 = vmul.f32 %v1200, %v1237
      %v1246 = vmul.f32 %v1204, %v1237
      %v1247 = vmul.f32 %v1208, %v1237
      %v1248 = vmul.f32 %v1212, %v1237
      %v1249 = vmul.f32 %v1216, %v1237
      %v1250 = vmul.f32 %v1220, %v1237
      %v1251 = vmul.f32 %v1224, %v1237
      %v1252 = vmul.f32 %v1228, %v1237
      %v1253 = vmul.f32 %v1232, %v1237
      %v1254 = vmul.f32 %v1139, %v1029
      %v1255 = vmul.f32 %v1141, %v1030
      %v1256 = vmul.f32 %v1143, %v1031
      %v1257 = vmul.f32 %v1145, %v1032
      %v1258 = vmul.f32 %v1147, %v1033
      %v1259 = vmul.f32 %v1149, %v1034
      %v1260 = vmul.f32 %v1151, %v1035
      %v1261 = vmul.f32 %v1153, %v1036
      %v1262 = vmul.f32 %v1155, %v1037
      %v1263 = vmul.f32 %v1157, %v1038
      %v1264 = vmul.f32 %v1159, %v1039
      %v1265 = vmul.f32 %v1161, %v1040
      %v1266 = vmul.f32 %v1163, %v1041
      %v1267 = vmul.f32 %v1165, %v1042
      %v1268 = vmul.f32 %v1167, %v1043
      %v1269 = vmul.f32 %v1169, %v1044
      %v1270 = vadd.f32 %v1254, %v1238
      %v1271 = vadd.f32 %v1255, %v1239
      %v1272 = vadd.f32 %v1256, %v1240
      %v1273 = vadd.f32 %v1257, %v1241
      %v1274 = vadd.f32 %v1258, %v1242
      %v1275 = vadd.f32 %v1259, %v1243
      %v1276 = vadd.f32 %v1260, %v1244
      %v1277 = vadd.f32 %v1261, %v1245
      %v1278 = vadd.f32 %v1262, %v1246
      %v1279 = vadd.f32 %v1263, %v1247
      %v1280 = vadd.f32 %v1264, %v1248
      %v1281 = vadd.f32 %v1265, %v1249
      %v1282 = vadd.f32 %v1266, %v1250
      %v1283 = vadd.f32 %v1267, %v1251
      %v1284 = vadd.f32 %v1268, %v1252
      %v1285 = vadd.f32 %v1269, %v1253
      %v1286 = vrot.slane %v573, 2
      %1288 = vmatprep.subr.mxu0 0.0
      %1289 = vmatpush1.msra.mxu0 %v1285
      %1290 = vmatprep.subr.mxu0 0.0
      %1291 = vmatpush1.msra.mxu0 %v1284
      %1292 = vmatprep.subr.mxu0 0.0
      %1293 = vmatpush1.msra.mxu0 %v1283
      %1294 = vmatprep.subr.mxu0 0.0
      %1295 = vmatpush1.msra.mxu0 %v1282
      %1296 = vmatprep.subr.mxu0 0.0
      %1297 = vmatpush1.msra.mxu0 %v1281
      %1298 = vmatprep.subr.mxu0 0.0
      %1299 = vmatpush1.msra.mxu0 %v1280
      %1300 = vmatprep.subr.mxu0 0.0
      %1301 = vmatpush1.msra.mxu0 %v1279
      %1302 = vmatprep.subr.mxu0 0.0
      %1303 = vmatpush1.msra.mxu0 %v1278
      %1304 = vmatprep.subr.mxu0 0.0
      %1305 = vmatpush1.msra.mxu0 %v1277
      %1306 = vmatprep.subr.mxu0 0.0
      %1307 = vmatpush1.msra.mxu0 %v1276
      %1308 = vmatprep.subr.mxu0 0.0
      %1309 = vmatpush1.msra.mxu0 %v1275
      %1310 = vmatprep.subr.mxu0 0.0
      %1311 = vmatpush1.msra.mxu0 %v1274
      %1312 = vmatprep.subr.mxu0 0.0
      %1313 = vmatpush1.msra.mxu0 %v1273
      %1314 = vmatprep.subr.mxu0 0.0
      %1315 = vmatpush1.msra.mxu0 %v1272
      %1316 = vmatprep.subr.mxu0 0.0
      %1317 = vmatpush1.msra.mxu0 %v1271
      %1318 = vmatprep.subr.mxu0 0.0
      %1319 = vmatpush1.msra.mxu0 %v1270
      %1320 = vmatprep.subr.mxu0 0.0
      %1321 = vmatpush2.msra.mxu0 0.0
      %1322 = vmatprep.subr.mxu0 0.0
      %1323 = vmatpush2.msra.mxu0 0.0
      %1324 = vmatprep.subr.mxu0 0.0
      %1325 = vmatpush2.msra.mxu0 0.0
      %1326 = vmatprep.subr.mxu0 0.0
      %1327 = vmatpush2.msra.mxu0 0.0
      %1328 = vmatprep.subr.mxu0 0.0
      %1329 = vmatpush2.msra.mxu0 0.0
      %1330 = vmatprep.subr.mxu0 0.0
      %1331 = vmatpush2.msra.mxu0 0.0
      %1332 = vmatprep.subr.mxu0 0.0
      %1333 = vmatpush2.msra.mxu0 0.0
      %1334 = vmatprep.subr.mxu0 0.0
      %1335 = vmatpush2.msra.mxu0 0.0
      %1336 = vmatprep.subr.mxu0 0.0
      %1337 = vmatpush2.msra.mxu0 0.0
      %1338 = vmatprep.subr.mxu0 0.0
      %1339 = vmatpush2.msra.mxu0 0.0
      %1340 = vmatprep.subr.mxu0 0.0
      %1341 = vmatpush2.msra.mxu0 0.0
      %1342 = vmatprep.subr.mxu0 0.0
      %1343 = vmatpush2.msra.mxu0 0.0
      %1344 = vmatprep.subr.mxu0 0.0
      %1345 = vmatpush2.msra.mxu0 0.0
      %1346 = vmatprep.subr.mxu0 0.0
      %1347 = vmatpush2.msra.mxu0 0.0
      %1348 = vmatprep.subr.mxu0 0.0
      %1349 = vmatpush2.msra.mxu0 0.0
      %1350 = vmatprep.subr.mxu0 0.0
      %1351 = vmatpush2.msra.mxu0 0.0
      %1352 = vmatprep.mubr.f32.mxu0 0.0
      %1353 = vmatmul.mubr.f32.gmra.mxu0 %v1286
      %v1354 = vpop.f32.mrf.mxu0
      %v1355 = vadd.f32 0.0, %v1354
      %v1356 = vpop.f32.mrf.mxu0
      %1357 = vdwg.mxu0
      %v1358 = vlaneseq
      %v1359 = vshrl.u32 %v1358, 7
      %v1360 = vsub.s32 3, %v1359
      %v1361 = vrot.slane %v571, %v1360
      %v1362 = vmul.f32 %v1361, %v544
      %v1363 = vmul.f32 %v1361, %v545
      %v1364 = vmul.f32 %v1361, %v546
      %v1365 = vmul.f32 %v1361, %v547
      %v1366 = vmul.f32 %v1361, %v548
      %v1367 = vmul.f32 %v1361, %v549
      %v1368 = vmul.f32 %v1361, %v550
      %v1369 = vmul.f32 %v1361, %v551
      %v1370 = vmul.f32 %v1361, %v552
      %v1371 = vmul.f32 %v1361, %v553
      %v1372 = vmul.f32 %v1361, %v554
      %v1373 = vmul.f32 %v1361, %v555
      %v1374 = vmul.f32 %v1361, %v556
      %v1375 = vmul.f32 %v1361, %v557
      %v1376 = vmul.f32 %v1361, %v558
      %v1377 = vmul.f32 %v1361, %v559
      %v1378 = vmul.f32 %v1362, 1.442695
      %v1379 = vpow.pop %v1378
      %v1380 = vmul.f32 %v1363, 1.442695
      %v1381 = vpow.pop %v1380
      %v1382 = vmul.f32 %v1364, 1.442695
      %v1383 = vpow.pop %v1382
      %v1384 = vmul.f32 %v1365, 1.442695
      %v1385 = vpow.pop %v1384
      %v1386 = vmul.f32 %v1366, 1.442695
      %v1387 = vpow.pop %v1386
      %v1388 = vmul.f32 %v1367, 1.442695
      %v1389 = vpow.pop %v1388
      %v1390 = vmul.f32 %v1368, 1.442695
      %v1391 = vpow.pop %v1390
      %v1392 = vmul.f32 %v1369, 1.442695
      %v1393 = vpow.pop %v1392
      %v1394 = vmul.f32 %v1370, 1.442695
      %v1395 = vpow.pop %v1394
      %v1396 = vmul.f32 %v1371, 1.442695
      %v1397 = vpow.pop %v1396
      %v1398 = vmul.f32 %v1372, 1.442695
      %v1399 = vpow.pop %v1398
      %v1400 = vmul.f32 %v1373, 1.442695
      %v1401 = vpow.pop %v1400
      %v1402 = vmul.f32 %v1374, 1.442695
      %v1403 = vpow.pop %v1402
      %v1404 = vmul.f32 %v1375, 1.442695
      %v1405 = vpow.pop %v1404
      %v1406 = vmul.f32 %v1376, 1.442695
      %v1407 = vpow.pop %v1406
      %v1408 = vmul.f32 %v1377, 1.442695
      %v1409 = vpow.pop %v1408
      %1410 = vset.pattern.permute.xlu0 3
      %1411 = vperm.xlu0 %1410, %v590
      %v1412 = vpop.permute.xlu0 %1411
      %1414 = vset.pattern.permute.xlu0 3
      %1415 = vperm.xlu0 %1414, %v591
      %v1416 = vpop.permute.xlu0 %1415
      %1418 = vset.pattern.permute.xlu0 3
      %1419 = vperm.xlu0 %1418, %v592
      %v1420 = vpop.permute.xlu0 %1419
      %1422 = vset.pattern.permute.xlu0 3
      %1423 = vperm.xlu0 %1422, %v593
      %v1424 = vpop.permute.xlu0 %1423
      %1426 = vset.pattern.permute.xlu0 3
      %1427 = vperm.xlu0 %1426, %v594
      %v1428 = vpop.permute.xlu0 %1427
      %1430 = vset.pattern.permute.xlu0 3
      %1431 = vperm.xlu0 %1430, %v595
      %v1432 = vpop.permute.xlu0 %1431
      %1434 = vset.pattern.permute.xlu0 3
      %1435 = vperm.xlu0 %1434, %v596
      %v1436 = vpop.permute.xlu0 %1435
      %1438 = vset.pattern.permute.xlu0 3
      %1439 = vperm.xlu0 %1438, %v597
      %v1440 = vpop.permute.xlu0 %1439
      %1442 = vset.pattern.permute.xlu0 3
      %1443 = vperm.xlu0 %1442, %v598
      %v1444 = vpop.permute.xlu0 %1443
      %1446 = vset.pattern.permute.xlu0 3
      %1447 = vperm.xlu0 %1446, %v599
      %v1448 = vpop.permute.xlu0 %1447
      %1450 = vset.pattern.permute.xlu0 3
      %1451 = vperm.xlu0 %1450, %v600
      %v1452 = vpop.permute.xlu0 %1451
      %1454 = vset.pattern.permute.xlu0 3
      %1455 = vperm.xlu0 %1454, %v601
      %v1456 = vpop.permute.xlu0 %1455
      %1458 = vset.pattern.permute.xlu0 3
      %1459 = vperm.xlu0 %1458, %v602
      %v1460 = vpop.permute.xlu0 %1459
      %1462 = vset.pattern.permute.xlu0 3
      %1463 = vperm.xlu0 %1462, %v603
      %v1464 = vpop.permute.xlu0 %1463
      %1466 = vset.pattern.permute.xlu0 3
      %1467 = vperm.xlu0 %1466, %v604
      %v1468 = vpop.permute.xlu0 %1467
      %1470 = vset.pattern.permute.xlu0 3
      %1471 = vperm.xlu0 %1470, %v605
      %v1472 = vpop.permute.xlu0 %1471
      %v1474 = vlaneseq
      %v1475 = vshrl.u32 %v1474, 7
      %v1476 = vsub.s32 3, %v1475
      %v1477 = vrot.slane %v606, %v1476
      %v1478 = vmul.f32 %v1412, %v1477
      %v1479 = vmul.f32 %v1416, %v1477
      %v1480 = vmul.f32 %v1420, %v1477
      %v1481 = vmul.f32 %v1424, %v1477
      %v1482 = vmul.f32 %v1428, %v1477
      %v1483 = vmul.f32 %v1432, %v1477
      %v1484 = vmul.f32 %v1436, %v1477
      %v1485 = vmul.f32 %v1440, %v1477
      %v1486 = vmul.f32 %v1444, %v1477
      %v1487 = vmul.f32 %v1448, %v1477
      %v1488 = vmul.f32 %v1452, %v1477
      %v1489 = vmul.f32 %v1456, %v1477
      %v1490 = vmul.f32 %v1460, %v1477
      %v1491 = vmul.f32 %v1464, %v1477
      %v1492 = vmul.f32 %v1468, %v1477
      %v1493 = vmul.f32 %v1472, %v1477
      %v1494 = vmul.f32 %v1379, %v1270
      %v1495 = vmul.f32 %v1381, %v1271
      %v1496 = vmul.f32 %v1383, %v1272
      %v1497 = vmul.f32 %v1385, %v1273
      %v1498 = vmul.f32 %v1387, %v1274
      %v1499 = vmul.f32 %v1389, %v1275
      %v1500 = vmul.f32 %v1391, %v1276
      %v1501 = vmul.f32 %v1393, %v1277
      %v1502 = vmul.f32 %v1395, %v1278
      %v1503 = vmul.f32 %v1397, %v1279
      %v1504 = vmul.f32 %v1399, %v1280
      %v1505 = vmul.f32 %v1401, %v1281
      %v1506 = vmul.f32 %v1403, %v1282
      %v1507 = vmul.f32 %v1405, %v1283
      %v1508 = vmul.f32 %v1407, %v1284
      %v1509 = vmul.f32 %v1409, %v1285
      %v1510 = vadd.f32 %v1494, %v1478
      %v1511 = vadd.f32 %v1495, %v1479
      %v1512 = vadd.f32 %v1496, %v1480
      %v1513 = vadd.f32 %v1497, %v1481
      %v1514 = vadd.f32 %v1498, %v1482
      %v1515 = vadd.f32 %v1499, %v1483
      %v1516 = vadd.f32 %v1500, %v1484
      %v1517 = vadd.f32 %v1501, %v1485
      %v1518 = vadd.f32 %v1502, %v1486
      %v1519 = vadd.f32 %v1503, %v1487
      %v1520 = vadd.f32 %v1504, %v1488
      %v1521 = vadd.f32 %v1505, %v1489
      %v1522 = vadd.f32 %v1506, %v1490
      %v1523 = vadd.f32 %v1507, %v1491
      %v1524 = vadd.f32 %v1508, %v1492
      %v1525 = vadd.f32 %v1509, %v1493
      %v1526 = vrot.slane %v573, 3
      %1528 = vmatprep.subr.mxu0 0.0
      %1529 = vmatpush1.msra.mxu0 %v1525
      %1530 = vmatprep.subr.mxu0 0.0
      %1531 = vmatpush1.msra.mxu0 %v1524
      %1532 = vmatprep.subr.mxu0 0.0
      %1533 = vmatpush1.msra.mxu0 %v1523
      %1534 = vmatprep.subr.mxu0 0.0
      %1535 = vmatpush1.msra.mxu0 %v1522
      %1536 = vmatprep.subr.mxu0 0.0
      %1537 = vmatpush1.msra.mxu0 %v1521
      %1538 = vmatprep.subr.mxu0 0.0
      %1539 = vmatpush1.msra.mxu0 %v1520
      %1540 = vmatprep.subr.mxu0 0.0
      %1541 = vmatpush1.msra.mxu0 %v1519
      %1542 = vmatprep.subr.mxu0 0.0
      %1543 = vmatpush1.msra.mxu0 %v1518
      %1544 = vmatprep.subr.mxu0 0.0
      %1545 = vmatpush1.msra.mxu0 %v1517
      %1546 = vmatprep.subr.mxu0 0.0
      %1547 = vmatpush1.msra.mxu0 %v1516
      %1548 = vmatprep.subr.mxu0 0.0
      %1549 = vmatpush1.msra.mxu0 %v1515
      %1550 = vmatprep.subr.mxu0 0.0
      %1551 = vmatpush1.msra.mxu0 %v1514
      %1552 = vmatprep.subr.mxu0 0.0
      %1553 = vmatpush1.msra.mxu0 %v1513
      %1554 = vmatprep.subr.mxu0 0.0
      %1555 = vmatpush1.msra.mxu0 %v1512
      %1556 = vmatprep.subr.mxu0 0.0
      %1557 = vmatpush1.msra.mxu0 %v1511
      %1558 = vmatprep.subr.mxu0 0.0
      %1559 = vmatpush1.msra.mxu0 %v1510
      %1560 = vmatprep.subr.mxu0 0.0
      %1561 = vmatpush2.msra.mxu0 0.0
      %1562 = vmatprep.subr.mxu0 0.0
      %1563 = vmatpush2.msra.mxu0 0.0
      %1564 = vmatprep.subr.mxu0 0.0
      %1565 = vmatpush2.msra.mxu0 0.0
      %1566 = vmatprep.subr.mxu0 0.0
      %1567 = vmatpush2.msra.mxu0 0.0
      %1568 = vmatprep.subr.mxu0 0.0
      %1569 = vmatpush2.msra.mxu0 0.0
      %1570 = vmatprep.subr.mxu0 0.0
      %1571 = vmatpush2.msra.mxu0 0.0
      %1572 = vmatprep.subr.mxu0 0.0
      %1573 = vmatpush2.msra.mxu0 0.0
      %1574 = vmatprep.subr.mxu0 0.0
      %1575 = vmatpush2.msra.mxu0 0.0
      %1576 = vmatprep.subr.mxu0 0.0
      %1577 = vmatpush2.msra.mxu0 0.0
      %1578 = vmatprep.subr.mxu0 0.0
      %1579 = vmatpush2.msra.mxu0 0.0
      %1580 = vmatprep.subr.mxu0 0.0
      %1581 = vmatpush2.msra.mxu0 0.0
      %1582 = vmatprep.subr.mxu0 0.0
      %1583 = vmatpush2.msra.mxu0 0.0
      %1584 = vmatprep.subr.mxu0 0.0
      %1585 = vmatpush2.msra.mxu0 0.0
      %1586 = vmatprep.subr.mxu0 0.0
      %1587 = vmatpush2.msra.mxu0 0.0
      %1588 = vmatprep.subr.mxu0 0.0
      %1589 = vmatpush2.msra.mxu0 0.0
      %1590 = vmatprep.subr.mxu0 0.0
      %1591 = vmatpush2.msra.mxu0 0.0
      %1592 = vmatprep.mubr.f32.mxu0 0.0
      %1593 = vmatmul.mubr.f32.gmra.mxu0 %v1526
      %v1594 = vpop.f32.mrf.mxu0
      %v1595 = vadd.f32 0.0, %v1594
      %v1596 = vpop.f32.mrf.mxu0
      %1597 = vdwg.mxu0
      %v1598 = vlaneseq
      %v1599 = vshrl.u32 %v1598, 7
      %v1600 = vsub.s32 4, %v1599
      %v1601 = vrot.slane %v571, %v1600
      %v1602 = vmul.f32 %v1601, %v544
      %v1603 = vmul.f32 %v1601, %v545
      %v1604 = vmul.f32 %v1601, %v546
      %v1605 = vmul.f32 %v1601, %v547
      %v1606 = vmul.f32 %v1601, %v548
      %v1607 = vmul.f32 %v1601, %v549
      %v1608 = vmul.f32 %v1601, %v550
      %v1609 = vmul.f32 %v1601, %v551
      %v1610 = vmul.f32 %v1601, %v552
      %v1611 = vmul.f32 %v1601, %v553
      %v1612 = vmul.f32 %v1601, %v554
      %v1613 = vmul.f32 %v1601, %v555
      %v1614 = vmul.f32 %v1601, %v556
      %v1615 = vmul.f32 %v1601, %v557
      %v1616 = vmul.f32 %v1601, %v558
      %v1617 = vmul.f32 %v1601, %v559
      %v1618 = vmul.f32 %v1602, 1.442695
      %v1619 = vpow.pop %v1618
      %v1620 = vmul.f32 %v1603, 1.442695
      %v1621 = vpow.pop %v1620
      %v1622 = vmul.f32 %v1604, 1.442695
      %v1623 = vpow.pop %v1622
      %v1624 = vmul.f32 %v1605, 1.442695
      %v1625 = vpow.pop %v1624
      %v1626 = vmul.f32 %v1606, 1.442695
      %v1627 = vpow.pop %v1626
      %v1628 = vmul.f32 %v1607, 1.442695
      %v1629 = vpow.pop %v1628
      %v1630 = vmul.f32 %v1608, 1.442695
      %v1631 = vpow.pop %v1630
      %v1632 = vmul.f32 %v1609, 1.442695
      %v1633 = vpow.pop %v1632
      %v1634 = vmul.f32 %v1610, 1.442695
      %v1635 = vpow.pop %v1634
      %v1636 = vmul.f32 %v1611, 1.442695
      %v1637 = vpow.pop %v1636
      %v1638 = vmul.f32 %v1612, 1.442695
      %v1639 = vpow.pop %v1638
      %v1640 = vmul.f32 %v1613, 1.442695
      %v1641 = vpow.pop %v1640
      %v1642 = vmul.f32 %v1614, 1.442695
      %v1643 = vpow.pop %v1642
      %v1644 = vmul.f32 %v1615, 1.442695
      %v1645 = vpow.pop %v1644
      %v1646 = vmul.f32 %v1616, 1.442695
      %v1647 = vpow.pop %v1646
      %v1648 = vmul.f32 %v1617, 1.442695
      %v1649 = vpow.pop %v1648
      %1650 = vset.pattern.permute.xlu0 4
      %1651 = vperm.xlu0 %1650, %v590
      %v1652 = vpop.permute.xlu0 %1651
      %1654 = vset.pattern.permute.xlu0 4
      %1655 = vperm.xlu0 %1654, %v591
      %v1656 = vpop.permute.xlu0 %1655
      %1658 = vset.pattern.permute.xlu0 4
      %1659 = vperm.xlu0 %1658, %v592
      %v1660 = vpop.permute.xlu0 %1659
      %1662 = vset.pattern.permute.xlu0 4
      %1663 = vperm.xlu0 %1662, %v593
      %v1664 = vpop.permute.xlu0 %1663
      %1666 = vset.pattern.permute.xlu0 4
      %1667 = vperm.xlu0 %1666, %v594
      %v1668 = vpop.permute.xlu0 %1667
      %1670 = vset.pattern.permute.xlu0 4
      %1671 = vperm.xlu0 %1670, %v595
      %v1672 = vpop.permute.xlu0 %1671
      %1674 = vset.pattern.permute.xlu0 4
      %1675 = vperm.xlu0 %1674, %v596
      %v1676 = vpop.permute.xlu0 %1675
      %1678 = vset.pattern.permute.xlu0 4
      %1679 = vperm.xlu0 %1678, %v597
      %v1680 = vpop.permute.xlu0 %1679
      %1682 = vset.pattern.permute.xlu0 4
      %1683 = vperm.xlu0 %1682, %v598
      %v1684 = vpop.permute.xlu0 %1683
      %1686 = vset.pattern.permute.xlu0 4
      %1687 = vperm.xlu0 %1686, %v599
      %v1688 = vpop.permute.xlu0 %1687
      %1690 = vset.pattern.permute.xlu0 4
      %1691 = vperm.xlu0 %1690, %v600
      %v1692 = vpop.permute.xlu0 %1691
      %1694 = vset.pattern.permute.xlu0 4
      %1695 = vperm.xlu0 %1694, %v601
      %v1696 = vpop.permute.xlu0 %1695
      %1698 = vset.pattern.permute.xlu0 4
      %1699 = vperm.xlu0 %1698, %v602
      %v1700 = vpop.permute.xlu0 %1699
      %1702 = vset.pattern.permute.xlu0 4
      %1703 = vperm.xlu0 %1702, %v603
      %v1704 = vpop.permute.xlu0 %1703
      %1706 = vset.pattern.permute.xlu0 4
      %1707 = vperm.xlu0 %1706, %v604
      %v1708 = vpop.permute.xlu0 %1707
      %1710 = vset.pattern.permute.xlu0 4
      %1711 = vperm.xlu0 %1710, %v605
      %v1712 = vpop.permute.xlu0 %1711
      %v1714 = vlaneseq
      %v1715 = vshrl.u32 %v1714, 7
      %v1716 = vsub.s32 4, %v1715
      %v1717 = vrot.slane %v606, %v1716
      %v1718 = vmul.f32 %v1652, %v1717
      %v1719 = vmul.f32 %v1656, %v1717
      %v1720 = vmul.f32 %v1660, %v1717
      %v1721 = vmul.f32 %v1664, %v1717
      %v1722 = vmul.f32 %v1668, %v1717
      %v1723 = vmul.f32 %v1672, %v1717
      %v1724 = vmul.f32 %v1676, %v1717
      %v1725 = vmul.f32 %v1680, %v1717
      %v1726 = vmul.f32 %v1684, %v1717
      %v1727 = vmul.f32 %v1688, %v1717
      %v1728 = vmul.f32 %v1692, %v1717
      %v1729 = vmul.f32 %v1696, %v1717
      %v1730 = vmul.f32 %v1700, %v1717
      %v1731 = vmul.f32 %v1704, %v1717
      %v1732 = vmul.f32 %v1708, %v1717
      %v1733 = vmul.f32 %v1712, %v1717
      %v1734 = vmul.f32 %v1619, %v1510
      %v1735 = vmul.f32 %v1621, %v1511
      %v1736 = vmul.f32 %v1623, %v1512
      %v1737 = vmul.f32 %v1625, %v1513
      %v1738 = vmul.f32 %v1627, %v1514
      %v1739 = vmul.f32 %v1629, %v1515
      %v1740 = vmul.f32 %v1631, %v1516
      %v1741 = vmul.f32 %v1633, %v1517
      %v1742 = vmul.f32 %v1635, %v1518
      %v1743 = vmul.f32 %v1637, %v1519
      %v1744 = vmul.f32 %v1639, %v1520
      %v1745 = vmul.f32 %v1641, %v1521
      %v1746 = vmul.f32 %v1643, %v1522
      %v1747 = vmul.f32 %v1645, %v1523
      %v1748 = vmul.f32 %v1647, %v1524
      %v1749 = vmul.f32 %v1649, %v1525
      %v1750 = vadd.f32 %v1734, %v1718
      %v1751 = vadd.f32 %v1735, %v1719
      %v1752 = vadd.f32 %v1736, %v1720
      %v1753 = vadd.f32 %v1737, %v1721
      %v1754 = vadd.f32 %v1738, %v1722
      %v1755 = vadd.f32 %v1739, %v1723
      %v1756 = vadd.f32 %v1740, %v1724
      %v1757 = vadd.f32 %v1741, %v1725
      %v1758 = vadd.f32 %v1742, %v1726
      %v1759 = vadd.f32 %v1743, %v1727
      %v1760 = vadd.f32 %v1744, %v1728
      %v1761 = vadd.f32 %v1745, %v1729
      %v1762 = vadd.f32 %v1746, %v1730
      %v1763 = vadd.f32 %v1747, %v1731
      %v1764 = vadd.f32 %v1748, %v1732
      %v1765 = vadd.f32 %v1749, %v1733
      %v1766 = vrot.slane %v573, 4
      %1768 = vmatprep.subr.mxu0 0.0
      %1769 = vmatpush1.msra.mxu0 %v1765
      %1770 = vmatprep.subr.mxu0 0.0
      %1771 = vmatpush1.msra.mxu0 %v1764
      %1772 = vmatprep.subr.mxu0 0.0
      %1773 = vmatpush1.msra.mxu0 %v1763
      %1774 = vmatprep.subr.mxu0 0.0
      %1775 = vmatpush1.msra.mxu0 %v1762
      %1776 = vmatprep.subr.mxu0 0.0
      %1777 = vmatpush1.msra.mxu0 %v1761
      %1778 = vmatprep.subr.mxu0 0.0
      %1779 = vmatpush1.msra.mxu0 %v1760
      %1780 = vmatprep.subr.mxu0 0.0
      %1781 = vmatpush1.msra.mxu0 %v1759
      %1782 = vmatprep.subr.mxu0 0.0
      %1783 = vmatpush1.msra.mxu0 %v1758
      %1784 = vmatprep.subr.mxu0 0.0
      %1785 = vmatpush1.msra.mxu0 %v1757
      %1786 = vmatprep.subr.mxu0 0.0
      %1787 = vmatpush1.msra.mxu0 %v1756
      %1788 = vmatprep.subr.mxu0 0.0
      %1789 = vmatpush1.msra.mxu0 %v1755
      %1790 = vmatprep.subr.mxu0 0.0
      %1791 = vmatpush1.msra.mxu0 %v1754
      %1792 = vmatprep.subr.mxu0 0.0
      %1793 = vmatpush1.msra.mxu0 %v1753
      %1794 = vmatprep.subr.mxu0 0.0
      %1795 = vmatpush1.msra.mxu0 %v1752
      %1796 = vmatprep.subr.mxu0 0.0
      %1797 = vmatpush1.msra.mxu0 %v1751
      %1798 = vmatprep.subr.mxu0 0.0
      %1799 = vmatpush1.msra.mxu0 %v1750
      %1800 = vmatprep.subr.mxu0 0.0
      %1801 = vmatpush2.msra.mxu0 0.0
      %1802 = vmatprep.subr.mxu0 0.0
      %1803 = vmatpush2.msra.mxu0 0.0
      %1804 = vmatprep.subr.mxu0 0.0
      %1805 = vmatpush2.msra.mxu0 0.0
      %1806 = vmatprep.subr.mxu0 0.0
      %1807 = vmatpush2.msra.mxu0 0.0
      %1808 = vmatprep.subr.mxu0 0.0
      %1809 = vmatpush2.msra.mxu0 0.0
      %1810 = vmatprep.subr.mxu0 0.0
      %1811 = vmatpush2.msra.mxu0 0.0
      %1812 = vmatprep.subr.mxu0 0.0
      %1813 = vmatpush2.msra.mxu0 0.0
      %1814 = vmatprep.subr.mxu0 0.0
      %1815 = vmatpush2.msra.mxu0 0.0
      %1816 = vmatprep.subr.mxu0 0.0
      %1817 = vmatpush2.msra.mxu0 0.0
      %1818 = vmatprep.subr.mxu0 0.0
      %1819 = vmatpush2.msra.mxu0 0.0
      %1820 = vmatprep.subr.mxu0 0.0
      %1821 = vmatpush2.msra.mxu0 0.0
      %1822 = vmatprep.subr.mxu0 0.0
      %1823 = vmatpush2.msra.mxu0 0.0
      %1824 = vmatprep.subr.mxu0 0.0
      %1825 = vmatpush2.msra.mxu0 0.0
      %1826 = vmatprep.subr.mxu0 0.0
      %1827 = vmatpush2.msra.mxu0 0.0
      %1828 = vmatprep.subr.mxu0 0.0
      %1829 = vmatpush2.msra.mxu0 0.0
      %1830 = vmatprep.subr.mxu0 0.0
      %1831 = vmatpush2.msra.mxu0 0.0
      %1832 = vmatprep.mubr.f32.mxu0 0.0
      %1833 = vmatmul.mubr.f32.gmra.mxu0 %v1766
      %v1834 = vpop.f32.mrf.mxu0
      %v1835 = vadd.f32 0.0, %v1834
      %v1836 = vpop.f32.mrf.mxu0
      %1837 = vdwg.mxu0
      %v1838 = vlaneseq
      %v1839 = vshrl.u32 %v1838, 7
      %v1840 = vsub.s32 5, %v1839
      %v1841 = vrot.slane %v571, %v1840
      %v1842 = vmul.f32 %v1841, %v544
      %v1843 = vmul.f32 %v1841, %v545
      %v1844 = vmul.f32 %v1841, %v546
      %v1845 = vmul.f32 %v1841, %v547
      %v1846 = vmul.f32 %v1841, %v548
      %v1847 = vmul.f32 %v1841, %v549
      %v1848 = vmul.f32 %v1841, %v550
      %v1849 = vmul.f32 %v1841, %v551
      %v1850 = vmul.f32 %v1841, %v552
      %v1851 = vmul.f32 %v1841, %v553
      %v1852 = vmul.f32 %v1841, %v554
      %v1853 = vmul.f32 %v1841, %v555
      %v1854 = vmul.f32 %v1841, %v556
      %v1855 = vmul.f32 %v1841, %v557
      %v1856 = vmul.f32 %v1841, %v558
      %v1857 = vmul.f32 %v1841, %v559
      %v1858 = vmul.f32 %v1842, 1.442695
      %v1859 = vpow.pop %v1858
      %v1860 = vmul.f32 %v1843, 1.442695
      %v1861 = vpow.pop %v1860
      %v1862 = vmul.f32 %v1844, 1.442695
      %v1863 = vpow.pop %v1862
      %v1864 = vmul.f32 %v1845, 1.442695
      %v1865 = vpow.pop %v1864
      %v1866 = vmul.f32 %v1846, 1.442695
      %v1867 = vpow.pop %v1866
      %v1868 = vmul.f32 %v1847, 1.442695
      %v1869 = vpow.pop %v1868
      %v1870 = vmul.f32 %v1848, 1.442695
      %v1871 = vpow.pop %v1870
      %v1872 = vmul.f32 %v1849, 1.442695
      %v1873 = vpow.pop %v1872
      %v1874 = vmul.f32 %v1850, 1.442695
      %v1875 = vpow.pop %v1874
      %v1876 = vmul.f32 %v1851, 1.442695
      %v1877 = vpow.pop %v1876
      %v1878 = vmul.f32 %v1852, 1.442695
      %v1879 = vpow.pop %v1878
      %v1880 = vmul.f32 %v1853, 1.442695
      %v1881 = vpow.pop %v1880
      %v1882 = vmul.f32 %v1854, 1.442695
      %v1883 = vpow.pop %v1882
      %v1884 = vmul.f32 %v1855, 1.442695
      %v1885 = vpow.pop %v1884
      %v1886 = vmul.f32 %v1856, 1.442695
      %v1887 = vpow.pop %v1886
      %v1888 = vmul.f32 %v1857, 1.442695
      %v1889 = vpow.pop %v1888
      %1890 = vset.pattern.permute.xlu0 5
      %1891 = vperm.xlu0 %1890, %v590
      %v1892 = vpop.permute.xlu0 %1891
      %1894 = vset.pattern.permute.xlu0 5
      %1895 = vperm.xlu0 %1894, %v591
      %v1896 = vpop.permute.xlu0 %1895
      %1898 = vset.pattern.permute.xlu0 5
      %1899 = vperm.xlu0 %1898, %v592
      %v1900 = vpop.permute.xlu0 %1899
      %1902 = vset.pattern.permute.xlu0 5
      %1903 = vperm.xlu0 %1902, %v593
      %v1904 = vpop.permute.xlu0 %1903
      %1906 = vset.pattern.permute.xlu0 5
      %1907 = vperm.xlu0 %1906, %v594
      %v1908 = vpop.permute.xlu0 %1907
      %1910 = vset.pattern.permute.xlu0 5
      %1911 = vperm.xlu0 %1910, %v595
      %v1912 = vpop.permute.xlu0 %1911
      %1914 = vset.pattern.permute.xlu0 5
      %1915 = vperm.xlu0 %1914, %v596
      %v1916 = vpop.permute.xlu0 %1915
      %1918 = vset.pattern.permute.xlu0 5
      %1919 = vperm.xlu0 %1918, %v597
      %v1920 = vpop.permute.xlu0 %1919
      %1922 = vset.pattern.permute.xlu0 5
      %1923 = vperm.xlu0 %1922, %v598
      %v1924 = vpop.permute.xlu0 %1923
      %1926 = vset.pattern.permute.xlu0 5
      %1927 = vperm.xlu0 %1926, %v599
      %v1928 = vpop.permute.xlu0 %1927
      %1930 = vset.pattern.permute.xlu0 5
      %1931 = vperm.xlu0 %1930, %v600
      %v1932 = vpop.permute.xlu0 %1931
      %1934 = vset.pattern.permute.xlu0 5
      %1935 = vperm.xlu0 %1934, %v601
      %v1936 = vpop.permute.xlu0 %1935
      %1938 = vset.pattern.permute.xlu0 5
      %1939 = vperm.xlu0 %1938, %v602
      %v1940 = vpop.permute.xlu0 %1939
      %1942 = vset.pattern.permute.xlu0 5
      %1943 = vperm.xlu0 %1942, %v603
      %v1944 = vpop.permute.xlu0 %1943
      %1946 = vset.pattern.permute.xlu0 5
      %1947 = vperm.xlu0 %1946, %v604
      %v1948 = vpop.permute.xlu0 %1947
      %1950 = vset.pattern.permute.xlu0 5
      %1951 = vperm.xlu0 %1950, %v605
      %v1952 = vpop.permute.xlu0 %1951
      %v1954 = vlaneseq
      %v1955 = vshrl.u32 %v1954, 7
      %v1956 = vsub.s32 5, %v1955
      %v1957 = vrot.slane %v606, %v1956
      %v1958 = vmul.f32 %v1892, %v1957
      %v1959 = vmul.f32 %v1896, %v1957
      %v1960 = vmul.f32 %v1900, %v1957
      %v1961 = vmul.f32 %v1904, %v1957
      %v1962 = vmul.f32 %v1908, %v1957
      %v1963 = vmul.f32 %v1912, %v1957
      %v1964 = vmul.f32 %v1916, %v1957
      %v1965 = vmul.f32 %v1920, %v1957
      %v1966 = vmul.f32 %v1924, %v1957
      %v1967 = vmul.f32 %v1928, %v1957
      %v1968 = vmul.f32 %v1932, %v1957
      %v1969 = vmul.f32 %v1936, %v1957
      %v1970 = vmul.f32 %v1940, %v1957
      %v1971 = vmul.f32 %v1944, %v1957
      %v1972 = vmul.f32 %v1948, %v1957
      %v1973 = vmul.f32 %v1952, %v1957
      %v1974 = vmul.f32 %v1859, %v1750
      %v1975 = vmul.f32 %v1861, %v1751
      %v1976 = vmul.f32 %v1863, %v1752
      %v1977 = vmul.f32 %v1865, %v1753
      %v1978 = vmul.f32 %v1867, %v1754
      %v1979 = vmul.f32 %v1869, %v1755
      %v1980 = vmul.f32 %v1871, %v1756
      %v1981 = vmul.f32 %v1873, %v1757
      %v1982 = vmul.f32 %v1875, %v1758
      %v1983 = vmul.f32 %v1877, %v1759
      %v1984 = vmul.f32 %v1879, %v1760
      %v1985 = vmul.f32 %v1881, %v1761
      %v1986 = vmul.f32 %v1883, %v1762
      %v1987 = vmul.f32 %v1885, %v1763
      %v1988 = vmul.f32 %v1887, %v1764
      %v1989 = vmul.f32 %v1889, %v1765
      %v1990 = vadd.f32 %v1974, %v1958
      %v1991 = vadd.f32 %v1975, %v1959
      %v1992 = vadd.f32 %v1976, %v1960
      %v1993 = vadd.f32 %v1977, %v1961
      %v1994 = vadd.f32 %v1978, %v1962
      %v1995 = vadd.f32 %v1979, %v1963
      %v1996 = vadd.f32 %v1980, %v1964
      %v1997 = vadd.f32 %v1981, %v1965
      %v1998 = vadd.f32 %v1982, %v1966
      %v1999 = vadd.f32 %v1983, %v1967
      %v2000 = vadd.f32 %v1984, %v1968
      %v2001 = vadd.f32 %v1985, %v1969
      %v2002 = vadd.f32 %v1986, %v1970
      %v2003 = vadd.f32 %v1987, %v1971
      %v2004 = vadd.f32 %v1988, %v1972
      %v2005 = vadd.f32 %v1989, %v1973
      %v2006 = vrot.slane %v573, 5
      %2008 = vmatprep.subr.mxu0 0.0
      %2009 = vmatpush1.msra.mxu0 %v2005
      %2010 = vmatprep.subr.mxu0 0.0
      %2011 = vmatpush1.msra.mxu0 %v2004
      %2012 = vmatprep.subr.mxu0 0.0
      %2013 = vmatpush1.msra.mxu0 %v2003
      %2014 = vmatprep.subr.mxu0 0.0
      %2015 = vmatpush1.msra.mxu0 %v2002
      %2016 = vmatprep.subr.mxu0 0.0
      %2017 = vmatpush1.msra.mxu0 %v2001
      %2018 = vmatprep.subr.mxu0 0.0
      %2019 = vmatpush1.msra.mxu0 %v2000
      %2020 = vmatprep.subr.mxu0 0.0
      %2021 = vmatpush1.msra.mxu0 %v1999
      %2022 = vmatprep.subr.mxu0 0.0
      %2023 = vmatpush1.msra.mxu0 %v1998
      %2024 = vmatprep.subr.mxu0 0.0
      %2025 = vmatpush1.msra.mxu0 %v1997
      %2026 = vmatprep.subr.mxu0 0.0
      %2027 = vmatpush1.msra.mxu0 %v1996
      %2028 = vmatprep.subr.mxu0 0.0
      %2029 = vmatpush1.msra.mxu0 %v1995
      %2030 = vmatprep.subr.mxu0 0.0
      %2031 = vmatpush1.msra.mxu0 %v1994
      %2032 = vmatprep.subr.mxu0 0.0
      %2033 = vmatpush1.msra.mxu0 %v1993
      %2034 = vmatprep.subr.mxu0 0.0
      %2035 = vmatpush1.msra.mxu0 %v1992
      %2036 = vmatprep.subr.mxu0 0.0
      %2037 = vmatpush1.msra.mxu0 %v1991
      %2038 = vmatprep.subr.mxu0 0.0
      %2039 = vmatpush1.msra.mxu0 %v1990
      %2040 = vmatprep.subr.mxu0 0.0
      %2041 = vmatpush2.msra.mxu0 0.0
      %2042 = vmatprep.subr.mxu0 0.0
      %2043 = vmatpush2.msra.mxu0 0.0
      %2044 = vmatprep.subr.mxu0 0.0
      %2045 = vmatpush2.msra.mxu0 0.0
      %2046 = vmatprep.subr.mxu0 0.0
      %2047 = vmatpush2.msra.mxu0 0.0
      %2048 = vmatprep.subr.mxu0 0.0
      %2049 = vmatpush2.msra.mxu0 0.0
      %2050 = vmatprep.subr.mxu0 0.0
      %2051 = vmatpush2.msra.mxu0 0.0
      %2052 = vmatprep.subr.mxu0 0.0
      %2053 = vmatpush2.msra.mxu0 0.0
      %2054 = vmatprep.subr.mxu0 0.0
      %2055 = vmatpush2.msra.mxu0 0.0
      %2056 = vmatprep.subr.mxu0 0.0
      %2057 = vmatpush2.msra.mxu0 0.0
      %2058 = vmatprep.subr.mxu0 0.0
      %2059 = vmatpush2.msra.mxu0 0.0
      %2060 = vmatprep.subr.mxu0 0.0
      %2061 = vmatpush2.msra.mxu0 0.0
      %2062 = vmatprep.subr.mxu0 0.0
      %2063 = vmatpush2.msra.mxu0 0.0
      %2064 = vmatprep.subr.mxu0 0.0
      %2065 = vmatpush2.msra.mxu0 0.0
      %2066 = vmatprep.subr.mxu0 0.0
      %2067 = vmatpush2.msra.mxu0 0.0
      %2068 = vmatprep.subr.mxu0 0.0
      %2069 = vmatpush2.msra.mxu0 0.0
      %2070 = vmatprep.subr.mxu0 0.0
      %2071 = vmatpush2.msra.mxu0 0.0
      %2072 = vmatprep.mubr.f32.mxu0 0.0
      %2073 = vmatmul.mubr.f32.gmra.mxu0 %v2006
      %v2074 = vpop.f32.mrf.mxu0
      %v2075 = vadd.f32 0.0, %v2074
      %v2076 = vpop.f32.mrf.mxu0
      %2077 = vdwg.mxu0
      %v2078 = vlaneseq
      %v2079 = vshrl.u32 %v2078, 7
      %v2080 = vsub.s32 6, %v2079
      %v2081 = vrot.slane %v571, %v2080
      %v2082 = vmul.f32 %v2081, %v544
      %v2083 = vmul.f32 %v2081, %v545
      %v2084 = vmul.f32 %v2081, %v546
      %v2085 = vmul.f32 %v2081, %v547
      %v2086 = vmul.f32 %v2081, %v548
      %v2087 = vmul.f32 %v2081, %v549
      %v2088 = vmul.f32 %v2081, %v550
      %v2089 = vmul.f32 %v2081, %v551
      %v2090 = vmul.f32 %v2081, %v552
      %v2091 = vmul.f32 %v2081, %v553
      %v2092 = vmul.f32 %v2081, %v554
      %v2093 = vmul.f32 %v2081, %v555
      %v2094 = vmul.f32 %v2081, %v556
      %v2095 = vmul.f32 %v2081, %v557
      %v2096 = vmul.f32 %v2081, %v558
      %v2097 = vmul.f32 %v2081, %v559
      %v2098 = vmul.f32 %v2082, 1.442695
      %v2099 = vpow.pop %v2098
      %v2100 = vmul.f32 %v2083, 1.442695
      %v2101 = vpow.pop %v2100
      %v2102 = vmul.f32 %v2084, 1.442695
      %v2103 = vpow.pop %v2102
      %v2104 = vmul.f32 %v2085, 1.442695
      %v2105 = vpow.pop %v2104
      %v2106 = vmul.f32 %v2086, 1.442695
      %v2107 = vpow.pop %v2106
      %v2108 = vmul.f32 %v2087, 1.442695
      %v2109 = vpow.pop %v2108
      %v2110 = vmul.f32 %v2088, 1.442695
      %v2111 = vpow.pop %v2110
      %v2112 = vmul.f32 %v2089, 1.442695
      %v2113 = vpow.pop %v2112
      %v2114 = vmul.f32 %v2090, 1.442695
      %v2115 = vpow.pop %v2114
      %v2116 = vmul.f32 %v2091, 1.442695
      %v2117 = vpow.pop %v2116
      %v2118 = vmul.f32 %v2092, 1.442695
      %v2119 = vpow.pop %v2118
      %v2120 = vmul.f32 %v2093, 1.442695
      %v2121 = vpow.pop %v2120
      %v2122 = vmul.f32 %v2094, 1.442695
      %v2123 = vpow.pop %v2122
      %v2124 = vmul.f32 %v2095, 1.442695
      %v2125 = vpow.pop %v2124
      %v2126 = vmul.f32 %v2096, 1.442695
      %v2127 = vpow.pop %v2126
      %v2128 = vmul.f32 %v2097, 1.442695
      %v2129 = vpow.pop %v2128
      %2130 = vset.pattern.permute.xlu0 6
      %2131 = vperm.xlu0 %2130, %v590
      %v2132 = vpop.permute.xlu0 %2131
      %2134 = vset.pattern.permute.xlu0 6
      %2135 = vperm.xlu0 %2134, %v591
      %v2136 = vpop.permute.xlu0 %2135
      %2138 = vset.pattern.permute.xlu0 6
      %2139 = vperm.xlu0 %2138, %v592
      %v2140 = vpop.permute.xlu0 %2139
      %2142 = vset.pattern.permute.xlu0 6
      %2143 = vperm.xlu0 %2142, %v593
      %v2144 = vpop.permute.xlu0 %2143
      %2146 = vset.pattern.permute.xlu0 6
      %2147 = vperm.xlu0 %2146, %v594
      %v2148 = vpop.permute.xlu0 %2147
      %2150 = vset.pattern.permute.xlu0 6
      %2151 = vperm.xlu0 %2150, %v595
      %v2152 = vpop.permute.xlu0 %2151
      %2154 = vset.pattern.permute.xlu0 6
      %2155 = vperm.xlu0 %2154, %v596
      %v2156 = vpop.permute.xlu0 %2155
      %2158 = vset.pattern.permute.xlu0 6
      %2159 = vperm.xlu0 %2158, %v597
      %v2160 = vpop.permute.xlu0 %2159
      %2162 = vset.pattern.permute.xlu0 6
      %2163 = vperm.xlu0 %2162, %v598
      %v2164 = vpop.permute.xlu0 %2163
      %2166 = vset.pattern.permute.xlu0 6
      %2167 = vperm.xlu0 %2166, %v599
      %v2168 = vpop.permute.xlu0 %2167
      %2170 = vset.pattern.permute.xlu0 6
      %2171 = vperm.xlu0 %2170, %v600
      %v2172 = vpop.permute.xlu0 %2171
      %2174 = vset.pattern.permute.xlu0 6
      %2175 = vperm.xlu0 %2174, %v601
      %v2176 = vpop.permute.xlu0 %2175
      %2178 = vset.pattern.permute.xlu0 6
      %2179 = vperm.xlu0 %2178, %v602
      %v2180 = vpop.permute.xlu0 %2179
      %2182 = vset.pattern.permute.xlu0 6
      %2183 = vperm.xlu0 %2182, %v603
      %v2184 = vpop.permute.xlu0 %2183
      %2186 = vset.pattern.permute.xlu0 6
      %2187 = vperm.xlu0 %2186, %v604
      %v2188 = vpop.permute.xlu0 %2187
      %2190 = vset.pattern.permute.xlu0 6
      %2191 = vperm.xlu0 %2190, %v605
      %v2192 = vpop.permute.xlu0 %2191
      %v2194 = vlaneseq
      %v2195 = vshrl.u32 %v2194, 7
      %v2196 = vsub.s32 6, %v2195
      %v2197 = vrot.slane %v606, %v2196
      %v2198 = vmul.f32 %v2132, %v2197
      %v2199 = vmul.f32 %v2136, %v2197
      %v2200 = vmul.f32 %v2140, %v2197
      %v2201 = vmul.f32 %v2144, %v2197
      %v2202 = vmul.f32 %v2148, %v2197
      %v2203 = vmul.f32 %v2152, %v2197
      %v2204 = vmul.f32 %v2156, %v2197
      %v2205 = vmul.f32 %v2160, %v2197
      %v2206 = vmul.f32 %v2164, %v2197
      %v2207 = vmul.f32 %v2168, %v2197
      %v2208 = vmul.f32 %v2172, %v2197
      %v2209 = vmul.f32 %v2176, %v2197
      %v2210 = vmul.f32 %v2180, %v2197
      %v2211 = vmul.f32 %v2184, %v2197
      %v2212 = vmul.f32 %v2188, %v2197
      %v2213 = vmul.f32 %v2192, %v2197
      %v2214 = vmul.f32 %v2099, %v1990
      %v2215 = vmul.f32 %v2101, %v1991
      %v2216 = vmul.f32 %v2103, %v1992
      %v2217 = vmul.f32 %v2105, %v1993
      %v2218 = vmul.f32 %v2107, %v1994
      %v2219 = vmul.f32 %v2109, %v1995
      %v2220 = vmul.f32 %v2111, %v1996
      %v2221 = vmul.f32 %v2113, %v1997
      %v2222 = vmul.f32 %v2115, %v1998
      %v2223 = vmul.f32 %v2117, %v1999
      %v2224 = vmul.f32 %v2119, %v2000
      %v2225 = vmul.f32 %v2121, %v2001
      %v2226 = vmul.f32 %v2123, %v2002
      %v2227 = vmul.f32 %v2125, %v2003
      %v2228 = vmul.f32 %v2127, %v2004
      %v2229 = vmul.f32 %v2129, %v2005
      %v2230 = vadd.f32 %v2214, %v2198
      %v2231 = vadd.f32 %v2215, %v2199
      %v2232 = vadd.f32 %v2216, %v2200
      %v2233 = vadd.f32 %v2217, %v2201
      %v2234 = vadd.f32 %v2218, %v2202
      %v2235 = vadd.f32 %v2219, %v2203
      %v2236 = vadd.f32 %v2220, %v2204
      %v2237 = vadd.f32 %v2221, %v2205
      %v2238 = vadd.f32 %v2222, %v2206
      %v2239 = vadd.f32 %v2223, %v2207
      %v2240 = vadd.f32 %v2224, %v2208
      %v2241 = vadd.f32 %v2225, %v2209
      %v2242 = vadd.f32 %v2226, %v2210
      %v2243 = vadd.f32 %v2227, %v2211
      %v2244 = vadd.f32 %v2228, %v2212
      %v2245 = vadd.f32 %v2229, %v2213
      %v2246 = vrot.slane %v573, 6
      %2248 = vmatprep.subr.mxu0 0.0
      %2249 = vmatpush1.msra.mxu0 %v2245
      %2250 = vmatprep.subr.mxu0 0.0
      %2251 = vmatpush1.msra.mxu0 %v2244
      %2252 = vmatprep.subr.mxu0 0.0
      %2253 = vmatpush1.msra.mxu0 %v2243
      %2254 = vmatprep.subr.mxu0 0.0
      %2255 = vmatpush1.msra.mxu0 %v2242
      %2256 = vmatprep.subr.mxu0 0.0
      %2257 = vmatpush1.msra.mxu0 %v2241
      %2258 = vmatprep.subr.mxu0 0.0
      %2259 = vmatpush1.msra.mxu0 %v2240
      %2260 = vmatprep.subr.mxu0 0.0
      %2261 = vmatpush1.msra.mxu0 %v2239
      %2262 = vmatprep.subr.mxu0 0.0
      %2263 = vmatpush1.msra.mxu0 %v2238
      %2264 = vmatprep.subr.mxu0 0.0
      %2265 = vmatpush1.msra.mxu0 %v2237
      %2266 = vmatprep.subr.mxu0 0.0
      %2267 = vmatpush1.msra.mxu0 %v2236
      %2268 = vmatprep.subr.mxu0 0.0
      %2269 = vmatpush1.msra.mxu0 %v2235
      %2270 = vmatprep.subr.mxu0 0.0
      %2271 = vmatpush1.msra.mxu0 %v2234
      %2272 = vmatprep.subr.mxu0 0.0
      %2273 = vmatpush1.msra.mxu0 %v2233
      %2274 = vmatprep.subr.mxu0 0.0
      %2275 = vmatpush1.msra.mxu0 %v2232
      %2276 = vmatprep.subr.mxu0 0.0
      %2277 = vmatpush1.msra.mxu0 %v2231
      %2278 = vmatprep.subr.mxu0 0.0
      %2279 = vmatpush1.msra.mxu0 %v2230
      %2280 = vmatprep.subr.mxu0 0.0
      %2281 = vmatpush2.msra.mxu0 0.0
      %2282 = vmatprep.subr.mxu0 0.0
      %2283 = vmatpush2.msra.mxu0 0.0
      %2284 = vmatprep.subr.mxu0 0.0
      %2285 = vmatpush2.msra.mxu0 0.0
      %2286 = vmatprep.subr.mxu0 0.0
      %2287 = vmatpush2.msra.mxu0 0.0
      %2288 = vmatprep.subr.mxu0 0.0
      %2289 = vmatpush2.msra.mxu0 0.0
      %2290 = vmatprep.subr.mxu0 0.0
      %2291 = vmatpush2.msra.mxu0 0.0
      %2292 = vmatprep.subr.mxu0 0.0
      %2293 = vmatpush2.msra.mxu0 0.0
      %2294 = vmatprep.subr.mxu0 0.0
      %2295 = vmatpush2.msra.mxu0 0.0
      %2296 = vmatprep.subr.mxu0 0.0
      %2297 = vmatpush2.msra.mxu0 0.0
      %2298 = vmatprep.subr.mxu0 0.0
      %2299 = vmatpush2.msra.mxu0 0.0
      %2300 = vmatprep.subr.mxu0 0.0
      %2301 = vmatpush2.msra.mxu0 0.0
      %2302 = vmatprep.subr.mxu0 0.0
      %2303 = vmatpush2.msra.mxu0 0.0
      %2304 = vmatprep.subr.mxu0 0.0
      %2305 = vmatpush2.msra.mxu0 0.0
      %2306 = vmatprep.subr.mxu0 0.0
      %2307 = vmatpush2.msra.mxu0 0.0
      %2308 = vmatprep.subr.mxu0 0.0
      %2309 = vmatpush2.msra.mxu0 0.0
      %2310 = vmatprep.subr.mxu0 0.0
      %2311 = vmatpush2.msra.mxu0 0.0
      %2312 = vmatprep.mubr.f32.mxu0 0.0
      %2313 = vmatmul.mubr.f32.gmra.mxu0 %v2246
      %v2314 = vpop.f32.mrf.mxu0
      %v2315 = vadd.f32 0.0, %v2314
      %v2316 = vpop.f32.mrf.mxu0
      %2317 = vdwg.mxu0
      %v2318 = vlaneseq
      %v2319 = vshrl.u32 %v2318, 7
      %v2320 = vsub.s32 7, %v2319
      %v2321 = vrot.slane %v571, %v2320
      %v2322 = vmul.f32 %v2321, %v544
      %v2323 = vmul.f32 %v2321, %v545
      %v2324 = vmul.f32 %v2321, %v546
      %v2325 = vmul.f32 %v2321, %v547
      %v2326 = vmul.f32 %v2321, %v548
      %v2327 = vmul.f32 %v2321, %v549
      %v2328 = vmul.f32 %v2321, %v550
      %v2329 = vmul.f32 %v2321, %v551
      %v2330 = vmul.f32 %v2321, %v552
      %v2331 = vmul.f32 %v2321, %v553
      %v2332 = vmul.f32 %v2321, %v554
      %v2333 = vmul.f32 %v2321, %v555
      %v2334 = vmul.f32 %v2321, %v556
      %v2335 = vmul.f32 %v2321, %v557
      %v2336 = vmul.f32 %v2321, %v558
      %v2337 = vmul.f32 %v2321, %v559
      %v2338 = vmul.f32 %v2322, 1.442695
      %v2339 = vpow.pop %v2338
      %v2340 = vmul.f32 %v2323, 1.442695
      %v2341 = vpow.pop %v2340
      %v2342 = vmul.f32 %v2324, 1.442695
      %v2343 = vpow.pop %v2342
      %v2344 = vmul.f32 %v2325, 1.442695
      %v2345 = vpow.pop %v2344
      %v2346 = vmul.f32 %v2326, 1.442695
      %v2347 = vpow.pop %v2346
      %v2348 = vmul.f32 %v2327, 1.442695
      %v2349 = vpow.pop %v2348
      %v2350 = vmul.f32 %v2328, 1.442695
      %v2351 = vpow.pop %v2350
      %v2352 = vmul.f32 %v2329, 1.442695
      %v2353 = vpow.pop %v2352
      %v2354 = vmul.f32 %v2330, 1.442695
      %v2355 = vpow.pop %v2354
      %v2356 = vmul.f32 %v2331, 1.442695
      %v2357 = vpow.pop %v2356
      %v2358 = vmul.f32 %v2332, 1.442695
      %v2359 = vpow.pop %v2358
      %v2360 = vmul.f32 %v2333, 1.442695
      %v2361 = vpow.pop %v2360
      %v2362 = vmul.f32 %v2334, 1.442695
      %v2363 = vpow.pop %v2362
      %v2364 = vmul.f32 %v2335, 1.442695
      %v2365 = vpow.pop %v2364
      %v2366 = vmul.f32 %v2336, 1.442695
      %v2367 = vpow.pop %v2366
      %v2368 = vmul.f32 %v2337, 1.442695
      %v2369 = vpow.pop %v2368
      %2370 = vset.pattern.permute.xlu0 7
      %2371 = vperm.xlu0 %2370, %v590
      %v2372 = vpop.permute.xlu0 %2371
      %2374 = vset.pattern.permute.xlu0 7
      %2375 = vperm.xlu0 %2374, %v591
      %v2376 = vpop.permute.xlu0 %2375
      %2378 = vset.pattern.permute.xlu0 7
      %2379 = vperm.xlu0 %2378, %v592
      %v2380 = vpop.permute.xlu0 %2379
      %2382 = vset.pattern.permute.xlu0 7
      %2383 = vperm.xlu0 %2382, %v593
      %v2384 = vpop.permute.xlu0 %2383
      %2386 = vset.pattern.permute.xlu0 7
      %2387 = vperm.xlu0 %2386, %v594
      %v2388 = vpop.permute.xlu0 %2387
      %2390 = vset.pattern.permute.xlu0 7
      %2391 = vperm.xlu0 %2390, %v595
      %v2392 = vpop.permute.xlu0 %2391
      %2394 = vset.pattern.permute.xlu0 7
      %2395 = vperm.xlu0 %2394, %v596
      %v2396 = vpop.permute.xlu0 %2395
      %2398 = vset.pattern.permute.xlu0 7
      %2399 = vperm.xlu0 %2398, %v597
      %v2400 = vpop.permute.xlu0 %2399
      %2402 = vset.pattern.permute.xlu0 7
      %2403 = vperm.xlu0 %2402, %v598
      %v2404 = vpop.permute.xlu0 %2403
      %2406 = vset.pattern.permute.xlu0 7
      %2407 = vperm.xlu0 %2406, %v599
      %v2408 = vpop.permute.xlu0 %2407
      %2410 = vset.pattern.permute.xlu0 7
      %2411 = vperm.xlu0 %2410, %v600
      %v2412 = vpop.permute.xlu0 %2411
      %2414 = vset.pattern.permute.xlu0 7
      %2415 = vperm.xlu0 %2414, %v601
      %v2416 = vpop.permute.xlu0 %2415
      %2418 = vset.pattern.permute.xlu0 7
      %2419 = vperm.xlu0 %2418, %v602
      %v2420 = vpop.permute.xlu0 %2419
      %2422 = vset.pattern.permute.xlu0 7
      %2423 = vperm.xlu0 %2422, %v603
      %v2424 = vpop.permute.xlu0 %2423
      %2426 = vset.pattern.permute.xlu0 7
      %2427 = vperm.xlu0 %2426, %v604
      %v2428 = vpop.permute.xlu0 %2427
      %2430 = vset.pattern.permute.xlu0 7
      %2431 = vperm.xlu0 %2430, %v605
      %v2432 = vpop.permute.xlu0 %2431
      %v2434 = vlaneseq
      %v2435 = vshrl.u32 %v2434, 7
      %v2436 = vsub.s32 7, %v2435
      %v2437 = vrot.slane %v606, %v2436
      %v2438 = vmul.f32 %v2372, %v2437
      %v2439 = vmul.f32 %v2376, %v2437
      %v2440 = vmul.f32 %v2380, %v2437
      %v2441 = vmul.f32 %v2384, %v2437
      %v2442 = vmul.f32 %v2388, %v2437
      %v2443 = vmul.f32 %v2392, %v2437
      %v2444 = vmul.f32 %v2396, %v2437
      %v2445 = vmul.f32 %v2400, %v2437
      %v2446 = vmul.f32 %v2404, %v2437
      %v2447 = vmul.f32 %v2408, %v2437
      %v2448 = vmul.f32 %v2412, %v2437
      %v2449 = vmul.f32 %v2416, %v2437
      %v2450 = vmul.f32 %v2420, %v2437
      %v2451 = vmul.f32 %v2424, %v2437
      %v2452 = vmul.f32 %v2428, %v2437
      %v2453 = vmul.f32 %v2432, %v2437
      %v2454 = vmul.f32 %v2339, %v2230
      %v2455 = vmul.f32 %v2341, %v2231
      %v2456 = vmul.f32 %v2343, %v2232
      %v2457 = vmul.f32 %v2345, %v2233
      %v2458 = vmul.f32 %v2347, %v2234
      %v2459 = vmul.f32 %v2349, %v2235
      %v2460 = vmul.f32 %v2351, %v2236
      %v2461 = vmul.f32 %v2353, %v2237
      %v2462 = vmul.f32 %v2355, %v2238
      %v2463 = vmul.f32 %v2357, %v2239
      %v2464 = vmul.f32 %v2359, %v2240
      %v2465 = vmul.f32 %v2361, %v2241
      %v2466 = vmul.f32 %v2363, %v2242
      %v2467 = vmul.f32 %v2365, %v2243
      %v2468 = vmul.f32 %v2367, %v2244
      %v2469 = vmul.f32 %v2369, %v2245
      %v2470 = vadd.f32 %v2454, %v2438
      %v2471 = vadd.f32 %v2455, %v2439
      %v2472 = vadd.f32 %v2456, %v2440
      %v2473 = vadd.f32 %v2457, %v2441
      %v2474 = vadd.f32 %v2458, %v2442
      %v2475 = vadd.f32 %v2459, %v2443
      %v2476 = vadd.f32 %v2460, %v2444
      %v2477 = vadd.f32 %v2461, %v2445
      %v2478 = vadd.f32 %v2462, %v2446
      %v2479 = vadd.f32 %v2463, %v2447
      %v2480 = vadd.f32 %v2464, %v2448
      %v2481 = vadd.f32 %v2465, %v2449
      %v2482 = vadd.f32 %v2466, %v2450
      %v2483 = vadd.f32 %v2467, %v2451
      %v2484 = vadd.f32 %v2468, %v2452
      %v2485 = vadd.f32 %v2469, %v2453
      %v2486 = vrot.slane %v573, 7
      %2488 = vmatprep.subr.mxu0 0.0
      %2489 = vmatpush1.msra.mxu0 %v2485
      %2490 = vmatprep.subr.mxu0 0.0
      %2491 = vmatpush1.msra.mxu0 %v2484
      %2492 = vmatprep.subr.mxu0 0.0
      %2493 = vmatpush1.msra.mxu0 %v2483
      %2494 = vmatprep.subr.mxu0 0.0
      %2495 = vmatpush1.msra.mxu0 %v2482
      %2496 = vmatprep.subr.mxu0 0.0
      %2497 = vmatpush1.msra.mxu0 %v2481
      %2498 = vmatprep.subr.mxu0 0.0
      %2499 = vmatpush1.msra.mxu0 %v2480
      %2500 = vmatprep.subr.mxu0 0.0
      %2501 = vmatpush1.msra.mxu0 %v2479
      %2502 = vmatprep.subr.mxu0 0.0
      %2503 = vmatpush1.msra.mxu0 %v2478
      %2504 = vmatprep.subr.mxu0 0.0
      %2505 = vmatpush1.msra.mxu0 %v2477
      %2506 = vmatprep.subr.mxu0 0.0
      %2507 = vmatpush1.msra.mxu0 %v2476
      %2508 = vmatprep.subr.mxu0 0.0
      %2509 = vmatpush1.msra.mxu0 %v2475
      %2510 = vmatprep.subr.mxu0 0.0
      %2511 = vmatpush1.msra.mxu0 %v2474
      %2512 = vmatprep.subr.mxu0 0.0
      %2513 = vmatpush1.msra.mxu0 %v2473
      %2514 = vmatprep.subr.mxu0 0.0
      %2515 = vmatpush1.msra.mxu0 %v2472
      %2516 = vmatprep.subr.mxu0 0.0
      %2517 = vmatpush1.msra.mxu0 %v2471
      %2518 = vmatprep.subr.mxu0 0.0
      %2519 = vmatpush1.msra.mxu0 %v2470
      %2520 = vmatprep.subr.mxu0 0.0
      %2521 = vmatpush2.msra.mxu0 0.0
      %2522 = vmatprep.subr.mxu0 0.0
      %2523 = vmatpush2.msra.mxu0 0.0
      %2524 = vmatprep.subr.mxu0 0.0
      %2525 = vmatpush2.msra.mxu0 0.0
      %2526 = vmatprep.subr.mxu0 0.0
      %2527 = vmatpush2.msra.mxu0 0.0
      %2528 = vmatprep.subr.mxu0 0.0
      %2529 = vmatpush2.msra.mxu0 0.0
      %2530 = vmatprep.subr.mxu0 0.0
      %2531 = vmatpush2.msra.mxu0 0.0
      %2532 = vmatprep.subr.mxu0 0.0
      %2533 = vmatpush2.msra.mxu0 0.0
      %2534 = vmatprep.subr.mxu0 0.0
      %2535 = vmatpush2.msra.mxu0 0.0
      %2536 = vmatprep.subr.mxu0 0.0
      %2537 = vmatpush2.msra.mxu0 0.0
      %2538 = vmatprep.subr.mxu0 0.0
      %2539 = vmatpush2.msra.mxu0 0.0
      %2540 = vmatprep.subr.mxu0 0.0
      %2541 = vmatpush2.msra.mxu0 0.0
      %2542 = vmatprep.subr.mxu0 0.0
      %2543 = vmatpush2.msra.mxu0 0.0
      %2544 = vmatprep.subr.mxu0 0.0
      %2545 = vmatpush2.msra.mxu0 0.0
      %2546 = vmatprep.subr.mxu0 0.0
      %2547 = vmatpush2.msra.mxu0 0.0
      %2548 = vmatprep.subr.mxu0 0.0
      %2549 = vmatpush2.msra.mxu0 0.0
      %2550 = vmatprep.subr.mxu0 0.0
      %2551 = vmatpush2.msra.mxu0 0.0
      %2552 = vmatprep.mubr.f32.mxu0 0.0
      %2553 = vmatmul.mubr.f32.gmra.mxu0 %v2486
      %v2554 = vpop.f32.mrf.mxu0
      %v2555 = vadd.f32 0.0, %v2554
      %v2556 = vpop.f32.mrf.mxu0
      %2557 = vdwg.mxu0
      %2558 = vst [vmem:[#allocation2] sm:$0xff] %v2470
      %2559 = vst [vmem:[#allocation2 + $0x8] sm:$0xff] %v2471
      %2560 = vst [vmem:[#allocation2 + $0x10] sm:$0xff] %v2472
      %2561 = vst [vmem:[#allocation2 + $0x18] sm:$0xff] %v2473
      %2562 = vst [vmem:[#allocation2 + $0x20] sm:$0xff] %v2474
      %2563 = vst [vmem:[#allocation2 + $0x28] sm:$0xff] %v2475
      %2564 = vst [vmem:[#allocation2 + $0x30] sm:$0xff] %v2476
      %2565 = vst [vmem:[#allocation2 + $0x38] sm:$0xff] %v2477
      %2566 = vst [vmem:[#allocation2 + $0x40] sm:$0xff] %v2478
      %2567 = vst [vmem:[#allocation2 + $0x48] sm:$0xff] %v2479
      %2568 = vst [vmem:[#allocation2 + $0x50] sm:$0xff] %v2480
      %2569 = vst [vmem:[#allocation2 + $0x58] sm:$0xff] %v2481
      %2570 = vst [vmem:[#allocation2 + $0x60] sm:$0xff] %v2482
      %2571 = vst [vmem:[#allocation2 + $0x68] sm:$0xff] %v2483
      %2572 = vst [vmem:[#allocation2 + $0x70] sm:$0xff] %v2484
      %2573 = vst [vmem:[#allocation2 + $0x78] sm:$0xff] %v2485
      %v2575 = vrot.slane %v1115, 7
      %v2578 = vrot.slane %v1355, 6
      %v2581 = vrot.slane %v1595, 5
      %v2584 = vrot.slane %v1835, 4
      %v2587 = vrot.slane %v2075, 3
      %v2590 = vrot.slane %v2315, 2
      %v2593 = vrot.slane %v2555, 1
      %vm2595 = vcmask 1040384
      %v2596 = vsel %vm2595, %v874, %v2575
      %vm2597 = vcmask 1041408
      %v2598 = vsel %vm2597, %v2596, %v2578
      %vm2599 = vcmask 1042432
      %v2600 = vsel %vm2599, %v2598, %v2581
      %vm2601 = vcmask 1043456
      %v2602 = vsel %vm2601, %v2600, %v2584
      %vm2603 = vcmask 1044480
      %v2604 = vsel %vm2603, %v2602, %v2587
      %vm2605 = vcmask 1045504
      %v2606 = vsel %vm2605, %v2604, %v2590
      %vm2607 = vcmask 1046528
      %v2608 = vsel %vm2607, %v2606, %v2593
      %v2609 = vld [vmem:[%s513] sm:$0x1]
      %v2611 = vlaneseq
      %v2612 = vshrl.u32 %v2611, 7
      %v2613 = vsub.s32 0, %v2612
      %v2614 = vrot.slane %v2609, %v2613
      %v2616 = vmul.f32 %v2614, %v560
      %v2617 = vadd.f32 %v2608, %v2616
      %v2618 = vsub.f32 0.0, %v561
      %v2619 = vmul.f32 %v2618, 1.442695
      %v2620 = vpow.pop %v2619
      %v2621 = vadd.f32 %v2620, 1.0
      %v2622 = vrcp.pop %v2621
      %v2623 = vmul.f32 %v561, %v2622
      %v2624 = vmul.f32 %v2617, %v2623
      %2625 = vst [vmem:[%s523] sm:$0xff] %v2624
      %p2626 = scmp.lt.s32.totalorder %s23, 1
      %s2627 = scalar_select %p2626, %s23, 1
      %p2628 = scmp.lt.s32.totalorder %s25, 0
      %s2629 = scalar_select %p2628, %s25, 0
      %p2630 = scmp.lt.s32.totalorder %s24, 0
      %s2631 = scalar_select %p2630, %s24, 0
      %s2632 = sadd.s32 %s2631, %s2629
      %s2633 = sadd.s32 %s2632, %s2627
      %s2634 = smul.addr %s2633, 8
      %s2635 = scalar_lea.vmem %s7, %s2634
      // Predicated region
      $region53: #{_lambda_.31} parent=47 // pred_check
        %p2636 = pneg %p259
      $region54: #{_lambda_.31} parent=47 // pred_check_branch
        %2638 = sbr.rel (%p2636) target = $region56
      $region55: #{_lambda_.31} parent=47 // pred_region
        _
      $region56: #{_lambda_.31} parent=47 // pred_fallthru
        _
    $region48: #{_lambda_.31} parent=5 // pred_fallthru
      _
    %p2639 = scmp.le.s32.totalorder 2, %s13
    // Predicated region
    $region57: #{_lambda_.31} parent=5 // pred_check
      %p2640 = pneg %p2639
    $region58: #{_lambda_.31} parent=5 // pred_check_branch
      %2642 = sbr.rel (%p2640) target = $region60
    $region59: #{_lambda_.31} parent=5 // pred_region
      %s2643 = ssub.s32 %s13, 2
      // Predicated region
      $region61: #{_lambda_.31} parent=59 // pred_check
        %p2644 = pneg %p265
      $region62: #{_lambda_.31} parent=59 // pred_check_branch
        %2646 = sbr.rel (%p2644) target = $region64
      $region63: #{_lambda_.31} parent=59 // pred_region
        %p2647 = scmp.lt.s32.totalorder %s26, 1
        %s2648 = scalar_select %p2647, %s26, 1
        %p2649 = scmp.lt.s32.totalorder %s28, 0
        %s2650 = scalar_select %p2649, %s28, 0
        %p2651 = scmp.lt.s32.totalorder %s27, 0
        %s2652 = scalar_select %p2651, %s27, 0
        %s2653 = sadd.s32 %s2652, %s2650
        %s2654 = sadd.s32 %s2653, %s2648
        %s2655 = smul.addr %s2654, 8
        %s2656 = scalar_lea.vmem %s7, %s2655
      $region64: #{_lambda_.31} parent=59 // pred_fallthru
        _
    $region60: #{_lambda_.31} parent=5 // pred_fallthru
      _
  $region6: #{_lambda_.31} parent=0 // loop_footer
    %s17 = sadd.s32 1, %s13
  $region7: #{_lambda_.31} parent=0 // loop_footer_branch
    %12 = sbr.rel target = $region3
  $region8: #{_lambda_.31} parent=0 // loop_exit
    _

// kernel: _lambda_.32
$region0: #{_lambda_.32}
  #allocation0 [shape = 'u32[]', space=smem, size = 0x4, offset = 0x4, fixed_abs, tag = 'smem constant byte address 0x4 - core index']
  #allocation1 [shape = 'u32[144,128]{1,0:T(1,128)}', space=vmem, size = 0x12000, scoped, tag = 'internal scratch']
  %s0 = inlined_call_operand.vmem [shape: f32[2,8,256], index: 0, kind: input, shape index: {}, may-alias: {0,1}]
  %s1 = inlined_call_operand.vmem [shape: f32[2,8,256], index: 1, kind: input, shape index: {}, may-alias: {0,1}]
  %s2 = inlined_call_operand.vmem [shape: f32[4,128], index: 2, kind: input, shape index: {}]
  %s3 = inlined_call_operand.vmem [shape: f32[1,128], index: 3, kind: input, shape index: {}]
  %s4 = inlined_call_operand.vmem [shape: f32[2,8,128], index: 4, kind: output, shape index: {}]
  %s5 = sld [smem:[#allocation0]]
  $region49: #{_lambda_.32} parent=0
    _
  %s7 = ssub.s32 1, %s5
  %s8 = scalar_select 0, %s7, %s5
  loop: start=0, step=1, limit=4
  $region2: #{_lambda_.32} parent=0 // loop_pre_header
    _
  $region3: #{_lambda_.32} parent=0 // loop_header
    %s10 = sphi 0, %s14
    %p11 = scmp.ge.s32.totalorder %s10, 4
    %s17 = sphi 0, %s29
    %s18 = sphi 0, %s25
    %s19 = sphi 0, %s17
    %s20 = sphi 0, %s18
    %s21 = sphi 0, %s19
    %s22 = sphi 0, %s20
    %s34 = sphi 0, %s36
    %s37 = sphi 0, %s34
    %s38 = sphi 0, %s37
    %s54 = sphi 0, %s38
    %s68 = sphi 0, %s70
    %s71 = sphi 0, %s68
    %s72 = sphi 0, %s71
    %s88 = sphi 0, %s72
    %s92 = sphi 0, %s92
    %s94 = sphi 0, %s92
    %s95 = sphi 0, %s94
    %s109 = sphi 0, %s95
    %s113 = sphi 0, %s113
    %s115 = sphi 0, %s113
    %s116 = sphi 0, %s115
    %s130 = sphi 0, %s116
    %s138 = sphi 0, %s140
    %s141 = sphi 0, %s138
    %s142 = sphi 0, %s141
    %s158 = sphi 0, %s142
  $region4: #{_lambda_.32} parent=0 // loop_header_branch
    %13 = sbr.rel (%p11) target = $region8
  $region5: #{_lambda_.32} parent=0 // loop_body
    %s15 = ssub.s32 %s10, 1
    %s16 = ssub.s32 %s10, 2
    %s23 = sadd.s32 1, %s18
    %p24 = scmp.ge.s32.totalorder %s23, 1
    %s25 = scalar_select %p24, 0, %s23
    %s26 = sadd.s32 1, %s17
    %s27 = scalar_select %p24, %s26, %s17
    %p28 = scmp.ge.s32.totalorder %s27, 2
    %s29 = scalar_select %p28, 0, %s27
    %s30 = ssub.s32 %s17, %s29
    %s31 = ssub.s32 %s18, %s25
    %s32 = sor.u32 %s30, %s31
    %p33 = scmp.eq.s32.totalorder %s32, 0
    %s35 = sadd.s32 %s34, 1
    %s36 = scalar_select %p33, %s34, %s35
    %p39 = pneg %p33
    %p40 = scmp.eq.s32.totalorder %s10, 1
    %p41 = por %p39, %p40
    %p42 = scmp.ne.s32.totalorder %s34, %s37
    %p43 = scmp.eq.s32.totalorder %s10, 0
    %p44 = por %p42, %p43
    %p45 = scmp.ne.s32.totalorder %s34, %s37
    %p46 = scmp.eq.s32.totalorder %s15, 1
    %p47 = por %p45, %p46
    %p48 = scmp.ne.s32.totalorder %s37, %s38
    %p49 = scmp.eq.s32.totalorder %s15, 0
    %p50 = por %p48, %p49
    %p51 = scmp.ne.s32.totalorder %s37, %s38
    %p52 = scmp.eq.s32.totalorder %s16, 1
    %p53 = por %p51, %p52
    %p55 = scmp.ne.s32.totalorder %s38, %s54
    %p56 = scmp.eq.s32.totalorder %s16, 0
    %p57 = por %p55, %p56
    %s58 = sadd.s32 %s18, 1
    %p59 = scmp.lt.s32.totalorder %s58, 0
    %s60 = scalar_select %p59, %s58, 0
    %s61 = sadd.s32 %s25, 1
    %p62 = scmp.lt.s32.totalorder %s61, 0
    %s63 = scalar_select %p62, %s61, 0
    %s64 = ssub.s32 %s17, %s29
    %s65 = ssub.s32 %s60, %s63
    %s66 = sor.u32 %s64, %s65
    %p67 = scmp.eq.s32.totalorder %s66, 0
    %s69 = sadd.s32 %s68, 1
    %s70 = scalar_select %p67, %s68, %s69
    %p73 = pneg %p67
    %p74 = scmp.eq.s32.totalorder %s10, 1
    %p75 = por %p73, %p74
    %p76 = scmp.ne.s32.totalorder %s68, %s71
    %p77 = scmp.eq.s32.totalorder %s10, 0
    %p78 = por %p76, %p77
    %p79 = scmp.ne.s32.totalorder %s68, %s71
    %p80 = scmp.eq.s32.totalorder %s15, 1
    %p81 = por %p79, %p80
    %p82 = scmp.ne.s32.totalorder %s71, %s72
    %p83 = scmp.eq.s32.totalorder %s15, 0
    %p84 = por %p82, %p83
    %p85 = scmp.ne.s32.totalorder %s71, %s72
    %p86 = scmp.eq.s32.totalorder %s16, 1
    %p87 = por %p85, %p86
    %p89 = scmp.ne.s32.totalorder %s72, %s88
    %p90 = scmp.eq.s32.totalorder %s16, 0
    %p91 = por %p89, %p90
    %s93 = sadd.s32 %s92, 1
    %p96 = scmp.eq.s32.totalorder %s10, 1
    %p97 = scmp.ne.s32.totalorder %s92, %s94
    %p98 = scmp.eq.s32.totalorder %s10, 0
    %p99 = por %p97, %p98
    %p100 = scmp.ne.s32.totalorder %s92, %s94
    %p101 = scmp.eq.s32.totalorder %s15, 1
    %p102 = por %p100, %p101
    %p103 = scmp.ne.s32.totalorder %s94, %s95
    %p104 = scmp.eq.s32.totalorder %s15, 0
    %p105 = por %p103, %p104
    %p106 = scmp.ne.s32.totalorder %s94, %s95
    %p107 = scmp.eq.s32.totalorder %s16, 1
    %p108 = por %p106, %p107
    %p110 = scmp.ne.s32.totalorder %s95, %s109
    %p111 = scmp.eq.s32.totalorder %s16, 0
    %p112 = por %p110, %p111
    %s114 = sadd.s32 %s113, 1
    %p117 = scmp.eq.s32.totalorder %s10, 1
    %p118 = scmp.ne.s32.totalorder %s113, %s115
    %p119 = scmp.eq.s32.totalorder %s10, 0
    %p120 = por %p118, %p119
    %p121 = scmp.ne.s32.totalorder %s113, %s115
    %p122 = scmp.eq.s32.totalorder %s15, 1
    %p123 = por %p121, %p122
    %p124 = scmp.ne.s32.totalorder %s115, %s116
    %p125 = scmp.eq.s32.totalorder %s15, 0
    %p126 = por %p124, %p125
    %p127 = scmp.ne.s32.totalorder %s115, %s116
    %p128 = scmp.eq.s32.totalorder %s16, 1
    %p129 = por %p127, %p128
    %p131 = scmp.ne.s32.totalorder %s116, %s130
    %p132 = scmp.eq.s32.totalorder %s16, 0
    %p133 = por %p131, %p132
    %s134 = ssub.s32 %s17, %s29
    %s135 = ssub.s32 %s18, %s25
    %s136 = sor.u32 %s134, %s135
    %p137 = scmp.eq.s32.totalorder %s136, 0
    %s139 = sadd.s32 %s138, 1
    %s140 = scalar_select %p137, %s138, %s139
    %p143 = pneg %p137
    %p144 = scmp.eq.s32.totalorder %s10, 1
    %p145 = por %p143, %p144
    %p146 = scmp.ne.s32.totalorder %s138, %s141
    %p147 = scmp.eq.s32.totalorder %s10, 0
    %p148 = por %p146, %p147
    %p149 = scmp.ne.s32.totalorder %s138, %s141
    %p150 = scmp.eq.s32.totalorder %s15, 1
    %p151 = por %p149, %p150
    %p152 = scmp.ne.s32.totalorder %s141, %s142
    %p153 = scmp.eq.s32.totalorder %s15, 0
    %p154 = por %p152, %p153
    %p155 = scmp.ne.s32.totalorder %s141, %s142
    %p156 = scmp.eq.s32.totalorder %s16, 1
    %p157 = por %p155, %p156
    %p159 = scmp.ne.s32.totalorder %s142, %s158
    %p160 = scmp.eq.s32.totalorder %s16, 0
    %p161 = por %p159, %p160
    %p162 = scmp.le.s32.totalorder 1, %s10
    %p163 = scmp.lt.s32.totalorder %s10, 3
    %p164 = pnand %p162, %p163
    %p165 = pneg %p164
    // Predicated region
    $region9: #{_lambda_.32} parent=5 // pred_check
      _
    $region10: #{_lambda_.32} parent=5 // pred_check_branch
      %167 = sbr.rel (%p164) target = $region12
    $region11: #{_lambda_.32} parent=5 // pred_region
      %s168 = ssub.s32 %s10, 1
      // Predicated region
      $region13: #{_lambda_.32} parent=11 // pred_check
        %p169 = pneg %p105
      $region14: #{_lambda_.32} parent=11 // pred_check_branch
        %171 = sbr.rel (%p169) target = $region16
      $region15: #{_lambda_.32} parent=11 // pred_region
        _
      $region16: #{_lambda_.32} parent=11 // pred_fallthru
        _
      // Predicated region
      $region17: #{_lambda_.32} parent=11 // pred_check
        %p172 = pneg %p126
      $region18: #{_lambda_.32} parent=11 // pred_check_branch
        %174 = sbr.rel (%p172) target = $region20
      $region19: #{_lambda_.32} parent=11 // pred_region
        _
      $region20: #{_lambda_.32} parent=11 // pred_fallthru
        _
    $region12: #{_lambda_.32} parent=5 // pred_fallthru
      _
    %p175 = scmp.lt.s32.totalorder %s10, 2
    // Predicated region
    $region21: #{_lambda_.32} parent=5 // pred_check
      %p176 = pneg %p175
    $region22: #{_lambda_.32} parent=5 // pred_check_branch
      %178 = sbr.rel (%p176) target = $region24
    $region23: #{_lambda_.32} parent=5 // pred_region
      // Predicated region
      $region25: #{_lambda_.32} parent=23 // pred_check
        %p179 = pneg %p44
      $region26: #{_lambda_.32} parent=23 // pred_check_branch
        %181 = sbr.rel (%p179) target = $region28
      $region27: #{_lambda_.32} parent=23 // pred_region
        %p182 = scmp.lt.s32.totalorder %s17, 1
        %s183 = scalar_select %p182, %s17, 1
        %p184 = scmp.lt.s32.totalorder %s18, 0
        %s185 = scalar_select %p184, %s18, 0
        %s186 = smul.addr %s185, 2
        %s187 = smul.addr %s183, 2
        %s188 = sadd.s32 %s186, %s187
        %s189 = smul.addr %s188, 8
        %s190 = scalar_lea.vmem %s0, %s189
      $region28: #{_lambda_.32} parent=23 // pred_fallthru
        _
      // Predicated region
      $region29: #{_lambda_.32} parent=23 // pred_check
        %p191 = pneg %p78
      $region30: #{_lambda_.32} parent=23 // pred_check_branch
        %193 = sbr.rel (%p191) target = $region32
      $region31: #{_lambda_.32} parent=23 // pred_region
        %s194 = sadd.s32 %s18, 1
        %p195 = scmp.lt.s32.totalorder %s194, 0
        %s196 = scalar_select %p195, %s194, 0
        %p197 = scmp.lt.s32.totalorder %s17, 1
        %s198 = scalar_select %p197, %s17, 1
        %p199 = scmp.lt.s32.totalorder %s196, 0
        %s200 = scalar_select %p199, %s196, 0
        %s201 = smul.addr %s200, 2
        %s202 = smul.addr %s198, 2
        %s203 = sadd.s32 %s201, %s202
        %s204 = smul.addr %s203, 8
        %s205 = scalar_lea.vmem %s1, %s204
        %s206 = sadd.s32 %s18, 1
        %p207 = scmp.lt.s32.totalorder %s206, 0
        %s208 = scalar_select %p207, %s206, 0
      $region32: #{_lambda_.32} parent=23 // pred_fallthru
        _
    $region24: #{_lambda_.32} parent=5 // pred_fallthru
      _
    %p209 = scmp.le.s32.totalorder 1, %s10
    %p210 = scmp.lt.s32.totalorder %s10, 3
    %p211 = pnand %p209, %p210
    %p212 = pneg %p211
    // Predicated region
    $region33: #{_lambda_.32} parent=5 // pred_check
      _
    $region34: #{_lambda_.32} parent=5 // pred_check_branch
      %214 = sbr.rel (%p211) target = $region36
    $region35: #{_lambda_.32} parent=5 // pred_region
      %s215 = ssub.s32 %s10, 1
      %p216 = scmp.lt.s32.totalorder %s19, 1
      %s217 = scalar_select %p216, %s19, 1
      %p218 = scmp.lt.s32.totalorder %s20, 0
      %s219 = scalar_select %p218, %s20, 0
      %s220 = smul.addr %s219, 2
      %s221 = smul.addr %s217, 2
      %s222 = sadd.s32 %s220, %s221
      %s223 = smul.addr %s222, 8
      %s224 = scalar_lea.vmem %s0, %s223
      %p225 = pneg %p50
      %p226 = pneg %p47
      %s227 = sadd.s32 %s20, 1
      %p228 = scmp.lt.s32.totalorder %s227, 0
      %s229 = scalar_select %p228, %s227, 0
      %p230 = scmp.lt.s32.totalorder %s19, 1
      %s231 = scalar_select %p230, %s19, 1
      %p232 = scmp.lt.s32.totalorder %s229, 0
      %s233 = scalar_select %p232, %s229, 0
      %s234 = smul.addr %s233, 2
      %s235 = smul.addr %s231, 2
      %s236 = sadd.s32 %s234, %s235
      %s237 = smul.addr %s236, 8
      %s238 = scalar_lea.vmem %s1, %s237
      %p239 = pneg %p84
      %p240 = pneg %p81
      %p241 = pneg %p105
      %p242 = pneg %p102
      %p243 = pneg %p126
      %p244 = pneg %p123
      %p245 = pneg %p154
      %p246 = pneg %p151
      %p247 = scmp.lt.s32.totalorder %s19, 1
      %s248 = scalar_select %p247, %s19, 1
      %p249 = scmp.lt.s32.totalorder %s20, 0
      %s250 = scalar_select %p249, %s20, 0
      %s251 = sadd.s32 %s250, %s248
      %s252 = smul.addr %s251, 8
      %s253 = scalar_lea.vmem %s4, %s252
      %p254 = scmp.lt.s32.totalorder %s19, 1
      %s255 = scalar_select %p254, %s19, 1
      %p256 = scmp.lt.s32.totalorder %s20, 0
      %s257 = scalar_select %p256, %s20, 0
      %s258 = smul.addr %s257, 2
      %s259 = smul.addr %s255, 2
      %s260 = sadd.s32 %s258, %s259
      %s261 = smul.addr %s260, 8
      %s262 = scalar_lea.vmem %s0, %s261
      %s263 = sadd.s32 %s20, 1
      %p264 = scmp.lt.s32.totalorder %s263, 0
      %s265 = scalar_select %p264, %s263, 0
      %p266 = scmp.lt.s32.totalorder %s19, 1
      %s267 = scalar_select %p266, %s19, 1
      %p268 = scmp.lt.s32.totalorder %s265, 0
      %s269 = scalar_select %p268, %s265, 0
      %s270 = smul.addr %s269, 2
      %s271 = smul.addr %s267, 2
      %s272 = sadd.s32 %s270, %s271
      %s273 = smul.addr %s272, 8
      %s274 = scalar_lea.vmem %s1, %s273
      %s275 = sadd.s32 %s20, 1
      %p276 = scmp.lt.s32.totalorder %s275, 0
      %s277 = scalar_select %p276, %s275, 0
      %p278 = scmp.lt.s32.totalorder %s19, 1
      %s279 = scalar_select %p278, %s19, 1
      %p280 = scmp.lt.s32.totalorder %s20, 0
      %s281 = scalar_select %p280, %s20, 0
      %s282 = sadd.s32 %s281, %s279
      %s283 = smul.addr %s282, 8
      %s284 = scalar_lea.vmem %s4, %s283
      %v285 = vld [vmem:[%s262] sm:$0xff]
      %v286 = vld [vmem:[%s274] sm:$0xff]
      %p287 = scmp.eq.s32.totalorder %s20, 0
      %s288 = scalar_select %p287, 1, 0
      %v289 = vstv %s288
      %vm290 = vcmp.eq.s32.totalorder %v289, 1
      %v291 = vsel %vm290, 0.0, %v286
      %v292 = vld [vmem:[%s2 + $0x3] sm:$0x1]
      %v293 = vlaneseq
      %v294 = vshrl.u32 %v293, 7
      %v295 = vsub.s32 0, %v294
      %v296 = vrot.slane %v292, %v295
      %v297 = vmul.f32 %v285, %v296
      %v298 = vld [vmem:[%s2 + $0x2] sm:$0x1]
      %v299 = vlaneseq
      %v300 = vshrl.u32 %v299, 7
      %v301 = vsub.s32 0, %v300
      %v302 = vrot.slane %v298, %v301
      %v303 = vmul.f32 %v285, %v302
      %v304 = vmul.f32 %v291, %v302
      %vm307 = vcmask 1046528
      %v308 = vrot.slane %v303, 1
      %v309 = vrot.slane %v304, 1
      %v310 = vsel %vm307, %v308, %v309
      %v312 = vadd.f32 %v297, %v310
      %v313 = vld [vmem:[%s2 + $0x1] sm:$0x1]
      %v314 = vlaneseq
      %v315 = vshrl.u32 %v314, 7
      %v316 = vsub.s32 0, %v315
      %v317 = vrot.slane %v313, %v316
      %v318 = vmul.f32 %v285, %v317
      %v319 = vmul.f32 %v291, %v317
      %vm322 = vcmask 1045504
      %v323 = vrot.slane %v318, 2
      %v324 = vrot.slane %v319, 2
      %v325 = vsel %vm322, %v323, %v324
      %v327 = vadd.f32 %v312, %v325
      %v328 = vld [vmem:[%s2] sm:$0x1]
      %v329 = vlaneseq
      %v330 = vshrl.u32 %v329, 7
      %v331 = vsub.s32 0, %v330
      %v332 = vrot.slane %v328, %v331
      %v333 = vmul.f32 %v285, %v332
      %v334 = vmul.f32 %v291, %v332
      %vm337 = vcmask 1044480
      %v338 = vrot.slane %v333, 3
      %v339 = vrot.slane %v334, 3
      %v340 = vsel %vm337, %v338, %v339
      %v342 = vadd.f32 %v327, %v340
      %v343 = vld [vmem:[%s3] sm:$0x1]
      %v345 = vlaneseq
      %v346 = vshrl.u32 %v345, 7
      %v347 = vsub.s32 0, %v346
      %v348 = vrot.slane %v343, %v347
      %v350 = vadd.f32 %v342, %v348
      %v351 = vsub.f32 0.0, %v350
      %v352 = vmul.f32 %v351, 1.442695
      %v353 = vpow.pop %v352
      %v354 = vadd.f32 %v353, 1.0
      %v355 = vrcp.pop %v354
      %v356 = vmul.f32 %v350, %v355
      %357 = vst [vmem:[%s284] sm:$0xff] %v356
      %p358 = scmp.lt.s32.totalorder %s19, 1
      %s359 = scalar_select %p358, %s19, 1
      %p360 = scmp.lt.s32.totalorder %s20, 0
      %s361 = scalar_select %p360, %s20, 0
      %s362 = sadd.s32 %s361, %s359
      %s363 = smul.addr %s362, 8
      %s364 = scalar_lea.vmem %s4, %s363
      // Predicated region
      $region37: #{_lambda_.32} parent=35 // pred_check
        %p365 = pneg %p151
      $region38: #{_lambda_.32} parent=35 // pred_check_branch
        %367 = sbr.rel (%p365) target = $region40
      $region39: #{_lambda_.32} parent=35 // pred_region
        _
      $region40: #{_lambda_.32} parent=35 // pred_fallthru
        _
    $region36: #{_lambda_.32} parent=5 // pred_fallthru
      _
    %p368 = scmp.le.s32.totalorder 2, %s10
    // Predicated region
    $region41: #{_lambda_.32} parent=5 // pred_check
      %p369 = pneg %p368
    $region42: #{_lambda_.32} parent=5 // pred_check_branch
      %371 = sbr.rel (%p369) target = $region44
    $region43: #{_lambda_.32} parent=5 // pred_region
      %s372 = ssub.s32 %s10, 2
      // Predicated region
      $region45: #{_lambda_.32} parent=43 // pred_check
        %p373 = pneg %p157
      $region46: #{_lambda_.32} parent=43 // pred_check_branch
        %375 = sbr.rel (%p373) target = $region48
      $region47: #{_lambda_.32} parent=43 // pred_region
        %p376 = scmp.lt.s32.totalorder %s21, 1
        %s377 = scalar_select %p376, %s21, 1
        %p378 = scmp.lt.s32.totalorder %s22, 0
        %s379 = scalar_select %p378, %s22, 0
        %s380 = sadd.s32 %s379, %s377
        %s381 = smul.addr %s380, 8
        %s382 = scalar_lea.vmem %s4, %s381
      $region48: #{_lambda_.32} parent=43 // pred_fallthru
        _
    $region44: #{_lambda_.32} parent=5 // pred_fallthru
      _
  $region6: #{_lambda_.32} parent=0 // loop_footer
    %s14 = sadd.s32 1, %s10
  $region7: #{_lambda_.32} parent=0 // loop_footer_branch
    %9 = sbr.rel target = $region3
  $region8: #{_lambda_.32} parent=0 // loop_exit
    _

// kernel: _lambda_.37
$region0: #{_lambda_.37}
  #allocation0 [shape = 'u32[]', space=smem, size = 0x4, offset = 0x4, fixed_abs, tag = 'smem constant byte address 0x4 - core index']
  #allocation1 [shape = 'u32[144,128]{1,0:T(1,128)}', space=vmem, size = 0x12000, scoped, tag = 'internal scratch']
  #allocation2 [shape = 'f32[16,128]{1,0:T(8,128)}', space=vmem, size = 0x2000, scoped, tag = 'scratch operand']
  %s0 = inlined_call_operand.vmem [shape: f32[16,128], index: 0, kind: input, shape index: {}]
  %s1 = inlined_call_operand.vmem [shape: bf16[128,128], index: 1, kind: input, shape index: {}]
  %s2 = inlined_call_operand.vmem [shape: f32[1,128], index: 2, kind: input, shape index: {}]
  %s3 = inlined_call_operand.vmem [shape: f32[16,128], index: 3, kind: output, shape index: {}]
  %s4 = sld [smem:[#allocation0]]
  $region30: #{_lambda_.37} parent=0
    _
  %s6 = ssub.s32 1, %s4
  %s7 = scalar_select 0, %s6, %s4
  // Predicated region
  $region2: #{_lambda_.37} parent=0 // pred_check
    _
  $region3: #{_lambda_.37} parent=0 // pred_check_branch
    %9 = sbr.rel (0) target = $region5
  $region4: #{_lambda_.37} parent=0 // pred_region
    _
  $region5: #{_lambda_.37} parent=0 // pred_fallthru
    _
  // Predicated region
  $region6: #{_lambda_.37} parent=0 // pred_check
    _
  $region7: #{_lambda_.37} parent=0 // pred_check_branch
    %11 = sbr.rel (0) target = $region9
  $region8: #{_lambda_.37} parent=0 // pred_region
    _
  $region9: #{_lambda_.37} parent=0 // pred_fallthru
    _
  // Predicated region
  $region10: #{_lambda_.37} parent=0 // pred_check
    _
  $region11: #{_lambda_.37} parent=0 // pred_check_branch
    %13 = sbr.rel (0) target = $region13
  $region12: #{_lambda_.37} parent=0 // pred_region
    _
  $region13: #{_lambda_.37} parent=0 // pred_fallthru
    _
  %p15 = scmp.eq.s32.totalorder 0, 0
  // Predicated region
  $region14: #{_lambda_.37} parent=0 // pred_check
    %p16 = pneg %p15
  $region15: #{_lambda_.37} parent=0 // pred_check_branch
    %18 = sbr.rel (%p16) target = $region17
  $region16: #{_lambda_.37} parent=0 // pred_region
    %19 = vst [vmem:[#allocation2] sm:$0xff] 0.0
    %20 = vst [vmem:[#allocation2 + $0x8] sm:$0xff] 0.0
  $region17: #{_lambda_.37} parent=0 // pred_fallthru
    _
  %v21 = vld [vmem:[#allocation2] sm:$0xff]
  %v22 = vld [vmem:[#allocation2 + $0x8] sm:$0xff]
  %v23 = vld [vmem:[%s0] sm:$0xff]
  %v24 = vld [vmem:[%s0 + $0x8] sm:$0xff]
  %v25 = vpack.c.bf16 %v24, %v23
  %v26 = vld [vmem:[%s1] sm:$0xf]
  %v27 = vld [vmem:[%s1 + $0x4] sm:$0xf]
  %v28 = vld [vmem:[%s1 + $0x8] sm:$0xf]
  %v29 = vld [vmem:[%s1 + $0xc] sm:$0xf]
  %v30 = vld [vmem:[%s1 + $0x10] sm:$0xf]
  %v31 = vld [vmem:[%s1 + $0x14] sm:$0xf]
  %v32 = vld [vmem:[%s1 + $0x18] sm:$0xf]
  %v33 = vld [vmem:[%s1 + $0x1c] sm:$0xf]
  %v34 = vld [vmem:[%s1 + $0x20] sm:$0xf]
  %v35 = vld [vmem:[%s1 + $0x24] sm:$0xf]
  %v36 = vld [vmem:[%s1 + $0x28] sm:$0xf]
  %v37 = vld [vmem:[%s1 + $0x2c] sm:$0xf]
  %v38 = vld [vmem:[%s1 + $0x30] sm:$0xf]
  %v39 = vld [vmem:[%s1 + $0x34] sm:$0xf]
  %v40 = vld [vmem:[%s1 + $0x38] sm:$0xf]
  %v41 = vld [vmem:[%s1 + $0x3c] sm:$0xf]
  %v58 = vunpack.c.l.b16 %v26
  %v59 = vunpack.c.l.b16 %v27
  %v60 = vunpack.c.l.b16 %v28
  %v61 = vunpack.c.l.b16 %v29
  %v62 = vunpack.c.l.b16 %v30
  %v63 = vunpack.c.l.b16 %v31
  %v64 = vunpack.c.l.b16 %v32
  %v65 = vunpack.c.l.b16 %v33
  %v66 = vunpack.c.l.b16 %v34
  %v67 = vunpack.c.l.b16 %v35
  %v68 = vunpack.c.l.b16 %v36
  %v69 = vunpack.c.l.b16 %v37
  %v70 = vunpack.c.l.b16 %v38
  %v71 = vunpack.c.l.b16 %v39
  %v72 = vunpack.c.l.b16 %v40
  %v73 = vunpack.c.l.b16 %v41
  %v74 = vpack.c.b16 %v59, %v58
  %v75 = vpack.c.b16 %v61, %v60
  %v76 = vpack.c.b16 %v63, %v62
  %v77 = vpack.c.b16 %v65, %v64
  %v78 = vpack.c.b16 %v67, %v66
  %v79 = vpack.c.b16 %v69, %v68
  %v80 = vpack.c.b16 %v71, %v70
  %v81 = vpack.c.b16 %v73, %v72
  %90 = vmatprep.subr.bf16.mxu0 0
  %91 = vmatpush1.bf16.msra.mxu0 %v81
  %92 = vmatprep.subr.bf16.mxu0 0
  %93 = vmatpush1.bf16.msra.mxu0 %v80
  %94 = vmatprep.subr.bf16.mxu0 0
  %95 = vmatpush1.bf16.msra.mxu0 %v79
  %96 = vmatprep.subr.bf16.mxu0 0
  %97 = vmatpush1.bf16.msra.mxu0 %v78
  %98 = vmatprep.subr.bf16.mxu0 0
  %99 = vmatpush1.bf16.msra.mxu0 %v77
  %100 = vmatprep.subr.bf16.mxu0 0
  %101 = vmatpush1.bf16.msra.mxu0 %v76
  %102 = vmatprep.subr.bf16.mxu0 0
  %103 = vmatpush1.bf16.msra.mxu0 %v75
  %104 = vmatprep.subr.bf16.mxu0 0
  %105 = vmatpush1.bf16.msra.mxu0 %v74
  %106 = vmatprep.subr.bf16.mxu0 0
  %107 = vmatpush2.bf16.msra.mxu0 0
  %108 = vmatprep.subr.bf16.mxu0 0
  %109 = vmatpush2.bf16.msra.mxu0 0
  %110 = vmatprep.subr.bf16.mxu0 0
  %111 = vmatpush2.bf16.msra.mxu0 0
  %112 = vmatprep.subr.bf16.mxu0 0
  %113 = vmatpush2.bf16.msra.mxu0 0
  %114 = vmatprep.subr.bf16.mxu0 0
  %115 = vmatpush2.bf16.msra.mxu0 0
  %116 = vmatprep.subr.bf16.mxu0 0
  %117 = vmatpush2.bf16.msra.mxu0 0
  %118 = vmatprep.subr.bf16.mxu0 0
  %119 = vmatpush2.bf16.msra.mxu0 0
  %120 = vmatprep.subr.bf16.mxu0 0
  %121 = vmatpush2.bf16.msra.mxu0 0
  %122 = vmatprep.mubr.bf16.mxu0 0
  %123 = vmatmul.mubr.bf16.gmra.mxu0 %v25
  %v124 = vpop.f32.mrf.mxu0
  %v125 = vadd.f32 0.0, %v124
  %v126 = vpop.f32.mrf.mxu0
  %v127 = vpop.f32.mrf.mxu0
  %v128 = vadd.f32 0.0, %v127
  %v129 = vpop.f32.mrf.mxu0
  %130 = vdwg.mxu0
  %v131 = vadd.f32 %v21, %v125
  %v132 = vadd.f32 %v22, %v128
  %133 = vst [vmem:[#allocation2] sm:$0xff] %v131
  %134 = vst [vmem:[#allocation2 + $0x8] sm:$0xff] %v132
  // Predicated region
  $region18: #{_lambda_.37} parent=0 // pred_check
    %p135 = pneg %p15
  $region19: #{_lambda_.37} parent=0 // pred_check_branch
    %137 = sbr.rel (%p135) target = $region21
  $region20: #{_lambda_.37} parent=0 // pred_region
    %v138 = vld [vmem:[#allocation2] sm:$0xff]
    %v139 = vld [vmem:[#allocation2 + $0x8] sm:$0xff]
    %v140 = vld [vmem:[%s2] sm:$0x1]
    %v142 = vlaneseq
    %v143 = vshrl.u32 %v142, 7
    %v144 = vsub.s32 0, %v143
    %v145 = vrot.slane %v140, %v144
    %v147 = vadd.f32 %v138, %v145
    %v148 = vadd.f32 %v139, %v145
    %v149 = vmul.f32 %v147, 0.5
    %v150 = vmul.f32 %v148, 0.5
    %v151 = vmul.f32 %v147, 0.044715
    %v152 = vmul.f32 %v148, 0.044715
    %v153 = vmul.f32 %v151, %v147
    %v154 = vmul.f32 %v152, %v148
    %v155 = vmul.f32 %v153, %v147
    %v156 = vmul.f32 %v154, %v148
    %v157 = vadd.f32 %v147, %v155
    %v158 = vadd.f32 %v148, %v156
    %v159 = vmul.f32 %v157, 0.7978846
    %v160 = vmul.f32 %v158, 0.7978846
    %v161 = vtanh.pop %v159
    %v162 = vtanh.pop %v160
    %v163 = vadd.f32 %v161, 1.0
    %v164 = vadd.f32 %v162, 1.0
    %v165 = vmul.f32 %v149, %v163
    %v166 = vmul.f32 %v150, %v164
    %167 = vst [vmem:[%s3] sm:$0xff] %v165
    %168 = vst [vmem:[%s3 + $0x8] sm:$0xff] %v166
  $region21: #{_lambda_.37} parent=0 // pred_fallthru
    _
  // Predicated region
  $region22: #{_lambda_.37} parent=0 // pred_check
    _
  $region23: #{_lambda_.37} parent=0 // pred_check_branch
    %170 = sbr.rel (0) target = $region25
  $region24: #{_lambda_.37} parent=0 // pred_region
    _
  $region25: #{_lambda_.37} parent=0 // pred_fallthru
    _
  // Predicated region
  $region26: #{_lambda_.37} parent=0 // pred_check
    _
  $region27: #{_lambda_.37} parent=0 // pred_check_branch
    %172 = sbr.rel (0) target = $region29
  $region28: #{_lambda_.37} parent=0 // pred_region
    _
  $region29: #{_lambda_.37} parent=0 // pred_fallthru
    _

// kernel: _lambda_.35
$region0: #{_lambda_.35}
  #allocation0 [shape = 'u32[]', space=smem, size = 0x4, offset = 0x4, fixed_abs, tag = 'smem constant byte address 0x4 - core index']
  #allocation1 [shape = 'u32[144,128]{1,0:T(1,128)}', space=vmem, size = 0x12000, scoped, tag = 'internal scratch']
  #allocation2 [shape = 'f32[128,128]{1,0:T(8,128)}', space=vmem, size = 0x10000, scoped, tag = 'scratch operand']
  %s0 = inlined_call_operand.vmem [shape: f32[2,8,128], index: 0, kind: input, shape index: {}]
  %s1 = inlined_call_operand.vmem [shape: f32[2,8,128], index: 1, kind: input, shape index: {}]
  %s2 = inlined_call_operand.vmem [shape: f32[2,8,256], index: 2, kind: input, shape index: {}]
  %s3 = inlined_call_operand.vmem [shape: f32[2,8,256], index: 3, kind: input, shape index: {}, may-alias: {3,4}]
  %s4 = inlined_call_operand.vmem [shape: f32[2,8,256], index: 4, kind: input, shape index: {}, may-alias: {3,4}]
  %s5 = inlined_call_operand.vmem [shape: f32[128,128], index: 5, kind: input, shape index: {}]
  %s6 = inlined_call_operand.vmem [shape: f32[1,128], index: 6, kind: input, shape index: {}]
  %s7 = inlined_call_operand.vmem [shape: f32[2,8,128], index: 7, kind: input, shape index: {}]
  %s8 = inlined_call_operand.vmem [shape: f32[2,8,128], index: 8, kind: output, shape index: {}]
  %s9 = sld [smem:[#allocation0]]
  $region69: #{_lambda_.35} parent=0
    _
  %s11 = ssub.s32 1, %s9
  %s12 = scalar_select 0, %s11, %s9
  loop: start=0, step=1, limit=4
  $region2: #{_lambda_.35} parent=0 // loop_pre_header
    _
  $region3: #{_lambda_.35} parent=0 // loop_header
    %s14 = sphi 0, %s18
    %p15 = scmp.ge.s32.totalorder %s14, 4
    %s21 = sphi 0, %s40
    %s22 = sphi 0, %s36
    %s23 = sphi 0, %s32
    %s24 = sphi 0, %s21
    %s25 = sphi 0, %s22
    %s26 = sphi 0, %s23
    %s27 = sphi 0, %s24
    %s28 = sphi 0, %s25
    %s29 = sphi 0, %s26
    %s49 = sphi 0, %s51
    %s52 = sphi 0, %s49
    %s53 = sphi 0, %s52
    %s69 = sphi 0, %s53
    %s81 = sphi 0, %s83
    %s84 = sphi 0, %s81
    %s85 = sphi 0, %s84
    %s101 = sphi 0, %s85
    %s115 = sphi 0, %s117
    %s118 = sphi 0, %s115
    %s119 = sphi 0, %s118
    %s135 = sphi 0, %s119
    %s145 = sphi 0, %s147
    %s148 = sphi 0, %s145
    %s149 = sphi 0, %s148
    %s165 = sphi 0, %s149
    %s175 = sphi 0, %s177
    %s178 = sphi 0, %s175
    %s179 = sphi 0, %s178
    %s195 = sphi 0, %s179
    %s201 = sphi 0, %s203
    %s204 = sphi 0, %s201
    %s205 = sphi 0, %s204
    %s221 = sphi 0, %s205
    %s227 = sphi 0, %s229
    %s230 = sphi 0, %s227
    %s231 = sphi 0, %s230
    %s247 = sphi 0, %s231
    %s259 = sphi 0, %s261
    %s262 = sphi 0, %s259
    %s263 = sphi 0, %s262
    %s279 = sphi 0, %s263
    %s291 = sphi 0, %s293
    %s294 = sphi 0, %s291
    %s295 = sphi 0, %s294
    %s311 = sphi 0, %s295
  $region4: #{_lambda_.35} parent=0 // loop_header_branch
    %17 = sbr.rel (%p15) target = $region8
  $region5: #{_lambda_.35} parent=0 // loop_body
    %s19 = ssub.s32 %s14, 1
    %s20 = ssub.s32 %s14, 2
    %s30 = sadd.s32 1, %s23
    %p31 = scmp.ge.s32.totalorder %s30, 1
    %s32 = scalar_select %p31, 0, %s30
    %s33 = sadd.s32 1, %s22
    %s34 = scalar_select %p31, %s33, %s22
    %p35 = scmp.ge.s32.totalorder %s34, 1
    %s36 = scalar_select %p35, 0, %s34
    %s37 = sadd.s32 1, %s21
    %s38 = scalar_select %p35, %s37, %s21
    %p39 = scmp.ge.s32.totalorder %s38, 2
    %s40 = scalar_select %p39, 0, %s38
    %s41 = ssub.s32 0, %s23
    %s42 = ssub.s32 0, %s32
    %s43 = ssub.s32 %s21, %s40
    %s44 = ssub.s32 %s41, %s42
    %s45 = sor.u32 %s43, %s44
    %s46 = ssub.s32 %s22, %s36
    %s47 = sor.u32 %s45, %s46
    %p48 = scmp.eq.s32.totalorder %s47, 0
    %s50 = sadd.s32 %s49, 1
    %s51 = scalar_select %p48, %s49, %s50
    %p54 = pneg %p48
    %p55 = scmp.eq.s32.totalorder %s14, 1
    %p56 = por %p54, %p55
    %p57 = scmp.ne.s32.totalorder %s49, %s52
    %p58 = scmp.eq.s32.totalorder %s14, 0
    %p59 = por %p57, %p58
    %p60 = scmp.ne.s32.totalorder %s49, %s52
    %p61 = scmp.eq.s32.totalorder %s19, 1
    %p62 = por %p60, %p61
    %p63 = scmp.ne.s32.totalorder %s52, %s53
    %p64 = scmp.eq.s32.totalorder %s19, 0
    %p65 = por %p63, %p64
    %p66 = scmp.ne.s32.totalorder %s52, %s53
    %p67 = scmp.eq.s32.totalorder %s20, 1
    %p68 = por %p66, %p67
    %p70 = scmp.ne.s32.totalorder %s53, %s69
    %p71 = scmp.eq.s32.totalorder %s20, 0
    %p72 = por %p70, %p71
    %s73 = ssub.s32 0, %s23
    %s74 = ssub.s32 0, %s32
    %s75 = ssub.s32 %s21, %s40
    %s76 = ssub.s32 %s73, %s74
    %s77 = sor.u32 %s75, %s76
    %s78 = ssub.s32 %s22, %s36
    %s79 = sor.u32 %s77, %s78
    %p80 = scmp.eq.s32.totalorder %s79, 0
    %s82 = sadd.s32 %s81, 1
    %s83 = scalar_select %p80, %s81, %s82
    %p86 = pneg %p80
    %p87 = scmp.eq.s32.totalorder %s14, 1
    %p88 = por %p86, %p87
    %p89 = scmp.ne.s32.totalorder %s81, %s84
    %p90 = scmp.eq.s32.totalorder %s14, 0
    %p91 = por %p89, %p90
    %p92 = scmp.ne.s32.totalorder %s81, %s84
    %p93 = scmp.eq.s32.totalorder %s19, 1
    %p94 = por %p92, %p93
    %p95 = scmp.ne.s32.totalorder %s84, %s85
    %p96 = scmp.eq.s32.totalorder %s19, 0
    %p97 = por %p95, %p96
    %p98 = scmp.ne.s32.totalorder %s84, %s85
    %p99 = scmp.eq.s32.totalorder %s20, 1
    %p100 = por %p98, %p99
    %p102 = scmp.ne.s32.totalorder %s85, %s101
    %p103 = scmp.eq.s32.totalorder %s20, 0
    %p104 = por %p102, %p103
    %s105 = ssub.s32 0, %s23
    %s106 = sadd.s32 %s22, 1
    %s107 = ssub.s32 0, %s32
    %s108 = sadd.s32 %s36, 1
    %s109 = ssub.s32 %s21, %s40
    %s110 = ssub.s32 %s105, %s107
    %s111 = sor.u32 %s109, %s110
    %s112 = ssub.s32 %s106, %s108
    %s113 = sor.u32 %s111, %s112
    %p114 = scmp.eq.s32.totalorder %s113, 0
    %s116 = sadd.s32 %s115, 1
    %s117 = scalar_select %p114, %s115, %s116
    %p120 = pneg %p114
    %p121 = scmp.eq.s32.totalorder %s14, 1
    %p122 = por %p120, %p121
    %p123 = scmp.ne.s32.totalorder %s115, %s118
    %p124 = scmp.eq.s32.totalorder %s14, 0
    %p125 = por %p123, %p124
    %p126 = scmp.ne.s32.totalorder %s115, %s118
    %p127 = scmp.eq.s32.totalorder %s19, 1
    %p128 = por %p126, %p127
    %p129 = scmp.ne.s32.totalorder %s118, %s119
    %p130 = scmp.eq.s32.totalorder %s19, 0
    %p131 = por %p129, %p130
    %p132 = scmp.ne.s32.totalorder %s118, %s119
    %p133 = scmp.eq.s32.totalorder %s20, 1
    %p134 = por %p132, %p133
    %p136 = scmp.ne.s32.totalorder %s119, %s135
    %p137 = scmp.eq.s32.totalorder %s20, 0
    %p138 = por %p136, %p137
    %s139 = ssub.s32 0, %s23
    %s140 = ssub.s32 0, %s32
    %s141 = ssub.s32 %s21, %s40
    %s142 = ssub.s32 %s139, %s140
    %s143 = sor.u32 %s141, %s142
    %p144 = scmp.eq.s32.totalorder %s143, 0
    %s146 = sadd.s32 %s145, 1
    %s147 = scalar_select %p144, %s145, %s146
    %p150 = pneg %p144
    %p151 = scmp.eq.s32.totalorder %s14, 1
    %p152 = por %p150, %p151
    %p153 = scmp.ne.s32.totalorder %s145, %s148
    %p154 = scmp.eq.s32.totalorder %s14, 0
    %p155 = por %p153, %p154
    %p156 = scmp.ne.s32.totalorder %s145, %s148
    %p157 = scmp.eq.s32.totalorder %s19, 1
    %p158 = por %p156, %p157
    %p159 = scmp.ne.s32.totalorder %s148, %s149
    %p160 = scmp.eq.s32.totalorder %s19, 0
    %p161 = por %p159, %p160
    %p162 = scmp.ne.s32.totalorder %s148, %s149
    %p163 = scmp.eq.s32.totalorder %s20, 1
    %p164 = por %p162, %p163
    %p166 = scmp.ne.s32.totalorder %s149, %s165
    %p167 = scmp.eq.s32.totalorder %s20, 0
    %p168 = por %p166, %p167
    %s169 = ssub.s32 0, %s23
    %s170 = ssub.s32 0, %s32
    %s171 = ssub.s32 %s21, %s40
    %s172 = ssub.s32 %s169, %s170
    %s173 = sor.u32 %s171, %s172
    %p174 = scmp.eq.s32.totalorder %s173, 0
    %s176 = sadd.s32 %s175, 1
    %s177 = scalar_select %p174, %s175, %s176
    %p180 = pneg %p174
    %p181 = scmp.eq.s32.totalorder %s14, 1
    %p182 = por %p180, %p181
    %p183 = scmp.ne.s32.totalorder %s175, %s178
    %p184 = scmp.eq.s32.totalorder %s14, 0
    %p185 = por %p183, %p184
    %p186 = scmp.ne.s32.totalorder %s175, %s178
    %p187 = scmp.eq.s32.totalorder %s19, 1
    %p188 = por %p186, %p187
    %p189 = scmp.ne.s32.totalorder %s178, %s179
    %p190 = scmp.eq.s32.totalorder %s19, 0
    %p191 = por %p189, %p190
    %p192 = scmp.ne.s32.totalorder %s178, %s179
    %p193 = scmp.eq.s32.totalorder %s20, 1
    %p194 = por %p192, %p193
    %p196 = scmp.ne.s32.totalorder %s179, %s195
    %p197 = scmp.eq.s32.totalorder %s20, 0
    %p198 = por %p196, %p197
    %s199 = ssub.s32 %s22, %s36
    %p200 = scmp.eq.s32.totalorder %s199, 0
    %s202 = sadd.s32 %s201, 1
    %s203 = scalar_select %p200, %s201, %s202
    %p206 = pneg %p200
    %p207 = scmp.eq.s32.totalorder %s14, 1
    %p208 = por %p206, %p207
    %p209 = scmp.ne.s32.totalorder %s201, %s204
    %p210 = scmp.eq.s32.totalorder %s14, 0
    %p211 = por %p209, %p210
    %p212 = scmp.ne.s32.totalorder %s201, %s204
    %p213 = scmp.eq.s32.totalorder %s19, 1
    %p214 = por %p212, %p213
    %p215 = scmp.ne.s32.totalorder %s204, %s205
    %p216 = scmp.eq.s32.totalorder %s19, 0
    %p217 = por %p215, %p216
    %p218 = scmp.ne.s32.totalorder %s204, %s205
    %p219 = scmp.eq.s32.totalorder %s20, 1
    %p220 = por %p218, %p219
    %p222 = scmp.ne.s32.totalorder %s205, %s221
    %p223 = scmp.eq.s32.totalorder %s20, 0
    %p224 = por %p222, %p223
    %s225 = ssub.s32 %s22, %s36
    %p226 = scmp.eq.s32.totalorder %s225, 0
    %s228 = sadd.s32 %s227, 1
    %s229 = scalar_select %p226, %s227, %s228
    %p232 = pneg %p226
    %p233 = scmp.eq.s32.totalorder %s14, 1
    %p234 = por %p232, %p233
    %p235 = scmp.ne.s32.totalorder %s227, %s230
    %p236 = scmp.eq.s32.totalorder %s14, 0
    %p237 = por %p235, %p236
    %p238 = scmp.ne.s32.totalorder %s227, %s230
    %p239 = scmp.eq.s32.totalorder %s19, 1
    %p240 = por %p238, %p239
    %p241 = scmp.ne.s32.totalorder %s230, %s231
    %p242 = scmp.eq.s32.totalorder %s19, 0
    %p243 = por %p241, %p242
    %p244 = scmp.ne.s32.totalorder %s230, %s231
    %p245 = scmp.eq.s32.totalorder %s20, 1
    %p246 = por %p244, %p245
    %p248 = scmp.ne.s32.totalorder %s231, %s247
    %p249 = scmp.eq.s32.totalorder %s20, 0
    %p250 = por %p248, %p249
    %s251 = ssub.s32 0, %s23
    %s252 = ssub.s32 0, %s32
    %s253 = ssub.s32 %s21, %s40
    %s254 = ssub.s32 %s251, %s252
    %s255 = sor.u32 %s253, %s254
    %s256 = ssub.s32 %s22, %s36
    %s257 = sor.u32 %s255, %s256
    %p258 = scmp.eq.s32.totalorder %s257, 0
    %s260 = sadd.s32 %s259, 1
    %s261 = scalar_select %p258, %s259, %s260
    %p264 = pneg %p258
    %p265 = scmp.eq.s32.totalorder %s14, 1
    %p266 = por %p264, %p265
    %p267 = scmp.ne.s32.totalorder %s259, %s262
    %p268 = scmp.eq.s32.totalorder %s14, 0
    %p269 = por %p267, %p268
    %p270 = scmp.ne.s32.totalorder %s259, %s262
    %p271 = scmp.eq.s32.totalorder %s19, 1
    %p272 = por %p270, %p271
    %p273 = scmp.ne.s32.totalorder %s262, %s263
    %p274 = scmp.eq.s32.totalorder %s19, 0
    %p275 = por %p273, %p274
    %p276 = scmp.ne.s32.totalorder %s262, %s263
    %p277 = scmp.eq.s32.totalorder %s20, 1
    %p278 = por %p276, %p277
    %p280 = scmp.ne.s32.totalorder %s263, %s279
    %p281 = scmp.eq.s32.totalorder %s20, 0
    %p282 = por %p280, %p281
    %s283 = ssub.s32 0, %s23
    %s284 = ssub.s32 0, %s32
    %s285 = ssub.s32 %s21, %s40
    %s286 = ssub.s32 %s283, %s284
    %s287 = sor.u32 %s285, %s286
    %s288 = ssub.s32 %s22, %s36
    %s289 = sor.u32 %s287, %s288
    %p290 = scmp.eq.s32.totalorder %s289, 0
    %s292 = sadd.s32 %s291, 1
    %s293 = scalar_select %p290, %s291, %s292
    %p296 = pneg %p290
    %p297 = scmp.eq.s32.totalorder %s14, 1
    %p298 = por %p296, %p297
    %p299 = scmp.ne.s32.totalorder %s291, %s294
    %p300 = scmp.eq.s32.totalorder %s14, 0
    %p301 = por %p299, %p300
    %p302 = scmp.ne.s32.totalorder %s291, %s294
    %p303 = scmp.eq.s32.totalorder %s19, 1
    %p304 = por %p302, %p303
    %p305 = scmp.ne.s32.totalorder %s294, %s295
    %p306 = scmp.eq.s32.totalorder %s19, 0
    %p307 = por %p305, %p306
    %p308 = scmp.ne.s32.totalorder %s294, %s295
    %p309 = scmp.eq.s32.totalorder %s20, 1
    %p310 = por %p308, %p309
    %p312 = scmp.ne.s32.totalorder %s295, %s311
    %p313 = scmp.eq.s32.totalorder %s20, 0
    %p314 = por %p312, %p313
    %p315 = scmp.le.s32.totalorder 1, %s14
    %p316 = scmp.lt.s32.totalorder %s14, 3
    %p317 = pnand %p315, %p316
    %p318 = pneg %p317
    // Predicated region
    $region9: #{_lambda_.35} parent=5 // pred_check
      _
    $region10: #{_lambda_.35} parent=5 // pred_check_branch
      %320 = sbr.rel (%p317) target = $region12
    $region11: #{_lambda_.35} parent=5 // pred_region
      %s321 = ssub.s32 %s14, 1
      // Predicated region
      $region13: #{_lambda_.35} parent=11 // pred_check
        %p322 = pneg %p217
      $region14: #{_lambda_.35} parent=11 // pred_check_branch
        %324 = sbr.rel (%p322) target = $region16
      $region15: #{_lambda_.35} parent=11 // pred_region
        %p325 = scmp.lt.s32.totalorder %s25, 0
        %s326 = scalar_select %p325, %s25, 0
        %s327 = smul.addr %s326, 8
        %s328 = scalar_lea.vmem %s5, %s327
      $region16: #{_lambda_.35} parent=11 // pred_fallthru
        _
      // Predicated region
      $region17: #{_lambda_.35} parent=11 // pred_check
        %p329 = pneg %p243
      $region18: #{_lambda_.35} parent=11 // pred_check_branch
        %331 = sbr.rel (%p329) target = $region20
      $region19: #{_lambda_.35} parent=11 // pred_region
        %p332 = scmp.lt.s32.totalorder %s25, 0
        %s333 = scalar_select %p332, %s25, 0
        %s334 = scalar_lea.vmem %s6, %s333
      $region20: #{_lambda_.35} parent=11 // pred_fallthru
        _
    $region12: #{_lambda_.35} parent=5 // pred_fallthru
      _
    %p335 = scmp.lt.s32.totalorder %s14, 2
    // Predicated region
    $region21: #{_lambda_.35} parent=5 // pred_check
      %p336 = pneg %p335
    $region22: #{_lambda_.35} parent=5 // pred_check_branch
      %338 = sbr.rel (%p336) target = $region24
    $region23: #{_lambda_.35} parent=5 // pred_region
      // Predicated region
      $region25: #{_lambda_.35} parent=23 // pred_check
        %p339 = pneg %p59
      $region26: #{_lambda_.35} parent=23 // pred_check_branch
        %341 = sbr.rel (%p339) target = $region28
      $region27: #{_lambda_.35} parent=23 // pred_region
        %s342 = ssub.s32 0, %s23
        %p343 = scmp.lt.s32.totalorder %s21, 1
        %s344 = scalar_select %p343, %s21, 1
        %p345 = scmp.lt.s32.totalorder %s342, 0
        %s346 = scalar_select %p345, %s342, 0
        %p347 = scmp.lt.s32.totalorder %s22, 0
        %s348 = scalar_select %p347, %s22, 0
        %s349 = sadd.s32 %s348, %s346
        %s350 = sadd.s32 %s349, %s344
        %s351 = smul.addr %s350, 8
        %s352 = scalar_lea.vmem %s0, %s351
        %s353 = ssub.s32 0, %s23
      $region28: #{_lambda_.35} parent=23 // pred_fallthru
        _
      // Predicated region
      $region29: #{_lambda_.35} parent=23 // pred_check
        %p354 = pneg %p91
      $region30: #{_lambda_.35} parent=23 // pred_check_branch
        %356 = sbr.rel (%p354) target = $region32
      $region31: #{_lambda_.35} parent=23 // pred_region
        %s357 = ssub.s32 0, %s23
        %p358 = scmp.lt.s32.totalorder %s21, 1
        %s359 = scalar_select %p358, %s21, 1
        %p360 = scmp.lt.s32.totalorder %s357, 0
        %s361 = scalar_select %p360, %s357, 0
        %p362 = scmp.lt.s32.totalorder %s22, 0
        %s363 = scalar_select %p362, %s22, 0
        %s364 = sadd.s32 %s363, %s361
        %s365 = sadd.s32 %s364, %s359
        %s366 = smul.addr %s365, 8
        %s367 = scalar_lea.vmem %s1, %s366
        %s368 = ssub.s32 0, %s23
      $region32: #{_lambda_.35} parent=23 // pred_fallthru
        _
      // Predicated region
      $region33: #{_lambda_.35} parent=23 // pred_check
        %p369 = pneg %p125
      $region34: #{_lambda_.35} parent=23 // pred_check_branch
        %371 = sbr.rel (%p369) target = $region36
      $region35: #{_lambda_.35} parent=23 // pred_region
        %s372 = ssub.s32 0, %s23
        %s373 = sadd.s32 %s22, 1
        %p374 = scmp.lt.s32.totalorder %s21, 1
        %s375 = scalar_select %p374, %s21, 1
        %p376 = scmp.lt.s32.totalorder %s372, 0
        %s377 = scalar_select %p376, %s372, 0
        %p378 = scmp.lt.s32.totalorder %s373, 1
        %s379 = scalar_select %p378, %s373, 1
        %s380 = smul.addr %s377, 2
        %s381 = sadd.s32 %s379, %s380
        %s382 = smul.addr %s375, 2
        %s383 = sadd.s32 %s381, %s382
        %s384 = smul.addr %s383, 8
        %s385 = scalar_lea.vmem %s2, %s384
        %s386 = ssub.s32 0, %s23
        %s387 = sadd.s32 %s22, 1
      $region36: #{_lambda_.35} parent=23 // pred_fallthru
        _
      // Predicated region
      $region37: #{_lambda_.35} parent=23 // pred_check
        %p388 = pneg %p155
      $region38: #{_lambda_.35} parent=23 // pred_check_branch
        %390 = sbr.rel (%p388) target = $region40
      $region39: #{_lambda_.35} parent=23 // pred_region
        %s391 = ssub.s32 0, %s23
        %p392 = scmp.lt.s32.totalorder %s21, 1
        %s393 = scalar_select %p392, %s21, 1
        %p394 = scmp.lt.s32.totalorder %s391, 0
        %s395 = scalar_select %p394, %s391, 0
        %s396 = smul.addr %s395, 2
        %s397 = smul.addr %s393, 2
        %s398 = sadd.s32 %s396, %s397
        %s399 = smul.addr %s398, 8
        %s400 = scalar_lea.vmem %s3, %s399
        %s401 = ssub.s32 0, %s23
      $region40: #{_lambda_.35} parent=23 // pred_fallthru
        _
      // Predicated region
      $region41: #{_lambda_.35} parent=23 // pred_check
        %p402 = pneg %p185
      $region42: #{_lambda_.35} parent=23 // pred_check_branch
        %404 = sbr.rel (%p402) target = $region44
      $region43: #{_lambda_.35} parent=23 // pred_region
        %s405 = ssub.s32 0, %s23
        %p406 = scmp.lt.s32.totalorder %s21, 1
        %s407 = scalar_select %p406, %s21, 1
        %p408 = scmp.lt.s32.totalorder %s405, 0
        %s409 = scalar_select %p408, %s405, 0
        %s410 = smul.addr %s409, 2
        %s411 = sadd.s32 1, %s410
        %s412 = smul.addr %s407, 2
        %s413 = sadd.s32 %s411, %s412
        %s414 = smul.addr %s413, 8
        %s415 = scalar_lea.vmem %s4, %s414
        %s416 = ssub.s32 0, %s23
      $region44: #{_lambda_.35} parent=23 // pred_fallthru
        _
      // Predicated region
      $region45: #{_lambda_.35} parent=23 // pred_check
        %p417 = pneg %p269
      $region46: #{_lambda_.35} parent=23 // pred_check_branch
        %419 = sbr.rel (%p417) target = $region48
      $region47: #{_lambda_.35} parent=23 // pred_region
        %s420 = ssub.s32 0, %s23
        %p421 = scmp.lt.s32.totalorder %s21, 1
        %s422 = scalar_select %p421, %s21, 1
        %p423 = scmp.lt.s32.totalorder %s420, 0
        %s424 = scalar_select %p423, %s420, 0
        %p425 = scmp.lt.s32.totalorder %s22, 0
        %s426 = scalar_select %p425, %s22, 0
        %s427 = sadd.s32 %s426, %s424
        %s428 = sadd.s32 %s427, %s422
        %s429 = smul.addr %s428, 8
        %s430 = scalar_lea.vmem %s7, %s429
        %s431 = ssub.s32 0, %s23
      $region48: #{_lambda_.35} parent=23 // pred_fallthru
        _
    $region24: #{_lambda_.35} parent=5 // pred_fallthru
      _
    %p432 = scmp.le.s32.totalorder 1, %s14
    %p433 = scmp.lt.s32.totalorder %s14, 3
    %p434 = pnand %p432, %p433
    %p435 = pneg %p434
    // Predicated region
    $region49: #{_lambda_.35} parent=5 // pred_check
      _
    $region50: #{_lambda_.35} parent=5 // pred_check_branch
      %437 = sbr.rel (%p434) target = $region52
    $region51: #{_lambda_.35} parent=5 // pred_region
      %s438 = ssub.s32 %s14, 1
      %s439 = ssub.s32 0, %s26
      %p440 = scmp.lt.s32.totalorder %s24, 1
      %s441 = scalar_select %p440, %s24, 1
      %p442 = scmp.lt.s32.totalorder %s439, 0
      %s443 = scalar_select %p442, %s439, 0
      %p444 = scmp.lt.s32.totalorder %s25, 0
      %s445 = scalar_select %p444, %s25, 0
      %s446 = sadd.s32 %s445, %s443
      %s447 = sadd.s32 %s446, %s441
      %s448 = smul.addr %s447, 8
      %s449 = scalar_lea.vmem %s0, %s448
      %p450 = pneg %p65
      %p451 = pneg %p62
      %s452 = ssub.s32 0, %s26
      %p453 = scmp.lt.s32.totalorder %s24, 1
      %s454 = scalar_select %p453, %s24, 1
      %p455 = scmp.lt.s32.totalorder %s452, 0
      %s456 = scalar_select %p455, %s452, 0
      %p457 = scmp.lt.s32.totalorder %s25, 0
      %s458 = scalar_select %p457, %s25, 0
      %s459 = sadd.s32 %s458, %s456
      %s460 = sadd.s32 %s459, %s454
      %s461 = smul.addr %s460, 8
      %s462 = scalar_lea.vmem %s1, %s461
      %p463 = pneg %p97
      %p464 = pneg %p94
      %s465 = ssub.s32 0, %s26
      %s466 = sadd.s32 %s25, 1
      %p467 = scmp.lt.s32.totalorder %s24, 1
      %s468 = scalar_select %p467, %s24, 1
      %p469 = scmp.lt.s32.totalorder %s465, 0
      %s470 = scalar_select %p469, %s465, 0
      %p471 = scmp.lt.s32.totalorder %s466, 1
      %s472 = scalar_select %p471, %s466, 1
      %s473 = smul.addr %s470, 2
      %s474 = sadd.s32 %s472, %s473
      %s475 = smul.addr %s468, 2
      %s476 = sadd.s32 %s474, %s475
      %s477 = smul.addr %s476, 8
      %s478 = scalar_lea.vmem %s2, %s477
      %p479 = pneg %p131
      %p480 = pneg %p128
      %s481 = ssub.s32 0, %s26
      %p482 = scmp.lt.s32.totalorder %s24, 1
      %s483 = scalar_select %p482, %s24, 1
      %p484 = scmp.lt.s32.totalorder %s481, 0
      %s485 = scalar_select %p484, %s481, 0
      %s486 = smul.addr %s485, 2
      %s487 = smul.addr %s483, 2
      %s488 = sadd.s32 %s486, %s487
      %s489 = smul.addr %s488, 8
      %s490 = scalar_lea.vmem %s3, %s489
      %p491 = pneg %p161
      %p492 = pneg %p158
      %s493 = ssub.s32 0, %s26
      %p494 = scmp.lt.s32.totalorder %s24, 1
      %s495 = scalar_select %p494, %s24, 1
      %p496 = scmp.lt.s32.totalorder %s493, 0
      %s497 = scalar_select %p496, %s493, 0
      %s498 = smul.addr %s497, 2
      %s499 = sadd.s32 1, %s498
      %s500 = smul.addr %s495, 2
      %s501 = sadd.s32 %s499, %s500
      %s502 = smul.addr %s501, 8
      %s503 = scalar_lea.vmem %s4, %s502
      %p504 = pneg %p191
      %p505 = pneg %p188
      %p506 = scmp.lt.s32.totalorder %s25, 0
      %s507 = scalar_select %p506, %s25, 0
      %s508 = smul.addr %s507, 8
      %s509 = scalar_lea.vmem %s5, %s508
      %p510 = pneg %p217
      %p511 = pneg %p214
      %p512 = scmp.lt.s32.totalorder %s25, 0
      %s513 = scalar_select %p512, %s25, 0
      %s514 = scalar_lea.vmem %s6, %s513
      %p515 = pneg %p243
      %p516 = pneg %p240
      %s517 = ssub.s32 0, %s26
      %p518 = scmp.lt.s32.totalorder %s24, 1
      %s519 = scalar_select %p518, %s24, 1
      %p520 = scmp.lt.s32.totalorder %s517, 0
      %s521 = scalar_select %p520, %s517, 0
      %p522 = scmp.lt.s32.totalorder %s25, 0
      %s523 = scalar_select %p522, %s25, 0
      %s524 = sadd.s32 %s523, %s521
      %s525 = sadd.s32 %s524, %s519
      %s526 = smul.addr %s525, 8
      %s527 = scalar_lea.vmem %s7, %s526
      %p528 = pneg %p275
      %p529 = pneg %p272
      %p530 = pneg %p307
      %p531 = pneg %p304
      %s532 = ssub.s32 0, %s26
      %p533 = scmp.lt.s32.totalorder %s24, 1
      %s534 = scalar_select %p533, %s24, 1
      %p535 = scmp.lt.s32.totalorder %s532, 0
      %s536 = scalar_select %p535, %s532, 0
      %p537 = scmp.lt.s32.totalorder %s25, 0
      %s538 = scalar_select %p537, %s25, 0
      %s539 = sadd.s32 %s538, %s536
      %s540 = sadd.s32 %s539, %s534
      %s541 = smul.addr %s540, 8
      %s542 = scalar_lea.vmem %s8, %s541
      %s543 = ssub.s32 0, %s26
      %p544 = scmp.lt.s32.totalorder %s24, 1
      %s545 = scalar_select %p544, %s24, 1
      %p546 = scmp.lt.s32.totalorder %s543, 0
      %s547 = scalar_select %p546, %s543, 0
      %p548 = scmp.lt.s32.totalorder %s25, 0
      %s549 = scalar_select %p548, %s25, 0
      %s550 = sadd.s32 %s549, %s547
      %s551 = sadd.s32 %s550, %s545
      %s552 = smul.addr %s551, 8
      %s553 = scalar_lea.vmem %s0, %s552
      %s554 = ssub.s32 0, %s26
      %s555 = ssub.s32 0, %s26
      %p556 = scmp.lt.s32.totalorder %s24, 1
      %s557 = scalar_select %p556, %s24, 1
      %p558 = scmp.lt.s32.totalorder %s555, 0
      %s559 = scalar_select %p558, %s555, 0
      %p560 = scmp.lt.s32.totalorder %s25, 0
      %s561 = scalar_select %p560, %s25, 0
      %s562 = sadd.s32 %s561, %s559
      %s563 = sadd.s32 %s562, %s557
      %s564 = smul.addr %s563, 8
      %s565 = scalar_lea.vmem %s1, %s564
      %s566 = ssub.s32 0, %s26
      %s567 = ssub.s32 0, %s26
      %s568 = sadd.s32 %s25, 1
      %p569 = scmp.lt.s32.totalorder %s24, 1
      %s570 = scalar_select %p569, %s24, 1
      %p571 = scmp.lt.s32.totalorder %s567, 0
      %s572 = scalar_select %p571, %s567, 0
      %p573 = scmp.lt.s32.totalorder %s568, 1
      %s574 = scalar_select %p573, %s568, 1
      %s575 = smul.addr %s572, 2
      %s576 = sadd.s32 %s574, %s575
      %s577 = smul.addr %s570, 2
      %s578 = sadd.s32 %s576, %s577
      %s579 = smul.addr %s578, 8
      %s580 = scalar_lea.vmem %s2, %s579
      %s581 = ssub.s32 0, %s26
      %s582 = sadd.s32 %s25, 1
      %s583 = ssub.s32 0, %s26
      %p584 = scmp.lt.s32.totalorder %s24, 1
      %s585 = scalar_select %p584, %s24, 1
      %p586 = scmp.lt.s32.totalorder %s583, 0
      %s587 = scalar_select %p586, %s583, 0
      %s588 = smul.addr %s587, 2
      %s589 = smul.addr %s585, 2
      %s590 = sadd.s32 %s588, %s589
      %s591 = smul.addr %s590, 8
      %s592 = scalar_lea.vmem %s3, %s591
      %s593 = ssub.s32 0, %s26
      %s594 = ssub.s32 0, %s26
      %p595 = scmp.lt.s32.totalorder %s24, 1
      %s596 = scalar_select %p595, %s24, 1
      %p597 = scmp.lt.s32.totalorder %s594, 0
      %s598 = scalar_select %p597, %s594, 0
      %s599 = smul.addr %s598, 2
      %s600 = sadd.s32 1, %s599
      %s601 = smul.addr %s596, 2
      %s602 = sadd.s32 %s600, %s601
      %s603 = smul.addr %s602, 8
      %s604 = scalar_lea.vmem %s4, %s603
      %s605 = ssub.s32 0, %s26
      %p606 = scmp.lt.s32.totalorder %s25, 0
      %s607 = scalar_select %p606, %s25, 0
      %s608 = smul.addr %s607, 8
      %s609 = scalar_lea.vmem %s5, %s608
      %p610 = scmp.lt.s32.totalorder %s25, 0
      %s611 = scalar_select %p610, %s25, 0
      %s612 = scalar_lea.vmem %s6, %s611
      %s613 = ssub.s32 0, %s26
      %p614 = scmp.lt.s32.totalorder %s24, 1
      %s615 = scalar_select %p614, %s24, 1
      %p616 = scmp.lt.s32.totalorder %s613, 0
      %s617 = scalar_select %p616, %s613, 0
      %p618 = scmp.lt.s32.totalorder %s25, 0
      %s619 = scalar_select %p618, %s25, 0
      %s620 = sadd.s32 %s619, %s617
      %s621 = sadd.s32 %s620, %s615
      %s622 = smul.addr %s621, 8
      %s623 = scalar_lea.vmem %s7, %s622
      %s624 = ssub.s32 0, %s26
      %s625 = ssub.s32 0, %s26
      %p626 = scmp.lt.s32.totalorder %s24, 1
      %s627 = scalar_select %p626, %s24, 1
      %p628 = scmp.lt.s32.totalorder %s625, 0
      %s629 = scalar_select %p628, %s625, 0
      %p630 = scmp.lt.s32.totalorder %s25, 0
      %s631 = scalar_select %p630, %s25, 0
      %s632 = sadd.s32 %s631, %s629
      %s633 = sadd.s32 %s632, %s627
      %s634 = smul.addr %s633, 8
      %s635 = scalar_lea.vmem %s8, %s634
      %s636 = ssub.s32 0, %s26
      %p637 = scmp.eq.s32.totalorder %s26, 0
      // Predicated region
      $region53: #{_lambda_.35} parent=51 // pred_check
        %p638 = pneg %p637
      $region54: #{_lambda_.35} parent=51 // pred_check_branch
        %640 = sbr.rel (%p638) target = $region56
      $region55: #{_lambda_.35} parent=51 // pred_region
        %641 = vst [vmem:[#allocation2] sm:$0xff] 0.0
        %642 = vst [vmem:[#allocation2 + $0x8] sm:$0xff] 0.0
        %643 = vst [vmem:[#allocation2 + $0x10] sm:$0xff] 0.0
        %644 = vst [vmem:[#allocation2 + $0x18] sm:$0xff] 0.0
        %645 = vst [vmem:[#allocation2 + $0x20] sm:$0xff] 0.0
        %646 = vst [vmem:[#allocation2 + $0x28] sm:$0xff] 0.0
        %647 = vst [vmem:[#allocation2 + $0x30] sm:$0xff] 0.0
        %648 = vst [vmem:[#allocation2 + $0x38] sm:$0xff] 0.0
        %649 = vst [vmem:[#allocation2 + $0x40] sm:$0xff] 0.0
        %650 = vst [vmem:[#allocation2 + $0x48] sm:$0xff] 0.0
        %651 = vst [vmem:[#allocation2 + $0x50] sm:$0xff] 0.0
        %652 = vst [vmem:[#allocation2 + $0x58] sm:$0xff] 0.0
        %653 = vst [vmem:[#allocation2 + $0x60] sm:$0xff] 0.0
        %654 = vst [vmem:[#allocation2 + $0x68] sm:$0xff] 0.0
        %655 = vst [vmem:[#allocation2 + $0x70] sm:$0xff] 0.0
        %656 = vst [vmem:[#allocation2 + $0x78] sm:$0xff] 0.0
      $region56: #{_lambda_.35} parent=51 // pred_fallthru
        _
      %v657 = vld [vmem:[%s609] sm:$0xff]
      %v658 = vld [vmem:[%s609 + $0x8] sm:$0xff]
      %v659 = vld [vmem:[%s609 + $0x10] sm:$0xff]
      %v660 = vld [vmem:[%s609 + $0x18] sm:$0xff]
      %v661 = vld [vmem:[%s609 + $0x20] sm:$0xff]
      %v662 = vld [vmem:[%s609 + $0x28] sm:$0xff]
      %v663 = vld [vmem:[%s609 + $0x30] sm:$0xff]
      %v664 = vld [vmem:[%s609 + $0x38] sm:$0xff]
      %v665 = vld [vmem:[%s609 + $0x40] sm:$0xff]
      %v666 = vld [vmem:[%s609 + $0x48] sm:$0xff]
      %v667 = vld [vmem:[%s609 + $0x50] sm:$0xff]
      %v668 = vld [vmem:[%s609 + $0x58] sm:$0xff]
      %v669 = vld [vmem:[%s609 + $0x60] sm:$0xff]
      %v670 = vld [vmem:[%s609 + $0x68] sm:$0xff]
      %v671 = vld [vmem:[%s609 + $0x70] sm:$0xff]
      %v672 = vld [vmem:[%s609 + $0x78] sm:$0xff]
      %v673 = vld [vmem:[%s553] sm:$0xff]
      %v674 = vld [vmem:[%s580] sm:$0xff]
      %v675 = vld [vmem:[%s565] sm:$0xff]
      %v676 = vmax.f32 %v675, 0.0
      %v677 = vand.u32 2147483647, %v675
      %v678 = vsub.f32 0.0, %v677
      %v679 = vmul.f32 %v678, 1.442695
      %v680 = vpow.pop %v679
      %v681 = vadd.f32 %v680, 1.0
      %v682 = vlog2.pop %v681
      %v683 = vmul.f32 %v682, 0.6931472
      %v684 = vadd.f32 %v676, %v683
      %v685 = vld [vmem:[%s592] sm:$0xff]
      %v686 = vld [vmem:[%s604] sm:$0xff]
      %687 = vxpose.xlu0.b32.start [1/16] %v685, 128
      %688 = vxpose.xlu0.b32.cont [2/16] 0.0, 128
      %689 = vxpose.xlu0.b32.cont [3/16] 0.0, 128
      %690 = vxpose.xlu0.b32.cont [4/16] 0.0, 128
      %691 = vxpose.xlu0.b32.cont [5/16] 0.0, 128
      %692 = vxpose.xlu0.b32.cont [6/16] 0.0, 128
      %693 = vxpose.xlu0.b32.cont [7/16] 0.0, 128
      %694 = vxpose.xlu0.b32.cont [8/16] 0.0, 128
      %695 = vxpose.xlu0.b32.cont [9/16] 0.0, 128
      %696 = vxpose.xlu0.b32.cont [10/16] 0.0, 128
      %697 = vxpose.xlu0.b32.cont [11/16] 0.0, 128
      %698 = vxpose.xlu0.b32.cont [12/16] 0.0, 128
      %699 = vxpose.xlu0.b32.cont [13/16] 0.0, 128
      %700 = vxpose.xlu0.b32.cont [14/16] 0.0, 128
      %701 = vxpose.xlu0.b32.cont [15/16] 0.0, 128
      %702 = vxpose.xlu0.b32.end [16/16] 0.0, 128
      %v703 = vpop.trf.xlu0
      %v704 = vpop.trf.xlu0
      %v705 = vpop.trf.xlu0
      %v706 = vpop.trf.xlu0
      %v707 = vpop.trf.xlu0
      %v708 = vpop.trf.xlu0
      %v709 = vpop.trf.xlu0
      %v710 = vpop.trf.xlu0
      %v711 = vpop.trf.xlu0
      %v712 = vpop.trf.xlu0
      %v713 = vpop.trf.xlu0
      %v714 = vpop.trf.xlu0
      %v715 = vpop.trf.xlu0
      %v716 = vpop.trf.xlu0
      %v717 = vpop.trf.xlu0
      %v718 = vpop.trf.xlu0
      %v719 = vmul.f32 %v684, %v673
      %v720 = vld [vmem:[#allocation2] sm:$0xff]
      %v721 = vld [vmem:[#allocation2 + $0x8] sm:$0xff]
      %v722 = vld [vmem:[#allocation2 + $0x10] sm:$0xff]
      %v723 = vld [vmem:[#allocation2 + $0x18] sm:$0xff]
      %v724 = vld [vmem:[#allocation2 + $0x20] sm:$0xff]
      %v725 = vld [vmem:[#allocation2 + $0x28] sm:$0xff]
      %v726 = vld [vmem:[#allocation2 + $0x30] sm:$0xff]
      %v727 = vld [vmem:[#allocation2 + $0x38] sm:$0xff]
      %v728 = vld [vmem:[#allocation2 + $0x40] sm:$0xff]
      %v729 = vld [vmem:[#allocation2 + $0x48] sm:$0xff]
      %v730 = vld [vmem:[#allocation2 + $0x50] sm:$0xff]
      %v731 = vld [vmem:[#allocation2 + $0x58] sm:$0xff]
      %v732 = vld [vmem:[#allocation2 + $0x60] sm:$0xff]
      %v733 = vld [vmem:[#allocation2 + $0x68] sm:$0xff]
      %v734 = vld [vmem:[#allocation2 + $0x70] sm:$0xff]
      %v735 = vld [vmem:[#allocation2 + $0x78] sm:$0xff]
      %v736 = vlaneseq
      %v737 = vshrl.u32 %v736, 7
      %v738 = vsub.s32 7, %v737
      %v739 = vrot.slane %v684, %v738
      %v740 = vmul.f32 %v739, %v657
      %v741 = vmul.f32 %v739, %v658
      %v742 = vmul.f32 %v739, %v659
      %v743 = vmul.f32 %v739, %v660
      %v744 = vmul.f32 %v739, %v661
      %v745 = vmul.f32 %v739, %v662
      %v746 = vmul.f32 %v739, %v663
      %v747 = vmul.f32 %v739, %v664
      %v748 = vmul.f32 %v739, %v665
      %v749 = vmul.f32 %v739, %v666
      %v750 = vmul.f32 %v739, %v667
      %v751 = vmul.f32 %v739, %v668
      %v752 = vmul.f32 %v739, %v669
      %v753 = vmul.f32 %v739, %v670
      %v754 = vmul.f32 %v739, %v671
      %v755 = vmul.f32 %v739, %v672
      %v756 = vmul.f32 %v740, 1.442695
      %v757 = vpow.pop %v756
      %v758 = vmul.f32 %v741, 1.442695
      %v759 = vpow.pop %v758
      %v760 = vmul.f32 %v742, 1.442695
      %v761 = vpow.pop %v760
      %v762 = vmul.f32 %v743, 1.442695
      %v763 = vpow.pop %v762
      %v764 = vmul.f32 %v744, 1.442695
      %v765 = vpow.pop %v764
      %v766 = vmul.f32 %v745, 1.442695
      %v767 = vpow.pop %v766
      %v768 = vmul.f32 %v746, 1.442695
      %v769 = vpow.pop %v768
      %v770 = vmul.f32 %v747, 1.442695
      %v771 = vpow.pop %v770
      %v772 = vmul.f32 %v748, 1.442695
      %v773 = vpow.pop %v772
      %v774 = vmul.f32 %v749, 1.442695
      %v775 = vpow.pop %v774
      %v776 = vmul.f32 %v750, 1.442695
      %v777 = vpow.pop %v776
      %v778 = vmul.f32 %v751, 1.442695
      %v779 = vpow.pop %v778
      %v780 = vmul.f32 %v752, 1.442695
      %v781 = vpow.pop %v780
      %v782 = vmul.f32 %v753, 1.442695
      %v783 = vpow.pop %v782
      %v784 = vmul.f32 %v754, 1.442695
      %v785 = vpow.pop %v784
      %v786 = vmul.f32 %v755, 1.442695
      %v787 = vpow.pop %v786
      %789 = vset.pattern.permute.xlu0 7
      %790 = vperm.xlu0 %789, %v703
      %v791 = vpop.permute.xlu0 %790
      %794 = vset.pattern.permute.xlu0 7
      %795 = vperm.xlu0 %794, %v704
      %v796 = vpop.permute.xlu0 %795
      %799 = vset.pattern.permute.xlu0 7
      %800 = vperm.xlu0 %799, %v705
      %v801 = vpop.permute.xlu0 %800
      %804 = vset.pattern.permute.xlu0 7
      %805 = vperm.xlu0 %804, %v706
      %v806 = vpop.permute.xlu0 %805
      %809 = vset.pattern.permute.xlu0 7
      %810 = vperm.xlu0 %809, %v707
      %v811 = vpop.permute.xlu0 %810
      %814 = vset.pattern.permute.xlu0 7
      %815 = vperm.xlu0 %814, %v708
      %v816 = vpop.permute.xlu0 %815
      %819 = vset.pattern.permute.xlu0 7
      %820 = vperm.xlu0 %819, %v709
      %v821 = vpop.permute.xlu0 %820
      %824 = vset.pattern.permute.xlu0 7
      %825 = vperm.xlu0 %824, %v710
      %v826 = vpop.permute.xlu0 %825
      %829 = vset.pattern.permute.xlu0 7
      %830 = vperm.xlu0 %829, %v711
      %v831 = vpop.permute.xlu0 %830
      %834 = vset.pattern.permute.xlu0 7
      %835 = vperm.xlu0 %834, %v712
      %v836 = vpop.permute.xlu0 %835
      %839 = vset.pattern.permute.xlu0 7
      %840 = vperm.xlu0 %839, %v713
      %v841 = vpop.permute.xlu0 %840
      %844 = vset.pattern.permute.xlu0 7
      %845 = vperm.xlu0 %844, %v714
      %v846 = vpop.permute.xlu0 %845
      %849 = vset.pattern.permute.xlu0 7
      %850 = vperm.xlu0 %849, %v715
      %v851 = vpop.permute.xlu0 %850
      %854 = vset.pattern.permute.xlu0 7
      %855 = vperm.xlu0 %854, %v716
      %v856 = vpop.permute.xlu0 %855
      %859 = vset.pattern.permute.xlu0 7
      %860 = vperm.xlu0 %859, %v717
      %v861 = vpop.permute.xlu0 %860
      %864 = vset.pattern.permute.xlu0 7
      %865 = vperm.xlu0 %864, %v718
      %v866 = vpop.permute.xlu0 %865
      %v868 = vlaneseq
      %v869 = vshrl.u32 %v868, 7
      %v870 = vsub.s32 7, %v869
      %v871 = vrot.slane %v719, %v870
      %v872 = vmul.f32 %v791, %v871
      %v873 = vmul.f32 %v796, %v871
      %v874 = vmul.f32 %v801, %v871
      %v875 = vmul.f32 %v806, %v871
      %v876 = vmul.f32 %v811, %v871
      %v877 = vmul.f32 %v816, %v871
      %v878 = vmul.f32 %v821, %v871
      %v879 = vmul.f32 %v826, %v871
      %v880 = vmul.f32 %v831, %v871
      %v881 = vmul.f32 %v836, %v871
      %v882 = vmul.f32 %v841, %v871
      %v883 = vmul.f32 %v846, %v871
      %v884 = vmul.f32 %v851, %v871
      %v885 = vmul.f32 %v856, %v871
      %v886 = vmul.f32 %v861, %v871
      %v887 = vmul.f32 %v866, %v871
      %v888 = vmul.f32 %v757, %v720
      %v889 = vmul.f32 %v759, %v721
      %v890 = vmul.f32 %v761, %v722
      %v891 = vmul.f32 %v763, %v723
      %v892 = vmul.f32 %v765, %v724
      %v893 = vmul.f32 %v767, %v725
      %v894 = vmul.f32 %v769, %v726
      %v895 = vmul.f32 %v771, %v727
      %v896 = vmul.f32 %v773, %v728
      %v897 = vmul.f32 %v775, %v729
      %v898 = vmul.f32 %v777, %v730
      %v899 = vmul.f32 %v779, %v731
      %v900 = vmul.f32 %v781, %v732
      %v901 = vmul.f32 %v783, %v733
      %v902 = vmul.f32 %v785, %v734
      %v903 = vmul.f32 %v787, %v735
      %v904 = vadd.f32 %v888, %v872
      %v905 = vadd.f32 %v889, %v873
      %v906 = vadd.f32 %v890, %v874
      %v907 = vadd.f32 %v891, %v875
      %v908 = vadd.f32 %v892, %v876
      %v909 = vadd.f32 %v893, %v877
      %v910 = vadd.f32 %v894, %v878
      %v911 = vadd.f32 %v895, %v879
      %v912 = vadd.f32 %v896, %v880
      %v913 = vadd.f32 %v897, %v881
      %v914 = vadd.f32 %v898, %v882
      %v915 = vadd.f32 %v899, %v883
      %v916 = vadd.f32 %v900, %v884
      %v917 = vadd.f32 %v901, %v885
      %v918 = vadd.f32 %v902, %v886
      %v919 = vadd.f32 %v903, %v887
      %v921 = vrot.slane %v686, 7
      %923 = vmatprep.subr.mxu0 0.0
      %924 = vmatpush1.msra.mxu0 %v919
      %925 = vmatprep.subr.mxu0 0.0
      %926 = vmatpush1.msra.mxu0 %v918
      %927 = vmatprep.subr.mxu0 0.0
      %928 = vmatpush1.msra.mxu0 %v917
      %929 = vmatprep.subr.mxu0 0.0
      %930 = vmatpush1.msra.mxu0 %v916
      %931 = vmatprep.subr.mxu0 0.0
      %932 = vmatpush1.msra.mxu0 %v915
      %933 = vmatprep.subr.mxu0 0.0
      %934 = vmatpush1.msra.mxu0 %v914
      %935 = vmatprep.subr.mxu0 0.0
      %936 = vmatpush1.msra.mxu0 %v913
      %937 = vmatprep.subr.mxu0 0.0
      %938 = vmatpush1.msra.mxu0 %v912
      %939 = vmatprep.subr.mxu0 0.0
      %940 = vmatpush1.msra.mxu0 %v911
      %941 = vmatprep.subr.mxu0 0.0
      %942 = vmatpush1.msra.mxu0 %v910
      %943 = vmatprep.subr.mxu0 0.0
      %944 = vmatpush1.msra.mxu0 %v909
      %945 = vmatprep.subr.mxu0 0.0
      %946 = vmatpush1.msra.mxu0 %v908
      %947 = vmatprep.subr.mxu0 0.0
      %948 = vmatpush1.msra.mxu0 %v907
      %949 = vmatprep.subr.mxu0 0.0
      %950 = vmatpush1.msra.mxu0 %v906
      %951 = vmatprep.subr.mxu0 0.0
      %952 = vmatpush1.msra.mxu0 %v905
      %953 = vmatprep.subr.mxu0 0.0
      %954 = vmatpush1.msra.mxu0 %v904
      %955 = vmatprep.subr.mxu0 0.0
      %956 = vmatpush2.msra.mxu0 0.0
      %957 = vmatprep.subr.mxu0 0.0
      %958 = vmatpush2.msra.mxu0 0.0
      %959 = vmatprep.subr.mxu0 0.0
      %960 = vmatpush2.msra.mxu0 0.0
      %961 = vmatprep.subr.mxu0 0.0
      %962 = vmatpush2.msra.mxu0 0.0
      %963 = vmatprep.subr.mxu0 0.0
      %964 = vmatpush2.msra.mxu0 0.0
      %965 = vmatprep.subr.mxu0 0.0
      %966 = vmatpush2.msra.mxu0 0.0
      %967 = vmatprep.subr.mxu0 0.0
      %968 = vmatpush2.msra.mxu0 0.0
      %969 = vmatprep.subr.mxu0 0.0
      %970 = vmatpush2.msra.mxu0 0.0
      %971 = vmatprep.subr.mxu0 0.0
      %972 = vmatpush2.msra.mxu0 0.0
      %973 = vmatprep.subr.mxu0 0.0
      %974 = vmatpush2.msra.mxu0 0.0
      %975 = vmatprep.subr.mxu0 0.0
      %976 = vmatpush2.msra.mxu0 0.0
      %977 = vmatprep.subr.mxu0 0.0
      %978 = vmatpush2.msra.mxu0 0.0
      %979 = vmatprep.subr.mxu0 0.0
      %980 = vmatpush2.msra.mxu0 0.0
      %981 = vmatprep.subr.mxu0 0.0
      %982 = vmatpush2.msra.mxu0 0.0
      %983 = vmatprep.subr.mxu0 0.0
      %984 = vmatpush2.msra.mxu0 0.0
      %985 = vmatprep.subr.mxu0 0.0
      %986 = vmatpush2.msra.mxu0 0.0
      %987 = vmatprep.mubr.f32.mxu0 0.0
      %988 = vmatmul.mubr.f32.gmra.mxu0 %v921
      %v989 = vpop.f32.mrf.mxu0
      %v990 = vadd.f32 0.0, %v989
      %v991 = vpop.f32.mrf.mxu0
      %992 = vdwg.mxu0
      %v993 = vlaneseq
      %v994 = vshrl.u32 %v993, 7
      %v995 = vsub.s32 6, %v994
      %v996 = vrot.slane %v684, %v995
      %v997 = vmul.f32 %v996, %v657
      %v998 = vmul.f32 %v996, %v658
      %v999 = vmul.f32 %v996, %v659
      %v1000 = vmul.f32 %v996, %v660
      %v1001 = vmul.f32 %v996, %v661
      %v1002 = vmul.f32 %v996, %v662
      %v1003 = vmul.f32 %v996, %v663
      %v1004 = vmul.f32 %v996, %v664
      %v1005 = vmul.f32 %v996, %v665
      %v1006 = vmul.f32 %v996, %v666
      %v1007 = vmul.f32 %v996, %v667
      %v1008 = vmul.f32 %v996, %v668
      %v1009 = vmul.f32 %v996, %v669
      %v1010 = vmul.f32 %v996, %v670
      %v1011 = vmul.f32 %v996, %v671
      %v1012 = vmul.f32 %v996, %v672
      %v1013 = vmul.f32 %v997, 1.442695
      %v1014 = vpow.pop %v1013
      %v1015 = vmul.f32 %v998, 1.442695
      %v1016 = vpow.pop %v1015
      %v1017 = vmul.f32 %v999, 1.442695
      %v1018 = vpow.pop %v1017
      %v1019 = vmul.f32 %v1000, 1.442695
      %v1020 = vpow.pop %v1019
      %v1021 = vmul.f32 %v1001, 1.442695
      %v1022 = vpow.pop %v1021
      %v1023 = vmul.f32 %v1002, 1.442695
      %v1024 = vpow.pop %v1023
      %v1025 = vmul.f32 %v1003, 1.442695
      %v1026 = vpow.pop %v1025
      %v1027 = vmul.f32 %v1004, 1.442695
      %v1028 = vpow.pop %v1027
      %v1029 = vmul.f32 %v1005, 1.442695
      %v1030 = vpow.pop %v1029
      %v1031 = vmul.f32 %v1006, 1.442695
      %v1032 = vpow.pop %v1031
      %v1033 = vmul.f32 %v1007, 1.442695
      %v1034 = vpow.pop %v1033
      %v1035 = vmul.f32 %v1008, 1.442695
      %v1036 = vpow.pop %v1035
      %v1037 = vmul.f32 %v1009, 1.442695
      %v1038 = vpow.pop %v1037
      %v1039 = vmul.f32 %v1010, 1.442695
      %v1040 = vpow.pop %v1039
      %v1041 = vmul.f32 %v1011, 1.442695
      %v1042 = vpow.pop %v1041
      %v1043 = vmul.f32 %v1012, 1.442695
      %v1044 = vpow.pop %v1043
      %1045 = vset.pattern.permute.xlu0 6
      %1046 = vperm.xlu0 %1045, %v703
      %v1047 = vpop.permute.xlu0 %1046
      %1049 = vset.pattern.permute.xlu0 6
      %1050 = vperm.xlu0 %1049, %v704
      %v1051 = vpop.permute.xlu0 %1050
      %1053 = vset.pattern.permute.xlu0 6
      %1054 = vperm.xlu0 %1053, %v705
      %v1055 = vpop.permute.xlu0 %1054
      %1057 = vset.pattern.permute.xlu0 6
      %1058 = vperm.xlu0 %1057, %v706
      %v1059 = vpop.permute.xlu0 %1058
      %1061 = vset.pattern.permute.xlu0 6
      %1062 = vperm.xlu0 %1061, %v707
      %v1063 = vpop.permute.xlu0 %1062
      %1065 = vset.pattern.permute.xlu0 6
      %1066 = vperm.xlu0 %1065, %v708
      %v1067 = vpop.permute.xlu0 %1066
      %1069 = vset.pattern.permute.xlu0 6
      %1070 = vperm.xlu0 %1069, %v709
      %v1071 = vpop.permute.xlu0 %1070
      %1073 = vset.pattern.permute.xlu0 6
      %1074 = vperm.xlu0 %1073, %v710
      %v1075 = vpop.permute.xlu0 %1074
      %1077 = vset.pattern.permute.xlu0 6
      %1078 = vperm.xlu0 %1077, %v711
      %v1079 = vpop.permute.xlu0 %1078
      %1081 = vset.pattern.permute.xlu0 6
      %1082 = vperm.xlu0 %1081, %v712
      %v1083 = vpop.permute.xlu0 %1082
      %1085 = vset.pattern.permute.xlu0 6
      %1086 = vperm.xlu0 %1085, %v713
      %v1087 = vpop.permute.xlu0 %1086
      %1089 = vset.pattern.permute.xlu0 6
      %1090 = vperm.xlu0 %1089, %v714
      %v1091 = vpop.permute.xlu0 %1090
      %1093 = vset.pattern.permute.xlu0 6
      %1094 = vperm.xlu0 %1093, %v715
      %v1095 = vpop.permute.xlu0 %1094
      %1097 = vset.pattern.permute.xlu0 6
      %1098 = vperm.xlu0 %1097, %v716
      %v1099 = vpop.permute.xlu0 %1098
      %1101 = vset.pattern.permute.xlu0 6
      %1102 = vperm.xlu0 %1101, %v717
      %v1103 = vpop.permute.xlu0 %1102
      %1105 = vset.pattern.permute.xlu0 6
      %1106 = vperm.xlu0 %1105, %v718
      %v1107 = vpop.permute.xlu0 %1106
      %v1109 = vlaneseq
      %v1110 = vshrl.u32 %v1109, 7
      %v1111 = vsub.s32 6, %v1110
      %v1112 = vrot.slane %v719, %v1111
      %v1113 = vmul.f32 %v1047, %v1112
      %v1114 = vmul.f32 %v1051, %v1112
      %v1115 = vmul.f32 %v1055, %v1112
      %v1116 = vmul.f32 %v1059, %v1112
      %v1117 = vmul.f32 %v1063, %v1112
      %v1118 = vmul.f32 %v1067, %v1112
      %v1119 = vmul.f32 %v1071, %v1112
      %v1120 = vmul.f32 %v1075, %v1112
      %v1121 = vmul.f32 %v1079, %v1112
      %v1122 = vmul.f32 %v1083, %v1112
      %v1123 = vmul.f32 %v1087, %v1112
      %v1124 = vmul.f32 %v1091, %v1112
      %v1125 = vmul.f32 %v1095, %v1112
      %v1126 = vmul.f32 %v1099, %v1112
      %v1127 = vmul.f32 %v1103, %v1112
      %v1128 = vmul.f32 %v1107, %v1112
      %v1129 = vmul.f32 %v1014, %v904
      %v1130 = vmul.f32 %v1016, %v905
      %v1131 = vmul.f32 %v1018, %v906
      %v1132 = vmul.f32 %v1020, %v907
      %v1133 = vmul.f32 %v1022, %v908
      %v1134 = vmul.f32 %v1024, %v909
      %v1135 = vmul.f32 %v1026, %v910
      %v1136 = vmul.f32 %v1028, %v911
      %v1137 = vmul.f32 %v1030, %v912
      %v1138 = vmul.f32 %v1032, %v913
      %v1139 = vmul.f32 %v1034, %v914
      %v1140 = vmul.f32 %v1036, %v915
      %v1141 = vmul.f32 %v1038, %v916
      %v1142 = vmul.f32 %v1040, %v917
      %v1143 = vmul.f32 %v1042, %v918
      %v1144 = vmul.f32 %v1044, %v919
      %v1145 = vadd.f32 %v1129, %v1113
      %v1146 = vadd.f32 %v1130, %v1114
      %v1147 = vadd.f32 %v1131, %v1115
      %v1148 = vadd.f32 %v1132, %v1116
      %v1149 = vadd.f32 %v1133, %v1117
      %v1150 = vadd.f32 %v1134, %v1118
      %v1151 = vadd.f32 %v1135, %v1119
      %v1152 = vadd.f32 %v1136, %v1120
      %v1153 = vadd.f32 %v1137, %v1121
      %v1154 = vadd.f32 %v1138, %v1122
      %v1155 = vadd.f32 %v1139, %v1123
      %v1156 = vadd.f32 %v1140, %v1124
      %v1157 = vadd.f32 %v1141, %v1125
      %v1158 = vadd.f32 %v1142, %v1126
      %v1159 = vadd.f32 %v1143, %v1127
      %v1160 = vadd.f32 %v1144, %v1128
      %v1161 = vrot.slane %v686, 6
      %1163 = vmatprep.subr.mxu0 0.0
      %1164 = vmatpush1.msra.mxu0 %v1160
      %1165 = vmatprep.subr.mxu0 0.0
      %1166 = vmatpush1.msra.mxu0 %v1159
      %1167 = vmatprep.subr.mxu0 0.0
      %1168 = vmatpush1.msra.mxu0 %v1158
      %1169 = vmatprep.subr.mxu0 0.0
      %1170 = vmatpush1.msra.mxu0 %v1157
      %1171 = vmatprep.subr.mxu0 0.0
      %1172 = vmatpush1.msra.mxu0 %v1156
      %1173 = vmatprep.subr.mxu0 0.0
      %1174 = vmatpush1.msra.mxu0 %v1155
      %1175 = vmatprep.subr.mxu0 0.0
      %1176 = vmatpush1.msra.mxu0 %v1154
      %1177 = vmatprep.subr.mxu0 0.0
      %1178 = vmatpush1.msra.mxu0 %v1153
      %1179 = vmatprep.subr.mxu0 0.0
      %1180 = vmatpush1.msra.mxu0 %v1152
      %1181 = vmatprep.subr.mxu0 0.0
      %1182 = vmatpush1.msra.mxu0 %v1151
      %1183 = vmatprep.subr.mxu0 0.0
      %1184 = vmatpush1.msra.mxu0 %v1150
      %1185 = vmatprep.subr.mxu0 0.0
      %1186 = vmatpush1.msra.mxu0 %v1149
      %1187 = vmatprep.subr.mxu0 0.0
      %1188 = vmatpush1.msra.mxu0 %v1148
      %1189 = vmatprep.subr.mxu0 0.0
      %1190 = vmatpush1.msra.mxu0 %v1147
      %1191 = vmatprep.subr.mxu0 0.0
      %1192 = vmatpush1.msra.mxu0 %v1146
      %1193 = vmatprep.subr.mxu0 0.0
      %1194 = vmatpush1.msra.mxu0 %v1145
      %1195 = vmatprep.subr.mxu0 0.0
      %1196 = vmatpush2.msra.mxu0 0.0
      %1197 = vmatprep.subr.mxu0 0.0
      %1198 = vmatpush2.msra.mxu0 0.0
      %1199 = vmatprep.subr.mxu0 0.0
      %1200 = vmatpush2.msra.mxu0 0.0
      %1201 = vmatprep.subr.mxu0 0.0
      %1202 = vmatpush2.msra.mxu0 0.0
      %1203 = vmatprep.subr.mxu0 0.0
      %1204 = vmatpush2.msra.mxu0 0.0
      %1205 = vmatprep.subr.mxu0 0.0
      %1206 = vmatpush2.msra.mxu0 0.0
      %1207 = vmatprep.subr.mxu0 0.0
      %1208 = vmatpush2.msra.mxu0 0.0
      %1209 = vmatprep.subr.mxu0 0.0
      %1210 = vmatpush2.msra.mxu0 0.0
      %1211 = vmatprep.subr.mxu0 0.0
      %1212 = vmatpush2.msra.mxu0 0.0
      %1213 = vmatprep.subr.mxu0 0.0
      %1214 = vmatpush2.msra.mxu0 0.0
      %1215 = vmatprep.subr.mxu0 0.0
      %1216 = vmatpush2.msra.mxu0 0.0
      %1217 = vmatprep.subr.mxu0 0.0
      %1218 = vmatpush2.msra.mxu0 0.0
      %1219 = vmatprep.subr.mxu0 0.0
      %1220 = vmatpush2.msra.mxu0 0.0
      %1221 = vmatprep.subr.mxu0 0.0
      %1222 = vmatpush2.msra.mxu0 0.0
      %1223 = vmatprep.subr.mxu0 0.0
      %1224 = vmatpush2.msra.mxu0 0.0
      %1225 = vmatprep.subr.mxu0 0.0
      %1226 = vmatpush2.msra.mxu0 0.0
      %1227 = vmatprep.mubr.f32.mxu0 0.0
      %1228 = vmatmul.mubr.f32.gmra.mxu0 %v1161
      %v1229 = vpop.f32.mrf.mxu0
      %v1230 = vadd.f32 0.0, %v1229
      %v1231 = vpop.f32.mrf.mxu0
      %1232 = vdwg.mxu0
      %v1233 = vlaneseq
      %v1234 = vshrl.u32 %v1233, 7
      %v1235 = vsub.s32 5, %v1234
      %v1236 = vrot.slane %v684, %v1235
      %v1237 = vmul.f32 %v1236, %v657
      %v1238 = vmul.f32 %v1236, %v658
      %v1239 = vmul.f32 %v1236, %v659
      %v1240 = vmul.f32 %v1236, %v660
      %v1241 = vmul.f32 %v1236, %v661
      %v1242 = vmul.f32 %v1236, %v662
      %v1243 = vmul.f32 %v1236, %v663
      %v1244 = vmul.f32 %v1236, %v664
      %v1245 = vmul.f32 %v1236, %v665
      %v1246 = vmul.f32 %v1236, %v666
      %v1247 = vmul.f32 %v1236, %v667
      %v1248 = vmul.f32 %v1236, %v668
      %v1249 = vmul.f32 %v1236, %v669
      %v1250 = vmul.f32 %v1236, %v670
      %v1251 = vmul.f32 %v1236, %v671
      %v1252 = vmul.f32 %v1236, %v672
      %v1253 = vmul.f32 %v1237, 1.442695
      %v1254 = vpow.pop %v1253
      %v1255 = vmul.f32 %v1238, 1.442695
      %v1256 = vpow.pop %v1255
      %v1257 = vmul.f32 %v1239, 1.442695
      %v1258 = vpow.pop %v1257
      %v1259 = vmul.f32 %v1240, 1.442695
      %v1260 = vpow.pop %v1259
      %v1261 = vmul.f32 %v1241, 1.442695
      %v1262 = vpow.pop %v1261
      %v1263 = vmul.f32 %v1242, 1.442695
      %v1264 = vpow.pop %v1263
      %v1265 = vmul.f32 %v1243, 1.442695
      %v1266 = vpow.pop %v1265
      %v1267 = vmul.f32 %v1244, 1.442695
      %v1268 = vpow.pop %v1267
      %v1269 = vmul.f32 %v1245, 1.442695
      %v1270 = vpow.pop %v1269
      %v1271 = vmul.f32 %v1246, 1.442695
      %v1272 = vpow.pop %v1271
      %v1273 = vmul.f32 %v1247, 1.442695
      %v1274 = vpow.pop %v1273
      %v1275 = vmul.f32 %v1248, 1.442695
      %v1276 = vpow.pop %v1275
      %v1277 = vmul.f32 %v1249, 1.442695
      %v1278 = vpow.pop %v1277
      %v1279 = vmul.f32 %v1250, 1.442695
      %v1280 = vpow.pop %v1279
      %v1281 = vmul.f32 %v1251, 1.442695
      %v1282 = vpow.pop %v1281
      %v1283 = vmul.f32 %v1252, 1.442695
      %v1284 = vpow.pop %v1283
      %1285 = vset.pattern.permute.xlu0 5
      %1286 = vperm.xlu0 %1285, %v703
      %v1287 = vpop.permute.xlu0 %1286
      %1289 = vset.pattern.permute.xlu0 5
      %1290 = vperm.xlu0 %1289, %v704
      %v1291 = vpop.permute.xlu0 %1290
      %1293 = vset.pattern.permute.xlu0 5
      %1294 = vperm.xlu0 %1293, %v705
      %v1295 = vpop.permute.xlu0 %1294
      %1297 = vset.pattern.permute.xlu0 5
      %1298 = vperm.xlu0 %1297, %v706
      %v1299 = vpop.permute.xlu0 %1298
      %1301 = vset.pattern.permute.xlu0 5
      %1302 = vperm.xlu0 %1301, %v707
      %v1303 = vpop.permute.xlu0 %1302
      %1305 = vset.pattern.permute.xlu0 5
      %1306 = vperm.xlu0 %1305, %v708
      %v1307 = vpop.permute.xlu0 %1306
      %1309 = vset.pattern.permute.xlu0 5
      %1310 = vperm.xlu0 %1309, %v709
      %v1311 = vpop.permute.xlu0 %1310
      %1313 = vset.pattern.permute.xlu0 5
      %1314 = vperm.xlu0 %1313, %v710
      %v1315 = vpop.permute.xlu0 %1314
      %1317 = vset.pattern.permute.xlu0 5
      %1318 = vperm.xlu0 %1317, %v711
      %v1319 = vpop.permute.xlu0 %1318
      %1321 = vset.pattern.permute.xlu0 5
      %1322 = vperm.xlu0 %1321, %v712
      %v1323 = vpop.permute.xlu0 %1322
      %1325 = vset.pattern.permute.xlu0 5
      %1326 = vperm.xlu0 %1325, %v713
      %v1327 = vpop.permute.xlu0 %1326
      %1329 = vset.pattern.permute.xlu0 5
      %1330 = vperm.xlu0 %1329, %v714
      %v1331 = vpop.permute.xlu0 %1330
      %1333 = vset.pattern.permute.xlu0 5
      %1334 = vperm.xlu0 %1333, %v715
      %v1335 = vpop.permute.xlu0 %1334
      %1337 = vset.pattern.permute.xlu0 5
      %1338 = vperm.xlu0 %1337, %v716
      %v1339 = vpop.permute.xlu0 %1338
      %1341 = vset.pattern.permute.xlu0 5
      %1342 = vperm.xlu0 %1341, %v717
      %v1343 = vpop.permute.xlu0 %1342
      %1345 = vset.pattern.permute.xlu0 5
      %1346 = vperm.xlu0 %1345, %v718
      %v1347 = vpop.permute.xlu0 %1346
      %v1349 = vlaneseq
      %v1350 = vshrl.u32 %v1349, 7
      %v1351 = vsub.s32 5, %v1350
      %v1352 = vrot.slane %v719, %v1351
      %v1353 = vmul.f32 %v1287, %v1352
      %v1354 = vmul.f32 %v1291, %v1352
      %v1355 = vmul.f32 %v1295, %v1352
      %v1356 = vmul.f32 %v1299, %v1352
      %v1357 = vmul.f32 %v1303, %v1352
      %v1358 = vmul.f32 %v1307, %v1352
      %v1359 = vmul.f32 %v1311, %v1352
      %v1360 = vmul.f32 %v1315, %v1352
      %v1361 = vmul.f32 %v1319, %v1352
      %v1362 = vmul.f32 %v1323, %v1352
      %v1363 = vmul.f32 %v1327, %v1352
      %v1364 = vmul.f32 %v1331, %v1352
      %v1365 = vmul.f32 %v1335, %v1352
      %v1366 = vmul.f32 %v1339, %v1352
      %v1367 = vmul.f32 %v1343, %v1352
      %v1368 = vmul.f32 %v1347, %v1352
      %v1369 = vmul.f32 %v1254, %v1145
      %v1370 = vmul.f32 %v1256, %v1146
      %v1371 = vmul.f32 %v1258, %v1147
      %v1372 = vmul.f32 %v1260, %v1148
      %v1373 = vmul.f32 %v1262, %v1149
      %v1374 = vmul.f32 %v1264, %v1150
      %v1375 = vmul.f32 %v1266, %v1151
      %v1376 = vmul.f32 %v1268, %v1152
      %v1377 = vmul.f32 %v1270, %v1153
      %v1378 = vmul.f32 %v1272, %v1154
      %v1379 = vmul.f32 %v1274, %v1155
      %v1380 = vmul.f32 %v1276, %v1156
      %v1381 = vmul.f32 %v1278, %v1157
      %v1382 = vmul.f32 %v1280, %v1158
      %v1383 = vmul.f32 %v1282, %v1159
      %v1384 = vmul.f32 %v1284, %v1160
      %v1385 = vadd.f32 %v1369, %v1353
      %v1386 = vadd.f32 %v1370, %v1354
      %v1387 = vadd.f32 %v1371, %v1355
      %v1388 = vadd.f32 %v1372, %v1356
      %v1389 = vadd.f32 %v1373, %v1357
      %v1390 = vadd.f32 %v1374, %v1358
      %v1391 = vadd.f32 %v1375, %v1359
      %v1392 = vadd.f32 %v1376, %v1360
      %v1393 = vadd.f32 %v1377, %v1361
      %v1394 = vadd.f32 %v1378, %v1362
      %v1395 = vadd.f32 %v1379, %v1363
      %v1396 = vadd.f32 %v1380, %v1364
      %v1397 = vadd.f32 %v1381, %v1365
      %v1398 = vadd.f32 %v1382, %v1366
      %v1399 = vadd.f32 %v1383, %v1367
      %v1400 = vadd.f32 %v1384, %v1368
      %v1401 = vrot.slane %v686, 5
      %1403 = vmatprep.subr.mxu0 0.0
      %1404 = vmatpush1.msra.mxu0 %v1400
      %1405 = vmatprep.subr.mxu0 0.0
      %1406 = vmatpush1.msra.mxu0 %v1399
      %1407 = vmatprep.subr.mxu0 0.0
      %1408 = vmatpush1.msra.mxu0 %v1398
      %1409 = vmatprep.subr.mxu0 0.0
      %1410 = vmatpush1.msra.mxu0 %v1397
      %1411 = vmatprep.subr.mxu0 0.0
      %1412 = vmatpush1.msra.mxu0 %v1396
      %1413 = vmatprep.subr.mxu0 0.0
      %1414 = vmatpush1.msra.mxu0 %v1395
      %1415 = vmatprep.subr.mxu0 0.0
      %1416 = vmatpush1.msra.mxu0 %v1394
      %1417 = vmatprep.subr.mxu0 0.0
      %1418 = vmatpush1.msra.mxu0 %v1393
      %1419 = vmatprep.subr.mxu0 0.0
      %1420 = vmatpush1.msra.mxu0 %v1392
      %1421 = vmatprep.subr.mxu0 0.0
      %1422 = vmatpush1.msra.mxu0 %v1391
      %1423 = vmatprep.subr.mxu0 0.0
      %1424 = vmatpush1.msra.mxu0 %v1390
      %1425 = vmatprep.subr.mxu0 0.0
      %1426 = vmatpush1.msra.mxu0 %v1389
      %1427 = vmatprep.subr.mxu0 0.0
      %1428 = vmatpush1.msra.mxu0 %v1388
      %1429 = vmatprep.subr.mxu0 0.0
      %1430 = vmatpush1.msra.mxu0 %v1387
      %1431 = vmatprep.subr.mxu0 0.0
      %1432 = vmatpush1.msra.mxu0 %v1386
      %1433 = vmatprep.subr.mxu0 0.0
      %1434 = vmatpush1.msra.mxu0 %v1385
      %1435 = vmatprep.subr.mxu0 0.0
      %1436 = vmatpush2.msra.mxu0 0.0
      %1437 = vmatprep.subr.mxu0 0.0
      %1438 = vmatpush2.msra.mxu0 0.0
      %1439 = vmatprep.subr.mxu0 0.0
      %1440 = vmatpush2.msra.mxu0 0.0
      %1441 = vmatprep.subr.mxu0 0.0
      %1442 = vmatpush2.msra.mxu0 0.0
      %1443 = vmatprep.subr.mxu0 0.0
      %1444 = vmatpush2.msra.mxu0 0.0
      %1445 = vmatprep.subr.mxu0 0.0
      %1446 = vmatpush2.msra.mxu0 0.0
      %1447 = vmatprep.subr.mxu0 0.0
      %1448 = vmatpush2.msra.mxu0 0.0
      %1449 = vmatprep.subr.mxu0 0.0
      %1450 = vmatpush2.msra.mxu0 0.0
      %1451 = vmatprep.subr.mxu0 0.0
      %1452 = vmatpush2.msra.mxu0 0.0
      %1453 = vmatprep.subr.mxu0 0.0
      %1454 = vmatpush2.msra.mxu0 0.0
      %1455 = vmatprep.subr.mxu0 0.0
      %1456 = vmatpush2.msra.mxu0 0.0
      %1457 = vmatprep.subr.mxu0 0.0
      %1458 = vmatpush2.msra.mxu0 0.0
      %1459 = vmatprep.subr.mxu0 0.0
      %1460 = vmatpush2.msra.mxu0 0.0
      %1461 = vmatprep.subr.mxu0 0.0
      %1462 = vmatpush2.msra.mxu0 0.0
      %1463 = vmatprep.subr.mxu0 0.0
      %1464 = vmatpush2.msra.mxu0 0.0
      %1465 = vmatprep.subr.mxu0 0.0
      %1466 = vmatpush2.msra.mxu0 0.0
      %1467 = vmatprep.mubr.f32.mxu0 0.0
      %1468 = vmatmul.mubr.f32.gmra.mxu0 %v1401
      %v1469 = vpop.f32.mrf.mxu0
      %v1470 = vadd.f32 0.0, %v1469
      %v1471 = vpop.f32.mrf.mxu0
      %1472 = vdwg.mxu0
      %v1473 = vlaneseq
      %v1474 = vshrl.u32 %v1473, 7
      %v1475 = vsub.s32 4, %v1474
      %v1476 = vrot.slane %v684, %v1475
      %v1477 = vmul.f32 %v1476, %v657
      %v1478 = vmul.f32 %v1476, %v658
      %v1479 = vmul.f32 %v1476, %v659
      %v1480 = vmul.f32 %v1476, %v660
      %v1481 = vmul.f32 %v1476, %v661
      %v1482 = vmul.f32 %v1476, %v662
      %v1483 = vmul.f32 %v1476, %v663
      %v1484 = vmul.f32 %v1476, %v664
      %v1485 = vmul.f32 %v1476, %v665
      %v1486 = vmul.f32 %v1476, %v666
      %v1487 = vmul.f32 %v1476, %v667
      %v1488 = vmul.f32 %v1476, %v668
      %v1489 = vmul.f32 %v1476, %v669
      %v1490 = vmul.f32 %v1476, %v670
      %v1491 = vmul.f32 %v1476, %v671
      %v1492 = vmul.f32 %v1476, %v672
      %v1493 = vmul.f32 %v1477, 1.442695
      %v1494 = vpow.pop %v1493
      %v1495 = vmul.f32 %v1478, 1.442695
      %v1496 = vpow.pop %v1495
      %v1497 = vmul.f32 %v1479, 1.442695
      %v1498 = vpow.pop %v1497
      %v1499 = vmul.f32 %v1480, 1.442695
      %v1500 = vpow.pop %v1499
      %v1501 = vmul.f32 %v1481, 1.442695
      %v1502 = vpow.pop %v1501
      %v1503 = vmul.f32 %v1482, 1.442695
      %v1504 = vpow.pop %v1503
      %v1505 = vmul.f32 %v1483, 1.442695
      %v1506 = vpow.pop %v1505
      %v1507 = vmul.f32 %v1484, 1.442695
      %v1508 = vpow.pop %v1507
      %v1509 = vmul.f32 %v1485, 1.442695
      %v1510 = vpow.pop %v1509
      %v1511 = vmul.f32 %v1486, 1.442695
      %v1512 = vpow.pop %v1511
      %v1513 = vmul.f32 %v1487, 1.442695
      %v1514 = vpow.pop %v1513
      %v1515 = vmul.f32 %v1488, 1.442695
      %v1516 = vpow.pop %v1515
      %v1517 = vmul.f32 %v1489, 1.442695
      %v1518 = vpow.pop %v1517
      %v1519 = vmul.f32 %v1490, 1.442695
      %v1520 = vpow.pop %v1519
      %v1521 = vmul.f32 %v1491, 1.442695
      %v1522 = vpow.pop %v1521
      %v1523 = vmul.f32 %v1492, 1.442695
      %v1524 = vpow.pop %v1523
      %1525 = vset.pattern.permute.xlu0 4
      %1526 = vperm.xlu0 %1525, %v703
      %v1527 = vpop.permute.xlu0 %1526
      %1529 = vset.pattern.permute.xlu0 4
      %1530 = vperm.xlu0 %1529, %v704
      %v1531 = vpop.permute.xlu0 %1530
      %1533 = vset.pattern.permute.xlu0 4
      %1534 = vperm.xlu0 %1533, %v705
      %v1535 = vpop.permute.xlu0 %1534
      %1537 = vset.pattern.permute.xlu0 4
      %1538 = vperm.xlu0 %1537, %v706
      %v1539 = vpop.permute.xlu0 %1538
      %1541 = vset.pattern.permute.xlu0 4
      %1542 = vperm.xlu0 %1541, %v707
      %v1543 = vpop.permute.xlu0 %1542
      %1545 = vset.pattern.permute.xlu0 4
      %1546 = vperm.xlu0 %1545, %v708
      %v1547 = vpop.permute.xlu0 %1546
      %1549 = vset.pattern.permute.xlu0 4
      %1550 = vperm.xlu0 %1549, %v709
      %v1551 = vpop.permute.xlu0 %1550
      %1553 = vset.pattern.permute.xlu0 4
      %1554 = vperm.xlu0 %1553, %v710
      %v1555 = vpop.permute.xlu0 %1554
      %1557 = vset.pattern.permute.xlu0 4
      %1558 = vperm.xlu0 %1557, %v711
      %v1559 = vpop.permute.xlu0 %1558
      %1561 = vset.pattern.permute.xlu0 4
      %1562 = vperm.xlu0 %1561, %v712
      %v1563 = vpop.permute.xlu0 %1562
      %1565 = vset.pattern.permute.xlu0 4
      %1566 = vperm.xlu0 %1565, %v713
      %v1567 = vpop.permute.xlu0 %1566
      %1569 = vset.pattern.permute.xlu0 4
      %1570 = vperm.xlu0 %1569, %v714
      %v1571 = vpop.permute.xlu0 %1570
      %1573 = vset.pattern.permute.xlu0 4
      %1574 = vperm.xlu0 %1573, %v715
      %v1575 = vpop.permute.xlu0 %1574
      %1577 = vset.pattern.permute.xlu0 4
      %1578 = vperm.xlu0 %1577, %v716
      %v1579 = vpop.permute.xlu0 %1578
      %1581 = vset.pattern.permute.xlu0 4
      %1582 = vperm.xlu0 %1581, %v717
      %v1583 = vpop.permute.xlu0 %1582
      %1585 = vset.pattern.permute.xlu0 4
      %1586 = vperm.xlu0 %1585, %v718
      %v1587 = vpop.permute.xlu0 %1586
      %v1589 = vlaneseq
      %v1590 = vshrl.u32 %v1589, 7
      %v1591 = vsub.s32 4, %v1590
      %v1592 = vrot.slane %v719, %v1591
      %v1593 = vmul.f32 %v1527, %v1592
      %v1594 = vmul.f32 %v1531, %v1592
      %v1595 = vmul.f32 %v1535, %v1592
      %v1596 = vmul.f32 %v1539, %v1592
      %v1597 = vmul.f32 %v1543, %v1592
      %v1598 = vmul.f32 %v1547, %v1592
      %v1599 = vmul.f32 %v1551, %v1592
      %v1600 = vmul.f32 %v1555, %v1592
      %v1601 = vmul.f32 %v1559, %v1592
      %v1602 = vmul.f32 %v1563, %v1592
      %v1603 = vmul.f32 %v1567, %v1592
      %v1604 = vmul.f32 %v1571, %v1592
      %v1605 = vmul.f32 %v1575, %v1592
      %v1606 = vmul.f32 %v1579, %v1592
      %v1607 = vmul.f32 %v1583, %v1592
      %v1608 = vmul.f32 %v1587, %v1592
      %v1609 = vmul.f32 %v1494, %v1385
      %v1610 = vmul.f32 %v1496, %v1386
      %v1611 = vmul.f32 %v1498, %v1387
      %v1612 = vmul.f32 %v1500, %v1388
      %v1613 = vmul.f32 %v1502, %v1389
      %v1614 = vmul.f32 %v1504, %v1390
      %v1615 = vmul.f32 %v1506, %v1391
      %v1616 = vmul.f32 %v1508, %v1392
      %v1617 = vmul.f32 %v1510, %v1393
      %v1618 = vmul.f32 %v1512, %v1394
      %v1619 = vmul.f32 %v1514, %v1395
      %v1620 = vmul.f32 %v1516, %v1396
      %v1621 = vmul.f32 %v1518, %v1397
      %v1622 = vmul.f32 %v1520, %v1398
      %v1623 = vmul.f32 %v1522, %v1399
      %v1624 = vmul.f32 %v1524, %v1400
      %v1625 = vadd.f32 %v1609, %v1593
      %v1626 = vadd.f32 %v1610, %v1594
      %v1627 = vadd.f32 %v1611, %v1595
      %v1628 = vadd.f32 %v1612, %v1596
      %v1629 = vadd.f32 %v1613, %v1597
      %v1630 = vadd.f32 %v1614, %v1598
      %v1631 = vadd.f32 %v1615, %v1599
      %v1632 = vadd.f32 %v1616, %v1600
      %v1633 = vadd.f32 %v1617, %v1601
      %v1634 = vadd.f32 %v1618, %v1602
      %v1635 = vadd.f32 %v1619, %v1603
      %v1636 = vadd.f32 %v1620, %v1604
      %v1637 = vadd.f32 %v1621, %v1605
      %v1638 = vadd.f32 %v1622, %v1606
      %v1639 = vadd.f32 %v1623, %v1607
      %v1640 = vadd.f32 %v1624, %v1608
      %v1641 = vrot.slane %v686, 4
      %1643 = vmatprep.subr.mxu0 0.0
      %1644 = vmatpush1.msra.mxu0 %v1640
      %1645 = vmatprep.subr.mxu0 0.0
      %1646 = vmatpush1.msra.mxu0 %v1639
      %1647 = vmatprep.subr.mxu0 0.0
      %1648 = vmatpush1.msra.mxu0 %v1638
      %1649 = vmatprep.subr.mxu0 0.0
      %1650 = vmatpush1.msra.mxu0 %v1637
      %1651 = vmatprep.subr.mxu0 0.0
      %1652 = vmatpush1.msra.mxu0 %v1636
      %1653 = vmatprep.subr.mxu0 0.0
      %1654 = vmatpush1.msra.mxu0 %v1635
      %1655 = vmatprep.subr.mxu0 0.0
      %1656 = vmatpush1.msra.mxu0 %v1634
      %1657 = vmatprep.subr.mxu0 0.0
      %1658 = vmatpush1.msra.mxu0 %v1633
      %1659 = vmatprep.subr.mxu0 0.0
      %1660 = vmatpush1.msra.mxu0 %v1632
      %1661 = vmatprep.subr.mxu0 0.0
      %1662 = vmatpush1.msra.mxu0 %v1631
      %1663 = vmatprep.subr.mxu0 0.0
      %1664 = vmatpush1.msra.mxu0 %v1630
      %1665 = vmatprep.subr.mxu0 0.0
      %1666 = vmatpush1.msra.mxu0 %v1629
      %1667 = vmatprep.subr.mxu0 0.0
      %1668 = vmatpush1.msra.mxu0 %v1628
      %1669 = vmatprep.subr.mxu0 0.0
      %1670 = vmatpush1.msra.mxu0 %v1627
      %1671 = vmatprep.subr.mxu0 0.0
      %1672 = vmatpush1.msra.mxu0 %v1626
      %1673 = vmatprep.subr.mxu0 0.0
      %1674 = vmatpush1.msra.mxu0 %v1625
      %1675 = vmatprep.subr.mxu0 0.0
      %1676 = vmatpush2.msra.mxu0 0.0
      %1677 = vmatprep.subr.mxu0 0.0
      %1678 = vmatpush2.msra.mxu0 0.0
      %1679 = vmatprep.subr.mxu0 0.0
      %1680 = vmatpush2.msra.mxu0 0.0
      %1681 = vmatprep.subr.mxu0 0.0
      %1682 = vmatpush2.msra.mxu0 0.0
      %1683 = vmatprep.subr.mxu0 0.0
      %1684 = vmatpush2.msra.mxu0 0.0
      %1685 = vmatprep.subr.mxu0 0.0
      %1686 = vmatpush2.msra.mxu0 0.0
      %1687 = vmatprep.subr.mxu0 0.0
      %1688 = vmatpush2.msra.mxu0 0.0
      %1689 = vmatprep.subr.mxu0 0.0
      %1690 = vmatpush2.msra.mxu0 0.0
      %1691 = vmatprep.subr.mxu0 0.0
      %1692 = vmatpush2.msra.mxu0 0.0
      %1693 = vmatprep.subr.mxu0 0.0
      %1694 = vmatpush2.msra.mxu0 0.0
      %1695 = vmatprep.subr.mxu0 0.0
      %1696 = vmatpush2.msra.mxu0 0.0
      %1697 = vmatprep.subr.mxu0 0.0
      %1698 = vmatpush2.msra.mxu0 0.0
      %1699 = vmatprep.subr.mxu0 0.0
      %1700 = vmatpush2.msra.mxu0 0.0
      %1701 = vmatprep.subr.mxu0 0.0
      %1702 = vmatpush2.msra.mxu0 0.0
      %1703 = vmatprep.subr.mxu0 0.0
      %1704 = vmatpush2.msra.mxu0 0.0
      %1705 = vmatprep.subr.mxu0 0.0
      %1706 = vmatpush2.msra.mxu0 0.0
      %1707 = vmatprep.mubr.f32.mxu0 0.0
      %1708 = vmatmul.mubr.f32.gmra.mxu0 %v1641
      %v1709 = vpop.f32.mrf.mxu0
      %v1710 = vadd.f32 0.0, %v1709
      %v1711 = vpop.f32.mrf.mxu0
      %1712 = vdwg.mxu0
      %v1713 = vlaneseq
      %v1714 = vshrl.u32 %v1713, 7
      %v1715 = vsub.s32 3, %v1714
      %v1716 = vrot.slane %v684, %v1715
      %v1717 = vmul.f32 %v1716, %v657
      %v1718 = vmul.f32 %v1716, %v658
      %v1719 = vmul.f32 %v1716, %v659
      %v1720 = vmul.f32 %v1716, %v660
      %v1721 = vmul.f32 %v1716, %v661
      %v1722 = vmul.f32 %v1716, %v662
      %v1723 = vmul.f32 %v1716, %v663
      %v1724 = vmul.f32 %v1716, %v664
      %v1725 = vmul.f32 %v1716, %v665
      %v1726 = vmul.f32 %v1716, %v666
      %v1727 = vmul.f32 %v1716, %v667
      %v1728 = vmul.f32 %v1716, %v668
      %v1729 = vmul.f32 %v1716, %v669
      %v1730 = vmul.f32 %v1716, %v670
      %v1731 = vmul.f32 %v1716, %v671
      %v1732 = vmul.f32 %v1716, %v672
      %v1733 = vmul.f32 %v1717, 1.442695
      %v1734 = vpow.pop %v1733
      %v1735 = vmul.f32 %v1718, 1.442695
      %v1736 = vpow.pop %v1735
      %v1737 = vmul.f32 %v1719, 1.442695
      %v1738 = vpow.pop %v1737
      %v1739 = vmul.f32 %v1720, 1.442695
      %v1740 = vpow.pop %v1739
      %v1741 = vmul.f32 %v1721, 1.442695
      %v1742 = vpow.pop %v1741
      %v1743 = vmul.f32 %v1722, 1.442695
      %v1744 = vpow.pop %v1743
      %v1745 = vmul.f32 %v1723, 1.442695
      %v1746 = vpow.pop %v1745
      %v1747 = vmul.f32 %v1724, 1.442695
      %v1748 = vpow.pop %v1747
      %v1749 = vmul.f32 %v1725, 1.442695
      %v1750 = vpow.pop %v1749
      %v1751 = vmul.f32 %v1726, 1.442695
      %v1752 = vpow.pop %v1751
      %v1753 = vmul.f32 %v1727, 1.442695
      %v1754 = vpow.pop %v1753
      %v1755 = vmul.f32 %v1728, 1.442695
      %v1756 = vpow.pop %v1755
      %v1757 = vmul.f32 %v1729, 1.442695
      %v1758 = vpow.pop %v1757
      %v1759 = vmul.f32 %v1730, 1.442695
      %v1760 = vpow.pop %v1759
      %v1761 = vmul.f32 %v1731, 1.442695
      %v1762 = vpow.pop %v1761
      %v1763 = vmul.f32 %v1732, 1.442695
      %v1764 = vpow.pop %v1763
      %1765 = vset.pattern.permute.xlu0 3
      %1766 = vperm.xlu0 %1765, %v703
      %v1767 = vpop.permute.xlu0 %1766
      %1769 = vset.pattern.permute.xlu0 3
      %1770 = vperm.xlu0 %1769, %v704
      %v1771 = vpop.permute.xlu0 %1770
      %1773 = vset.pattern.permute.xlu0 3
      %1774 = vperm.xlu0 %1773, %v705
      %v1775 = vpop.permute.xlu0 %1774
      %1777 = vset.pattern.permute.xlu0 3
      %1778 = vperm.xlu0 %1777, %v706
      %v1779 = vpop.permute.xlu0 %1778
      %1781 = vset.pattern.permute.xlu0 3
      %1782 = vperm.xlu0 %1781, %v707
      %v1783 = vpop.permute.xlu0 %1782
      %1785 = vset.pattern.permute.xlu0 3
      %1786 = vperm.xlu0 %1785, %v708
      %v1787 = vpop.permute.xlu0 %1786
      %1789 = vset.pattern.permute.xlu0 3
      %1790 = vperm.xlu0 %1789, %v709
      %v1791 = vpop.permute.xlu0 %1790
      %1793 = vset.pattern.permute.xlu0 3
      %1794 = vperm.xlu0 %1793, %v710
      %v1795 = vpop.permute.xlu0 %1794
      %1797 = vset.pattern.permute.xlu0 3
      %1798 = vperm.xlu0 %1797, %v711
      %v1799 = vpop.permute.xlu0 %1798
      %1801 = vset.pattern.permute.xlu0 3
      %1802 = vperm.xlu0 %1801, %v712
      %v1803 = vpop.permute.xlu0 %1802
      %1805 = vset.pattern.permute.xlu0 3
      %1806 = vperm.xlu0 %1805, %v713
      %v1807 = vpop.permute.xlu0 %1806
      %1809 = vset.pattern.permute.xlu0 3
      %1810 = vperm.xlu0 %1809, %v714
      %v1811 = vpop.permute.xlu0 %1810
      %1813 = vset.pattern.permute.xlu0 3
      %1814 = vperm.xlu0 %1813, %v715
      %v1815 = vpop.permute.xlu0 %1814
      %1817 = vset.pattern.permute.xlu0 3
      %1818 = vperm.xlu0 %1817, %v716
      %v1819 = vpop.permute.xlu0 %1818
      %1821 = vset.pattern.permute.xlu0 3
      %1822 = vperm.xlu0 %1821, %v717
      %v1823 = vpop.permute.xlu0 %1822
      %1825 = vset.pattern.permute.xlu0 3
      %1826 = vperm.xlu0 %1825, %v718
      %v1827 = vpop.permute.xlu0 %1826
      %v1829 = vlaneseq
      %v1830 = vshrl.u32 %v1829, 7
      %v1831 = vsub.s32 3, %v1830
      %v1832 = vrot.slane %v719, %v1831
      %v1833 = vmul.f32 %v1767, %v1832
      %v1834 = vmul.f32 %v1771, %v1832
      %v1835 = vmul.f32 %v1775, %v1832
      %v1836 = vmul.f32 %v1779, %v1832
      %v1837 = vmul.f32 %v1783, %v1832
      %v1838 = vmul.f32 %v1787, %v1832
      %v1839 = vmul.f32 %v1791, %v1832
      %v1840 = vmul.f32 %v1795, %v1832
      %v1841 = vmul.f32 %v1799, %v1832
      %v1842 = vmul.f32 %v1803, %v1832
      %v1843 = vmul.f32 %v1807, %v1832
      %v1844 = vmul.f32 %v1811, %v1832
      %v1845 = vmul.f32 %v1815, %v1832
      %v1846 = vmul.f32 %v1819, %v1832
      %v1847 = vmul.f32 %v1823, %v1832
      %v1848 = vmul.f32 %v1827, %v1832
      %v1849 = vmul.f32 %v1734, %v1625
      %v1850 = vmul.f32 %v1736, %v1626
      %v1851 = vmul.f32 %v1738, %v1627
      %v1852 = vmul.f32 %v1740, %v1628
      %v1853 = vmul.f32 %v1742, %v1629
      %v1854 = vmul.f32 %v1744, %v1630
      %v1855 = vmul.f32 %v1746, %v1631
      %v1856 = vmul.f32 %v1748, %v1632
      %v1857 = vmul.f32 %v1750, %v1633
      %v1858 = vmul.f32 %v1752, %v1634
      %v1859 = vmul.f32 %v1754, %v1635
      %v1860 = vmul.f32 %v1756, %v1636
      %v1861 = vmul.f32 %v1758, %v1637
      %v1862 = vmul.f32 %v1760, %v1638
      %v1863 = vmul.f32 %v1762, %v1639
      %v1864 = vmul.f32 %v1764, %v1640
      %v1865 = vadd.f32 %v1849, %v1833
      %v1866 = vadd.f32 %v1850, %v1834
      %v1867 = vadd.f32 %v1851, %v1835
      %v1868 = vadd.f32 %v1852, %v1836
      %v1869 = vadd.f32 %v1853, %v1837
      %v1870 = vadd.f32 %v1854, %v1838
      %v1871 = vadd.f32 %v1855, %v1839
      %v1872 = vadd.f32 %v1856, %v1840
      %v1873 = vadd.f32 %v1857, %v1841
      %v1874 = vadd.f32 %v1858, %v1842
      %v1875 = vadd.f32 %v1859, %v1843
      %v1876 = vadd.f32 %v1860, %v1844
      %v1877 = vadd.f32 %v1861, %v1845
      %v1878 = vadd.f32 %v1862, %v1846
      %v1879 = vadd.f32 %v1863, %v1847
      %v1880 = vadd.f32 %v1864, %v1848
      %v1881 = vrot.slane %v686, 3
      %1883 = vmatprep.subr.mxu0 0.0
      %1884 = vmatpush1.msra.mxu0 %v1880
      %1885 = vmatprep.subr.mxu0 0.0
      %1886 = vmatpush1.msra.mxu0 %v1879
      %1887 = vmatprep.subr.mxu0 0.0
      %1888 = vmatpush1.msra.mxu0 %v1878
      %1889 = vmatprep.subr.mxu0 0.0
      %1890 = vmatpush1.msra.mxu0 %v1877
      %1891 = vmatprep.subr.mxu0 0.0
      %1892 = vmatpush1.msra.mxu0 %v1876
      %1893 = vmatprep.subr.mxu0 0.0
      %1894 = vmatpush1.msra.mxu0 %v1875
      %1895 = vmatprep.subr.mxu0 0.0
      %1896 = vmatpush1.msra.mxu0 %v1874
      %1897 = vmatprep.subr.mxu0 0.0
      %1898 = vmatpush1.msra.mxu0 %v1873
      %1899 = vmatprep.subr.mxu0 0.0
      %1900 = vmatpush1.msra.mxu0 %v1872
      %1901 = vmatprep.subr.mxu0 0.0
      %1902 = vmatpush1.msra.mxu0 %v1871
      %1903 = vmatprep.subr.mxu0 0.0
      %1904 = vmatpush1.msra.mxu0 %v1870
      %1905 = vmatprep.subr.mxu0 0.0
      %1906 = vmatpush1.msra.mxu0 %v1869
      %1907 = vmatprep.subr.mxu0 0.0
      %1908 = vmatpush1.msra.mxu0 %v1868
      %1909 = vmatprep.subr.mxu0 0.0
      %1910 = vmatpush1.msra.mxu0 %v1867
      %1911 = vmatprep.subr.mxu0 0.0
      %1912 = vmatpush1.msra.mxu0 %v1866
      %1913 = vmatprep.subr.mxu0 0.0
      %1914 = vmatpush1.msra.mxu0 %v1865
      %1915 = vmatprep.subr.mxu0 0.0
      %1916 = vmatpush2.msra.mxu0 0.0
      %1917 = vmatprep.subr.mxu0 0.0
      %1918 = vmatpush2.msra.mxu0 0.0
      %1919 = vmatprep.subr.mxu0 0.0
      %1920 = vmatpush2.msra.mxu0 0.0
      %1921 = vmatprep.subr.mxu0 0.0
      %1922 = vmatpush2.msra.mxu0 0.0
      %1923 = vmatprep.subr.mxu0 0.0
      %1924 = vmatpush2.msra.mxu0 0.0
      %1925 = vmatprep.subr.mxu0 0.0
      %1926 = vmatpush2.msra.mxu0 0.0
      %1927 = vmatprep.subr.mxu0 0.0
      %1928 = vmatpush2.msra.mxu0 0.0
      %1929 = vmatprep.subr.mxu0 0.0
      %1930 = vmatpush2.msra.mxu0 0.0
      %1931 = vmatprep.subr.mxu0 0.0
      %1932 = vmatpush2.msra.mxu0 0.0
      %1933 = vmatprep.subr.mxu0 0.0
      %1934 = vmatpush2.msra.mxu0 0.0
      %1935 = vmatprep.subr.mxu0 0.0
      %1936 = vmatpush2.msra.mxu0 0.0
      %1937 = vmatprep.subr.mxu0 0.0
      %1938 = vmatpush2.msra.mxu0 0.0
      %1939 = vmatprep.subr.mxu0 0.0
      %1940 = vmatpush2.msra.mxu0 0.0
      %1941 = vmatprep.subr.mxu0 0.0
      %1942 = vmatpush2.msra.mxu0 0.0
      %1943 = vmatprep.subr.mxu0 0.0
      %1944 = vmatpush2.msra.mxu0 0.0
      %1945 = vmatprep.subr.mxu0 0.0
      %1946 = vmatpush2.msra.mxu0 0.0
      %1947 = vmatprep.mubr.f32.mxu0 0.0
      %1948 = vmatmul.mubr.f32.gmra.mxu0 %v1881
      %v1949 = vpop.f32.mrf.mxu0
      %v1950 = vadd.f32 0.0, %v1949
      %v1951 = vpop.f32.mrf.mxu0
      %1952 = vdwg.mxu0
      %v1953 = vlaneseq
      %v1954 = vshrl.u32 %v1953, 7
      %v1955 = vsub.s32 2, %v1954
      %v1956 = vrot.slane %v684, %v1955
      %v1957 = vmul.f32 %v1956, %v657
      %v1958 = vmul.f32 %v1956, %v658
      %v1959 = vmul.f32 %v1956, %v659
      %v1960 = vmul.f32 %v1956, %v660
      %v1961 = vmul.f32 %v1956, %v661
      %v1962 = vmul.f32 %v1956, %v662
      %v1963 = vmul.f32 %v1956, %v663
      %v1964 = vmul.f32 %v1956, %v664
      %v1965 = vmul.f32 %v1956, %v665
      %v1966 = vmul.f32 %v1956, %v666
      %v1967 = vmul.f32 %v1956, %v667
      %v1968 = vmul.f32 %v1956, %v668
      %v1969 = vmul.f32 %v1956, %v669
      %v1970 = vmul.f32 %v1956, %v670
      %v1971 = vmul.f32 %v1956, %v671
      %v1972 = vmul.f32 %v1956, %v672
      %v1973 = vmul.f32 %v1957, 1.442695
      %v1974 = vpow.pop %v1973
      %v1975 = vmul.f32 %v1958, 1.442695
      %v1976 = vpow.pop %v1975
      %v1977 = vmul.f32 %v1959, 1.442695
      %v1978 = vpow.pop %v1977
      %v1979 = vmul.f32 %v1960, 1.442695
      %v1980 = vpow.pop %v1979
      %v1981 = vmul.f32 %v1961, 1.442695
      %v1982 = vpow.pop %v1981
      %v1983 = vmul.f32 %v1962, 1.442695
      %v1984 = vpow.pop %v1983
      %v1985 = vmul.f32 %v1963, 1.442695
      %v1986 = vpow.pop %v1985
      %v1987 = vmul.f32 %v1964, 1.442695
      %v1988 = vpow.pop %v1987
      %v1989 = vmul.f32 %v1965, 1.442695
      %v1990 = vpow.pop %v1989
      %v1991 = vmul.f32 %v1966, 1.442695
      %v1992 = vpow.pop %v1991
      %v1993 = vmul.f32 %v1967, 1.442695
      %v1994 = vpow.pop %v1993
      %v1995 = vmul.f32 %v1968, 1.442695
      %v1996 = vpow.pop %v1995
      %v1997 = vmul.f32 %v1969, 1.442695
      %v1998 = vpow.pop %v1997
      %v1999 = vmul.f32 %v1970, 1.442695
      %v2000 = vpow.pop %v1999
      %v2001 = vmul.f32 %v1971, 1.442695
      %v2002 = vpow.pop %v2001
      %v2003 = vmul.f32 %v1972, 1.442695
      %v2004 = vpow.pop %v2003
      %2005 = vset.pattern.permute.xlu0 2
      %2006 = vperm.xlu0 %2005, %v703
      %v2007 = vpop.permute.xlu0 %2006
      %2009 = vset.pattern.permute.xlu0 2
      %2010 = vperm.xlu0 %2009, %v704
      %v2011 = vpop.permute.xlu0 %2010
      %2013 = vset.pattern.permute.xlu0 2
      %2014 = vperm.xlu0 %2013, %v705
      %v2015 = vpop.permute.xlu0 %2014
      %2017 = vset.pattern.permute.xlu0 2
      %2018 = vperm.xlu0 %2017, %v706
      %v2019 = vpop.permute.xlu0 %2018
      %2021 = vset.pattern.permute.xlu0 2
      %2022 = vperm.xlu0 %2021, %v707
      %v2023 = vpop.permute.xlu0 %2022
      %2025 = vset.pattern.permute.xlu0 2
      %2026 = vperm.xlu0 %2025, %v708
      %v2027 = vpop.permute.xlu0 %2026
      %2029 = vset.pattern.permute.xlu0 2
      %2030 = vperm.xlu0 %2029, %v709
      %v2031 = vpop.permute.xlu0 %2030
      %2033 = vset.pattern.permute.xlu0 2
      %2034 = vperm.xlu0 %2033, %v710
      %v2035 = vpop.permute.xlu0 %2034
      %2037 = vset.pattern.permute.xlu0 2
      %2038 = vperm.xlu0 %2037, %v711
      %v2039 = vpop.permute.xlu0 %2038
      %2041 = vset.pattern.permute.xlu0 2
      %2042 = vperm.xlu0 %2041, %v712
      %v2043 = vpop.permute.xlu0 %2042
      %2045 = vset.pattern.permute.xlu0 2
      %2046 = vperm.xlu0 %2045, %v713
      %v2047 = vpop.permute.xlu0 %2046
      %2049 = vset.pattern.permute.xlu0 2
      %2050 = vperm.xlu0 %2049, %v714
      %v2051 = vpop.permute.xlu0 %2050
      %2053 = vset.pattern.permute.xlu0 2
      %2054 = vperm.xlu0 %2053, %v715
      %v2055 = vpop.permute.xlu0 %2054
      %2057 = vset.pattern.permute.xlu0 2
      %2058 = vperm.xlu0 %2057, %v716
      %v2059 = vpop.permute.xlu0 %2058
      %2061 = vset.pattern.permute.xlu0 2
      %2062 = vperm.xlu0 %2061, %v717
      %v2063 = vpop.permute.xlu0 %2062
      %2065 = vset.pattern.permute.xlu0 2
      %2066 = vperm.xlu0 %2065, %v718
      %v2067 = vpop.permute.xlu0 %2066
      %v2069 = vlaneseq
      %v2070 = vshrl.u32 %v2069, 7
      %v2071 = vsub.s32 2, %v2070
      %v2072 = vrot.slane %v719, %v2071
      %v2073 = vmul.f32 %v2007, %v2072
      %v2074 = vmul.f32 %v2011, %v2072
      %v2075 = vmul.f32 %v2015, %v2072
      %v2076 = vmul.f32 %v2019, %v2072
      %v2077 = vmul.f32 %v2023, %v2072
      %v2078 = vmul.f32 %v2027, %v2072
      %v2079 = vmul.f32 %v2031, %v2072
      %v2080 = vmul.f32 %v2035, %v2072
      %v2081 = vmul.f32 %v2039, %v2072
      %v2082 = vmul.f32 %v2043, %v2072
      %v2083 = vmul.f32 %v2047, %v2072
      %v2084 = vmul.f32 %v2051, %v2072
      %v2085 = vmul.f32 %v2055, %v2072
      %v2086 = vmul.f32 %v2059, %v2072
      %v2087 = vmul.f32 %v2063, %v2072
      %v2088 = vmul.f32 %v2067, %v2072
      %v2089 = vmul.f32 %v1974, %v1865
      %v2090 = vmul.f32 %v1976, %v1866
      %v2091 = vmul.f32 %v1978, %v1867
      %v2092 = vmul.f32 %v1980, %v1868
      %v2093 = vmul.f32 %v1982, %v1869
      %v2094 = vmul.f32 %v1984, %v1870
      %v2095 = vmul.f32 %v1986, %v1871
      %v2096 = vmul.f32 %v1988, %v1872
      %v2097 = vmul.f32 %v1990, %v1873
      %v2098 = vmul.f32 %v1992, %v1874
      %v2099 = vmul.f32 %v1994, %v1875
      %v2100 = vmul.f32 %v1996, %v1876
      %v2101 = vmul.f32 %v1998, %v1877
      %v2102 = vmul.f32 %v2000, %v1878
      %v2103 = vmul.f32 %v2002, %v1879
      %v2104 = vmul.f32 %v2004, %v1880
      %v2105 = vadd.f32 %v2089, %v2073
      %v2106 = vadd.f32 %v2090, %v2074
      %v2107 = vadd.f32 %v2091, %v2075
      %v2108 = vadd.f32 %v2092, %v2076
      %v2109 = vadd.f32 %v2093, %v2077
      %v2110 = vadd.f32 %v2094, %v2078
      %v2111 = vadd.f32 %v2095, %v2079
      %v2112 = vadd.f32 %v2096, %v2080
      %v2113 = vadd.f32 %v2097, %v2081
      %v2114 = vadd.f32 %v2098, %v2082
      %v2115 = vadd.f32 %v2099, %v2083
      %v2116 = vadd.f32 %v2100, %v2084
      %v2117 = vadd.f32 %v2101, %v2085
      %v2118 = vadd.f32 %v2102, %v2086
      %v2119 = vadd.f32 %v2103, %v2087
      %v2120 = vadd.f32 %v2104, %v2088
      %v2121 = vrot.slane %v686, 2
      %2123 = vmatprep.subr.mxu0 0.0
      %2124 = vmatpush1.msra.mxu0 %v2120
      %2125 = vmatprep.subr.mxu0 0.0
      %2126 = vmatpush1.msra.mxu0 %v2119
      %2127 = vmatprep.subr.mxu0 0.0
      %2128 = vmatpush1.msra.mxu0 %v2118
      %2129 = vmatprep.subr.mxu0 0.0
      %2130 = vmatpush1.msra.mxu0 %v2117
      %2131 = vmatprep.subr.mxu0 0.0
      %2132 = vmatpush1.msra.mxu0 %v2116
      %2133 = vmatprep.subr.mxu0 0.0
      %2134 = vmatpush1.msra.mxu0 %v2115
      %2135 = vmatprep.subr.mxu0 0.0
      %2136 = vmatpush1.msra.mxu0 %v2114
      %2137 = vmatprep.subr.mxu0 0.0
      %2138 = vmatpush1.msra.mxu0 %v2113
      %2139 = vmatprep.subr.mxu0 0.0
      %2140 = vmatpush1.msra.mxu0 %v2112
      %2141 = vmatprep.subr.mxu0 0.0
      %2142 = vmatpush1.msra.mxu0 %v2111
      %2143 = vmatprep.subr.mxu0 0.0
      %2144 = vmatpush1.msra.mxu0 %v2110
      %2145 = vmatprep.subr.mxu0 0.0
      %2146 = vmatpush1.msra.mxu0 %v2109
      %2147 = vmatprep.subr.mxu0 0.0
      %2148 = vmatpush1.msra.mxu0 %v2108
      %2149 = vmatprep.subr.mxu0 0.0
      %2150 = vmatpush1.msra.mxu0 %v2107
      %2151 = vmatprep.subr.mxu0 0.0
      %2152 = vmatpush1.msra.mxu0 %v2106
      %2153 = vmatprep.subr.mxu0 0.0
      %2154 = vmatpush1.msra.mxu0 %v2105
      %2155 = vmatprep.subr.mxu0 0.0
      %2156 = vmatpush2.msra.mxu0 0.0
      %2157 = vmatprep.subr.mxu0 0.0
      %2158 = vmatpush2.msra.mxu0 0.0
      %2159 = vmatprep.subr.mxu0 0.0
      %2160 = vmatpush2.msra.mxu0 0.0
      %2161 = vmatprep.subr.mxu0 0.0
      %2162 = vmatpush2.msra.mxu0 0.0
      %2163 = vmatprep.subr.mxu0 0.0
      %2164 = vmatpush2.msra.mxu0 0.0
      %2165 = vmatprep.subr.mxu0 0.0
      %2166 = vmatpush2.msra.mxu0 0.0
      %2167 = vmatprep.subr.mxu0 0.0
      %2168 = vmatpush2.msra.mxu0 0.0
      %2169 = vmatprep.subr.mxu0 0.0
      %2170 = vmatpush2.msra.mxu0 0.0
      %2171 = vmatprep.subr.mxu0 0.0
      %2172 = vmatpush2.msra.mxu0 0.0
      %2173 = vmatprep.subr.mxu0 0.0
      %2174 = vmatpush2.msra.mxu0 0.0
      %2175 = vmatprep.subr.mxu0 0.0
      %2176 = vmatpush2.msra.mxu0 0.0
      %2177 = vmatprep.subr.mxu0 0.0
      %2178 = vmatpush2.msra.mxu0 0.0
      %2179 = vmatprep.subr.mxu0 0.0
      %2180 = vmatpush2.msra.mxu0 0.0
      %2181 = vmatprep.subr.mxu0 0.0
      %2182 = vmatpush2.msra.mxu0 0.0
      %2183 = vmatprep.subr.mxu0 0.0
      %2184 = vmatpush2.msra.mxu0 0.0
      %2185 = vmatprep.subr.mxu0 0.0
      %2186 = vmatpush2.msra.mxu0 0.0
      %2187 = vmatprep.mubr.f32.mxu0 0.0
      %2188 = vmatmul.mubr.f32.gmra.mxu0 %v2121
      %v2189 = vpop.f32.mrf.mxu0
      %v2190 = vadd.f32 0.0, %v2189
      %v2191 = vpop.f32.mrf.mxu0
      %2192 = vdwg.mxu0
      %v2193 = vlaneseq
      %v2194 = vshrl.u32 %v2193, 7
      %v2195 = vsub.s32 1, %v2194
      %v2196 = vrot.slane %v684, %v2195
      %v2197 = vmul.f32 %v2196, %v657
      %v2198 = vmul.f32 %v2196, %v658
      %v2199 = vmul.f32 %v2196, %v659
      %v2200 = vmul.f32 %v2196, %v660
      %v2201 = vmul.f32 %v2196, %v661
      %v2202 = vmul.f32 %v2196, %v662
      %v2203 = vmul.f32 %v2196, %v663
      %v2204 = vmul.f32 %v2196, %v664
      %v2205 = vmul.f32 %v2196, %v665
      %v2206 = vmul.f32 %v2196, %v666
      %v2207 = vmul.f32 %v2196, %v667
      %v2208 = vmul.f32 %v2196, %v668
      %v2209 = vmul.f32 %v2196, %v669
      %v2210 = vmul.f32 %v2196, %v670
      %v2211 = vmul.f32 %v2196, %v671
      %v2212 = vmul.f32 %v2196, %v672
      %v2213 = vmul.f32 %v2197, 1.442695
      %v2214 = vpow.pop %v2213
      %v2215 = vmul.f32 %v2198, 1.442695
      %v2216 = vpow.pop %v2215
      %v2217 = vmul.f32 %v2199, 1.442695
      %v2218 = vpow.pop %v2217
      %v2219 = vmul.f32 %v2200, 1.442695
      %v2220 = vpow.pop %v2219
      %v2221 = vmul.f32 %v2201, 1.442695
      %v2222 = vpow.pop %v2221
      %v2223 = vmul.f32 %v2202, 1.442695
      %v2224 = vpow.pop %v2223
      %v2225 = vmul.f32 %v2203, 1.442695
      %v2226 = vpow.pop %v2225
      %v2227 = vmul.f32 %v2204, 1.442695
      %v2228 = vpow.pop %v2227
      %v2229 = vmul.f32 %v2205, 1.442695
      %v2230 = vpow.pop %v2229
      %v2231 = vmul.f32 %v2206, 1.442695
      %v2232 = vpow.pop %v2231
      %v2233 = vmul.f32 %v2207, 1.442695
      %v2234 = vpow.pop %v2233
      %v2235 = vmul.f32 %v2208, 1.442695
      %v2236 = vpow.pop %v2235
      %v2237 = vmul.f32 %v2209, 1.442695
      %v2238 = vpow.pop %v2237
      %v2239 = vmul.f32 %v2210, 1.442695
      %v2240 = vpow.pop %v2239
      %v2241 = vmul.f32 %v2211, 1.442695
      %v2242 = vpow.pop %v2241
      %v2243 = vmul.f32 %v2212, 1.442695
      %v2244 = vpow.pop %v2243
      %2245 = vset.pattern.permute.xlu0 1
      %2246 = vperm.xlu0 %2245, %v703
      %v2247 = vpop.permute.xlu0 %2246
      %2249 = vset.pattern.permute.xlu0 1
      %2250 = vperm.xlu0 %2249, %v704
      %v2251 = vpop.permute.xlu0 %2250
      %2253 = vset.pattern.permute.xlu0 1
      %2254 = vperm.xlu0 %2253, %v705
      %v2255 = vpop.permute.xlu0 %2254
      %2257 = vset.pattern.permute.xlu0 1
      %2258 = vperm.xlu0 %2257, %v706
      %v2259 = vpop.permute.xlu0 %2258
      %2261 = vset.pattern.permute.xlu0 1
      %2262 = vperm.xlu0 %2261, %v707
      %v2263 = vpop.permute.xlu0 %2262
      %2265 = vset.pattern.permute.xlu0 1
      %2266 = vperm.xlu0 %2265, %v708
      %v2267 = vpop.permute.xlu0 %2266
      %2269 = vset.pattern.permute.xlu0 1
      %2270 = vperm.xlu0 %2269, %v709
      %v2271 = vpop.permute.xlu0 %2270
      %2273 = vset.pattern.permute.xlu0 1
      %2274 = vperm.xlu0 %2273, %v710
      %v2275 = vpop.permute.xlu0 %2274
      %2277 = vset.pattern.permute.xlu0 1
      %2278 = vperm.xlu0 %2277, %v711
      %v2279 = vpop.permute.xlu0 %2278
      %2281 = vset.pattern.permute.xlu0 1
      %2282 = vperm.xlu0 %2281, %v712
      %v2283 = vpop.permute.xlu0 %2282
      %2285 = vset.pattern.permute.xlu0 1
      %2286 = vperm.xlu0 %2285, %v713
      %v2287 = vpop.permute.xlu0 %2286
      %2289 = vset.pattern.permute.xlu0 1
      %2290 = vperm.xlu0 %2289, %v714
      %v2291 = vpop.permute.xlu0 %2290
      %2293 = vset.pattern.permute.xlu0 1
      %2294 = vperm.xlu0 %2293, %v715
      %v2295 = vpop.permute.xlu0 %2294
      %2297 = vset.pattern.permute.xlu0 1
      %2298 = vperm.xlu0 %2297, %v716
      %v2299 = vpop.permute.xlu0 %2298
      %2301 = vset.pattern.permute.xlu0 1
      %2302 = vperm.xlu0 %2301, %v717
      %v2303 = vpop.permute.xlu0 %2302
      %2305 = vset.pattern.permute.xlu0 1
      %2306 = vperm.xlu0 %2305, %v718
      %v2307 = vpop.permute.xlu0 %2306
      %v2309 = vlaneseq
      %v2310 = vshrl.u32 %v2309, 7
      %v2311 = vsub.s32 1, %v2310
      %v2312 = vrot.slane %v719, %v2311
      %v2313 = vmul.f32 %v2247, %v2312
      %v2314 = vmul.f32 %v2251, %v2312
      %v2315 = vmul.f32 %v2255, %v2312
      %v2316 = vmul.f32 %v2259, %v2312
      %v2317 = vmul.f32 %v2263, %v2312
      %v2318 = vmul.f32 %v2267, %v2312
      %v2319 = vmul.f32 %v2271, %v2312
      %v2320 = vmul.f32 %v2275, %v2312
      %v2321 = vmul.f32 %v2279, %v2312
      %v2322 = vmul.f32 %v2283, %v2312
      %v2323 = vmul.f32 %v2287, %v2312
      %v2324 = vmul.f32 %v2291, %v2312
      %v2325 = vmul.f32 %v2295, %v2312
      %v2326 = vmul.f32 %v2299, %v2312
      %v2327 = vmul.f32 %v2303, %v2312
      %v2328 = vmul.f32 %v2307, %v2312
      %v2329 = vmul.f32 %v2214, %v2105
      %v2330 = vmul.f32 %v2216, %v2106
      %v2331 = vmul.f32 %v2218, %v2107
      %v2332 = vmul.f32 %v2220, %v2108
      %v2333 = vmul.f32 %v2222, %v2109
      %v2334 = vmul.f32 %v2224, %v2110
      %v2335 = vmul.f32 %v2226, %v2111
      %v2336 = vmul.f32 %v2228, %v2112
      %v2337 = vmul.f32 %v2230, %v2113
      %v2338 = vmul.f32 %v2232, %v2114
      %v2339 = vmul.f32 %v2234, %v2115
      %v2340 = vmul.f32 %v2236, %v2116
      %v2341 = vmul.f32 %v2238, %v2117
      %v2342 = vmul.f32 %v2240, %v2118
      %v2343 = vmul.f32 %v2242, %v2119
      %v2344 = vmul.f32 %v2244, %v2120
      %v2345 = vadd.f32 %v2329, %v2313
      %v2346 = vadd.f32 %v2330, %v2314
      %v2347 = vadd.f32 %v2331, %v2315
      %v2348 = vadd.f32 %v2332, %v2316
      %v2349 = vadd.f32 %v2333, %v2317
      %v2350 = vadd.f32 %v2334, %v2318
      %v2351 = vadd.f32 %v2335, %v2319
      %v2352 = vadd.f32 %v2336, %v2320
      %v2353 = vadd.f32 %v2337, %v2321
      %v2354 = vadd.f32 %v2338, %v2322
      %v2355 = vadd.f32 %v2339, %v2323
      %v2356 = vadd.f32 %v2340, %v2324
      %v2357 = vadd.f32 %v2341, %v2325
      %v2358 = vadd.f32 %v2342, %v2326
      %v2359 = vadd.f32 %v2343, %v2327
      %v2360 = vadd.f32 %v2344, %v2328
      %v2361 = vrot.slane %v686, 1
      %2363 = vmatprep.subr.mxu0 0.0
      %2364 = vmatpush1.msra.mxu0 %v2360
      %2365 = vmatprep.subr.mxu0 0.0
      %2366 = vmatpush1.msra.mxu0 %v2359
      %2367 = vmatprep.subr.mxu0 0.0
      %2368 = vmatpush1.msra.mxu0 %v2358
      %2369 = vmatprep.subr.mxu0 0.0
      %2370 = vmatpush1.msra.mxu0 %v2357
      %2371 = vmatprep.subr.mxu0 0.0
      %2372 = vmatpush1.msra.mxu0 %v2356
      %2373 = vmatprep.subr.mxu0 0.0
      %2374 = vmatpush1.msra.mxu0 %v2355
      %2375 = vmatprep.subr.mxu0 0.0
      %2376 = vmatpush1.msra.mxu0 %v2354
      %2377 = vmatprep.subr.mxu0 0.0
      %2378 = vmatpush1.msra.mxu0 %v2353
      %2379 = vmatprep.subr.mxu0 0.0
      %2380 = vmatpush1.msra.mxu0 %v2352
      %2381 = vmatprep.subr.mxu0 0.0
      %2382 = vmatpush1.msra.mxu0 %v2351
      %2383 = vmatprep.subr.mxu0 0.0
      %2384 = vmatpush1.msra.mxu0 %v2350
      %2385 = vmatprep.subr.mxu0 0.0
      %2386 = vmatpush1.msra.mxu0 %v2349
      %2387 = vmatprep.subr.mxu0 0.0
      %2388 = vmatpush1.msra.mxu0 %v2348
      %2389 = vmatprep.subr.mxu0 0.0
      %2390 = vmatpush1.msra.mxu0 %v2347
      %2391 = vmatprep.subr.mxu0 0.0
      %2392 = vmatpush1.msra.mxu0 %v2346
      %2393 = vmatprep.subr.mxu0 0.0
      %2394 = vmatpush1.msra.mxu0 %v2345
      %2395 = vmatprep.subr.mxu0 0.0
      %2396 = vmatpush2.msra.mxu0 0.0
      %2397 = vmatprep.subr.mxu0 0.0
      %2398 = vmatpush2.msra.mxu0 0.0
      %2399 = vmatprep.subr.mxu0 0.0
      %2400 = vmatpush2.msra.mxu0 0.0
      %2401 = vmatprep.subr.mxu0 0.0
      %2402 = vmatpush2.msra.mxu0 0.0
      %2403 = vmatprep.subr.mxu0 0.0
      %2404 = vmatpush2.msra.mxu0 0.0
      %2405 = vmatprep.subr.mxu0 0.0
      %2406 = vmatpush2.msra.mxu0 0.0
      %2407 = vmatprep.subr.mxu0 0.0
      %2408 = vmatpush2.msra.mxu0 0.0
      %2409 = vmatprep.subr.mxu0 0.0
      %2410 = vmatpush2.msra.mxu0 0.0
      %2411 = vmatprep.subr.mxu0 0.0
      %2412 = vmatpush2.msra.mxu0 0.0
      %2413 = vmatprep.subr.mxu0 0.0
      %2414 = vmatpush2.msra.mxu0 0.0
      %2415 = vmatprep.subr.mxu0 0.0
      %2416 = vmatpush2.msra.mxu0 0.0
      %2417 = vmatprep.subr.mxu0 0.0
      %2418 = vmatpush2.msra.mxu0 0.0
      %2419 = vmatprep.subr.mxu0 0.0
      %2420 = vmatpush2.msra.mxu0 0.0
      %2421 = vmatprep.subr.mxu0 0.0
      %2422 = vmatpush2.msra.mxu0 0.0
      %2423 = vmatprep.subr.mxu0 0.0
      %2424 = vmatpush2.msra.mxu0 0.0
      %2425 = vmatprep.subr.mxu0 0.0
      %2426 = vmatpush2.msra.mxu0 0.0
      %2427 = vmatprep.mubr.f32.mxu0 0.0
      %2428 = vmatmul.mubr.f32.gmra.mxu0 %v2361
      %v2429 = vpop.f32.mrf.mxu0
      %v2430 = vadd.f32 0.0, %v2429
      %v2431 = vpop.f32.mrf.mxu0
      %2432 = vdwg.mxu0
      %v2433 = vlaneseq
      %v2434 = vshrl.u32 %v2433, 7
      %v2435 = vsub.s32 0, %v2434
      %v2436 = vrot.slane %v684, %v2435
      %v2437 = vmul.f32 %v2436, %v657
      %v2438 = vmul.f32 %v2436, %v658
      %v2439 = vmul.f32 %v2436, %v659
      %v2440 = vmul.f32 %v2436, %v660
      %v2441 = vmul.f32 %v2436, %v661
      %v2442 = vmul.f32 %v2436, %v662
      %v2443 = vmul.f32 %v2436, %v663
      %v2444 = vmul.f32 %v2436, %v664
      %v2445 = vmul.f32 %v2436, %v665
      %v2446 = vmul.f32 %v2436, %v666
      %v2447 = vmul.f32 %v2436, %v667
      %v2448 = vmul.f32 %v2436, %v668
      %v2449 = vmul.f32 %v2436, %v669
      %v2450 = vmul.f32 %v2436, %v670
      %v2451 = vmul.f32 %v2436, %v671
      %v2452 = vmul.f32 %v2436, %v672
      %v2453 = vmul.f32 %v2437, 1.442695
      %v2454 = vpow.pop %v2453
      %v2455 = vmul.f32 %v2438, 1.442695
      %v2456 = vpow.pop %v2455
      %v2457 = vmul.f32 %v2439, 1.442695
      %v2458 = vpow.pop %v2457
      %v2459 = vmul.f32 %v2440, 1.442695
      %v2460 = vpow.pop %v2459
      %v2461 = vmul.f32 %v2441, 1.442695
      %v2462 = vpow.pop %v2461
      %v2463 = vmul.f32 %v2442, 1.442695
      %v2464 = vpow.pop %v2463
      %v2465 = vmul.f32 %v2443, 1.442695
      %v2466 = vpow.pop %v2465
      %v2467 = vmul.f32 %v2444, 1.442695
      %v2468 = vpow.pop %v2467
      %v2469 = vmul.f32 %v2445, 1.442695
      %v2470 = vpow.pop %v2469
      %v2471 = vmul.f32 %v2446, 1.442695
      %v2472 = vpow.pop %v2471
      %v2473 = vmul.f32 %v2447, 1.442695
      %v2474 = vpow.pop %v2473
      %v2475 = vmul.f32 %v2448, 1.442695
      %v2476 = vpow.pop %v2475
      %v2477 = vmul.f32 %v2449, 1.442695
      %v2478 = vpow.pop %v2477
      %v2479 = vmul.f32 %v2450, 1.442695
      %v2480 = vpow.pop %v2479
      %v2481 = vmul.f32 %v2451, 1.442695
      %v2482 = vpow.pop %v2481
      %v2483 = vmul.f32 %v2452, 1.442695
      %v2484 = vpow.pop %v2483
      %2485 = vset.pattern.permute.xlu0 0
      %2486 = vperm.xlu0 %2485, %v703
      %v2487 = vpop.permute.xlu0 %2486
      %2489 = vset.pattern.permute.xlu0 0
      %2490 = vperm.xlu0 %2489, %v704
      %v2491 = vpop.permute.xlu0 %2490
      %2493 = vset.pattern.permute.xlu0 0
      %2494 = vperm.xlu0 %2493, %v705
      %v2495 = vpop.permute.xlu0 %2494
      %2497 = vset.pattern.permute.xlu0 0
      %2498 = vperm.xlu0 %2497, %v706
      %v2499 = vpop.permute.xlu0 %2498
      %2501 = vset.pattern.permute.xlu0 0
      %2502 = vperm.xlu0 %2501, %v707
      %v2503 = vpop.permute.xlu0 %2502
      %2505 = vset.pattern.permute.xlu0 0
      %2506 = vperm.xlu0 %2505, %v708
      %v2507 = vpop.permute.xlu0 %2506
      %2509 = vset.pattern.permute.xlu0 0
      %2510 = vperm.xlu0 %2509, %v709
      %v2511 = vpop.permute.xlu0 %2510
      %2513 = vset.pattern.permute.xlu0 0
      %2514 = vperm.xlu0 %2513, %v710
      %v2515 = vpop.permute.xlu0 %2514
      %2517 = vset.pattern.permute.xlu0 0
      %2518 = vperm.xlu0 %2517, %v711
      %v2519 = vpop.permute.xlu0 %2518
      %2521 = vset.pattern.permute.xlu0 0
      %2522 = vperm.xlu0 %2521, %v712
      %v2523 = vpop.permute.xlu0 %2522
      %2525 = vset.pattern.permute.xlu0 0
      %2526 = vperm.xlu0 %2525, %v713
      %v2527 = vpop.permute.xlu0 %2526
      %2529 = vset.pattern.permute.xlu0 0
      %2530 = vperm.xlu0 %2529, %v714
      %v2531 = vpop.permute.xlu0 %2530
      %2533 = vset.pattern.permute.xlu0 0
      %2534 = vperm.xlu0 %2533, %v715
      %v2535 = vpop.permute.xlu0 %2534
      %2537 = vset.pattern.permute.xlu0 0
      %2538 = vperm.xlu0 %2537, %v716
      %v2539 = vpop.permute.xlu0 %2538
      %2541 = vset.pattern.permute.xlu0 0
      %2542 = vperm.xlu0 %2541, %v717
      %v2543 = vpop.permute.xlu0 %2542
      %2545 = vset.pattern.permute.xlu0 0
      %2546 = vperm.xlu0 %2545, %v718
      %v2547 = vpop.permute.xlu0 %2546
      %v2549 = vlaneseq
      %v2550 = vshrl.u32 %v2549, 7
      %v2551 = vsub.s32 0, %v2550
      %v2552 = vrot.slane %v719, %v2551
      %v2553 = vmul.f32 %v2487, %v2552
      %v2554 = vmul.f32 %v2491, %v2552
      %v2555 = vmul.f32 %v2495, %v2552
      %v2556 = vmul.f32 %v2499, %v2552
      %v2557 = vmul.f32 %v2503, %v2552
      %v2558 = vmul.f32 %v2507, %v2552
      %v2559 = vmul.f32 %v2511, %v2552
      %v2560 = vmul.f32 %v2515, %v2552
      %v2561 = vmul.f32 %v2519, %v2552
      %v2562 = vmul.f32 %v2523, %v2552
      %v2563 = vmul.f32 %v2527, %v2552
      %v2564 = vmul.f32 %v2531, %v2552
      %v2565 = vmul.f32 %v2535, %v2552
      %v2566 = vmul.f32 %v2539, %v2552
      %v2567 = vmul.f32 %v2543, %v2552
      %v2568 = vmul.f32 %v2547, %v2552
      %v2569 = vmul.f32 %v2454, %v2345
      %v2570 = vmul.f32 %v2456, %v2346
      %v2571 = vmul.f32 %v2458, %v2347
      %v2572 = vmul.f32 %v2460, %v2348
      %v2573 = vmul.f32 %v2462, %v2349
      %v2574 = vmul.f32 %v2464, %v2350
      %v2575 = vmul.f32 %v2466, %v2351
      %v2576 = vmul.f32 %v2468, %v2352
      %v2577 = vmul.f32 %v2470, %v2353
      %v2578 = vmul.f32 %v2472, %v2354
      %v2579 = vmul.f32 %v2474, %v2355
      %v2580 = vmul.f32 %v2476, %v2356
      %v2581 = vmul.f32 %v2478, %v2357
      %v2582 = vmul.f32 %v2480, %v2358
      %v2583 = vmul.f32 %v2482, %v2359
      %v2584 = vmul.f32 %v2484, %v2360
      %v2585 = vadd.f32 %v2569, %v2553
      %v2586 = vadd.f32 %v2570, %v2554
      %v2587 = vadd.f32 %v2571, %v2555
      %v2588 = vadd.f32 %v2572, %v2556
      %v2589 = vadd.f32 %v2573, %v2557
      %v2590 = vadd.f32 %v2574, %v2558
      %v2591 = vadd.f32 %v2575, %v2559
      %v2592 = vadd.f32 %v2576, %v2560
      %v2593 = vadd.f32 %v2577, %v2561
      %v2594 = vadd.f32 %v2578, %v2562
      %v2595 = vadd.f32 %v2579, %v2563
      %v2596 = vadd.f32 %v2580, %v2564
      %v2597 = vadd.f32 %v2581, %v2565
      %v2598 = vadd.f32 %v2582, %v2566
      %v2599 = vadd.f32 %v2583, %v2567
      %v2600 = vadd.f32 %v2584, %v2568
      %2601 = vmatprep.subr.mxu0 0.0
      %2602 = vmatpush1.msra.mxu0 %v2600
      %2603 = vmatprep.subr.mxu0 0.0
      %2604 = vmatpush1.msra.mxu0 %v2599
      %2605 = vmatprep.subr.mxu0 0.0
      %2606 = vmatpush1.msra.mxu0 %v2598
      %2607 = vmatprep.subr.mxu0 0.0
      %2608 = vmatpush1.msra.mxu0 %v2597
      %2609 = vmatprep.subr.mxu0 0.0
      %2610 = vmatpush1.msra.mxu0 %v2596
      %2611 = vmatprep.subr.mxu0 0.0
      %2612 = vmatpush1.msra.mxu0 %v2595
      %2613 = vmatprep.subr.mxu0 0.0
      %2614 = vmatpush1.msra.mxu0 %v2594
      %2615 = vmatprep.subr.mxu0 0.0
      %2616 = vmatpush1.msra.mxu0 %v2593
      %2617 = vmatprep.subr.mxu0 0.0
      %2618 = vmatpush1.msra.mxu0 %v2592
      %2619 = vmatprep.subr.mxu0 0.0
      %2620 = vmatpush1.msra.mxu0 %v2591
      %2621 = vmatprep.subr.mxu0 0.0
      %2622 = vmatpush1.msra.mxu0 %v2590
      %2623 = vmatprep.subr.mxu0 0.0
      %2624 = vmatpush1.msra.mxu0 %v2589
      %2625 = vmatprep.subr.mxu0 0.0
      %2626 = vmatpush1.msra.mxu0 %v2588
      %2627 = vmatprep.subr.mxu0 0.0
      %2628 = vmatpush1.msra.mxu0 %v2587
      %2629 = vmatprep.subr.mxu0 0.0
      %2630 = vmatpush1.msra.mxu0 %v2586
      %2631 = vmatprep.subr.mxu0 0.0
      %2632 = vmatpush1.msra.mxu0 %v2585
      %2633 = vmatprep.subr.mxu0 0.0
      %2634 = vmatpush2.msra.mxu0 0.0
      %2635 = vmatprep.subr.mxu0 0.0
      %2636 = vmatpush2.msra.mxu0 0.0
      %2637 = vmatprep.subr.mxu0 0.0
      %2638 = vmatpush2.msra.mxu0 0.0
      %2639 = vmatprep.subr.mxu0 0.0
      %2640 = vmatpush2.msra.mxu0 0.0
      %2641 = vmatprep.subr.mxu0 0.0
      %2642 = vmatpush2.msra.mxu0 0.0
      %2643 = vmatprep.subr.mxu0 0.0
      %2644 = vmatpush2.msra.mxu0 0.0
      %2645 = vmatprep.subr.mxu0 0.0
      %2646 = vmatpush2.msra.mxu0 0.0
      %2647 = vmatprep.subr.mxu0 0.0
      %2648 = vmatpush2.msra.mxu0 0.0
      %2649 = vmatprep.subr.mxu0 0.0
      %2650 = vmatpush2.msra.mxu0 0.0
      %2651 = vmatprep.subr.mxu0 0.0
      %2652 = vmatpush2.msra.mxu0 0.0
      %2653 = vmatprep.subr.mxu0 0.0
      %2654 = vmatpush2.msra.mxu0 0.0
      %2655 = vmatprep.subr.mxu0 0.0
      %2656 = vmatpush2.msra.mxu0 0.0
      %2657 = vmatprep.subr.mxu0 0.0
      %2658 = vmatpush2.msra.mxu0 0.0
      %2659 = vmatprep.subr.mxu0 0.0
      %2660 = vmatpush2.msra.mxu0 0.0
      %2661 = vmatprep.subr.mxu0 0.0
      %2662 = vmatpush2.msra.mxu0 0.0
      %2663 = vmatprep.subr.mxu0 0.0
      %2664 = vmatpush2.msra.mxu0 0.0
      %2665 = vmatprep.mubr.f32.mxu0 0.0
      %2666 = vmatmul.mubr.f32.gmra.mxu0 %v686
      %v2667 = vpop.f32.mrf.mxu0
      %v2668 = vadd.f32 0.0, %v2667
      %v2669 = vpop.f32.mrf.mxu0
      %2670 = vdwg.mxu0
      %2671 = vst [vmem:[#allocation2] sm:$0xff] %v2585
      %2672 = vst [vmem:[#allocation2 + $0x8] sm:$0xff] %v2586
      %2673 = vst [vmem:[#allocation2 + $0x10] sm:$0xff] %v2587
      %2674 = vst [vmem:[#allocation2 + $0x18] sm:$0xff] %v2588
      %2675 = vst [vmem:[#allocation2 + $0x20] sm:$0xff] %v2589
      %2676 = vst [vmem:[#allocation2 + $0x28] sm:$0xff] %v2590
      %2677 = vst [vmem:[#allocation2 + $0x30] sm:$0xff] %v2591
      %2678 = vst [vmem:[#allocation2 + $0x38] sm:$0xff] %v2592
      %2679 = vst [vmem:[#allocation2 + $0x40] sm:$0xff] %v2593
      %2680 = vst [vmem:[#allocation2 + $0x48] sm:$0xff] %v2594
      %2681 = vst [vmem:[#allocation2 + $0x50] sm:$0xff] %v2595
      %2682 = vst [vmem:[#allocation2 + $0x58] sm:$0xff] %v2596
      %2683 = vst [vmem:[#allocation2 + $0x60] sm:$0xff] %v2597
      %2684 = vst [vmem:[#allocation2 + $0x68] sm:$0xff] %v2598
      %2685 = vst [vmem:[#allocation2 + $0x70] sm:$0xff] %v2599
      %2686 = vst [vmem:[#allocation2 + $0x78] sm:$0xff] %v2600
      %v2688 = vrot.slane %v2430, 7
      %v2691 = vrot.slane %v2190, 6
      %v2694 = vrot.slane %v1950, 5
      %v2697 = vrot.slane %v1710, 4
      %v2700 = vrot.slane %v1470, 3
      %v2703 = vrot.slane %v1230, 2
      %v2706 = vrot.slane %v990, 1
      %vm2708 = vcmask 1040384
      %v2709 = vsel %vm2708, %v2668, %v2688
      %vm2710 = vcmask 1041408
      %v2711 = vsel %vm2710, %v2709, %v2691
      %vm2712 = vcmask 1042432
      %v2713 = vsel %vm2712, %v2711, %v2694
      %vm2714 = vcmask 1043456
      %v2715 = vsel %vm2714, %v2713, %v2697
      %vm2716 = vcmask 1044480
      %v2717 = vsel %vm2716, %v2715, %v2700
      %vm2718 = vcmask 1045504
      %v2719 = vsel %vm2718, %v2717, %v2703
      %vm2720 = vcmask 1046528
      %v2721 = vsel %vm2720, %v2719, %v2706
      %v2722 = vld [vmem:[%s612] sm:$0x1]
      %v2724 = vlaneseq
      %v2725 = vshrl.u32 %v2724, 7
      %v2726 = vsub.s32 0, %v2725
      %v2727 = vrot.slane %v2722, %v2726
      %v2729 = vmul.f32 %v2727, %v673
      %v2730 = vadd.f32 %v2721, %v2729
      %v2731 = vsub.f32 0.0, %v674
      %v2732 = vmul.f32 %v2731, 1.442695
      %v2733 = vpow.pop %v2732
      %v2734 = vadd.f32 %v2733, 1.0
      %v2735 = vrcp.pop %v2734
      %v2736 = vmul.f32 %v674, %v2735
      %v2737 = vmul.f32 %v2730, %v2736
      %v2738 = vld [vmem:[%s623] sm:$0xff]
      %v2739 = vadd.f32 %v2737, %v2738
      %2740 = vst [vmem:[%s635] sm:$0xff] %v2739
      %s2741 = ssub.s32 0, %s26
      %p2742 = scmp.lt.s32.totalorder %s24, 1
      %s2743 = scalar_select %p2742, %s24, 1
      %p2744 = scmp.lt.s32.totalorder %s2741, 0
      %s2745 = scalar_select %p2744, %s2741, 0
      %p2746 = scmp.lt.s32.totalorder %s25, 0
      %s2747 = scalar_select %p2746, %s25, 0
      %s2748 = sadd.s32 %s2747, %s2745
      %s2749 = sadd.s32 %s2748, %s2743
      %s2750 = smul.addr %s2749, 8
      %s2751 = scalar_lea.vmem %s8, %s2750
      // Predicated region
      $region57: #{_lambda_.35} parent=51 // pred_check
        %p2752 = pneg %p304
      $region58: #{_lambda_.35} parent=51 // pred_check_branch
        %2754 = sbr.rel (%p2752) target = $region60
      $region59: #{_lambda_.35} parent=51 // pred_region
        %s2755 = ssub.s32 0, %s26
      $region60: #{_lambda_.35} parent=51 // pred_fallthru
        _
    $region52: #{_lambda_.35} parent=5 // pred_fallthru
      _
    %p2756 = scmp.le.s32.totalorder 2, %s14
    // Predicated region
    $region61: #{_lambda_.35} parent=5 // pred_check
      %p2757 = pneg %p2756
    $region62: #{_lambda_.35} parent=5 // pred_check_branch
      %2759 = sbr.rel (%p2757) target = $region64
    $region63: #{_lambda_.35} parent=5 // pred_region
      %s2760 = ssub.s32 %s14, 2
      // Predicated region
      $region65: #{_lambda_.35} parent=63 // pred_check
        %p2761 = pneg %p310
      $region66: #{_lambda_.35} parent=63 // pred_check_branch
        %2763 = sbr.rel (%p2761) target = $region68
      $region67: #{_lambda_.35} parent=63 // pred_region
        %s2764 = ssub.s32 0, %s29
        %p2765 = scmp.lt.s32.totalorder %s27, 1
        %s2766 = scalar_select %p2765, %s27, 1
        %p2767 = scmp.lt.s32.totalorder %s2764, 0
        %s2768 = scalar_select %p2767, %s2764, 0
        %p2769 = scmp.lt.s32.totalorder %s28, 0
        %s2770 = scalar_select %p2769, %s28, 0
        %s2771 = sadd.s32 %s2770, %s2768
        %s2772 = sadd.s32 %s2771, %s2766
        %s2773 = smul.addr %s2772, 8
        %s2774 = scalar_lea.vmem %s8, %s2773
      $region68: #{_lambda_.35} parent=63 // pred_fallthru
        _
    $region64: #{_lambda_.35} parent=5 // pred_fallthru
      _
  $region6: #{_lambda_.35} parent=0 // loop_footer
    %s18 = sadd.s32 1, %s14
  $region7: #{_lambda_.35} parent=0 // loop_footer_branch
    %13 = sbr.rel target = $region3
  $region8: #{_lambda_.35} parent=0 // loop_exit
    _

// kernel: _lambda_.38
$region0: #{_lambda_.38}
  #allocation0 [shape = 'u32[]', space=smem, size = 0x4, offset = 0x4, fixed_abs, tag = 'smem constant byte address 0x4 - core index']
  #allocation1 [shape = 'u32[144,128]{1,0:T(1,128)}', space=vmem, size = 0x12000, scoped, tag = 'internal scratch']
  #allocation2 [shape = 'f32[16,128]{1,0:T(8,128)}', space=vmem, size = 0x2000, scoped, tag = 'scratch operand']
  %s0 = inlined_call_operand.vmem [shape: f32[16,128], index: 0, kind: input, shape index: {}]
  %s1 = inlined_call_operand.vmem [shape: bf16[128,128], index: 1, kind: input, shape index: {}]
  %s2 = inlined_call_operand.vmem [shape: f32[1,128], index: 2, kind: input, shape index: {}]
  %s3 = inlined_call_operand.vmem [shape: f32[1,128], index: 3, kind: input, shape index: {}]
  %s4 = inlined_call_operand.vmem [shape: f32[1,128], index: 4, kind: input, shape index: {}]
  %s5 = inlined_call_operand.vmem [shape: f32[16,128], index: 5, kind: input, shape index: {}]
  %s6 = inlined_call_operand.vmem [shape: f32[16,128], index: 6, kind: output, shape index: {}]
  %s7 = sld [smem:[#allocation0]]
  $region42: #{_lambda_.38} parent=0
    _
  %s9 = ssub.s32 1, %s7
  %s10 = scalar_select 0, %s9, %s7
  // Predicated region
  $region2: #{_lambda_.38} parent=0 // pred_check
    _
  $region3: #{_lambda_.38} parent=0 // pred_check_branch
    %12 = sbr.rel (0) target = $region5
  $region4: #{_lambda_.38} parent=0 // pred_region
    _
  $region5: #{_lambda_.38} parent=0 // pred_fallthru
    _
  // Predicated region
  $region6: #{_lambda_.38} parent=0 // pred_check
    _
  $region7: #{_lambda_.38} parent=0 // pred_check_branch
    %14 = sbr.rel (0) target = $region9
  $region8: #{_lambda_.38} parent=0 // pred_region
    _
  $region9: #{_lambda_.38} parent=0 // pred_fallthru
    _
  // Predicated region
  $region10: #{_lambda_.38} parent=0 // pred_check
    _
  $region11: #{_lambda_.38} parent=0 // pred_check_branch
    %16 = sbr.rel (0) target = $region13
  $region12: #{_lambda_.38} parent=0 // pred_region
    _
  $region13: #{_lambda_.38} parent=0 // pred_fallthru
    _
  // Predicated region
  $region14: #{_lambda_.38} parent=0 // pred_check
    _
  $region15: #{_lambda_.38} parent=0 // pred_check_branch
    %18 = sbr.rel (0) target = $region17
  $region16: #{_lambda_.38} parent=0 // pred_region
    _
  $region17: #{_lambda_.38} parent=0 // pred_fallthru
    _
  // Predicated region
  $region18: #{_lambda_.38} parent=0 // pred_check
    _
  $region19: #{_lambda_.38} parent=0 // pred_check_branch
    %20 = sbr.rel (0) target = $region21
  $region20: #{_lambda_.38} parent=0 // pred_region
    _
  $region21: #{_lambda_.38} parent=0 // pred_fallthru
    _
  // Predicated region
  $region22: #{_lambda_.38} parent=0 // pred_check
    _
  $region23: #{_lambda_.38} parent=0 // pred_check_branch
    %22 = sbr.rel (0) target = $region25
  $region24: #{_lambda_.38} parent=0 // pred_region
    _
  $region25: #{_lambda_.38} parent=0 // pred_fallthru
    _
  %p24 = scmp.eq.s32.totalorder 0, 0
  // Predicated region
  $region26: #{_lambda_.38} parent=0 // pred_check
    %p25 = pneg %p24
  $region27: #{_lambda_.38} parent=0 // pred_check_branch
    %27 = sbr.rel (%p25) target = $region29
  $region28: #{_lambda_.38} parent=0 // pred_region
    %28 = vst [vmem:[#allocation2] sm:$0xff] 0.0
    %29 = vst [vmem:[#allocation2 + $0x8] sm:$0xff] 0.0
  $region29: #{_lambda_.38} parent=0 // pred_fallthru
    _
  %v30 = vld [vmem:[#allocation2] sm:$0xff]
  %v31 = vld [vmem:[#allocation2 + $0x8] sm:$0xff]
  %v32 = vld [vmem:[%s0] sm:$0xff]
  %v33 = vld [vmem:[%s0 + $0x8] sm:$0xff]
  %v34 = vpack.c.bf16 %v33, %v32
  %v35 = vld [vmem:[%s1] sm:$0xf]
  %v36 = vld [vmem:[%s1 + $0x4] sm:$0xf]
  %v37 = vld [vmem:[%s1 + $0x8] sm:$0xf]
  %v38 = vld [vmem:[%s1 + $0xc] sm:$0xf]
  %v39 = vld [vmem:[%s1 + $0x10] sm:$0xf]
  %v40 = vld [vmem:[%s1 + $0x14] sm:$0xf]
  %v41 = vld [vmem:[%s1 + $0x18] sm:$0xf]
  %v42 = vld [vmem:[%s1 + $0x1c] sm:$0xf]
  %v43 = vld [vmem:[%s1 + $0x20] sm:$0xf]
  %v44 = vld [vmem:[%s1 + $0x24] sm:$0xf]
  %v45 = vld [vmem:[%s1 + $0x28] sm:$0xf]
  %v46 = vld [vmem:[%s1 + $0x2c] sm:$0xf]
  %v47 = vld [vmem:[%s1 + $0x30] sm:$0xf]
  %v48 = vld [vmem:[%s1 + $0x34] sm:$0xf]
  %v49 = vld [vmem:[%s1 + $0x38] sm:$0xf]
  %v50 = vld [vmem:[%s1 + $0x3c] sm:$0xf]
  %v67 = vunpack.c.l.b16 %v35
  %v68 = vunpack.c.l.b16 %v36
  %v69 = vunpack.c.l.b16 %v37
  %v70 = vunpack.c.l.b16 %v38
  %v71 = vunpack.c.l.b16 %v39
  %v72 = vunpack.c.l.b16 %v40
  %v73 = vunpack.c.l.b16 %v41
  %v74 = vunpack.c.l.b16 %v42
  %v75 = vunpack.c.l.b16 %v43
  %v76 = vunpack.c.l.b16 %v44
  %v77 = vunpack.c.l.b16 %v45
  %v78 = vunpack.c.l.b16 %v46
  %v79 = vunpack.c.l.b16 %v47
  %v80 = vunpack.c.l.b16 %v48
  %v81 = vunpack.c.l.b16 %v49
  %v82 = vunpack.c.l.b16 %v50
  %v83 = vpack.c.b16 %v68, %v67
  %v84 = vpack.c.b16 %v70, %v69
  %v85 = vpack.c.b16 %v72, %v71
  %v86 = vpack.c.b16 %v74, %v73
  %v87 = vpack.c.b16 %v76, %v75
  %v88 = vpack.c.b16 %v78, %v77
  %v89 = vpack.c.b16 %v80, %v79
  %v90 = vpack.c.b16 %v82, %v81
  %99 = vmatprep.subr.bf16.mxu0 0
  %100 = vmatpush1.bf16.msra.mxu0 %v90
  %101 = vmatprep.subr.bf16.mxu0 0
  %102 = vmatpush1.bf16.msra.mxu0 %v89
  %103 = vmatprep.subr.bf16.mxu0 0
  %104 = vmatpush1.bf16.msra.mxu0 %v88
  %105 = vmatprep.subr.bf16.mxu0 0
  %106 = vmatpush1.bf16.msra.mxu0 %v87
  %107 = vmatprep.subr.bf16.mxu0 0
  %108 = vmatpush1.bf16.msra.mxu0 %v86
  %109 = vmatprep.subr.bf16.mxu0 0
  %110 = vmatpush1.bf16.msra.mxu0 %v85
  %111 = vmatprep.subr.bf16.mxu0 0
  %112 = vmatpush1.bf16.msra.mxu0 %v84
  %113 = vmatprep.subr.bf16.mxu0 0
  %114 = vmatpush1.bf16.msra.mxu0 %v83
  %115 = vmatprep.subr.bf16.mxu0 0
  %116 = vmatpush2.bf16.msra.mxu0 0
  %117 = vmatprep.subr.bf16.mxu0 0
  %118 = vmatpush2.bf16.msra.mxu0 0
  %119 = vmatprep.subr.bf16.mxu0 0
  %120 = vmatpush2.bf16.msra.mxu0 0
  %121 = vmatprep.subr.bf16.mxu0 0
  %122 = vmatpush2.bf16.msra.mxu0 0
  %123 = vmatprep.subr.bf16.mxu0 0
  %124 = vmatpush2.bf16.msra.mxu0 0
  %125 = vmatprep.subr.bf16.mxu0 0
  %126 = vmatpush2.bf16.msra.mxu0 0
  %127 = vmatprep.subr.bf16.mxu0 0
  %128 = vmatpush2.bf16.msra.mxu0 0
  %129 = vmatprep.subr.bf16.mxu0 0
  %130 = vmatpush2.bf16.msra.mxu0 0
  %131 = vmatprep.mubr.bf16.mxu0 0
  %132 = vmatmul.mubr.bf16.gmra.mxu0 %v34
  %v133 = vpop.f32.mrf.mxu0
  %v134 = vadd.f32 0.0, %v133
  %v135 = vpop.f32.mrf.mxu0
  %v136 = vpop.f32.mrf.mxu0
  %v137 = vadd.f32 0.0, %v136
  %v138 = vpop.f32.mrf.mxu0
  %139 = vdwg.mxu0
  %v140 = vadd.f32 %v30, %v134
  %v141 = vadd.f32 %v31, %v137
  %142 = vst [vmem:[#allocation2] sm:$0xff] %v140
  %143 = vst [vmem:[#allocation2 + $0x8] sm:$0xff] %v141
  // Predicated region
  $region30: #{_lambda_.38} parent=0 // pred_check
    %p144 = pneg %p24
  $region31: #{_lambda_.38} parent=0 // pred_check_branch
    %146 = sbr.rel (%p144) target = $region33
  $region32: #{_lambda_.38} parent=0 // pred_region
    %v147 = vld [vmem:[#allocation2] sm:$0xff]
    %v148 = vld [vmem:[#allocation2 + $0x8] sm:$0xff]
    %v149 = vld [vmem:[%s2] sm:$0x1]
    %v151 = vlaneseq
    %v152 = vshrl.u32 %v151, 7
    %v153 = vsub.s32 0, %v152
    %v154 = vrot.slane %v149, %v153
    %v156 = vadd.f32 %v147, %v154
    %v157 = vadd.f32 %v148, %v154
    %v158 = vlaneseq
    %v159 = vand.u32 %v158, 127
    %vm160 = vcmp.lt.s32.totalorder %v159, 32
    %v161 = vsel %vm160, %v156, 0.0
    %v162 = vsel %vm160, %v157, 0.0
    %163 = vadd.xlane.f32.xlu0 %v161
    %v164 = vpop.xlane.xlu0 %163
    %165 = vadd.xlane.f32.xlu0 %v162
    %v166 = vpop.xlane.xlu0 %165
    %v167 = vmul.f32 %v164, 0.03125
    %v168 = vmul.f32 %v166, 0.03125
    %v169 = vsub.f32 %v156, %v167
    %v170 = vsub.f32 %v157, %v168
    %v171 = vsel %vm160, %v169, 0.0
    %v172 = vsel %vm160, %v170, 0.0
    %v173 = vmul.f32 %v171, %v171
    %v174 = vmul.f32 %v172, %v172
    %175 = vadd.xlane.f32.xlu0 %v173
    %v176 = vpop.xlane.xlu0 %175
    %177 = vadd.xlane.f32.xlu0 %v174
    %v178 = vpop.xlane.xlu0 %177
    %v179 = vmul.f32 %v176, 0.03125
    %v180 = vmul.f32 %v178, 0.03125
    %v181 = vadd.f32 %v179, 1e-05
    %v182 = vadd.f32 %v180, 1e-05
    %v183 = vrsqrt.pop %v181
    %v184 = vrsqrt.pop %v182
    %v185 = vmul.f32 %v171, %v183
    %v186 = vmul.f32 %v172, %v184
    %v187 = vld [vmem:[%s3] sm:$0x1]
    %v189 = vlaneseq
    %v190 = vshrl.u32 %v189, 7
    %v191 = vsub.s32 0, %v190
    %v192 = vrot.slane %v187, %v191
    %v194 = vmul.f32 %v185, %v192
    %v195 = vmul.f32 %v186, %v192
    %v196 = vld [vmem:[%s4] sm:$0x1]
    %v198 = vlaneseq
    %v199 = vshrl.u32 %v198, 7
    %v200 = vsub.s32 0, %v199
    %v201 = vrot.slane %v196, %v200
    %v203 = vadd.f32 %v194, %v201
    %v204 = vadd.f32 %v195, %v201
    %v205 = vld [vmem:[%s5] sm:$0xff]
    %v206 = vld [vmem:[%s5 + $0x8] sm:$0xff]
    %v207 = vadd.f32 %v205, %v203
    %v208 = vadd.f32 %v206, %v204
    %209 = vst [vmem:[%s6] sm:$0xff] %v207
    %210 = vst [vmem:[%s6 + $0x8] sm:$0xff] %v208
  $region33: #{_lambda_.38} parent=0 // pred_fallthru
    _
  // Predicated region
  $region34: #{_lambda_.38} parent=0 // pred_check
    _
  $region35: #{_lambda_.38} parent=0 // pred_check_branch
    %212 = sbr.rel (0) target = $region37
  $region36: #{_lambda_.38} parent=0 // pred_region
    _
  $region37: #{_lambda_.38} parent=0 // pred_fallthru
    _
  // Predicated region
  $region38: #{_lambda_.38} parent=0 // pred_check
    _
  $region39: #{_lambda_.38} parent=0 // pred_check_branch
    %214 = sbr.rel (0) target = $region41
  $region40: #{_lambda_.38} parent=0 // pred_region
    _
  $region41: #{_lambda_.38} parent=0 // pred_fallthru
    _

// kernel: _lambda_.51
$region0: #{_lambda_.51}
  #allocation0 [shape = 'u32[]', space=smem, size = 0x4, offset = 0x4, fixed_abs, tag = 'smem constant byte address 0x4 - core index']
  #allocation1 [shape = 'u32[144,128]{1,0:T(1,128)}', space=vmem, size = 0x12000, scoped, tag = 'internal scratch']
  #allocation2 [shape = 'f32[8,128]{1,0:T(8,128)}', space=vmem, size = 0x1000, scoped, tag = 'scratch operand']
  %s0 = inlined_call_operand.vmem [shape: f32[8,128], index: 0, kind: input, shape index: {}]
  %s1 = inlined_call_operand.vmem [shape: bf16[128,128], index: 1, kind: input, shape index: {}]
  %s2 = inlined_call_operand.vmem [shape: f32[1,128], index: 2, kind: input, shape index: {}]
  %s3 = inlined_call_operand.vmem [shape: f32[8,128], index: 3, kind: output, shape index: {}]
  %s4 = sld [smem:[#allocation0]]
  $region30: #{_lambda_.51} parent=0
    _
  %s6 = ssub.s32 1, %s4
  %s7 = scalar_select 0, %s6, %s4
  // Predicated region
  $region2: #{_lambda_.51} parent=0 // pred_check
    _
  $region3: #{_lambda_.51} parent=0 // pred_check_branch
    %9 = sbr.rel (0) target = $region5
  $region4: #{_lambda_.51} parent=0 // pred_region
    _
  $region5: #{_lambda_.51} parent=0 // pred_fallthru
    _
  // Predicated region
  $region6: #{_lambda_.51} parent=0 // pred_check
    _
  $region7: #{_lambda_.51} parent=0 // pred_check_branch
    %11 = sbr.rel (0) target = $region9
  $region8: #{_lambda_.51} parent=0 // pred_region
    _
  $region9: #{_lambda_.51} parent=0 // pred_fallthru
    _
  // Predicated region
  $region10: #{_lambda_.51} parent=0 // pred_check
    _
  $region11: #{_lambda_.51} parent=0 // pred_check_branch
    %13 = sbr.rel (0) target = $region13
  $region12: #{_lambda_.51} parent=0 // pred_region
    _
  $region13: #{_lambda_.51} parent=0 // pred_fallthru
    _
  %p15 = scmp.eq.s32.totalorder 0, 0
  // Predicated region
  $region14: #{_lambda_.51} parent=0 // pred_check
    %p16 = pneg %p15
  $region15: #{_lambda_.51} parent=0 // pred_check_branch
    %18 = sbr.rel (%p16) target = $region17
  $region16: #{_lambda_.51} parent=0 // pred_region
    %19 = vst [vmem:[#allocation2] sm:$0xff] 0.0
  $region17: #{_lambda_.51} parent=0 // pred_fallthru
    _
  %v20 = vld [vmem:[#allocation2] sm:$0xff]
  %v21 = vld [vmem:[%s0] sm:$0xff]
  %v22 = vpack.c.bf16 %v21, %v21
  %v23 = vld [vmem:[%s1] sm:$0xf]
  %v24 = vld [vmem:[%s1 + $0x4] sm:$0xf]
  %v25 = vld [vmem:[%s1 + $0x8] sm:$0xf]
  %v26 = vld [vmem:[%s1 + $0xc] sm:$0xf]
  %v27 = vld [vmem:[%s1 + $0x10] sm:$0xf]
  %v28 = vld [vmem:[%s1 + $0x14] sm:$0xf]
  %v29 = vld [vmem:[%s1 + $0x18] sm:$0xf]
  %v30 = vld [vmem:[%s1 + $0x1c] sm:$0xf]
  %v31 = vld [vmem:[%s1 + $0x20] sm:$0xf]
  %v32 = vld [vmem:[%s1 + $0x24] sm:$0xf]
  %v33 = vld [vmem:[%s1 + $0x28] sm:$0xf]
  %v34 = vld [vmem:[%s1 + $0x2c] sm:$0xf]
  %v35 = vld [vmem:[%s1 + $0x30] sm:$0xf]
  %v36 = vld [vmem:[%s1 + $0x34] sm:$0xf]
  %v37 = vld [vmem:[%s1 + $0x38] sm:$0xf]
  %v38 = vld [vmem:[%s1 + $0x3c] sm:$0xf]
  %v55 = vunpack.c.l.b16 %v23
  %v56 = vunpack.c.l.b16 %v24
  %v57 = vunpack.c.l.b16 %v25
  %v58 = vunpack.c.l.b16 %v26
  %v59 = vunpack.c.l.b16 %v27
  %v60 = vunpack.c.l.b16 %v28
  %v61 = vunpack.c.l.b16 %v29
  %v62 = vunpack.c.l.b16 %v30
  %v63 = vunpack.c.l.b16 %v31
  %v64 = vunpack.c.l.b16 %v32
  %v65 = vunpack.c.l.b16 %v33
  %v66 = vunpack.c.l.b16 %v34
  %v67 = vunpack.c.l.b16 %v35
  %v68 = vunpack.c.l.b16 %v36
  %v69 = vunpack.c.l.b16 %v37
  %v70 = vunpack.c.l.b16 %v38
  %v71 = vpack.c.b16 %v56, %v55
  %v72 = vpack.c.b16 %v58, %v57
  %v73 = vpack.c.b16 %v60, %v59
  %v74 = vpack.c.b16 %v62, %v61
  %v75 = vpack.c.b16 %v64, %v63
  %v76 = vpack.c.b16 %v66, %v65
  %v77 = vpack.c.b16 %v68, %v67
  %v78 = vpack.c.b16 %v70, %v69
  %87 = vmatprep.subr.bf16.mxu0 0
  %88 = vmatpush1.bf16.msra.mxu0 %v78
  %89 = vmatprep.subr.bf16.mxu0 0
  %90 = vmatpush1.bf16.msra.mxu0 %v77
  %91 = vmatprep.subr.bf16.mxu0 0
  %92 = vmatpush1.bf16.msra.mxu0 %v76
  %93 = vmatprep.subr.bf16.mxu0 0
  %94 = vmatpush1.bf16.msra.mxu0 %v75
  %95 = vmatprep.subr.bf16.mxu0 0
  %96 = vmatpush1.bf16.msra.mxu0 %v74
  %97 = vmatprep.subr.bf16.mxu0 0
  %98 = vmatpush1.bf16.msra.mxu0 %v73
  %99 = vmatprep.subr.bf16.mxu0 0
  %100 = vmatpush1.bf16.msra.mxu0 %v72
  %101 = vmatprep.subr.bf16.mxu0 0
  %102 = vmatpush1.bf16.msra.mxu0 %v71
  %103 = vmatprep.subr.bf16.mxu0 0
  %104 = vmatpush2.bf16.msra.mxu0 0
  %105 = vmatprep.subr.bf16.mxu0 0
  %106 = vmatpush2.bf16.msra.mxu0 0
  %107 = vmatprep.subr.bf16.mxu0 0
  %108 = vmatpush2.bf16.msra.mxu0 0
  %109 = vmatprep.subr.bf16.mxu0 0
  %110 = vmatpush2.bf16.msra.mxu0 0
  %111 = vmatprep.subr.bf16.mxu0 0
  %112 = vmatpush2.bf16.msra.mxu0 0
  %113 = vmatprep.subr.bf16.mxu0 0
  %114 = vmatpush2.bf16.msra.mxu0 0
  %115 = vmatprep.subr.bf16.mxu0 0
  %116 = vmatpush2.bf16.msra.mxu0 0
  %117 = vmatprep.subr.bf16.mxu0 0
  %118 = vmatpush2.bf16.msra.mxu0 0
  %119 = vmatprep.mubr.bf16.mxu0 0
  %120 = vmatmul.mubr.bf16.gmra.mxu0 %v22
  %v121 = vpop.f32.mrf.mxu0
  %v122 = vadd.f32 0.0, %v121
  %v123 = vpop.f32.mrf.mxu0
  %v124 = vpop.f32.mrf.mxu0
  %v125 = vpop.f32.mrf.mxu0
  %126 = vdwg.mxu0
  %v127 = vadd.f32 %v20, %v122
  %128 = vst [vmem:[#allocation2] sm:$0xff] %v127
  // Predicated region
  $region18: #{_lambda_.51} parent=0 // pred_check
    %p129 = pneg %p15
  $region19: #{_lambda_.51} parent=0 // pred_check_branch
    %131 = sbr.rel (%p129) target = $region21
  $region20: #{_lambda_.51} parent=0 // pred_region
    %v132 = vld [vmem:[#allocation2] sm:$0xff]
    %v133 = vld [vmem:[%s2] sm:$0x1]
    %v135 = vlaneseq
    %v136 = vshrl.u32 %v135, 7
    %v137 = vsub.s32 0, %v136
    %v138 = vrot.slane %v133, %v137
    %v140 = vadd.f32 %v132, %v138
    %141 = vst [vmem:[%s3] sm:$0xff] %v140
  $region21: #{_lambda_.51} parent=0 // pred_fallthru
    _
  // Predicated region
  $region22: #{_lambda_.51} parent=0 // pred_check
    _
  $region23: #{_lambda_.51} parent=0 // pred_check_branch
    %143 = sbr.rel (0) target = $region25
  $region24: #{_lambda_.51} parent=0 // pred_region
    _
  $region25: #{_lambda_.51} parent=0 // pred_fallthru
    _
  // Predicated region
  $region26: #{_lambda_.51} parent=0 // pred_check
    _
  $region27: #{_lambda_.51} parent=0 // pred_check_branch
    %145 = sbr.rel (0) target = $region29
  $region28: #{_lambda_.51} parent=0 // pred_region
    _
  $region29: #{_lambda_.51} parent=0 // pred_fallthru
    _

</llo_original>
